<compile_context>
chip_gen: v7x
topology: tpu7x:2x2x1
jax: 0.10.0
libtpu: 0.0.40
codegen_flags: <defaults>
</compile_context>

<pallas_src>
import functools

import jax
import jax.numpy as jnp
from jax import lax
from jax.experimental import pallas as pl
from jax.experimental.pallas import tpu as pltpu


# ------------------------------ fused branch kernel -------------------------

def _make_branch_kernel(H, W, TR, T, hb, final_relu):
    WH = W + 2      # intermediate cols   (abs col  = col - 1)
    RX = TR + 4     # padded-frame rows   (abs row  = row0 - 2 + row)
    RH = TR + 2     # intermediate rows   (abs row  = row0 - 1 + row)
    C = 64

    def kernel(x_ref, xt_ref, xb_ref, f_ref,
               w1_ref, b1_ref, w2_ref, b2_ref, w3_ref, b3_ref,
               o_ref, fr_ref, g_ref):
        t = pl.program_id(1)
        row0 = t * TR

        # ---- assemble the zero-padded input frame for this tile -------------
        # frame: (RX rows, 3 channels on sublanes, W+4 cols on lanes)
        zc = jnp.zeros((RX, 3, 2), jnp.float32)
        fr_ref[:, :, pl.ds(0, 2)] = zc                     # left  zero pad
        fr_ref[:, :, pl.ds(W + 2, 2)] = zc                 # right zero pad
        fr_ref[pl.ds(2, TR), :, pl.ds(2, W)] = x_ref[0]    # tile body
        zr = jnp.zeros((2, 3, W), jnp.float32)
        fr_ref[pl.ds(0, 2), :, pl.ds(2, W)] = zr           # rows row0-2, row0-1
        fr_ref[pl.ds(TR + 2, 2), :, pl.ds(2, W)] = zr      # rows row0+TR, +TR+1

        @pl.when(t > 0)
        def _():                                           # halo rows above exist
            fr_ref[pl.ds(0, 2), :, pl.ds(2, W)] = xt_ref[0][hb - 2:hb, :, :]

        @pl.when(t < T - 1)
        def _():                                           # halo rows below exist
            fr_ref[pl.ds(TR + 2, 2), :, pl.ds(2, W)] = xb_ref[0][0:2, :, :]

        # ---- conv1 3x3 (3 -> 64): im2col gather + ONE batched MXU matmul ----
        for dy in range(3):
            for dx in range(3):
                tap = dy * 3 + dx
                g_ref[:, pl.ds(3 * tap, 3), :] = fr_ref[pl.ds(dy, RH), :,
                                                        pl.ds(dx, WH)]
        g = g_ref[...].astype(jnp.bfloat16)                          # (RH,27,WH)
        w1b = jnp.broadcast_to(w1_ref[...][None], (RH, C, 27))
        h = jnp.einsum("rok,rkw->row", w1b, g,
                       preferred_element_type=jnp.float32)           # (RH,64,WH)
        h = jnp.maximum(h + b1_ref[...], 0.0)

        # ---- conv2 1x1 (64 -> 64) --------------------------------------------
        w2b = jnp.broadcast_to(w2_ref[...][None], (RH, C, C))
        h = jnp.einsum("rok,rkw->row", w2b, h.astype(jnp.bfloat16),
                       preferred_element_type=jnp.float32)
        h = jnp.maximum(h + b2_ref[...], 0.0)

        # conv3 zero-pads its *input*: recomputed-halo positions lying outside
        # the image must contribute exactly zero.
        r_ids = lax.broadcasted_iota(jnp.int32, (RH, 1, WH), 0) + (row0 - 1)
        c_ids = lax.broadcasted_iota(jnp.int32, (RH, 1, WH), 2)
        valid = (r_ids >= 0) & (r_ids < H) & (c_ids >= 1) & (c_ids <= W)
        h = h * valid.astype(h.dtype)

        # ---- conv3 3x3 (64 -> 3): ONE matmul + 9 shifted 3-row adds ----------
        w3b = jnp.broadcast_to(w3_ref[...][None], (RH, 27, C))
        z3 = jnp.einsum("rok,rkw->row", w3b, h.astype(jnp.bfloat16),
                        preferred_element_type=jnp.float32)          # (RH,27,WH)
        y = None
        for dy in range(3):
            for dx in range(3):
                k = 3 * (dy * 3 + dx)
                contrib = z3[dy:dy + TR, k:k + 3, dx:dx + W]
                y = contrib if y is None else y + contrib            # (TR,3,W)
        y = y + b3_ref[...]
        if final_relu:
            y = jnp.maximum(y, 0.0)
        y = y + f_ref[0]                                             # residual
        o_ref[0] = y.astype(o_ref.dtype)

    return kernel


def _tile_rows_heuristic(H, W):
    """Largest row-tile (multiple of 8, divides H) under a ~32 MB working set."""
    if H % 8 != 0:
        return H
    budget = 32 * 1024 * 1024
    candidates = [H] + [c for c in (256, 128, 64, 32, 16, 8) if c < H]
    for tr in candidates:
        if H % tr != 0 or tr % 8 != 0:
            continue
        rh, wh = tr + 2, W + 2
        interm = rh * wh * (64 * 4 + 64 * 2 + 27 * 4 + 27 * 4 + 27 * 2)
        frame = (tr + 4) * (W + 4) * 3 * 4
        blocks = 8 * (tr * 3 * W * 4) + 4 * (8 * 3 * W * 4)
        if interm + frame + blocks <= budget:
            return tr
    return 8


def fused_branch(x, feature, bp, final_relu, *, tile_rows=None):
    """x, feature: (B, H, 3, W) float32 activations.  bp: prepared params."""
    B, H, _, W = x.shape
    if tile_rows is None:
        tile_rows = _tile_rows_heuristic(H, W)
    if H % tile_rows != 0 or (tile_rows % 8 != 0 and tile_rows != H):
        tile_rows = H
    TR = tile_rows
    T = H // TR
    hb = 8 if H % 8 == 0 else H            # halo block height (hb | TR, hb | H)
    R8h = TR // hb
    nbh = H // hb - 1

    w1, b1, w2, b2, w3, b3 = bp
    kernel = _make_branch_kernel(H, W, TR, T, hb, final_relu)

    rh, wh = TR + 2, W + 2
    flops = 2 * B * T * rh * wh * 64 * (27 + 64 + 27)
    bytes_accessed = 4 * (3 * x.size) + 2 * (w1.size + w2.size + w3.size) + 4 * (
        b1.size + b2.size + b3.size)

    def tile_map(b, t):
        return (b, t, 0, 0)

    def top_map(b, t):                      # 8-row block just above the tile
        return (b, jnp.maximum(t * R8h - 1, 0), 0, 0)

    def bot_map(b, t):                      # 8-row block just below the tile
        return (b, jnp.minimum((t + 1) * R8h, nbh), 0, 0)

    return pl.pallas_call(
        kernel,
        out_shape=jax.ShapeDtypeStruct((B, H, 3, W), x.dtype),
        grid=(B, T),
        in_specs=[
            pl.BlockSpec((1, TR, 3, W), tile_map),        # x, tile rows
            pl.BlockSpec((1, hb, 3, W), top_map),         # x, rows above (clamped)
            pl.BlockSpec((1, hb, 3, W), bot_map),         # x, rows below (clamped)
            pl.BlockSpec((1, TR, 3, W), tile_map),        # residual feature
            pl.BlockSpec((64, 27), lambda b, t: (0, 0)),
            pl.BlockSpec((1, 64, 1), lambda b, t: (0, 0, 0)),
            pl.BlockSpec((64, 64), lambda b, t: (0, 0)),
            pl.BlockSpec((1, 64, 1), lambda b, t: (0, 0, 0)),
            pl.BlockSpec((27, 64), lambda b, t: (0, 0)),
            pl.BlockSpec((1, 3, 1), lambda b, t: (0, 0, 0)),
        ],
        out_specs=pl.BlockSpec((1, TR, 3, W), tile_map),
        scratch_shapes=[
            pltpu.VMEM((TR + 4, 3, W + 4), jnp.float32),   # zero-padded input frame
            pltpu.VMEM((TR + 2, 27, W + 2), jnp.float32),  # conv1 im2col gather
        ],
        compiler_params=pltpu.CompilerParams(
            dimension_semantics=("parallel", "parallel"),
            vmem_limit_bytes=64 * 1024 * 1024),
        cost_estimate=pl.CostEstimate(
            flops=flops, transcendentals=0, bytes_accessed=bytes_accessed),
    )(x, x, x, feature, w1, b1, w2, b2, w3, b3)


# ----------------------------- parameter setup -------------------------------

def _fold_bn(gamma, beta, mean, var, eps=1e-5):
    scale = gamma / jnp.sqrt(var + eps)
    bias = beta - mean * scale
    return scale, bias


def init_branch_params(key, with_final_bn):
    """Deterministic stand-ins for the PyTorch conv/BN parameters."""
    keys = jax.random.split(key, 6)

    def conv_w(k, kh, kw, cin, cout):
        fan_in = kh * kw * cin
        return jax.random.normal(k, (kh, kw, cin, cout), jnp.float32) / jnp.sqrt(
            jnp.float32(fan_in))

    def bn_params(k, c):
        k1, k2, k3 = jax.random.split(k, 3)
        gamma = 1.0 + 0.1 * jax.random.normal(k1, (c,), jnp.float32)
        beta = 0.1 * jax.random.normal(k2, (c,), jnp.float32)
        mean = 0.1 * jax.random.normal(k3, (c,), jnp.float32)
        var = jnp.ones((c,), jnp.float32)
        return _fold_bn(gamma, beta, mean, var)

    p = {}
    p["w0"] = conv_w(keys[0], 3, 3, 3, 64)
    p["s0"], p["b0"] = bn_params(keys[1], 64)
    p["w1"] = conv_w(keys[2], 1, 1, 64, 64)
    p["s1"], p["b1"] = bn_params(keys[3], 64)
    p["w2"] = conv_w(keys[4], 3, 3, 64, 3)
    if with_final_bn:
        p["s2"], p["b2"] = bn_params(keys[5], 3)
    else:
        p["s2"] = jnp.ones((3,), jnp.float32)
        p["b2"] = jnp.zeros((3,), jnp.float32)
    return p


def prepare_branch_params(p):
    """Fold BN scales into the conv weights and lay them out for the in-kernel
    matmuls (bf16 MXU operands; f32 biases)."""
    # conv1 3x3: (kh,kw,cin,cout) -> (cout, (dy*3+dx)*3 + cin)
    w1 = (p["w0"] * p["s0"]).transpose(3, 0, 1, 2).reshape(64, 27)
    b1 = p["b0"].reshape(1, 64, 1)
    # conv2 1x1: (1,1,cin,cout) -> (cout, cin)
    w2 = (p["w1"] * p["s1"]).reshape(64, 64).T
    b2 = p["b1"].reshape(1, 64, 1)
    # conv3 3x3: (kh,kw,cin,cout) -> ((dy*3+dx)*3 + cout, cin)
    w3 = (p["w2"] * p["s2"]).transpose(0, 1, 3, 2).reshape(27, 64)
    b3 = p["b2"].reshape(1, 3, 1)
    return (w1.astype(jnp.bfloat16), b1,
            w2.astype(jnp.bfloat16), b2,
            w3.astype(jnp.bfloat16), b3)


# ------------------------------- forward pass --------------------------------

def enhancement_net(x_nchw, params, *, tile_rows=None):
    # NCHW -> (B, H, 3, W): rows outer, channels on sublanes, width on lanes.
    x = jnp.transpose(x_nchw, (0, 2, 1, 3))
    feature = x
    x11 = fused_branch(x, feature, params["branch0"], True, tile_rows=tile_rows)
    x21 = fused_branch(x11, feature, params["branch1"], True, tile_rows=tile_rows)
    x31 = fused_branch(x21, feature, params["branch2"], False, tile_rows=tile_rows)
    return jnp.transpose(x31, (0, 2, 1, 3))               # back to NCHW


if __name__ == "__main__":
    key = jax.random.PRNGKey(0)
    kx, k0, k1, k2 = jax.random.split(key, 4)
    x = jax.random.normal(kx, (2, 3, 16, 16), jnp.float32)     # NCHW like PyTorch
    params = {
        "branch0": prepare_branch_params(init_branch_params(k0, True)),
        "branch1": prepare_branch_params(init_branch_params(k1, True)),
        "branch2": prepare_branch_params(init_branch_params(k2, False)),
    }
    # tile_rows=8 -> two row tiles per image, exercising the halo path.
    fwd = jax.jit(functools.partial(enhancement_net, tile_rows=8))
    out = fwd(x, params)
    jax.block_until_ready(out)
    assert out.shape == x.shape and out.dtype == x.dtype
    print("KERNEL_OK")
</pallas_src>

<mosaic_0001>
module attributes {stable_mosaic.version = 11 : i64} {
  func.func @kernel(%arg0: i32, %arg1: i32, %arg2: memref<1x8x3x16xf32, #tpu.memory_space<vmem>>, %arg3: memref<1x8x3x16xf32, #tpu.memory_space<vmem>>, %arg4: memref<1x8x3x16xf32, #tpu.memory_space<vmem>>, %arg5: memref<1x8x3x16xf32, #tpu.memory_space<vmem>>, %arg6: memref<64x27xbf16, #tpu.memory_space<vmem>>, %arg7: memref<1x64x1xf32, #tpu.memory_space<vmem>>, %arg8: memref<64x64xbf16, #tpu.memory_space<vmem>>, %arg9: memref<1x64x1xf32, #tpu.memory_space<vmem>>, %arg10: memref<27x64xbf16, #tpu.memory_space<vmem>>, %arg11: memref<1x3x1xf32, #tpu.memory_space<vmem>>, %arg12: memref<1x8x3x16xf32, #tpu.memory_space<vmem>>, %arg13: memref<12x3x20xf32, #tpu.memory_space<vmem>>, %arg14: memref<10x27x18xf32, #tpu.memory_space<vmem>>) attributes {dimension_semantics = [#tpu.dimension_semantics<parallel>, #tpu.dimension_semantics<parallel>], iteration_bounds = array<i64: 2, 2>, scalar_prefetch = 0 : i64, scratch_operands = 2 : i64, tpu.core_type = #tpu.core_type<tc>, window_params = [{transform_indices = @transform_0, window_bounds = array<i64: 1, 8, 3, 16>}, {transform_indices = @transform_1, window_bounds = array<i64: 1, 8, 3, 16>}, {transform_indices = @transform_2, window_bounds = array<i64: 1, 8, 3, 16>}, {transform_indices = @transform_3, window_bounds = array<i64: 1, 8, 3, 16>}, {pipeline_mode = #tpu.pipeline_mode<synchronous>, transform_indices = @transform_4, window_bounds = array<i64: 64, 27>}, {pipeline_mode = #tpu.pipeline_mode<synchronous>, transform_indices = @transform_5, window_bounds = array<i64: 1, 64, 1>}, {pipeline_mode = #tpu.pipeline_mode<synchronous>, transform_indices = @transform_6, window_bounds = array<i64: 64, 64>}, {pipeline_mode = #tpu.pipeline_mode<synchronous>, transform_indices = @transform_7, window_bounds = array<i64: 1, 64, 1>}, {pipeline_mode = #tpu.pipeline_mode<synchronous>, transform_indices = @transform_8, window_bounds = array<i64: 27, 64>}, {pipeline_mode = #tpu.pipeline_mode<synchronous>, transform_indices = @transform_9, window_bounds = array<i64: 1, 3, 1>}, {transform_indices = @transform_10, window_bounds = array<i64: 1, 8, 3, 16>}]} {
    %c8_i32 = arith.constant 8 : i32
    %0 = arith.muli %arg1, %c8_i32 : i32
    %cst = arith.constant 0.000000e+00 : f32
    %1 = vector.broadcast %cst : f32 to vector<12x3x2xf32>
    %c0 = arith.constant 0 : index
    %c0_0 = arith.constant 0 : index
    %c0_1 = arith.constant 0 : index
    %2 = vector.load %arg13[%c0, %c0_0, %c0_1] : memref<12x3x20xf32, #tpu.memory_space<vmem>>, vector<12x3x2xf32>
    tpu.vector_store %arg13[%c0, %c0_0, %c0_1], %1 {strides = array<i32>} : memref<12x3x20xf32, #tpu.memory_space<vmem>>, vector<12x3x2xf32>,
    %c0_2 = arith.constant 0 : index
    %c0_3 = arith.constant 0 : index
    %c18 = arith.constant 18 : index
    %3 = vector.load %arg13[%c0_2, %c0_3, %c18] : memref<12x3x20xf32, #tpu.memory_space<vmem>>, vector<12x3x2xf32>
    tpu.vector_store %arg13[%c0_2, %c0_3, %c18], %1 {strides = array<i32>} : memref<12x3x20xf32, #tpu.memory_space<vmem>>, vector<12x3x2xf32>,
    %c0_4 = arith.constant 0 : index
    %c0_5 = arith.constant 0 : index
    %c0_6 = arith.constant 0 : index
    %c0_7 = arith.constant 0 : index
    %4 = vector.load %arg2[%c0_4, %c0_5, %c0_6, %c0_7] : memref<1x8x3x16xf32, #tpu.memory_space<vmem>>, vector<1x8x3x16xf32>
    %5 = vector.shape_cast %4 : vector<1x8x3x16xf32> to vector<8x3x16xf32>
    %c2 = arith.constant 2 : index
    %c0_8 = arith.constant 0 : index
    %c2_9 = arith.constant 2 : index
    %6 = vector.load %arg13[%c2, %c0_8, %c2_9] : memref<12x3x20xf32, #tpu.memory_space<vmem>>, vector<8x3x16xf32>
    tpu.vector_store %arg13[%c2, %c0_8, %c2_9], %5 {strides = array<i32>} : memref<12x3x20xf32, #tpu.memory_space<vmem>>, vector<8x3x16xf32>,
    %cst_10 = arith.constant 0.000000e+00 : f32
    %7 = vector.broadcast %cst_10 : f32 to vector<2x3x16xf32>
    %c0_11 = arith.constant 0 : index
    %c0_12 = arith.constant 0 : index
    %c2_13 = arith.constant 2 : index
    %8 = vector.load %arg13[%c0_11, %c0_12, %c2_13] : memref<12x3x20xf32, #tpu.memory_space<vmem>>, vector<2x3x16xf32>
    tpu.vector_store %arg13[%c0_11, %c0_12, %c2_13], %7 {strides = array<i32>} : memref<12x3x20xf32, #tpu.memory_space<vmem>>, vector<2x3x16xf32>,
    %c10 = arith.constant 10 : index
    %c0_14 = arith.constant 0 : index
    %c2_15 = arith.constant 2 : index
    %9 = vector.load %arg13[%c10, %c0_14, %c2_15] : memref<12x3x20xf32, #tpu.memory_space<vmem>>, vector<2x3x16xf32>
    tpu.vector_store %arg13[%c10, %c0_14, %c2_15], %7 {strides = array<i32>} : memref<12x3x20xf32, #tpu.memory_space<vmem>>, vector<2x3x16xf32>,
    %c0_i32 = arith.constant 0 : i32
    %10 = arith.cmpi sgt, %arg1, %c0_i32 : i32
    %11 = arith.extui %10 : i1 to i32
    %c0_i32_16 = arith.constant 0 : i32
    %12 = arith.cmpi ne, %11, %c0_i32_16 : i32
    scf.if %12 {
      %c0_99 = arith.constant 0 : index
      %c0_100 = arith.constant 0 : index
      %c0_101 = arith.constant 0 : index
      %c0_102 = arith.constant 0 : index
      %109 = vector.load %arg3[%c0_99, %c0_100, %c0_101, %c0_102] : memref<1x8x3x16xf32, #tpu.memory_space<vmem>>, vector<1x8x3x16xf32>
      %110 = vector.shape_cast %109 : vector<1x8x3x16xf32> to vector<8x3x16xf32>
      %111 = vector.extract_strided_slice %110 {offsets = [6, 0, 0], sizes = [2, 3, 16], strides = [1, 1, 1]} : vector<8x3x16xf32> to vector<2x3x16xf32>
      %c0_103 = arith.constant 0 : index
      %c0_104 = arith.constant 0 : index
      %c2_105 = arith.constant 2 : index
      %112 = vector.load %arg13[%c0_103, %c0_104, %c2_105] : memref<12x3x20xf32, #tpu.memory_space<vmem>>, vector<2x3x16xf32>
      tpu.vector_store %arg13[%c0_103, %c0_104, %c2_105], %111 {strides = array<i32>} : memref<12x3x20xf32, #tpu.memory_space<vmem>>, vector<2x3x16xf32>,
    } else {
    }
    %c1_i32 = arith.constant 1 : i32
    %13 = arith.cmpi slt, %arg1, %c1_i32 : i32
    %14 = arith.extui %13 : i1 to i32
    %c0_i32_17 = arith.constant 0 : i32
    %15 = arith.cmpi ne, %14, %c0_i32_17 : i32
    scf.if %15 {
      %c0_99 = arith.constant 0 : index
      %c0_100 = arith.constant 0 : index
      %c0_101 = arith.constant 0 : index
      %c0_102 = arith.constant 0 : index
      %109 = vector.load %arg4[%c0_99, %c0_100, %c0_101, %c0_102] : memref<1x8x3x16xf32, #tpu.memory_space<vmem>>, vector<1x8x3x16xf32>
      %110 = vector.shape_cast %109 : vector<1x8x3x16xf32> to vector<8x3x16xf32>
      %111 = vector.extract_strided_slice %110 {offsets = [0, 0, 0], sizes = [2, 3, 16], strides = [1, 1, 1]} : vector<8x3x16xf32> to vector<2x3x16xf32>
      %c10_103 = arith.constant 10 : index
      %c0_104 = arith.constant 0 : index
      %c2_105 = arith.constant 2 : index
      %112 = vector.load %arg13[%c10_103, %c0_104, %c2_105] : memref<12x3x20xf32, #tpu.memory_space<vmem>>, vector<2x3x16xf32>
      tpu.vector_store %arg13[%c10_103, %c0_104, %c2_105], %111 {strides = array<i32>} : memref<12x3x20xf32, #tpu.memory_space<vmem>>, vector<2x3x16xf32>,
    } else {
    }
    %c0_18 = arith.constant 0 : index
    %c0_19 = arith.constant 0 : index
    %c0_20 = arith.constant 0 : index
    %16 = vector.load %arg13[%c0_18, %c0_19, %c0_20] : memref<12x3x20xf32, #tpu.memory_space<vmem>>, vector<10x3x18xf32>
    %c0_21 = arith.constant 0 : index
    %c0_22 = arith.constant 0 : index
    %c0_23 = arith.constant 0 : index
    %17 = vector.load %arg14[%c0_21, %c0_22, %c0_23] : memref<10x27x18xf32, #tpu.memory_space<vmem>>, vector<10x3x18xf32>
    tpu.vector_store %arg14[%c0_21, %c0_22, %c0_23], %16 {strides = array<i32>} : memref<10x27x18xf32, #tpu.memory_space<vmem>>, vector<10x3x18xf32>,
    %c0_24 = arith.constant 0 : index
    %c0_25 = arith.constant 0 : index
    %c1 = arith.constant 1 : index
    %18 = vector.load %arg13[%c0_24, %c0_25, %c1] : memref<12x3x20xf32, #tpu.memory_space<vmem>>, vector<10x3x18xf32>
    %c0_26 = arith.constant 0 : index
    %c3 = arith.constant 3 : index
    %c0_27 = arith.constant 0 : index
    %19 = vector.load %arg14[%c0_26, %c3, %c0_27] : memref<10x27x18xf32, #tpu.memory_space<vmem>>, vector<10x3x18xf32>
    tpu.vector_store %arg14[%c0_26, %c3, %c0_27], %18 {strides = array<i32>} : memref<10x27x18xf32, #tpu.memory_space<vmem>>, vector<10x3x18xf32>,
    %c0_28 = arith.constant 0 : index
    %c0_29 = arith.constant 0 : index
    %c2_30 = arith.constant 2 : index
    %20 = vector.load %arg13[%c0_28, %c0_29, %c2_30] : memref<12x3x20xf32, #tpu.memory_space<vmem>>, vector<10x3x18xf32>
    %c0_31 = arith.constant 0 : index
    %c6 = arith.constant 6 : index
    %c0_32 = arith.constant 0 : index
    %21 = vector.load %arg14[%c0_31, %c6, %c0_32] : memref<10x27x18xf32, #tpu.memory_space<vmem>>, vector<10x3x18xf32>
    tpu.vector_store %arg14[%c0_31, %c6, %c0_32], %20 {strides = array<i32>} : memref<10x27x18xf32, #tpu.memory_space<vmem>>, vector<10x3x18xf32>,
    %c1_33 = arith.constant 1 : index
    %c0_34 = arith.constant 0 : index
    %c0_35 = arith.constant 0 : index
    %22 = vector.load %arg13[%c1_33, %c0_34, %c0_35] : memref<12x3x20xf32, #tpu.memory_space<vmem>>, vector<10x3x18xf32>
    %c0_36 = arith.constant 0 : index
    %c9 = arith.constant 9 : index
    %c0_37 = arith.constant 0 : index
    %23 = vector.load %arg14[%c0_36, %c9, %c0_37] : memref<10x27x18xf32, #tpu.memory_space<vmem>>, vector<10x3x18xf32>
    tpu.vector_store %arg14[%c0_36, %c9, %c0_37], %22 {strides = array<i32>} : memref<10x27x18xf32, #tpu.memory_space<vmem>>, vector<10x3x18xf32>,
    %c1_38 = arith.constant 1 : index
    %c0_39 = arith.constant 0 : index
    %c1_40 = arith.constant 1 : index
    %24 = vector.load %arg13[%c1_38, %c0_39, %c1_40] : memref<12x3x20xf32, #tpu.memory_space<vmem>>, vector<10x3x18xf32>
    %c0_41 = arith.constant 0 : index
    %c12 = arith.constant 12 : index
    %c0_42 = arith.constant 0 : index
    %25 = vector.load %arg14[%c0_41, %c12, %c0_42] : memref<10x27x18xf32, #tpu.memory_space<vmem>>, vector<10x3x18xf32>
    tpu.vector_store %arg14[%c0_41, %c12, %c0_42], %24 {strides = array<i32>} : memref<10x27x18xf32, #tpu.memory_space<vmem>>, vector<10x3x18xf32>,
    %c1_43 = arith.constant 1 : index
    %c0_44 = arith.constant 0 : index
    %c2_45 = arith.constant 2 : index
    %26 = vector.load %arg13[%c1_43, %c0_44, %c2_45] : memref<12x3x20xf32, #tpu.memory_space<vmem>>, vector<10x3x18xf32>
    %c0_46 = arith.constant 0 : index
    %c15 = arith.constant 15 : index
    %c0_47 = arith.constant 0 : index
    %27 = vector.load %arg14[%c0_46, %c15, %c0_47] : memref<10x27x18xf32, #tpu.memory_space<vmem>>, vector<10x3x18xf32>
    tpu.vector_store %arg14[%c0_46, %c15, %c0_47], %26 {strides = array<i32>} : memref<10x27x18xf32, #tpu.memory_space<vmem>>, vector<10x3x18xf32>,
    %c2_48 = arith.constant 2 : index
    %c0_49 = arith.constant 0 : index
    %c0_50 = arith.constant 0 : index
    %28 = vector.load %arg13[%c2_48, %c0_49, %c0_50] : memref<12x3x20xf32, #tpu.memory_space<vmem>>, vector<10x3x18xf32>
    %c0_51 = arith.constant 0 : index
    %c18_52 = arith.constant 18 : index
    %c0_53 = arith.constant 0 : index
    %29 = vector.load %arg14[%c0_51, %c18_52, %c0_53] : memref<10x27x18xf32, #tpu.memory_space<vmem>>, vector<10x3x18xf32>
    tpu.vector_store %arg14[%c0_51, %c18_52, %c0_53], %28 {strides = array<i32>} : memref<10x27x18xf32, #tpu.memory_space<vmem>>, vector<10x3x18xf32>,
    %c2_54 = arith.constant 2 : index
    %c0_55 = arith.constant 0 : index
    %c1_56 = arith.constant 1 : index
    %30 = vector.load %arg13[%c2_54, %c0_55, %c1_56] : memref<12x3x20xf32, #tpu.memory_space<vmem>>, vector<10x3x18xf32>
    %c0_57 = arith.constant 0 : index
    %c21 = arith.constant 21 : index
    %c0_58 = arith.constant 0 : index
    %31 = vector.load %arg14[%c0_57, %c21, %c0_58] : memref<10x27x18xf32, #tpu.memory_space<vmem>>, vector<10x3x18xf32>
    tpu.vector_store %arg14[%c0_57, %c21, %c0_58], %30 {strides = array<i32>} : memref<10x27x18xf32, #tpu.memory_space<vmem>>, vector<10x3x18xf32>,
    %c2_59 = arith.constant 2 : index
    %c0_60 = arith.constant 0 : index
    %c2_61 = arith.constant 2 : index
    %32 = vector.load %arg13[%c2_59, %c0_60, %c2_61] : memref<12x3x20xf32, #tpu.memory_space<vmem>>, vector<10x3x18xf32>
    %c0_62 = arith.constant 0 : index
    %c24 = arith.constant 24 : index
    %c0_63 = arith.constant 0 : index
    %33 = vector.load %arg14[%c0_62, %c24, %c0_63] : memref<10x27x18xf32, #tpu.memory_space<vmem>>, vector<10x3x18xf32>
    tpu.vector_store %arg14[%c0_62, %c24, %c0_63], %32 {strides = array<i32>} : memref<10x27x18xf32, #tpu.memory_space<vmem>>, vector<10x3x18xf32>,
    %c0_64 = arith.constant 0 : index
    %c0_65 = arith.constant 0 : index
    %c0_66 = arith.constant 0 : index
    %34 = vector.load %arg14[%c0_64, %c0_65, %c0_66] : memref<10x27x18xf32, #tpu.memory_space<vmem>>, vector<10x27x18xf32>
    %35 = arith.truncf %34 : vector<10x27x18xf32> to vector<10x27x18xbf16>
    %c0_67 = arith.constant 0 : index
    %c0_68 = arith.constant 0 : index
    %36 = vector.load %arg6[%c0_67, %c0_68] : memref<64x27xbf16, #tpu.memory_space<vmem>>, vector<64x27xbf16>
    %37 = vector.shape_cast %36 : vector<64x27xbf16> to vector<1x64x27xbf16>
    %38 = vector.shape_cast %37 : vector<1x64x27xbf16> to vector<1x64x27xbf16>
    %39 = vector.broadcast %38 : vector<1x64x27xbf16> to vector<10x64x27xbf16>
    "tpu.trace_start"() <{level = 10 : i32, message = "rok,rkw->row"}> : () -> ()
    %cst_69 = arith.constant dense<0.000000e+00> : vector<10x64x18xf32>
    %40 = tpu.matmul %39, %35, %cst_69 {dimension_numbers = #tpu.dot_dimension_numbers<[2], [1], [1], [2], [0, 0, 0, 1, 1, 2], [0], [0]>} : vector<10x64x27xbf16>, vector<10x27x18xbf16>, vector<10x64x18xf32> -> vector<10x64x18xf32>
    "tpu.trace_stop"() : () -> ()
    %c0_70 = arith.constant 0 : index
    %c0_71 = arith.constant 0 : index
    %c0_72 = arith.constant 0 : index
    %41 = vector.load %arg7[%c0_70, %c0_71, %c0_72] : memref<1x64x1xf32, #tpu.memory_space<vmem>>, vector<1x64x1xf32>
    %42 = vector.broadcast %41 : vector<1x64x1xf32> to vector<10x64x18xf32>
    %43 = arith.addf %40, %42 : vector<10x64x18xf32>
    %cst_73 = arith.constant 0.000000e+00 : f32
    %44 = vector.broadcast %cst_73 : f32 to vector<10x64x18xf32>
    %45 = arith.maximumf %43, %44 : vector<10x64x18xf32>
    %c0_74 = arith.constant 0 : index
    %c0_75 = arith.constant 0 : index
    %46 = vector.load %arg8[%c0_74, %c0_75] : memref<64x64xbf16, #tpu.memory_space<vmem>>, vector<64x64xbf16>
    %47 = vector.shape_cast %46 : vector<64x64xbf16> to vector<1x64x64xbf16>
    %48 = vector.shape_cast %47 : vector<1x64x64xbf16> to vector<1x64x64xbf16>
    %49 = vector.broadcast %48 : vector<1x64x64xbf16> to vector<10x64x64xbf16>
    %50 = arith.truncf %45 : vector<10x64x18xf32> to vector<10x64x18xbf16>
    "tpu.trace_start"() <{level = 10 : i32, message = "rok,rkw->row"}> : () -> ()
    %cst_76 = arith.constant dense<0.000000e+00> : vector<10x64x18xf32>
    %51 = tpu.matmul %49, %50, %cst_76 {dimension_numbers = #tpu.dot_dimension_numbers<[2], [1], [1], [2], [0, 0, 0, 1, 1, 2], [0], [0]>} : vector<10x64x64xbf16>, vector<10x64x18xbf16>, vector<10x64x18xf32> -> vector<10x64x18xf32>
    "tpu.trace_stop"() : () -> ()
    %c0_77 = arith.constant 0 : index
    %c0_78 = arith.constant 0 : index
    %c0_79 = arith.constant 0 : index
    %52 = vector.load %arg9[%c0_77, %c0_78, %c0_79] : memref<1x64x1xf32, #tpu.memory_space<vmem>>, vector<1x64x1xf32>
    %53 = vector.broadcast %52 : vector<1x64x1xf32> to vector<10x64x18xf32>
    %54 = arith.addf %51, %53 : vector<10x64x18xf32>
    %cst_80 = arith.constant 0.000000e+00 : f32
    %55 = vector.broadcast %cst_80 : f32 to vector<10x64x18xf32>
    %56 = arith.maximumf %54, %55 : vector<10x64x18xf32>
    %57 = tpu.iota {dimensions = array<i32: 0>} : vector<10x1x18xi32>
    %c1_i32_81 = arith.constant 1 : i32
    %58 = arith.subi %0, %c1_i32_81 : i32
    %59 = vector.broadcast %58 : i32 to vector<10x1x18xi32>
    %60 = arith.addi %57, %59 : vector<10x1x18xi32>
    %61 = tpu.iota {dimensions = array<i32: 2>} : vector<10x1x18xi32>
    %c0_i32_82 = arith.constant 0 : i32
    %62 = vector.broadcast %c0_i32_82 : i32 to vector<10x1x18xi32>
    %63 = arith.cmpi sge, %60, %62 : vector<10x1x18xi32>
    %c16_i32 = arith.constant 16 : i32
    %64 = vector.broadcast %c16_i32 : i32 to vector<10x1x18xi32>
    %65 = arith.cmpi slt, %60, %64 : vector<10x1x18xi32>
    %66 = arith.andi %63, %65 : vector<10x1x18xi1>
    %c1_i32_83 = arith.constant 1 : i32
    %67 = vector.broadcast %c1_i32_83 : i32 to vector<10x1x18xi32>
    %68 = arith.cmpi sge, %61, %67 : vector<10x1x18xi32>
    %69 = arith.andi %66, %68 : vector<10x1x18xi1>
    %c16_i32_84 = arith.constant 16 : i32
    %70 = vector.broadcast %c16_i32_84 : i32 to vector<10x1x18xi32>
    %71 = arith.cmpi sle, %61, %70 : vector<10x1x18xi32>
    %72 = arith.andi %69, %71 : vector<10x1x18xi1>
    %73 = arith.extui %72 : vector<10x1x18xi1> to vector<10x1x18xi32>
    %74 = arith.sitofp %73 : vector<10x1x18xi32> to vector<10x1x18xf32>
    %75 = vector.broadcast %74 : vector<10x1x18xf32> to vector<10x64x18xf32>
    %76 = arith.mulf %56, %75 : vector<10x64x18xf32>
    %c0_85 = arith.constant 0 : index
    %c0_86 = arith.constant 0 : index
    %77 = vector.load %arg10[%c0_85, %c0_86] : memref<27x64xbf16, #tpu.memory_space<vmem>>, vector<27x64xbf16>
    %78 = vector.shape_cast %77 : vector<27x64xbf16> to vector<1x27x64xbf16>
    %79 = vector.shape_cast %78 : vector<1x27x64xbf16> to vector<1x27x64xbf16>
    %80 = vector.broadcast %79 : vector<1x27x64xbf16> to vector<10x27x64xbf16>
    %81 = arith.truncf %76 : vector<10x64x18xf32> to vector<10x64x18xbf16>
    "tpu.trace_start"() <{level = 10 : i32, message = "rok,rkw->row"}> : () -> ()
    %cst_87 = arith.constant dense<0.000000e+00> : vector<10x27x18xf32>
    %82 = tpu.matmul %80, %81, %cst_87 {dimension_numbers = #tpu.dot_dimension_numbers<[2], [1], [1], [2], [0, 0, 0, 1, 1, 2], [0], [0]>} : vector<10x27x64xbf16>, vector<10x64x18xbf16>, vector<10x27x18xf32> -> vector<10x27x18xf32>
    "tpu.trace_stop"() : () -> ()
    %83 = vector.extract_strided_slice %82 {offsets = [0, 0, 0], sizes = [8, 3, 16], strides = [1, 1, 1]} : vector<10x27x18xf32> to vector<8x3x16xf32>
    %84 = vector.extract_strided_slice %82 {offsets = [0, 3, 1], sizes = [8, 3, 16], strides = [1, 1, 1]} : vector<10x27x18xf32> to vector<8x3x16xf32>
    %85 = arith.addf %83, %84 : vector<8x3x16xf32>
    %86 = vector.extract_strided_slice %82 {offsets = [0, 6, 2], sizes = [8, 3, 16], strides = [1, 1, 1]} : vector<10x27x18xf32> to vector<8x3x16xf32>
    %87 = arith.addf %85, %86 : vector<8x3x16xf32>
    %88 = vector.extract_strided_slice %82 {offsets = [1, 9, 0], sizes = [8, 3, 16], strides = [1, 1, 1]} : vector<10x27x18xf32> to vector<8x3x16xf32>
    %89 = arith.addf %87, %88 : vector<8x3x16xf32>
    %90 = vector.extract_strided_slice %82 {offsets = [1, 12, 1], sizes = [8, 3, 16], strides = [1, 1, 1]} : vector<10x27x18xf32> to vector<8x3x16xf32>
    %91 = arith.addf %89, %90 : vector<8x3x16xf32>
    %92 = vector.extract_strided_slice %82 {offsets = [1, 15, 2], sizes = [8, 3, 16], strides = [1, 1, 1]} : vector<10x27x18xf32> to vector<8x3x16xf32>
    %93 = arith.addf %91, %92 : vector<8x3x16xf32>
    %94 = vector.extract_strided_slice %82 {offsets = [2, 18, 0], sizes = [8, 3, 16], strides = [1, 1, 1]} : vector<10x27x18xf32> to vector<8x3x16xf32>
    %95 = arith.addf %93, %94 : vector<8x3x16xf32>
    %96 = vector.extract_strided_slice %82 {offsets = [2, 21, 1], sizes = [8, 3, 16], strides = [1, 1, 1]} : vector<10x27x18xf32> to vector<8x3x16xf32>
    %97 = arith.addf %95, %96 : vector<8x3x16xf32>
    %98 = vector.extract_strided_slice %82 {offsets = [2, 24, 2], sizes = [8, 3, 16], strides = [1, 1, 1]} : vector<10x27x18xf32> to vector<8x3x16xf32>
    %99 = arith.addf %97, %98 : vector<8x3x16xf32>
    %c0_88 = arith.constant 0 : index
    %c0_89 = arith.constant 0 : index
    %c0_90 = arith.constant 0 : index
    %100 = vector.load %arg11[%c0_88, %c0_89, %c0_90] : memref<1x3x1xf32, #tpu.memory_space<vmem>>, vector<1x3x1xf32>
    %101 = vector.broadcast %100 : vector<1x3x1xf32> to vector<8x3x16xf32>
    %102 = arith.addf %99, %101 : vector<8x3x16xf32>
    %c0_91 = arith.constant 0 : index
    %c0_92 = arith.constant 0 : index
    %c0_93 = arith.constant 0 : index
    %c0_94 = arith.constant 0 : index
    %103 = vector.load %arg5[%c0_91, %c0_92, %c0_93, %c0_94] : memref<1x8x3x16xf32, #tpu.memory_space<vmem>>, vector<1x8x3x16xf32>
    %104 = vector.shape_cast %103 : vector<1x8x3x16xf32> to vector<8x3x16xf32>
    %105 = arith.addf %102, %104 : vector<8x3x16xf32>
    %c0_95 = arith.constant 0 : index
    %c0_96 = arith.constant 0 : index
    %c0_97 = arith.constant 0 : index
    %c0_98 = arith.constant 0 : index
    %106 = vector.load %arg12[%c0_95, %c0_96, %c0_97, %c0_98] : memref<1x8x3x16xf32, #tpu.memory_space<vmem>>, vector<1x8x3x16xf32>
    %107 = vector.shape_cast %106 : vector<1x8x3x16xf32> to vector<8x3x16xf32>
    %108 = vector.shape_cast %105 : vector<8x3x16xf32> to vector<1x8x3x16xf32>
    tpu.vector_store %arg12[%c0_95, %c0_96, %c0_97, %c0_98], %108 {strides = array<i32>} : memref<1x8x3x16xf32, #tpu.memory_space<vmem>>, vector<1x8x3x16xf32>,
    return
  }
  func.func @transform_0(%arg0: i32, %arg1: i32) -> (i32, i32, i32, i32) {
    %c0_i32 = arith.constant 0 : i32
    %c0_i32_0 = arith.constant 0 : i32
    %c0_i32_1 = arith.constant 0 : i32
    return %arg0, %arg1, %c0_i32, %c0_i32_0 : i32, i32, i32, i32
  }
  func.func @transform_1(%arg0: i32, %arg1: i32) -> (i32, i32, i32, i32) {
    %c1_i32 = arith.constant 1 : i32
    %0 = arith.muli %arg1, %c1_i32 : i32
    %c1_i32_0 = arith.constant 1 : i32
    %1 = arith.subi %0, %c1_i32_0 : i32
    %c0_i32 = arith.constant 0 : i32
    %2 = arith.maxsi %1, %c0_i32 : i32
    %c0_i32_1 = arith.constant 0 : i32
    %c0_i32_2 = arith.constant 0 : i32
    %c0_i32_3 = arith.constant 0 : i32
    return %arg0, %2, %c0_i32_1, %c0_i32_2 : i32, i32, i32, i32
  }
  func.func @transform_2(%arg0: i32, %arg1: i32) -> (i32, i32, i32, i32) {
    %c1_i32 = arith.constant 1 : i32
    %0 = arith.addi %arg1, %c1_i32 : i32
    %c1_i32_0 = arith.constant 1 : i32
    %1 = arith.muli %0, %c1_i32_0 : i32
    %c1_i32_1 = arith.constant 1 : i32
    %2 = arith.minsi %1, %c1_i32_1 : i32
    %c0_i32 = arith.constant 0 : i32
    %c0_i32_2 = arith.constant 0 : i32
    %c0_i32_3 = arith.constant 0 : i32
    return %arg0, %2, %c0_i32, %c0_i32_2 : i32, i32, i32, i32
  }
  func.func @transform_3(%arg0: i32, %arg1: i32) -> (i32, i32, i32, i32) {
    %c0_i32 = arith.constant 0 : i32
    %c0_i32_0 = arith.constant 0 : i32
    %c0_i32_1 = arith.constant 0 : i32
    return %arg0, %arg1, %c0_i32, %c0_i32_0 : i32, i32, i32, i32
  }
  func.func @transform_4(%arg0: i32, %arg1: i32) -> (i32, i32) {
    %c0_i32 = arith.constant 0 : i32
    %c0_i32_0 = arith.constant 0 : i32
    %c0_i32_1 = arith.constant 0 : i32
    return %c0_i32, %c0_i32_0 : i32, i32
  }
  func.func @transform_5(%arg0: i32, %arg1: i32) -> (i32, i32, i32) {
    %c0_i32 = arith.constant 0 : i32
    %c0_i32_0 = arith.constant 0 : i32
    %c0_i32_1 = arith.constant 0 : i32
    %c0_i32_2 = arith.constant 0 : i32
    return %c0_i32, %c0_i32_0, %c0_i32_1 : i32, i32, i32
  }
  func.func @transform_6(%arg0: i32, %arg1: i32) -> (i32, i32) {
    %c0_i32 = arith.constant 0 : i32
    %c0_i32_0 = arith.constant 0 : i32
    %c0_i32_1 = arith.constant 0 : i32
    return %c0_i32, %c0_i32_0 : i32, i32
  }
  func.func @transform_7(%arg0: i32, %arg1: i32) -> (i32, i32, i32) {
    %c0_i32 = arith.constant 0 : i32
    %c0_i32_0 = arith.constant 0 : i32
    %c0_i32_1 = arith.constant 0 : i32
    %c0_i32_2 = arith.constant 0 : i32
    return %c0_i32, %c0_i32_0, %c0_i32_1 : i32, i32, i32
  }
  func.func @transform_8(%arg0: i32, %arg1: i32) -> (i32, i32) {
    %c0_i32 = arith.constant 0 : i32
    %c0_i32_0 = arith.constant 0 : i32
    %c0_i32_1 = arith.constant 0 : i32
    return %c0_i32, %c0_i32_0 : i32, i32
  }
  func.func @transform_9(%arg0: i32, %arg1: i32) -> (i32, i32, i32) {
    %c0_i32 = arith.constant 0 : i32
    %c0_i32_0 = arith.constant 0 : i32
    %c0_i32_1 = arith.constant 0 : i32
    %c0_i32_2 = arith.constant 0 : i32
    return %c0_i32, %c0_i32_0, %c0_i32_1 : i32, i32, i32
  }
  func.func @transform_10(%arg0: i32, %arg1: i32) -> (i32, i32, i32, i32) {
    %c0_i32 = arith.constant 0 : i32
    %c0_i32_0 = arith.constant 0 : i32
    %c0_i32_1 = arith.constant 0 : i32
    return %arg0, %arg1, %c0_i32, %c0_i32_0 : i32, i32, i32, i32
  }
}

module attributes {stable_mosaic.version = 11 : i64} {
  func.func @kernel(%arg0: i32, %arg1: i32, %arg2: memref<1x8x3x16xf32, #tpu.memory_space<vmem>>, %arg3: memref<1x8x3x16xf32, #tpu.memory_space<vmem>>, %arg4: memref<1x8x3x16xf32, #tpu.memory_space<vmem>>, %arg5: memref<1x8x3x16xf32, #tpu.memory_space<vmem>>, %arg6: memref<64x27xbf16, #tpu.memory_space<vmem>>, %arg7: memref<1x64x1xf32, #tpu.memory_space<vmem>>, %arg8: memref<64x64xbf16, #tpu.memory_space<vmem>>, %arg9: memref<1x64x1xf32, #tpu.memory_space<vmem>>, %arg10: memref<27x64xbf16, #tpu.memory_space<vmem>>, %arg11: memref<1x3x1xf32, #tpu.memory_space<vmem>>, %arg12: memref<1x8x3x16xf32, #tpu.memory_space<vmem>>, %arg13: memref<12x3x20xf32, #tpu.memory_space<vmem>>, %arg14: memref<10x27x18xf32, #tpu.memory_space<vmem>>) attributes {dimension_semantics = [#tpu.dimension_semantics<parallel>, #tpu.dimension_semantics<parallel>], iteration_bounds = array<i64: 2, 2>, scalar_prefetch = 0 : i64, scratch_operands = 2 : i64, tpu.core_type = #tpu.core_type<tc>, window_params = [{transform_indices = @transform_0, window_bounds = array<i64: 1, 8, 3, 16>}, {transform_indices = @transform_1, window_bounds = array<i64: 1, 8, 3, 16>}, {transform_indices = @transform_2, window_bounds = array<i64: 1, 8, 3, 16>}, {transform_indices = @transform_3, window_bounds = array<i64: 1, 8, 3, 16>}, {pipeline_mode = #tpu.pipeline_mode<synchronous>, transform_indices = @transform_4, window_bounds = array<i64: 64, 27>}, {pipeline_mode = #tpu.pipeline_mode<synchronous>, transform_indices = @transform_5, window_bounds = array<i64: 1, 64, 1>}, {pipeline_mode = #tpu.pipeline_mode<synchronous>, transform_indices = @transform_6, window_bounds = array<i64: 64, 64>}, {pipeline_mode = #tpu.pipeline_mode<synchronous>, transform_indices = @transform_7, window_bounds = array<i64: 1, 64, 1>}, {pipeline_mode = #tpu.pipeline_mode<synchronous>, transform_indices = @transform_8, window_bounds = array<i64: 27, 64>}, {pipeline_mode = #tpu.pipeline_mode<synchronous>, transform_indices = @transform_9, window_bounds = array<i64: 1, 3, 1>}, {transform_indices = @transform_10, window_bounds = array<i64: 1, 8, 3, 16>}]} {
    %c8_i32 = arith.constant 8 : i32
    %0 = arith.muli %arg1, %c8_i32 : i32
    %cst = arith.constant 0.000000e+00 : f32
    %1 = vector.broadcast %cst : f32 to vector<12x3x2xf32>
    %c0 = arith.constant 0 : index
    %c0_0 = arith.constant 0 : index
    %c0_1 = arith.constant 0 : index
    %2 = vector.load %arg13[%c0, %c0_0, %c0_1] : memref<12x3x20xf32, #tpu.memory_space<vmem>>, vector<12x3x2xf32>
    tpu.vector_store %arg13[%c0, %c0_0, %c0_1], %1 {strides = array<i32>} : memref<12x3x20xf32, #tpu.memory_space<vmem>>, vector<12x3x2xf32>,
    %c0_2 = arith.constant 0 : index
    %c0_3 = arith.constant 0 : index
    %c18 = arith.constant 18 : index
    %3 = vector.load %arg13[%c0_2, %c0_3, %c18] : memref<12x3x20xf32, #tpu.memory_space<vmem>>, vector<12x3x2xf32>
    tpu.vector_store %arg13[%c0_2, %c0_3, %c18], %1 {strides = array<i32>} : memref<12x3x20xf32, #tpu.memory_space<vmem>>, vector<12x3x2xf32>,
    %c0_4 = arith.constant 0 : index
    %c0_5 = arith.constant 0 : index
    %c0_6 = arith.constant 0 : index
    %c0_7 = arith.constant 0 : index
    %4 = vector.load %arg2[%c0_4, %c0_5, %c0_6, %c0_7] : memref<1x8x3x16xf32, #tpu.memory_space<vmem>>, vector<1x8x3x16xf32>
    %5 = vector.shape_cast %4 : vector<1x8x3x16xf32> to vector<8x3x16xf32>
    %c2 = arith.constant 2 : index
    %c0_8 = arith.constant 0 : index
    %c2_9 = arith.constant 2 : index
    %6 = vector.load %arg13[%c2, %c0_8, %c2_9] : memref<12x3x20xf32, #tpu.memory_space<vmem>>, vector<8x3x16xf32>
    tpu.vector_store %arg13[%c2, %c0_8, %c2_9], %5 {strides = array<i32>} : memref<12x3x20xf32, #tpu.memory_space<vmem>>, vector<8x3x16xf32>,
    %cst_10 = arith.constant 0.000000e+00 : f32
    %7 = vector.broadcast %cst_10 : f32 to vector<2x3x16xf32>
    %c0_11 = arith.constant 0 : index
    %c0_12 = arith.constant 0 : index
    %c2_13 = arith.constant 2 : index
    %8 = vector.load %arg13[%c0_11, %c0_12, %c2_13] : memref<12x3x20xf32, #tpu.memory_space<vmem>>, vector<2x3x16xf32>
    tpu.vector_store %arg13[%c0_11, %c0_12, %c2_13], %7 {strides = array<i32>} : memref<12x3x20xf32, #tpu.memory_space<vmem>>, vector<2x3x16xf32>,
    %c10 = arith.constant 10 : index
    %c0_14 = arith.constant 0 : index
    %c2_15 = arith.constant 2 : index
    %9 = vector.load %arg13[%c10, %c0_14, %c2_15] : memref<12x3x20xf32, #tpu.memory_space<vmem>>, vector<2x3x16xf32>
    tpu.vector_store %arg13[%c10, %c0_14, %c2_15], %7 {strides = array<i32>} : memref<12x3x20xf32, #tpu.memory_space<vmem>>, vector<2x3x16xf32>,
    %c0_i32 = arith.constant 0 : i32
    %10 = arith.cmpi sgt, %arg1, %c0_i32 : i32
    %11 = arith.extui %10 : i1 to i32
    %c0_i32_16 = arith.constant 0 : i32
    %12 = arith.cmpi ne, %11, %c0_i32_16 : i32
    scf.if %12 {
      %c0_100 = arith.constant 0 : index
      %c0_101 = arith.constant 0 : index
      %c0_102 = arith.constant 0 : index
      %c0_103 = arith.constant 0 : index
      %111 = vector.load %arg3[%c0_100, %c0_101, %c0_102, %c0_103] : memref<1x8x3x16xf32, #tpu.memory_space<vmem>>, vector<1x8x3x16xf32>
      %112 = vector.shape_cast %111 : vector<1x8x3x16xf32> to vector<8x3x16xf32>
      %113 = vector.extract_strided_slice %112 {offsets = [6, 0, 0], sizes = [2, 3, 16], strides = [1, 1, 1]} : vector<8x3x16xf32> to vector<2x3x16xf32>
      %c0_104 = arith.constant 0 : index
      %c0_105 = arith.constant 0 : index
      %c2_106 = arith.constant 2 : index
      %114 = vector.load %arg13[%c0_104, %c0_105, %c2_106] : memref<12x3x20xf32, #tpu.memory_space<vmem>>, vector<2x3x16xf32>
      tpu.vector_store %arg13[%c0_104, %c0_105, %c2_106], %113 {strides = array<i32>} : memref<12x3x20xf32, #tpu.memory_space<vmem>>, vector<2x3x16xf32>,
    } else {
    }
    %c1_i32 = arith.constant 1 : i32
    %13 = arith.cmpi slt, %arg1, %c1_i32 : i32
    %14 = arith.extui %13 : i1 to i32
    %c0_i32_17 = arith.constant 0 : i32
    %15 = arith.cmpi ne, %14, %c0_i32_17 : i32
    scf.if %15 {
      %c0_100 = arith.constant 0 : index
      %c0_101 = arith.constant 0 : index
      %c0_102 = arith.constant 0 : index
      %c0_103 = arith.constant 0 : index
      %111 = vector.load %arg4[%c0_100, %c0_101, %c0_102, %c0_103] : memref<1x8x3x16xf32, #tpu.memory_space<vmem>>, vector<1x8x3x16xf32>
      %112 = vector.shape_cast %111 : vector<1x8x3x16xf32> to vector<8x3x16xf32>
      %113 = vector.extract_strided_slice %112 {offsets = [0, 0, 0], sizes = [2, 3, 16], strides = [1, 1, 1]} : vector<8x3x16xf32> to vector<2x3x16xf32>
      %c10_104 = arith.constant 10 : index
      %c0_105 = arith.constant 0 : index
      %c2_106 = arith.constant 2 : index
      %114 = vector.load %arg13[%c10_104, %c0_105, %c2_106] : memref<12x3x20xf32, #tpu.memory_space<vmem>>, vector<2x3x16xf32>
      tpu.vector_store %arg13[%c10_104, %c0_105, %c2_106], %113 {strides = array<i32>} : memref<12x3x20xf32, #tpu.memory_space<vmem>>, vector<2x3x16xf32>,
    } else {
    }
    %c0_18 = arith.constant 0 : index
    %c0_19 = arith.constant 0 : index
    %c0_20 = arith.constant 0 : index
    %16 = vector.load %arg13[%c0_18, %c0_19, %c0_20] : memref<12x3x20xf32, #tpu.memory_space<vmem>>, vector<10x3x18xf32>
    %c0_21 = arith.constant 0 : index
    %c0_22 = arith.constant 0 : index
    %c0_23 = arith.constant 0 : index
    %17 = vector.load %arg14[%c0_21, %c0_22, %c0_23] : memref<10x27x18xf32, #tpu.memory_space<vmem>>, vector<10x3x18xf32>
    tpu.vector_store %arg14[%c0_21, %c0_22, %c0_23], %16 {strides = array<i32>} : memref<10x27x18xf32, #tpu.memory_space<vmem>>, vector<10x3x18xf32>,
    %c0_24 = arith.constant 0 : index
    %c0_25 = arith.constant 0 : index
    %c1 = arith.constant 1 : index
    %18 = vector.load %arg13[%c0_24, %c0_25, %c1] : memref<12x3x20xf32, #tpu.memory_space<vmem>>, vector<10x3x18xf32>
    %c0_26 = arith.constant 0 : index
    %c3 = arith.constant 3 : index
    %c0_27 = arith.constant 0 : index
    %19 = vector.load %arg14[%c0_26, %c3, %c0_27] : memref<10x27x18xf32, #tpu.memory_space<vmem>>, vector<10x3x18xf32>
    tpu.vector_store %arg14[%c0_26, %c3, %c0_27], %18 {strides = array<i32>} : memref<10x27x18xf32, #tpu.memory_space<vmem>>, vector<10x3x18xf32>,
    %c0_28 = arith.constant 0 : index
    %c0_29 = arith.constant 0 : index
    %c2_30 = arith.constant 2 : index
    %20 = vector.load %arg13[%c0_28, %c0_29, %c2_30] : memref<12x3x20xf32, #tpu.memory_space<vmem>>, vector<10x3x18xf32>
    %c0_31 = arith.constant 0 : index
    %c6 = arith.constant 6 : index
    %c0_32 = arith.constant 0 : index
    %21 = vector.load %arg14[%c0_31, %c6, %c0_32] : memref<10x27x18xf32, #tpu.memory_space<vmem>>, vector<10x3x18xf32>
    tpu.vector_store %arg14[%c0_31, %c6, %c0_32], %20 {strides = array<i32>} : memref<10x27x18xf32, #tpu.memory_space<vmem>>, vector<10x3x18xf32>,
    %c1_33 = arith.constant 1 : index
    %c0_34 = arith.constant 0 : index
    %c0_35 = arith.constant 0 : index
    %22 = vector.load %arg13[%c1_33, %c0_34, %c0_35] : memref<12x3x20xf32, #tpu.memory_space<vmem>>, vector<10x3x18xf32>
    %c0_36 = arith.constant 0 : index
    %c9 = arith.constant 9 : index
    %c0_37 = arith.constant 0 : index
    %23 = vector.load %arg14[%c0_36, %c9, %c0_37] : memref<10x27x18xf32, #tpu.memory_space<vmem>>, vector<10x3x18xf32>
    tpu.vector_store %arg14[%c0_36, %c9, %c0_37], %22 {strides = array<i32>} : memref<10x27x18xf32, #tpu.memory_space<vmem>>, vector<10x3x18xf32>,
    %c1_38 = arith.constant 1 : index
    %c0_39 = arith.constant 0 : index
    %c1_40 = arith.constant 1 : index
    %24 = vector.load %arg13[%c1_38, %c0_39, %c1_40] : memref<12x3x20xf32, #tpu.memory_space<vmem>>, vector<10x3x18xf32>
    %c0_41 = arith.constant 0 : index
    %c12 = arith.constant 12 : index
    %c0_42 = arith.constant 0 : index
    %25 = vector.load %arg14[%c0_41, %c12, %c0_42] : memref<10x27x18xf32, #tpu.memory_space<vmem>>, vector<10x3x18xf32>
    tpu.vector_store %arg14[%c0_41, %c12, %c0_42], %24 {strides = array<i32>} : memref<10x27x18xf32, #tpu.memory_space<vmem>>, vector<10x3x18xf32>,
    %c1_43 = arith.constant 1 : index
    %c0_44 = arith.constant 0 : index
    %c2_45 = arith.constant 2 : index
    %26 = vector.load %arg13[%c1_43, %c0_44, %c2_45] : memref<12x3x20xf32, #tpu.memory_space<vmem>>, vector<10x3x18xf32>
    %c0_46 = arith.constant 0 : index
    %c15 = arith.constant 15 : index
    %c0_47 = arith.constant 0 : index
    %27 = vector.load %arg14[%c0_46, %c15, %c0_47] : memref<10x27x18xf32, #tpu.memory_space<vmem>>, vector<10x3x18xf32>
    tpu.vector_store %arg14[%c0_46, %c15, %c0_47], %26 {strides = array<i32>} : memref<10x27x18xf32, #tpu.memory_space<vmem>>, vector<10x3x18xf32>,
    %c2_48 = arith.constant 2 : index
    %c0_49 = arith.constant 0 : index
    %c0_50 = arith.constant 0 : index
    %28 = vector.load %arg13[%c2_48, %c0_49, %c0_50] : memref<12x3x20xf32, #tpu.memory_space<vmem>>, vector<10x3x18xf32>
    %c0_51 = arith.constant 0 : index
    %c18_52 = arith.constant 18 : index
    %c0_53 = arith.constant 0 : index
    %29 = vector.load %arg14[%c0_51, %c18_52, %c0_53] : memref<10x27x18xf32, #tpu.memory_space<vmem>>, vector<10x3x18xf32>
    tpu.vector_store %arg14[%c0_51, %c18_52, %c0_53], %28 {strides = array<i32>} : memref<10x27x18xf32, #tpu.memory_space<vmem>>, vector<10x3x18xf32>,
    %c2_54 = arith.constant 2 : index
    %c0_55 = arith.constant 0 : index
    %c1_56 = arith.constant 1 : index
    %30 = vector.load %arg13[%c2_54, %c0_55, %c1_56] : memref<12x3x20xf32, #tpu.memory_space<vmem>>, vector<10x3x18xf32>
    %c0_57 = arith.constant 0 : index
    %c21 = arith.constant 21 : index
    %c0_58 = arith.constant 0 : index
    %31 = vector.load %arg14[%c0_57, %c21, %c0_58] : memref<10x27x18xf32, #tpu.memory_space<vmem>>, vector<10x3x18xf32>
    tpu.vector_store %arg14[%c0_57, %c21, %c0_58], %30 {strides = array<i32>} : memref<10x27x18xf32, #tpu.memory_space<vmem>>, vector<10x3x18xf32>,
    %c2_59 = arith.constant 2 : index
    %c0_60 = arith.constant 0 : index
    %c2_61 = arith.constant 2 : index
    %32 = vector.load %arg13[%c2_59, %c0_60, %c2_61] : memref<12x3x20xf32, #tpu.memory_space<vmem>>, vector<10x3x18xf32>
    %c0_62 = arith.constant 0 : index
    %c24 = arith.constant 24 : index
    %c0_63 = arith.constant 0 : index
    %33 = vector.load %arg14[%c0_62, %c24, %c0_63] : memref<10x27x18xf32, #tpu.memory_space<vmem>>, vector<10x3x18xf32>
    tpu.vector_store %arg14[%c0_62, %c24, %c0_63], %32 {strides = array<i32>} : memref<10x27x18xf32, #tpu.memory_space<vmem>>, vector<10x3x18xf32>,
    %c0_64 = arith.constant 0 : index
    %c0_65 = arith.constant 0 : index
    %c0_66 = arith.constant 0 : index
    %34 = vector.load %arg14[%c0_64, %c0_65, %c0_66] : memref<10x27x18xf32, #tpu.memory_space<vmem>>, vector<10x27x18xf32>
    %35 = arith.truncf %34 : vector<10x27x18xf32> to vector<10x27x18xbf16>
    %c0_67 = arith.constant 0 : index
    %c0_68 = arith.constant 0 : index
    %36 = vector.load %arg6[%c0_67, %c0_68] : memref<64x27xbf16, #tpu.memory_space<vmem>>, vector<64x27xbf16>
    %37 = vector.shape_cast %36 : vector<64x27xbf16> to vector<1x64x27xbf16>
    %38 = vector.shape_cast %37 : vector<1x64x27xbf16> to vector<1x64x27xbf16>
    %39 = vector.broadcast %38 : vector<1x64x27xbf16> to vector<10x64x27xbf16>
    "tpu.trace_start"() <{level = 10 : i32, message = "rok,rkw->row"}> : () -> ()
    %cst_69 = arith.constant dense<0.000000e+00> : vector<10x64x18xf32>
    %40 = tpu.matmul %39, %35, %cst_69 {dimension_numbers = #tpu.dot_dimension_numbers<[2], [1], [1], [2], [0, 0, 0, 1, 1, 2], [0], [0]>} : vector<10x64x27xbf16>, vector<10x27x18xbf16>, vector<10x64x18xf32> -> vector<10x64x18xf32>
    "tpu.trace_stop"() : () -> ()
    %c0_70 = arith.constant 0 : index
    %c0_71 = arith.constant 0 : index
    %c0_72 = arith.constant 0 : index
    %41 = vector.load %arg7[%c0_70, %c0_71, %c0_72] : memref<1x64x1xf32, #tpu.memory_space<vmem>>, vector<1x64x1xf32>
    %42 = vector.broadcast %41 : vector<1x64x1xf32> to vector<10x64x18xf32>
    %43 = arith.addf %40, %42 : vector<10x64x18xf32>
    %cst_73 = arith.constant 0.000000e+00 : f32
    %44 = vector.broadcast %cst_73 : f32 to vector<10x64x18xf32>
    %45 = arith.maximumf %43, %44 : vector<10x64x18xf32>
    %c0_74 = arith.constant 0 : index
    %c0_75 = arith.constant 0 : index
    %46 = vector.load %arg8[%c0_74, %c0_75] : memref<64x64xbf16, #tpu.memory_space<vmem>>, vector<64x64xbf16>
    %47 = vector.shape_cast %46 : vector<64x64xbf16> to vector<1x64x64xbf16>
    %48 = vector.shape_cast %47 : vector<1x64x64xbf16> to vector<1x64x64xbf16>
    %49 = vector.broadcast %48 : vector<1x64x64xbf16> to vector<10x64x64xbf16>
    %50 = arith.truncf %45 : vector<10x64x18xf32> to vector<10x64x18xbf16>
    "tpu.trace_start"() <{level = 10 : i32, message = "rok,rkw->row"}> : () -> ()
    %cst_76 = arith.constant dense<0.000000e+00> : vector<10x64x18xf32>
    %51 = tpu.matmul %49, %50, %cst_76 {dimension_numbers = #tpu.dot_dimension_numbers<[2], [1], [1], [2], [0, 0, 0, 1, 1, 2], [0], [0]>} : vector<10x64x64xbf16>, vector<10x64x18xbf16>, vector<10x64x18xf32> -> vector<10x64x18xf32>
    "tpu.trace_stop"() : () -> ()
    %c0_77 = arith.constant 0 : index
    %c0_78 = arith.constant 0 : index
    %c0_79 = arith.constant 0 : index
    %52 = vector.load %arg9[%c0_77, %c0_78, %c0_79] : memref<1x64x1xf32, #tpu.memory_space<vmem>>, vector<1x64x1xf32>
    %53 = vector.broadcast %52 : vector<1x64x1xf32> to vector<10x64x18xf32>
    %54 = arith.addf %51, %53 : vector<10x64x18xf32>
    %cst_80 = arith.constant 0.000000e+00 : f32
    %55 = vector.broadcast %cst_80 : f32 to vector<10x64x18xf32>
    %56 = arith.maximumf %54, %55 : vector<10x64x18xf32>
    %57 = tpu.iota {dimensions = array<i32: 0>} : vector<10x1x18xi32>
    %c1_i32_81 = arith.constant 1 : i32
    %58 = arith.subi %0, %c1_i32_81 : i32
    %59 = vector.broadcast %58 : i32 to vector<10x1x18xi32>
    %60 = arith.addi %57, %59 : vector<10x1x18xi32>
    %61 = tpu.iota {dimensions = array<i32: 2>} : vector<10x1x18xi32>
    %c0_i32_82 = arith.constant 0 : i32
    %62 = vector.broadcast %c0_i32_82 : i32 to vector<10x1x18xi32>
    %63 = arith.cmpi sge, %60, %62 : vector<10x1x18xi32>
    %c16_i32 = arith.constant 16 : i32
    %64 = vector.broadcast %c16_i32 : i32 to vector<10x1x18xi32>
    %65 = arith.cmpi slt, %60, %64 : vector<10x1x18xi32>
    %66 = arith.andi %63, %65 : vector<10x1x18xi1>
    %c1_i32_83 = arith.constant 1 : i32
    %67 = vector.broadcast %c1_i32_83 : i32 to vector<10x1x18xi32>
    %68 = arith.cmpi sge, %61, %67 : vector<10x1x18xi32>
    %69 = arith.andi %66, %68 : vector<10x1x18xi1>
    %c16_i32_84 = arith.constant 16 : i32
    %70 = vector.broadcast %c16_i32_84 : i32 to vector<10x1x18xi32>
    %71 = arith.cmpi sle, %61, %70 : vector<10x1x18xi32>
    %72 = arith.andi %69, %71 : vector<10x1x18xi1>
    %73 = arith.extui %72 : vector<10x1x18xi1> to vector<10x1x18xi32>
    %74 = arith.sitofp %73 : vector<10x1x18xi32> to vector<10x1x18xf32>
    %75 = vector.broadcast %74 : vector<10x1x18xf32> to vector<10x64x18xf32>
    %76 = arith.mulf %56, %75 : vector<10x64x18xf32>
    %c0_85 = arith.constant 0 : index
    %c0_86 = arith.constant 0 : index
    %77 = vector.load %arg10[%c0_85, %c0_86] : memref<27x64xbf16, #tpu.memory_space<vmem>>, vector<27x64xbf16>
    %78 = vector.shape_cast %77 : vector<27x64xbf16> to vector<1x27x64xbf16>
    %79 = vector.shape_cast %78 : vector<1x27x64xbf16> to vector<1x27x64xbf16>
    %80 = vector.broadcast %79 : vector<1x27x64xbf16> to vector<10x27x64xbf16>
    %81 = arith.truncf %76 : vector<10x64x18xf32> to vector<10x64x18xbf16>
    "tpu.trace_start"() <{level = 10 : i32, message = "rok,rkw->row"}> : () -> ()
    %cst_87 = arith.constant dense<0.000000e+00> : vector<10x27x18xf32>
    %82 = tpu.matmul %80, %81, %cst_87 {dimension_numbers = #tpu.dot_dimension_numbers<[2], [1], [1], [2], [0, 0, 0, 1, 1, 2], [0], [0]>} : vector<10x27x64xbf16>, vector<10x64x18xbf16>, vector<10x27x18xf32> -> vector<10x27x18xf32>
    "tpu.trace_stop"() : () -> ()
    %83 = vector.extract_strided_slice %82 {offsets = [0, 0, 0], sizes = [8, 3, 16], strides = [1, 1, 1]} : vector<10x27x18xf32> to vector<8x3x16xf32>
    %84 = vector.extract_strided_slice %82 {offsets = [0, 3, 1], sizes = [8, 3, 16], strides = [1, 1, 1]} : vector<10x27x18xf32> to vector<8x3x16xf32>
    %85 = arith.addf %83, %84 : vector<8x3x16xf32>
    %86 = vector.extract_strided_slice %82 {offsets = [0, 6, 2], sizes = [8, 3, 16], strides = [1, 1, 1]} : vector<10x27x18xf32> to vector<8x3x16xf32>
    %87 = arith.addf %85, %86 : vector<8x3x16xf32>
    %88 = vector.extract_strided_slice %82 {offsets = [1, 9, 0], sizes = [8, 3, 16], strides = [1, 1, 1]} : vector<10x27x18xf32> to vector<8x3x16xf32>
    %89 = arith.addf %87, %88 : vector<8x3x16xf32>
    %90 = vector.extract_strided_slice %82 {offsets = [1, 12, 1], sizes = [8, 3, 16], strides = [1, 1, 1]} : vector<10x27x18xf32> to vector<8x3x16xf32>
    %91 = arith.addf %89, %90 : vector<8x3x16xf32>
    %92 = vector.extract_strided_slice %82 {offsets = [1, 15, 2], sizes = [8, 3, 16], strides = [1, 1, 1]} : vector<10x27x18xf32> to vector<8x3x16xf32>
    %93 = arith.addf %91, %92 : vector<8x3x16xf32>
    %94 = vector.extract_strided_slice %82 {offsets = [2, 18, 0], sizes = [8, 3, 16], strides = [1, 1, 1]} : vector<10x27x18xf32> to vector<8x3x16xf32>
    %95 = arith.addf %93, %94 : vector<8x3x16xf32>
    %96 = vector.extract_strided_slice %82 {offsets = [2, 21, 1], sizes = [8, 3, 16], strides = [1, 1, 1]} : vector<10x27x18xf32> to vector<8x3x16xf32>
    %97 = arith.addf %95, %96 : vector<8x3x16xf32>
    %98 = vector.extract_strided_slice %82 {offsets = [2, 24, 2], sizes = [8, 3, 16], strides = [1, 1, 1]} : vector<10x27x18xf32> to vector<8x3x16xf32>
    %99 = arith.addf %97, %98 : vector<8x3x16xf32>
    %c0_88 = arith.constant 0 : index
    %c0_89 = arith.constant 0 : index
    %c0_90 = arith.constant 0 : index
    %100 = vector.load %arg11[%c0_88, %c0_89, %c0_90] : memref<1x3x1xf32, #tpu.memory_space<vmem>>, vector<1x3x1xf32>
    %101 = vector.broadcast %100 : vector<1x3x1xf32> to vector<8x3x16xf32>
    %102 = arith.addf %99, %101 : vector<8x3x16xf32>
    %cst_91 = arith.constant 0.000000e+00 : f32
    %103 = vector.broadcast %cst_91 : f32 to vector<8x3x16xf32>
    %104 = arith.maximumf %102, %103 : vector<8x3x16xf32>
    %c0_92 = arith.constant 0 : index
    %c0_93 = arith.constant 0 : index
    %c0_94 = arith.constant 0 : index
    %c0_95 = arith.constant 0 : index
    %105 = vector.load %arg5[%c0_92, %c0_93, %c0_94, %c0_95] : memref<1x8x3x16xf32, #tpu.memory_space<vmem>>, vector<1x8x3x16xf32>
    %106 = vector.shape_cast %105 : vector<1x8x3x16xf32> to vector<8x3x16xf32>
    %107 = arith.addf %104, %106 : vector<8x3x16xf32>
    %c0_96 = arith.constant 0 : index
    %c0_97 = arith.constant 0 : index
    %c0_98 = arith.constant 0 : index
    %c0_99 = arith.constant 0 : index
    %108 = vector.load %arg12[%c0_96, %c0_97, %c0_98, %c0_99] : memref<1x8x3x16xf32, #tpu.memory_space<vmem>>, vector<1x8x3x16xf32>
    %109 = vector.shape_cast %108 : vector<1x8x3x16xf32> to vector<8x3x16xf32>
    %110 = vector.shape_cast %107 : vector<8x3x16xf32> to vector<1x8x3x16xf32>
    tpu.vector_store %arg12[%c0_96, %c0_97, %c0_98, %c0_99], %110 {strides = array<i32>} : memref<1x8x3x16xf32, #tpu.memory_space<vmem>>, vector<1x8x3x16xf32>,
    return
  }
  func.func @transform_0(%arg0: i32, %arg1: i32) -> (i32, i32, i32, i32) {
    %c0_i32 = arith.constant 0 : i32
    %c0_i32_0 = arith.constant 0 : i32
    %c0_i32_1 = arith.constant 0 : i32
    return %arg0, %arg1, %c0_i32, %c0_i32_0 : i32, i32, i32, i32
  }
  func.func @transform_1(%arg0: i32, %arg1: i32) -> (i32, i32, i32, i32) {
    %c1_i32 = arith.constant 1 : i32
    %0 = arith.muli %arg1, %c1_i32 : i32
    %c1_i32_0 = arith.constant 1 : i32
    %1 = arith.subi %0, %c1_i32_0 : i32
    %c0_i32 = arith.constant 0 : i32
    %2 = arith.maxsi %1, %c0_i32 : i32
    %c0_i32_1 = arith.constant 0 : i32
    %c0_i32_2 = arith.constant 0 : i32
    %c0_i32_3 = arith.constant 0 : i32
    return %arg0, %2, %c0_i32_1, %c0_i32_2 : i32, i32, i32, i32
  }
  func.func @transform_2(%arg0: i32, %arg1: i32) -> (i32, i32, i32, i32) {
    %c1_i32 = arith.constant 1 : i32
    %0 = arith.addi %arg1, %c1_i32 : i32
    %c1_i32_0 = arith.constant 1 : i32
    %1 = arith.muli %0, %c1_i32_0 : i32
    %c1_i32_1 = arith.constant 1 : i32
    %2 = arith.minsi %1, %c1_i32_1 : i32
    %c0_i32 = arith.constant 0 : i32
    %c0_i32_2 = arith.constant 0 : i32
    %c0_i32_3 = arith.constant 0 : i32
    return %arg0, %2, %c0_i32, %c0_i32_2 : i32, i32, i32, i32
  }
  func.func @transform_3(%arg0: i32, %arg1: i32) -> (i32, i32, i32, i32) {
    %c0_i32 = arith.constant 0 : i32
    %c0_i32_0 = arith.constant 0 : i32
    %c0_i32_1 = arith.constant 0 : i32
    return %arg0, %arg1, %c0_i32, %c0_i32_0 : i32, i32, i32, i32
  }
  func.func @transform_4(%arg0: i32, %arg1: i32) -> (i32, i32) {
    %c0_i32 = arith.constant 0 : i32
    %c0_i32_0 = arith.constant 0 : i32
    %c0_i32_1 = arith.constant 0 : i32
    return %c0_i32, %c0_i32_0 : i32, i32
  }
  func.func @transform_5(%arg0: i32, %arg1: i32) -> (i32, i32, i32) {
    %c0_i32 = arith.constant 0 : i32
    %c0_i32_0 = arith.constant 0 : i32
    %c0_i32_1 = arith.constant 0 : i32
    %c0_i32_2 = arith.constant 0 : i32
    return %c0_i32, %c0_i32_0, %c0_i32_1 : i32, i32, i32
  }
  func.func @transform_6(%arg0: i32, %arg1: i32) -> (i32, i32) {
    %c0_i32 = arith.constant 0 : i32
    %c0_i32_0 = arith.constant 0 : i32
    %c0_i32_1 = arith.constant 0 : i32
    return %c0_i32, %c0_i32_0 : i32, i32
  }
  func.func @transform_7(%arg0: i32, %arg1: i32) -> (i32, i32, i32) {
    %c0_i32 = arith.constant 0 : i32
    %c0_i32_0 = arith.constant 0 : i32
    %c0_i32_1 = arith.constant 0 : i32
    %c0_i32_2 = arith.constant 0 : i32
    return %c0_i32, %c0_i32_0, %c0_i32_1 : i32, i32, i32
  }
  func.func @transform_8(%arg0: i32, %arg1: i32) -> (i32, i32) {
    %c0_i32 = arith.constant 0 : i32
    %c0_i32_0 = arith.constant 0 : i32
    %c0_i32_1 = arith.constant 0 : i32
    return %c0_i32, %c0_i32_0 : i32, i32
  }
  func.func @transform_9(%arg0: i32, %arg1: i32) -> (i32, i32, i32) {
    %c0_i32 = arith.constant 0 : i32
    %c0_i32_0 = arith.constant 0 : i32
    %c0_i32_1 = arith.constant 0 : i32
    %c0_i32_2 = arith.constant 0 : i32
    return %c0_i32, %c0_i32_0, %c0_i32_1 : i32, i32, i32
  }
  func.func @transform_10(%arg0: i32, %arg1: i32) -> (i32, i32, i32, i32) {
    %c0_i32 = arith.constant 0 : i32
    %c0_i32_0 = arith.constant 0 : i32
    %c0_i32_1 = arith.constant 0 : i32
    return %arg0, %arg1, %c0_i32, %c0_i32_0 : i32, i32, i32, i32
  }
}

</mosaic_0001>

<llo_original>
// kernel: enhancement_net.5
$region0: #{enhancement_net.5}
  #allocation0 [shape = 'u32[]', space=smem, size = 0x4, offset = 0x4, fixed_abs, tag = 'smem constant byte address 0x4 - core index']
  #allocation1 [shape = 'u32[144,128]{1,0:T(1,128)}', space=vmem, size = 0x12000, scoped, tag = 'internal scratch']
  #allocation2 [shape = 'f32[12,3,20]{2,1,0:T(4,128)}', space=vmem, size = 0x6000, scoped, tag = 'scratch operand']
  #allocation3 [shape = 'f32[10,27,18]{2,1,0:T(8,128)}', space=vmem, size = 0x28000, scoped, tag = 'scratch operand']
  %s0 = inlined_call_operand.hbm [shape: f32[2,16,3,16], index: 0, kind: input, shape index: {}, may-alias: {0,1,2}]
  %s1 = inlined_call_operand.hbm [shape: f32[2,16,3,16], index: 1, kind: input, shape index: {}, may-alias: {0,1,2}]
  %s2 = inlined_call_operand.hbm [shape: f32[2,16,3,16], index: 2, kind: input, shape index: {}, may-alias: {0,1,2}]
  %s3 = inlined_call_operand.hbm [shape: f32[2,16,3,16], index: 3, kind: input, shape index: {}]
  %s4 = inlined_call_operand.hbm [shape: bf16[64,27], index: 4, kind: input, shape index: {}]
  %s5 = inlined_call_operand.hbm [shape: f32[1,64,1], index: 5, kind: input, shape index: {}]
  %s6 = inlined_call_operand.hbm [shape: bf16[64,64], index: 6, kind: input, shape index: {}]
  %s7 = inlined_call_operand.hbm [shape: f32[1,64,1], index: 7, kind: input, shape index: {}]
  %s8 = inlined_call_operand.hbm [shape: bf16[27,64], index: 8, kind: input, shape index: {}]
  %s9 = inlined_call_operand.hbm [shape: f32[1,3,1], index: 9, kind: input, shape index: {}]
  %s10 = inlined_call_operand.hbm [shape: f32[2,16,3,16], index: 10, kind: output, shape index: {}]
  %s11 = sld [smem:[#allocation0]]
  $region121: #{enhancement_net.5} parent=0
    _
  %s13 = ssub.s32 1, %s11
  %s14 = scalar_select 0, %s13, %s11
  $region1: #{enhancement_net.5} parent=0
    #allocation4 [shape = 'u8[32768]{0}', space=vmem, size = 0x8000, scoped, tag = 'input window, operand 0']
    #allocation5 [shape = 's32[2]{0}', space=sflag, size = 0x8, scoped, tag = 'scoped memory for enhancement_net.5']
    #allocation6 [shape = 's32[2]{0}', space=sflag, size = 0x8, scoped, tag = 'scoped memory for enhancement_net.5']
    #allocation7 [shape = 'u8[32768]{0}', space=vmem, size = 0x8000, scoped, tag = 'input window, operand 1']
    #allocation8 [shape = 's32[2]{0}', space=sflag, size = 0x8, scoped, tag = 'scoped memory for enhancement_net.5']
    #allocation9 [shape = 'u8[32768]{0}', space=vmem, size = 0x8000, scoped, tag = 'input window, operand 2']
    #allocation10 [shape = 'u8[32768]{0}', space=vmem, size = 0x8000, scoped, tag = 'input window, operand 3']
    #allocation11 [shape = 's32[2]{0}', space=sflag, size = 0x8, scoped, tag = 'scoped memory for enhancement_net.5']
    #allocation12 [shape = 'u8[16384]{0}', space=vmem, size = 0x4000, scoped, tag = 'input window, operand 4, single buffered']
    #allocation13 [shape = 'u8[32768]{0}', space=vmem, size = 0x8000, scoped, tag = 'input window, operand 5, single buffered']
    #allocation14 [shape = 's32[1]{0}', space=sflag, size = 0x4, scoped, tag = 'scoped memory for enhancement_net.5']
    #allocation15 [shape = 'u8[16384]{0}', space=vmem, size = 0x4000, scoped, tag = 'input window, operand 6, single buffered']
    #allocation16 [shape = 'u8[32768]{0}', space=vmem, size = 0x8000, scoped, tag = 'input window, operand 7, single buffered']
    #allocation17 [shape = 's32[1]{0}', space=sflag, size = 0x4, scoped, tag = 'scoped memory for enhancement_net.5']
    #allocation18 [shape = 'u8[8192]{0}', space=vmem, size = 0x2000, scoped, tag = 'input window, operand 8, single buffered']
    #allocation19 [shape = 'u8[2048]{0}', space=vmem, size = 0x800, scoped, tag = 'input window, operand 9, single buffered']
    #allocation20 [shape = 's32[1]{0}', space=sflag, size = 0x4, scoped, tag = 'scoped memory for enhancement_net.5']
    #allocation21 [shape = 'u8[32768]{0}', space=vmem, size = 0x8000, scoped, tag = 'output window, operand 0']
    %15 = vsyncpa [#allocation5], 0
    %s16 = scalar_lea.sflag [#allocation5], 1
    %17 = vsyncpa %s16, 0
    %18 = vsyncpa [#allocation8], 0
    %s19 = scalar_lea.sflag [#allocation8], 1
    %20 = vsyncpa %s19, 0
    %21 = vsyncpa [#allocation11], 0
    %s22 = scalar_lea.sflag [#allocation11], 1
    %23 = vsyncpa %s22, 0
    %24 = vsyncpa [#allocation14], 0
    %25 = vsyncpa [#allocation17], 0
    %26 = vsyncpa [#allocation20], 0
    %27 = vsyncpa [#allocation6], 0
    %s28 = scalar_lea.sflag [#allocation6], 1
    %29 = vsyncpa %s28, 0
    loop: start=0, step=1, limit=6
    $region2: #{enhancement_net.5} parent=1 // loop_pre_header
      _
    $region3: #{enhancement_net.5} parent=1 // loop_header
      %s31 = sphi 0, %s35
      %p32 = scmp.ge.s32.totalorder %s31, 6
      %s38 = sphi 0, %s50
      %s39 = sphi 0, %s46
      %s40 = sphi 0, %s38
      %s41 = sphi 0, %s39
      %s42 = sphi 0, %s40
      %s43 = sphi 0, %s41
      %s55 = sphi 0, %s57
      %s58 = sphi 0, %s55
      %s59 = sphi 0, %s58
      %s75 = sphi 0, %s59
      %s89 = sphi 0, %s91
      %s92 = sphi 0, %s89
      %s93 = sphi 0, %s92
      %s109 = sphi 0, %s93
      %s123 = sphi 0, %s125
      %s126 = sphi 0, %s123
      %s127 = sphi 0, %s126
      %s143 = sphi 0, %s127
      %s151 = sphi 0, %s153
      %s154 = sphi 0, %s151
      %s155 = sphi 0, %s154
      %s171 = sphi 0, %s155
      %s175 = sphi 0, %s175
      %s177 = sphi 0, %s175
      %s178 = sphi 0, %s177
      %s192 = sphi 0, %s178
      %s196 = sphi 0, %s196
      %s198 = sphi 0, %s196
      %s199 = sphi 0, %s198
      %s213 = sphi 0, %s199
      %s217 = sphi 0, %s217
      %s219 = sphi 0, %s217
      %s220 = sphi 0, %s219
      %s234 = sphi 0, %s220
      %s238 = sphi 0, %s238
      %s240 = sphi 0, %s238
      %s241 = sphi 0, %s240
      %s255 = sphi 0, %s241
      %s259 = sphi 0, %s259
      %s261 = sphi 0, %s259
      %s262 = sphi 0, %s261
      %s276 = sphi 0, %s262
      %s280 = sphi 0, %s280
      %s282 = sphi 0, %s280
      %s283 = sphi 0, %s282
      %s297 = sphi 0, %s283
      %s305 = sphi 0, %s307
      %s308 = sphi 0, %s305
      %s309 = sphi 0, %s308
      %s325 = sphi 0, %s309
    $region4: #{enhancement_net.5} parent=1 // loop_header_branch
      %34 = sbr.rel (%p32) target = $region8
    $region5: #{enhancement_net.5} parent=1 // loop_body
      %s36 = ssub.s32 %s31, 1
      %s37 = ssub.s32 %s31, 2
      %s44 = sadd.s32 1, %s39
      %p45 = scmp.ge.s32.totalorder %s44, 2
      %s46 = scalar_select %p45, 0, %s44
      %s47 = sadd.s32 1, %s38
      %s48 = scalar_select %p45, %s47, %s38
      %p49 = scmp.ge.s32.totalorder %s48, 2
      %s50 = scalar_select %p49, 0, %s48
      %s51 = ssub.s32 %s38, %s50
      %s52 = ssub.s32 %s39, %s46
      %s53 = sor.u32 %s51, %s52
      %p54 = scmp.eq.s32.totalorder %s53, 0
      %s56 = sadd.s32 %s55, 1
      %s57 = scalar_select %p54, %s55, %s56
      %p60 = pneg %p54
      %p61 = scmp.eq.s32.totalorder %s31, 3
      %p62 = por %p60, %p61
      %p63 = scmp.ne.s32.totalorder %s55, %s58
      %p64 = scmp.eq.s32.totalorder %s31, 0
      %p65 = por %p63, %p64
      %p66 = scmp.ne.s32.totalorder %s55, %s58
      %p67 = scmp.eq.s32.totalorder %s36, 3
      %p68 = por %p66, %p67
      %p69 = scmp.ne.s32.totalorder %s58, %s59
      %p70 = scmp.eq.s32.totalorder %s36, 0
      %p71 = por %p69, %p70
      %p72 = scmp.ne.s32.totalorder %s58, %s59
      %p73 = scmp.eq.s32.totalorder %s37, 3
      %p74 = por %p72, %p73
      %p76 = scmp.ne.s32.totalorder %s59, %s75
      %p77 = scmp.eq.s32.totalorder %s37, 0
      %p78 = por %p76, %p77
      %s79 = ssub.s32 %s39, 1
      %p80 = scmp.gt.s32.totalorder %s79, 0
      %s81 = scalar_select %p80, %s79, 0
      %s82 = ssub.s32 %s46, 1
      %p83 = scmp.gt.s32.totalorder %s82, 0
      %s84 = scalar_select %p83, %s82, 0
      %s85 = ssub.s32 %s38, %s50
      %s86 = ssub.s32 %s81, %s84
      %s87 = sor.u32 %s85, %s86
      %p88 = scmp.eq.s32.totalorder %s87, 0
      %s90 = sadd.s32 %s89, 1
      %s91 = scalar_select %p88, %s89, %s90
      %p94 = pneg %p88
      %p95 = scmp.eq.s32.totalorder %s31, 3
      %p96 = por %p94, %p95
      %p97 = scmp.ne.s32.totalorder %s89, %s92
      %p98 = scmp.eq.s32.totalorder %s31, 0
      %p99 = por %p97, %p98
      %p100 = scmp.ne.s32.totalorder %s89, %s92
      %p101 = scmp.eq.s32.totalorder %s36, 3
      %p102 = por %p100, %p101
      %p103 = scmp.ne.s32.totalorder %s92, %s93
      %p104 = scmp.eq.s32.totalorder %s36, 0
      %p105 = por %p103, %p104
      %p106 = scmp.ne.s32.totalorder %s92, %s93
      %p107 = scmp.eq.s32.totalorder %s37, 3
      %p108 = por %p106, %p107
      %p110 = scmp.ne.s32.totalorder %s93, %s109
      %p111 = scmp.eq.s32.totalorder %s37, 0
      %p112 = por %p110, %p111
      %s113 = sadd.s32 %s39, 1
      %p114 = scmp.lt.s32.totalorder %s113, 1
      %s115 = scalar_select %p114, %s113, 1
      %s116 = sadd.s32 %s46, 1
      %p117 = scmp.lt.s32.totalorder %s116, 1
      %s118 = scalar_select %p117, %s116, 1
      %s119 = ssub.s32 %s38, %s50
      %s120 = ssub.s32 %s115, %s118
      %s121 = sor.u32 %s119, %s120
      %p122 = scmp.eq.s32.totalorder %s121, 0
      %s124 = sadd.s32 %s123, 1
      %s125 = scalar_select %p122, %s123, %s124
      %p128 = pneg %p122
      %p129 = scmp.eq.s32.totalorder %s31, 3
      %p130 = por %p128, %p129
      %p131 = scmp.ne.s32.totalorder %s123, %s126
      %p132 = scmp.eq.s32.totalorder %s31, 0
      %p133 = por %p131, %p132
      %p134 = scmp.ne.s32.totalorder %s123, %s126
      %p135 = scmp.eq.s32.totalorder %s36, 3
      %p136 = por %p134, %p135
      %p137 = scmp.ne.s32.totalorder %s126, %s127
      %p138 = scmp.eq.s32.totalorder %s36, 0
      %p139 = por %p137, %p138
      %p140 = scmp.ne.s32.totalorder %s126, %s127
      %p141 = scmp.eq.s32.totalorder %s37, 3
      %p142 = por %p140, %p141
      %p144 = scmp.ne.s32.totalorder %s127, %s143
      %p145 = scmp.eq.s32.totalorder %s37, 0
      %p146 = por %p144, %p145
      %s147 = ssub.s32 %s38, %s50
      %s148 = ssub.s32 %s39, %s46
      %s149 = sor.u32 %s147, %s148
      %p150 = scmp.eq.s32.totalorder %s149, 0
      %s152 = sadd.s32 %s151, 1
      %s153 = scalar_select %p150, %s151, %s152
      %p156 = pneg %p150
      %p157 = scmp.eq.s32.totalorder %s31, 3
      %p158 = por %p156, %p157
      %p159 = scmp.ne.s32.totalorder %s151, %s154
      %p160 = scmp.eq.s32.totalorder %s31, 0
      %p161 = por %p159, %p160
      %p162 = scmp.ne.s32.totalorder %s151, %s154
      %p163 = scmp.eq.s32.totalorder %s36, 3
      %p164 = por %p162, %p163
      %p165 = scmp.ne.s32.totalorder %s154, %s155
      %p166 = scmp.eq.s32.totalorder %s36, 0
      %p167 = por %p165, %p166
      %p168 = scmp.ne.s32.totalorder %s154, %s155
      %p169 = scmp.eq.s32.totalorder %s37, 3
      %p170 = por %p168, %p169
      %p172 = scmp.ne.s32.totalorder %s155, %s171
      %p173 = scmp.eq.s32.totalorder %s37, 0
      %p174 = por %p172, %p173
      %s176 = sadd.s32 %s175, 1
      %p179 = scmp.eq.s32.totalorder %s31, 3
      %p180 = scmp.ne.s32.totalorder %s175, %s177
      %p181 = scmp.eq.s32.totalorder %s31, 0
      %p182 = por %p180, %p181
      %p183 = scmp.ne.s32.totalorder %s175, %s177
      %p184 = scmp.eq.s32.totalorder %s36, 3
      %p185 = por %p183, %p184
      %p186 = scmp.ne.s32.totalorder %s177, %s178
      %p187 = scmp.eq.s32.totalorder %s36, 0
      %p188 = por %p186, %p187
      %p189 = scmp.ne.s32.totalorder %s177, %s178
      %p190 = scmp.eq.s32.totalorder %s37, 3
      %p191 = por %p189, %p190
      %p193 = scmp.ne.s32.totalorder %s178, %s192
      %p194 = scmp.eq.s32.totalorder %s37, 0
      %p195 = por %p193, %p194
      %s197 = sadd.s32 %s196, 1
      %p200 = scmp.eq.s32.totalorder %s31, 3
      %p201 = scmp.ne.s32.totalorder %s196, %s198
      %p202 = scmp.eq.s32.totalorder %s31, 0
      %p203 = por %p201, %p202
      %p204 = scmp.ne.s32.totalorder %s196, %s198
      %p205 = scmp.eq.s32.totalorder %s36, 3
      %p206 = por %p204, %p205
      %p207 = scmp.ne.s32.totalorder %s198, %s199
      %p208 = scmp.eq.s32.totalorder %s36, 0
      %p209 = por %p207, %p208
      %p210 = scmp.ne.s32.totalorder %s198, %s199
      %p211 = scmp.eq.s32.totalorder %s37, 3
      %p212 = por %p210, %p211
      %p214 = scmp.ne.s32.totalorder %s199, %s213
      %p215 = scmp.eq.s32.totalorder %s37, 0
      %p216 = por %p214, %p215
      %s218 = sadd.s32 %s217, 1
      %p221 = scmp.eq.s32.totalorder %s31, 3
      %p222 = scmp.ne.s32.totalorder %s217, %s219
      %p223 = scmp.eq.s32.totalorder %s31, 0
      %p224 = por %p222, %p223
      %p225 = scmp.ne.s32.totalorder %s217, %s219
      %p226 = scmp.eq.s32.totalorder %s36, 3
      %p227 = por %p225, %p226
      %p228 = scmp.ne.s32.totalorder %s219, %s220
      %p229 = scmp.eq.s32.totalorder %s36, 0
      %p230 = por %p228, %p229
      %p231 = scmp.ne.s32.totalorder %s219, %s220
      %p232 = scmp.eq.s32.totalorder %s37, 3
      %p233 = por %p231, %p232
      %p235 = scmp.ne.s32.totalorder %s220, %s234
      %p236 = scmp.eq.s32.totalorder %s37, 0
      %p237 = por %p235, %p236
      %s239 = sadd.s32 %s238, 1
      %p242 = scmp.eq.s32.totalorder %s31, 3
      %p243 = scmp.ne.s32.totalorder %s238, %s240
      %p244 = scmp.eq.s32.totalorder %s31, 0
      %p245 = por %p243, %p244
      %p246 = scmp.ne.s32.totalorder %s238, %s240
      %p247 = scmp.eq.s32.totalorder %s36, 3
      %p248 = por %p246, %p247
      %p249 = scmp.ne.s32.totalorder %s240, %s241
      %p250 = scmp.eq.s32.totalorder %s36, 0
      %p251 = por %p249, %p250
      %p252 = scmp.ne.s32.totalorder %s240, %s241
      %p253 = scmp.eq.s32.totalorder %s37, 3
      %p254 = por %p252, %p253
      %p256 = scmp.ne.s32.totalorder %s241, %s255
      %p257 = scmp.eq.s32.totalorder %s37, 0
      %p258 = por %p256, %p257
      %s260 = sadd.s32 %s259, 1
      %p263 = scmp.eq.s32.totalorder %s31, 3
      %p264 = scmp.ne.s32.totalorder %s259, %s261
      %p265 = scmp.eq.s32.totalorder %s31, 0
      %p266 = por %p264, %p265
      %p267 = scmp.ne.s32.totalorder %s259, %s261
      %p268 = scmp.eq.s32.totalorder %s36, 3
      %p269 = por %p267, %p268
      %p270 = scmp.ne.s32.totalorder %s261, %s262
      %p271 = scmp.eq.s32.totalorder %s36, 0
      %p272 = por %p270, %p271
      %p273 = scmp.ne.s32.totalorder %s261, %s262
      %p274 = scmp.eq.s32.totalorder %s37, 3
      %p275 = por %p273, %p274
      %p277 = scmp.ne.s32.totalorder %s262, %s276
      %p278 = scmp.eq.s32.totalorder %s37, 0
      %p279 = por %p277, %p278
      %s281 = sadd.s32 %s280, 1
      %p284 = scmp.eq.s32.totalorder %s31, 3
      %p285 = scmp.ne.s32.totalorder %s280, %s282
      %p286 = scmp.eq.s32.totalorder %s31, 0
      %p287 = por %p285, %p286
      %p288 = scmp.ne.s32.totalorder %s280, %s282
      %p289 = scmp.eq.s32.totalorder %s36, 3
      %p290 = por %p288, %p289
      %p291 = scmp.ne.s32.totalorder %s282, %s283
      %p292 = scmp.eq.s32.totalorder %s36, 0
      %p293 = por %p291, %p292
      %p294 = scmp.ne.s32.totalorder %s282, %s283
      %p295 = scmp.eq.s32.totalorder %s37, 3
      %p296 = por %p294, %p295
      %p298 = scmp.ne.s32.totalorder %s283, %s297
      %p299 = scmp.eq.s32.totalorder %s37, 0
      %p300 = por %p298, %p299
      %s301 = ssub.s32 %s38, %s50
      %s302 = ssub.s32 %s39, %s46
      %s303 = sor.u32 %s301, %s302
      %p304 = scmp.eq.s32.totalorder %s303, 0
      %s306 = sadd.s32 %s305, 1
      %s307 = scalar_select %p304, %s305, %s306
      %p310 = pneg %p304
      %p311 = scmp.eq.s32.totalorder %s31, 3
      %p312 = por %p310, %p311
      %p313 = scmp.ne.s32.totalorder %s305, %s308
      %p314 = scmp.eq.s32.totalorder %s31, 0
      %p315 = por %p313, %p314
      %p316 = scmp.ne.s32.totalorder %s305, %s308
      %p317 = scmp.eq.s32.totalorder %s36, 3
      %p318 = por %p316, %p317
      %p319 = scmp.ne.s32.totalorder %s308, %s309
      %p320 = scmp.eq.s32.totalorder %s36, 0
      %p321 = por %p319, %p320
      %p322 = scmp.ne.s32.totalorder %s308, %s309
      %p323 = scmp.eq.s32.totalorder %s37, 3
      %p324 = por %p322, %p323
      %p326 = scmp.ne.s32.totalorder %s309, %s325
      %p327 = scmp.eq.s32.totalorder %s37, 0
      %p328 = por %p326, %p327
      %p329 = scmp.le.s32.totalorder 1, %s31
      %p330 = scmp.lt.s32.totalorder %s31, 5
      %p331 = pnand %p329, %p330
      %p332 = pneg %p331
      // Predicated region
      $region9: #{enhancement_net.5} parent=5 // pred_check
        _
      $region10: #{enhancement_net.5} parent=5 // pred_check_branch
        %334 = sbr.rel (%p331) target = $region12
      $region11: #{enhancement_net.5} parent=5 // pred_region
        %s335 = ssub.s32 %s31, 1
        // Predicated region
        $region13: #{enhancement_net.5} parent=11 // pred_check
          %p336 = pneg %p188
        $region14: #{enhancement_net.5} parent=11 // pred_check_branch
          %338 = sbr.rel (%p336) target = $region16
        $region15: #{enhancement_net.5} parent=11 // pred_region
          %s340 = ssub.s32 512, 512
          %341 = vsyncadd [#allocation11], %s340
          %s342 = sshll.u32 [#allocation12], 4
          %s343 = int_to_ptr.vmem [resolvable:$true] %s342
          %348 = dma.hbm_to_vmem [thread:$0]  %s4, 512, %s343, [#allocation11], 64, 64, 4
        $region16: #{enhancement_net.5} parent=11 // pred_fallthru
          _
        // Predicated region
        $region17: #{enhancement_net.5} parent=11 // pred_check
          %p349 = pneg %p209
        $region18: #{enhancement_net.5} parent=11 // pred_check_branch
          %351 = sbr.rel (%p349) target = $region20
        $region19: #{enhancement_net.5} parent=11 // pred_region
          %s353 = ssub.s32 1024, 1024
          %354 = vsyncadd [#allocation14], %s353
          %s355 = sshll.u32 [#allocation13], 4
          %s356 = int_to_ptr.vmem [resolvable:$true] %s355
          %361 = dma.hbm_to_vmem [thread:$0]  %s5, 1024, %s356, [#allocation14], 128, 128, 8
        $region20: #{enhancement_net.5} parent=11 // pred_fallthru
          _
        // Predicated region
        $region21: #{enhancement_net.5} parent=11 // pred_check
          %p362 = pneg %p230
        $region22: #{enhancement_net.5} parent=11 // pred_check_branch
          %364 = sbr.rel (%p362) target = $region24
        $region23: #{enhancement_net.5} parent=11 // pred_region
          %s366 = ssub.s32 512, 512
          %367 = vsyncadd [#allocation14], %s366
          %s368 = sshll.u32 [#allocation15], 4
          %s369 = int_to_ptr.vmem [resolvable:$true] %s368
          %374 = dma.hbm_to_vmem [thread:$0]  %s6, 512, %s369, [#allocation14], 64, 64, 4
        $region24: #{enhancement_net.5} parent=11 // pred_fallthru
          _
        // Predicated region
        $region25: #{enhancement_net.5} parent=11 // pred_check
          %p375 = pneg %p251
        $region26: #{enhancement_net.5} parent=11 // pred_check_branch
          %377 = sbr.rel (%p375) target = $region28
        $region27: #{enhancement_net.5} parent=11 // pred_region
          %s379 = ssub.s32 1024, 1024
          %380 = vsyncadd [#allocation17], %s379
          %s381 = sshll.u32 [#allocation16], 4
          %s382 = int_to_ptr.vmem [resolvable:$true] %s381
          %387 = dma.hbm_to_vmem [thread:$0]  %s7, 1024, %s382, [#allocation17], 128, 128, 8
        $region28: #{enhancement_net.5} parent=11 // pred_fallthru
          _
        // Predicated region
        $region29: #{enhancement_net.5} parent=11 // pred_check
          %p388 = pneg %p272
        $region30: #{enhancement_net.5} parent=11 // pred_check_branch
          %390 = sbr.rel (%p388) target = $region32
        $region31: #{enhancement_net.5} parent=11 // pred_region
          %s392 = ssub.s32 256, 256
          %393 = vsyncadd [#allocation17], %s392
          %s394 = sshll.u32 [#allocation18], 4
          %s395 = int_to_ptr.vmem [resolvable:$true] %s394
          %400 = dma.hbm_to_vmem [thread:$0]  %s8, 256, %s395, [#allocation17], 64, 64, 4
        $region32: #{enhancement_net.5} parent=11 // pred_fallthru
          _
        // Predicated region
        $region33: #{enhancement_net.5} parent=11 // pred_check
          %p401 = pneg %p293
        $region34: #{enhancement_net.5} parent=11 // pred_check_branch
          %403 = sbr.rel (%p401) target = $region36
        $region35: #{enhancement_net.5} parent=11 // pred_region
          %s405 = ssub.s32 64, 64
          %406 = vsyncadd [#allocation20], %s405
          %s408 = sshll.u32 [#allocation19], 4
          %s409 = int_to_ptr.vmem [resolvable:$true] %s408
          %411 = dma.hbm_to_vmem [thread:$0]  %s9, 64, %s409, [#allocation20]
        $region36: #{enhancement_net.5} parent=11 // pred_fallthru
          _
      $region12: #{enhancement_net.5} parent=5 // pred_fallthru
        _
      %p412 = scmp.lt.s32.totalorder %s31, 4
      // Predicated region
      $region37: #{enhancement_net.5} parent=5 // pred_check
        %p413 = pneg %p412
      $region38: #{enhancement_net.5} parent=5 // pred_check_branch
        %415 = sbr.rel (%p413) target = $region40
      $region39: #{enhancement_net.5} parent=5 // pred_region
        // Predicated region
        $region41: #{enhancement_net.5} parent=39 // pred_check
          %p416 = pneg %p65
        $region42: #{enhancement_net.5} parent=39 // pred_check_branch
          %418 = sbr.rel (%p416) target = $region44
        $region43: #{enhancement_net.5} parent=39 // pred_region
          %s419 = sand.u32 %s55, 1
          %s420 = scalar_lea.sflag [#allocation5], %s419
          %s421 = sand.u32 %s55, 1
          %s422 = smul.addr %s421, 32
          %s423 = scalar_lea.vmem [#allocation4], %s422
          %s424 = smul.u32 8, %s39
          %s426 = ssub.s32 512, 512
          %427 = vsyncadd %s420, %s426
          %s428 = smul.addr %s38, 16
          %s429 = sadd.s32 %s424, %s428
          %s430 = smul.addr %s429, 64
          %s431 = scalar_lea.hbm %s0, %s430
          %s432 = sshll.u32 %s423, 4
          %s433 = int_to_ptr.vmem [resolvable:$true] %s432
          %438 = dma.hbm_to_vmem [thread:$0]  %s431, 512, %s433, %s420, 64, 64, 4
        $region44: #{enhancement_net.5} parent=39 // pred_fallthru
          _
        // Predicated region
        $region45: #{enhancement_net.5} parent=39 // pred_check
          %p439 = pneg %p99
        $region46: #{enhancement_net.5} parent=39 // pred_check_branch
          %441 = sbr.rel (%p439) target = $region48
        $region47: #{enhancement_net.5} parent=39 // pred_region
          %s442 = sand.u32 %s31, 1
          %s443 = scalar_lea.sflag [#allocation8], %s442
          %s444 = sand.u32 %s89, 1
          %s445 = smul.addr %s444, 32
          %s446 = scalar_lea.vmem [#allocation7], %s445
          %s447 = ssub.s32 %s39, 1
          %p448 = scmp.gt.s32.totalorder %s447, 0
          %s449 = scalar_select %p448, %s447, 0
          %s450 = smul.u32 8, %s449
          %s452 = ssub.s32 512, 512
          %453 = vsyncadd %s443, %s452
          %s454 = smul.addr %s38, 16
          %s455 = sadd.s32 %s450, %s454
          %s456 = smul.addr %s455, 64
          %s457 = scalar_lea.hbm %s1, %s456
          %s458 = sshll.u32 %s446, 4
          %s459 = int_to_ptr.vmem [resolvable:$true] %s458
          %464 = dma.hbm_to_vmem [thread:$0]  %s457, 512, %s459, %s443, 64, 64, 4
        $region48: #{enhancement_net.5} parent=39 // pred_fallthru
          _
        // Predicated region
        $region49: #{enhancement_net.5} parent=39 // pred_check
          %p465 = pneg %p133
        $region50: #{enhancement_net.5} parent=39 // pred_check_branch
          %467 = sbr.rel (%p465) target = $region52
        $region51: #{enhancement_net.5} parent=39 // pred_region
          %s468 = sand.u32 %s31, 1
          %s469 = scalar_lea.sflag [#allocation8], %s468
          %s470 = sand.u32 %s123, 1
          %s471 = smul.addr %s470, 32
          %s472 = scalar_lea.vmem [#allocation9], %s471
          %s473 = sadd.s32 %s39, 1
          %p474 = scmp.lt.s32.totalorder %s473, 1
          %s475 = scalar_select %p474, %s473, 1
          %s476 = smul.u32 8, %s475
          %s478 = ssub.s32 512, 512
          %479 = vsyncadd %s469, %s478
          %s480 = smul.addr %s38, 16
          %s481 = sadd.s32 %s476, %s480
          %s482 = smul.addr %s481, 64
          %s483 = scalar_lea.hbm %s2, %s482
          %s484 = sshll.u32 %s472, 4
          %s485 = int_to_ptr.vmem [resolvable:$true] %s484
          %490 = dma.hbm_to_vmem [thread:$0]  %s483, 512, %s485, %s469, 64, 64, 4
        $region52: #{enhancement_net.5} parent=39 // pred_fallthru
          _
        // Predicated region
        $region53: #{enhancement_net.5} parent=39 // pred_check
          %p491 = pneg %p161
        $region54: #{enhancement_net.5} parent=39 // pred_check_branch
          %493 = sbr.rel (%p491) target = $region56
        $region55: #{enhancement_net.5} parent=39 // pred_region
          %s494 = sand.u32 %s31, 1
          %s495 = scalar_lea.sflag [#allocation11], %s494
          %s496 = sand.u32 %s151, 1
          %s497 = smul.addr %s496, 32
          %s498 = scalar_lea.vmem [#allocation10], %s497
          %s499 = smul.u32 8, %s39
          %s501 = ssub.s32 512, 512
          %502 = vsyncadd %s495, %s501
          %s503 = smul.addr %s38, 16
          %s504 = sadd.s32 %s499, %s503
          %s505 = smul.addr %s504, 64
          %s506 = scalar_lea.hbm %s3, %s505
          %s507 = sshll.u32 %s498, 4
          %s508 = int_to_ptr.vmem [resolvable:$true] %s507
          %513 = dma.hbm_to_vmem [thread:$0]  %s506, 512, %s508, %s495, 64, 64, 4
        $region56: #{enhancement_net.5} parent=39 // pred_fallthru
          _
      $region40: #{enhancement_net.5} parent=5 // pred_fallthru
        _
      %p514 = scmp.le.s32.totalorder 1, %s31
      %p515 = scmp.lt.s32.totalorder %s31, 5
      %p516 = pnand %p514, %p515
      %p517 = pneg %p516
      // Predicated region
      $region57: #{enhancement_net.5} parent=5 // pred_check
        _
      $region58: #{enhancement_net.5} parent=5 // pred_check_branch
        %519 = sbr.rel (%p516) target = $region60
      $region59: #{enhancement_net.5} parent=5 // pred_region
        %s520 = ssub.s32 %s31, 1
        %s521 = sand.u32 %s58, 1
        %s522 = scalar_lea.sflag [#allocation5], %s521
        %s523 = sand.u32 %s58, 1
        %s524 = smul.addr %s523, 32
        %s525 = scalar_lea.vmem [#allocation4], %s524
        // Predicated region
        $region61: #{enhancement_net.5} parent=59 // pred_check
          %p526 = pneg %p71
        $region62: #{enhancement_net.5} parent=59 // pred_check_branch
          %528 = sbr.rel (%p526) target = $region64
        $region63: #{enhancement_net.5} parent=59 // pred_region
          %529 = dma.done %s522, 512
        $region64: #{enhancement_net.5} parent=59 // pred_fallthru
          _
        %s530 = sand.u32 %s36, 1
        %s531 = scalar_lea.sflag [#allocation8], %s530
        %s532 = sand.u32 %s92, 1
        %s533 = smul.addr %s532, 32
        %s534 = scalar_lea.vmem [#allocation7], %s533
        // Predicated region
        $region65: #{enhancement_net.5} parent=59 // pred_check
          %p535 = pneg %p105
        $region66: #{enhancement_net.5} parent=59 // pred_check_branch
          %537 = sbr.rel (%p535) target = $region68
        $region67: #{enhancement_net.5} parent=59 // pred_region
          %538 = dma.done %s531, 512
        $region68: #{enhancement_net.5} parent=59 // pred_fallthru
          _
        %s539 = sand.u32 %s36, 1
        %s540 = scalar_lea.sflag [#allocation8], %s539
        %s541 = sand.u32 %s126, 1
        %s542 = smul.addr %s541, 32
        %s543 = scalar_lea.vmem [#allocation9], %s542
        // Predicated region
        $region69: #{enhancement_net.5} parent=59 // pred_check
          %p544 = pneg %p139
        $region70: #{enhancement_net.5} parent=59 // pred_check_branch
          %546 = sbr.rel (%p544) target = $region72
        $region71: #{enhancement_net.5} parent=59 // pred_region
          %547 = dma.done %s540, 512
        $region72: #{enhancement_net.5} parent=59 // pred_fallthru
          _
        %s548 = sand.u32 %s36, 1
        %s549 = scalar_lea.sflag [#allocation11], %s548
        %s550 = sand.u32 %s154, 1
        %s551 = smul.addr %s550, 32
        %s552 = scalar_lea.vmem [#allocation10], %s551
        // Predicated region
        $region73: #{enhancement_net.5} parent=59 // pred_check
          %p553 = pneg %p167
        $region74: #{enhancement_net.5} parent=59 // pred_check_branch
          %555 = sbr.rel (%p553) target = $region76
        $region75: #{enhancement_net.5} parent=59 // pred_region
          %556 = dma.done %s549, 512
        $region76: #{enhancement_net.5} parent=59 // pred_fallthru
          _
        // Predicated region
        $region77: #{enhancement_net.5} parent=59 // pred_check
          %p557 = pneg %p188
        $region78: #{enhancement_net.5} parent=59 // pred_check_branch
          %559 = sbr.rel (%p557) target = $region80
        $region79: #{enhancement_net.5} parent=59 // pred_region
          %560 = dma.done [#allocation11], 512
        $region80: #{enhancement_net.5} parent=59 // pred_fallthru
          _
        // Predicated region
        $region81: #{enhancement_net.5} parent=59 // pred_check
          %p561 = pneg %p209
        $region82: #{enhancement_net.5} parent=59 // pred_check_branch
          %563 = sbr.rel (%p561) target = $region84
        $region83: #{enhancement_net.5} parent=59 // pred_region
          %564 = dma.done [#allocation14], 1024
        $region84: #{enhancement_net.5} parent=59 // pred_fallthru
          _
        // Predicated region
        $region85: #{enhancement_net.5} parent=59 // pred_check
          %p565 = pneg %p230
        $region86: #{enhancement_net.5} parent=59 // pred_check_branch
          %567 = sbr.rel (%p565) target = $region88
        $region87: #{enhancement_net.5} parent=59 // pred_region
          %568 = dma.done [#allocation14], 512
        $region88: #{enhancement_net.5} parent=59 // pred_fallthru
          _
        // Predicated region
        $region89: #{enhancement_net.5} parent=59 // pred_check
          %p569 = pneg %p251
        $region90: #{enhancement_net.5} parent=59 // pred_check_branch
          %571 = sbr.rel (%p569) target = $region92
        $region91: #{enhancement_net.5} parent=59 // pred_region
          %572 = dma.done [#allocation17], 1024
        $region92: #{enhancement_net.5} parent=59 // pred_fallthru
          _
        // Predicated region
        $region93: #{enhancement_net.5} parent=59 // pred_check
          %p573 = pneg %p272
        $region94: #{enhancement_net.5} parent=59 // pred_check_branch
          %575 = sbr.rel (%p573) target = $region96
        $region95: #{enhancement_net.5} parent=59 // pred_region
          %576 = dma.done [#allocation17], 256
        $region96: #{enhancement_net.5} parent=59 // pred_fallthru
          _
        // Predicated region
        $region97: #{enhancement_net.5} parent=59 // pred_check
          %p577 = pneg %p293
        $region98: #{enhancement_net.5} parent=59 // pred_check_branch
          %579 = sbr.rel (%p577) target = $region100
        $region99: #{enhancement_net.5} parent=59 // pred_region
          %580 = dma.done [#allocation20], 64
        $region100: #{enhancement_net.5} parent=59 // pred_fallthru
          _
        %s581 = sand.u32 %s58, 1
        %s582 = scalar_lea.sflag [#allocation5], %s581
        %s583 = sand.u32 %s58, 1
        %s584 = smul.addr %s583, 32
        %s585 = scalar_lea.vmem [#allocation4], %s584
        %p586 = pneg %p71
        %p587 = pneg %p68
        %s588 = sand.u32 %s36, 1
        %s589 = scalar_lea.sflag [#allocation8], %s588
        %s590 = sand.u32 %s92, 1
        %s591 = smul.addr %s590, 32
        %s592 = scalar_lea.vmem [#allocation7], %s591
        %p593 = pneg %p105
        %p594 = pneg %p102
        %s595 = sand.u32 %s36, 1
        %s596 = scalar_lea.sflag [#allocation8], %s595
        %s597 = sand.u32 %s126, 1
        %s598 = smul.addr %s597, 32
        %s599 = scalar_lea.vmem [#allocation9], %s598
        %p600 = pneg %p139
        %p601 = pneg %p136
        %s602 = sand.u32 %s36, 1
        %s603 = scalar_lea.sflag [#allocation11], %s602
        %s604 = sand.u32 %s154, 1
        %s605 = smul.addr %s604, 32
        %s606 = scalar_lea.vmem [#allocation10], %s605
        %p607 = pneg %p167
        %p608 = pneg %p164
        %p609 = pneg %p188
        %p610 = pneg %p185
        %p611 = pneg %p209
        %p612 = pneg %p206
        %p613 = pneg %p230
        %p614 = pneg %p227
        %p615 = pneg %p251
        %p616 = pneg %p248
        %p617 = pneg %p272
        %p618 = pneg %p269
        %p619 = pneg %p293
        %p620 = pneg %p290
        %p621 = pneg %p321
        %p622 = pneg %p318
        %s623 = sand.u32 %s308, 1
        %s624 = scalar_lea.sflag [#allocation6], %s623
        %s625 = sand.u32 %s308, 1
        %s626 = smul.addr %s625, 32
        %s627 = scalar_lea.vmem [#allocation21], %s626
        %s628 = smul.u32 8, %s41
        %s629 = ssub.s32 %s41, 1
        %p630 = scmp.gt.s32.totalorder %s629, 0
        %s631 = scalar_select %p630, %s629, 0
        %s632 = smul.u32 8, %s631
        %s633 = sadd.s32 %s41, 1
        %p634 = scmp.lt.s32.totalorder %s633, 1
        %s635 = scalar_select %p634, %s633, 1
        %s636 = smul.u32 8, %s635
        %s637 = smul.u32 8, %s41
        %s638 = smul.u32 8, %s41
        %s640 = smul.u32 %s41, 8
        %vm641 = vcmask 10240
        %642 = vst.msk [vmem:[#allocation2] sm:$0x7] %vm641, 0.0
        %643 = vst.msk [vmem:[#allocation2 + $0x4] sm:$0x7] %vm641, 0.0
        %644 = vst.msk [vmem:[#allocation2 + $0x8] sm:$0x7] %vm641, 0.0
        %645 = vst.msk [vmem:[#allocation2 + $0xc] sm:$0x7] %vm641, 0.0
        %646 = vst.msk [vmem:[#allocation2 + $0x10] sm:$0x7] %vm641, 0.0
        %647 = vst.msk [vmem:[#allocation2 + $0x14] sm:$0x7] %vm641, 0.0
        %648 = vst.msk [vmem:[#allocation2 + $0x18] sm:$0x7] %vm641, 0.0
        %649 = vst.msk [vmem:[#allocation2 + $0x1c] sm:$0x7] %vm641, 0.0
        %650 = vst.msk [vmem:[#allocation2 + $0x20] sm:$0x7] %vm641, 0.0
        %651 = vst.msk [vmem:[#allocation2 + $0x24] sm:$0x7] %vm641, 0.0
        %652 = vst.msk [vmem:[#allocation2 + $0x28] sm:$0x7] %vm641, 0.0
        %653 = vst.msk [vmem:[#allocation2 + $0x2c] sm:$0x7] %vm641, 0.0
        %vm654 = vcmask 157840
        %655 = vst.msk [vmem:[#allocation2] sm:$0x7] %vm654, 0.0
        %656 = vst.msk [vmem:[#allocation2 + $0x4] sm:$0x7] %vm654, 0.0
        %657 = vst.msk [vmem:[#allocation2 + $0x8] sm:$0x7] %vm654, 0.0
        %658 = vst.msk [vmem:[#allocation2 + $0xc] sm:$0x7] %vm654, 0.0
        %659 = vst.msk [vmem:[#allocation2 + $0x10] sm:$0x7] %vm654, 0.0
        %660 = vst.msk [vmem:[#allocation2 + $0x14] sm:$0x7] %vm654, 0.0
        %661 = vst.msk [vmem:[#allocation2 + $0x18] sm:$0x7] %vm654, 0.0
        %662 = vst.msk [vmem:[#allocation2 + $0x1c] sm:$0x7] %vm654, 0.0
        %663 = vst.msk [vmem:[#allocation2 + $0x20] sm:$0x7] %vm654, 0.0
        %664 = vst.msk [vmem:[#allocation2 + $0x24] sm:$0x7] %vm654, 0.0
        %665 = vst.msk [vmem:[#allocation2 + $0x28] sm:$0x7] %vm654, 0.0
        %666 = vst.msk [vmem:[#allocation2 + $0x2c] sm:$0x7] %vm654, 0.0
        %v667 = vld [vmem:[%s525] sm:$0x7]
        %v668 = vld [vmem:[%s525 + $0x4] sm:$0x7]
        %v669 = vld [vmem:[%s525 + $0x8] sm:$0x7]
        %v670 = vld [vmem:[%s525 + $0xc] sm:$0x7]
        %v671 = vld [vmem:[%s525 + $0x10] sm:$0x7]
        %v672 = vld [vmem:[%s525 + $0x14] sm:$0x7]
        %v673 = vld [vmem:[%s525 + $0x18] sm:$0x7]
        %v674 = vld [vmem:[%s525 + $0x1c] sm:$0x7]
        %683 = vrot.lane.b32.xlu0 %v667, 2
        %v684 = vpop.permute.xlu0 %683
        %685 = vrot.lane.b32.xlu0 %v668, 2
        %v686 = vpop.permute.xlu0 %685
        %687 = vrot.lane.b32.xlu0 %v669, 2
        %v688 = vpop.permute.xlu0 %687
        %689 = vrot.lane.b32.xlu0 %v670, 2
        %v690 = vpop.permute.xlu0 %689
        %691 = vrot.lane.b32.xlu0 %v671, 2
        %v692 = vpop.permute.xlu0 %691
        %693 = vrot.lane.b32.xlu0 %v672, 2
        %v694 = vpop.permute.xlu0 %693
        %695 = vrot.lane.b32.xlu0 %v673, 2
        %v696 = vpop.permute.xlu0 %695
        %697 = vrot.lane.b32.xlu0 %v674, 2
        %v698 = vpop.permute.xlu0 %697
        %s707 = scalar_lea.vmem [#allocation2], 8
        %vm708 = vcmask 141328
        %709 = vst.msk [vmem:[%s707] sm:$0x7] %vm708, %v684
        %710 = vst.msk [vmem:[%s707 + $0x4] sm:$0x7] %vm708, %v686
        %711 = vst.msk [vmem:[%s707 + $0x8] sm:$0x7] %vm708, %v688
        %712 = vst.msk [vmem:[%s707 + $0xc] sm:$0x7] %vm708, %v690
        %713 = vst.msk [vmem:[%s707 + $0x10] sm:$0x7] %vm708, %v692
        %714 = vst.msk [vmem:[%s707 + $0x14] sm:$0x7] %vm708, %v694
        %715 = vst.msk [vmem:[%s707 + $0x18] sm:$0x7] %vm708, %v696
        %716 = vst.msk [vmem:[%s707 + $0x1c] sm:$0x7] %vm708, %v698
        %717 = vst.msk [vmem:[#allocation2] sm:$0x7] %vm708, 0.0
        %718 = vst.msk [vmem:[#allocation2 + $0x4] sm:$0x7] %vm708, 0.0
        %s719 = scalar_lea.vmem [#allocation2], 40
        %720 = vst.msk [vmem:[%s719] sm:$0x7] %vm708, 0.0
        %721 = vst.msk [vmem:[%s719 + $0x4] sm:$0x7] %vm708, 0.0
        %p722 = scmp.gt.s32.totalorder %s41, 0
        // Predicated region
        $region101: #{enhancement_net.5} parent=59 // pred_check
          %p723 = pneg %p722
        $region102: #{enhancement_net.5} parent=59 // pred_check_branch
          %725 = sbr.rel (%p723) target = $region104
        $region103: #{enhancement_net.5} parent=59 // pred_region
          %v726 = vld [vmem:[%s534 + $0x18] sm:$0x7]
          %v727 = vld [vmem:[%s534 + $0x1c] sm:$0x7]
          %730 = vrot.lane.b32.xlu0 %v726, 2
          %v731 = vpop.permute.xlu0 %730
          %732 = vrot.lane.b32.xlu0 %v727, 2
          %v733 = vpop.permute.xlu0 %732
          %736 = vst.msk [vmem:[#allocation2] sm:$0x7] %vm708, %v731
          %737 = vst.msk [vmem:[#allocation2 + $0x4] sm:$0x7] %vm708, %v733
        $region104: #{enhancement_net.5} parent=59 // pred_fallthru
          _
        %p738 = scmp.lt.s32.totalorder %s41, 1
        // Predicated region
        $region105: #{enhancement_net.5} parent=59 // pred_check
          %p739 = pneg %p738
        $region106: #{enhancement_net.5} parent=59 // pred_check_branch
          %741 = sbr.rel (%p739) target = $region108
        $region107: #{enhancement_net.5} parent=59 // pred_region
          %v742 = vld [vmem:[%s543] sm:$0x7]
          %v743 = vld [vmem:[%s543 + $0x4] sm:$0x7]
          %746 = vrot.lane.b32.xlu0 %v742, 2
          %v747 = vpop.permute.xlu0 %746
          %748 = vrot.lane.b32.xlu0 %v743, 2
          %v749 = vpop.permute.xlu0 %748
          %752 = vst.msk [vmem:[%s719] sm:$0x7] %vm708, %v747
          %753 = vst.msk [vmem:[%s719 + $0x4] sm:$0x7] %vm708, %v749
        $region108: #{enhancement_net.5} parent=59 // pred_fallthru
          _
        %v754 = vld [vmem:[#allocation2] sm:$0x7]
        %v755 = vld [vmem:[#allocation2 + $0x4] sm:$0x7]
        %v756 = vld [vmem:[#allocation2 + $0x8] sm:$0x7]
        %v757 = vld [vmem:[#allocation2 + $0xc] sm:$0x7]
        %v758 = vld [vmem:[#allocation2 + $0x10] sm:$0x7]
        %v759 = vld [vmem:[#allocation2 + $0x14] sm:$0x7]
        %v760 = vld [vmem:[#allocation2 + $0x18] sm:$0x7]
        %v761 = vld [vmem:[#allocation2 + $0x1c] sm:$0x7]
        %v762 = vld [vmem:[#allocation2 + $0x20] sm:$0x7]
        %v763 = vld [vmem:[#allocation2 + $0x24] sm:$0x7]
        %vm764 = vcmask 141312
        %765 = vst.msk [vmem:[#allocation3] sm:$0x7] %vm764, %v754
        %766 = vst.msk [vmem:[#allocation3 + $0x20] sm:$0x7] %vm764, %v755
        %767 = vst.msk [vmem:[#allocation3 + $0x40] sm:$0x7] %vm764, %v756
        %768 = vst.msk [vmem:[#allocation3 + $0x60] sm:$0x7] %vm764, %v757
        %769 = vst.msk [vmem:[#allocation3 + $0x80] sm:$0x7] %vm764, %v758
        %770 = vst.msk [vmem:[#allocation3 + $0xa0] sm:$0x7] %vm764, %v759
        %771 = vst.msk [vmem:[#allocation3 + $0xc0] sm:$0x7] %vm764, %v760
        %772 = vst.msk [vmem:[#allocation3 + $0xe0] sm:$0x7] %vm764, %v761
        %773 = vst.msk [vmem:[#allocation3 + $0x100] sm:$0x7] %vm764, %v762
        %774 = vst.msk [vmem:[#allocation3 + $0x120] sm:$0x7] %vm764, %v763
        %v775 = vld [vmem:[#allocation2] sm:$0x7]
        %v776 = vld [vmem:[#allocation2 + $0x4] sm:$0x7]
        %v777 = vld [vmem:[#allocation2 + $0x8] sm:$0x7]
        %v778 = vld [vmem:[#allocation2 + $0xc] sm:$0x7]
        %v779 = vld [vmem:[#allocation2 + $0x10] sm:$0x7]
        %v780 = vld [vmem:[#allocation2 + $0x14] sm:$0x7]
        %v781 = vld [vmem:[#allocation2 + $0x18] sm:$0x7]
        %v782 = vld [vmem:[#allocation2 + $0x1c] sm:$0x7]
        %v783 = vld [vmem:[#allocation2 + $0x20] sm:$0x7]
        %v784 = vld [vmem:[#allocation2 + $0x24] sm:$0x7]
        %795 = vrot.lane.b32.xlu0 %v775, 127
        %v796 = vpop.permute.xlu0 %795
        %797 = vrot.lane.b32.xlu0 %v776, 127
        %v798 = vpop.permute.xlu0 %797
        %799 = vrot.lane.b32.xlu0 %v777, 127
        %v800 = vpop.permute.xlu0 %799
        %801 = vrot.lane.b32.xlu0 %v778, 127
        %v802 = vpop.permute.xlu0 %801
        %803 = vrot.lane.b32.xlu0 %v779, 127
        %v804 = vpop.permute.xlu0 %803
        %805 = vrot.lane.b32.xlu0 %v780, 127
        %v806 = vpop.permute.xlu0 %805
        %807 = vrot.lane.b32.xlu0 %v781, 127
        %v808 = vpop.permute.xlu0 %807
        %809 = vrot.lane.b32.xlu0 %v782, 127
        %v810 = vpop.permute.xlu0 %809
        %811 = vrot.lane.b32.xlu0 %v783, 127
        %v812 = vpop.permute.xlu0 %811
        %813 = vrot.lane.b32.xlu0 %v784, 127
        %v814 = vpop.permute.xlu0 %813
        %825 = vst.msk [vmem:[#allocation3 + $0x3] sm:$0x7] %vm764, %v796
        %826 = vst.msk [vmem:[#allocation3 + $0x23] sm:$0x7] %vm764, %v798
        %827 = vst.msk [vmem:[#allocation3 + $0x43] sm:$0x7] %vm764, %v800
        %828 = vst.msk [vmem:[#allocation3 + $0x63] sm:$0x7] %vm764, %v802
        %829 = vst.msk [vmem:[#allocation3 + $0x83] sm:$0x7] %vm764, %v804
        %830 = vst.msk [vmem:[#allocation3 + $0xa3] sm:$0x7] %vm764, %v806
        %831 = vst.msk [vmem:[#allocation3 + $0xc3] sm:$0x7] %vm764, %v808
        %832 = vst.msk [vmem:[#allocation3 + $0xe3] sm:$0x7] %vm764, %v810
        %833 = vst.msk [vmem:[#allocation3 + $0x103] sm:$0x7] %vm764, %v812
        %834 = vst.msk [vmem:[#allocation3 + $0x123] sm:$0x7] %vm764, %v814
        %v835 = vld [vmem:[#allocation2] sm:$0x7]
        %v836 = vld [vmem:[#allocation2 + $0x4] sm:$0x7]
        %v837 = vld [vmem:[#allocation2 + $0x8] sm:$0x7]
        %v838 = vld [vmem:[#allocation2 + $0xc] sm:$0x7]
        %v839 = vld [vmem:[#allocation2 + $0x10] sm:$0x7]
        %v840 = vld [vmem:[#allocation2 + $0x14] sm:$0x7]
        %v841 = vld [vmem:[#allocation2 + $0x18] sm:$0x7]
        %v842 = vld [vmem:[#allocation2 + $0x1c] sm:$0x7]
        %v843 = vld [vmem:[#allocation2 + $0x20] sm:$0x7]
        %v844 = vld [vmem:[#allocation2 + $0x24] sm:$0x7]
        %855 = vrot.lane.b32.xlu0 %v835, 126
        %v856 = vpop.permute.xlu0 %855
        %857 = vrot.lane.b32.xlu0 %v836, 126
        %v858 = vpop.permute.xlu0 %857
        %859 = vrot.lane.b32.xlu0 %v837, 126
        %v860 = vpop.permute.xlu0 %859
        %861 = vrot.lane.b32.xlu0 %v838, 126
        %v862 = vpop.permute.xlu0 %861
        %863 = vrot.lane.b32.xlu0 %v839, 126
        %v864 = vpop.permute.xlu0 %863
        %865 = vrot.lane.b32.xlu0 %v840, 126
        %v866 = vpop.permute.xlu0 %865
        %867 = vrot.lane.b32.xlu0 %v841, 126
        %v868 = vpop.permute.xlu0 %867
        %869 = vrot.lane.b32.xlu0 %v842, 126
        %v870 = vpop.permute.xlu0 %869
        %871 = vrot.lane.b32.xlu0 %v843, 126
        %v872 = vpop.permute.xlu0 %871
        %873 = vrot.lane.b32.xlu0 %v844, 126
        %v874 = vpop.permute.xlu0 %873
        %885 = vst.msk [vmem:[#allocation3 + $0x6] sm:$0x7] %vm764, %v856
        %886 = vst.msk [vmem:[#allocation3 + $0x26] sm:$0x7] %vm764, %v858
        %887 = vst.msk [vmem:[#allocation3 + $0x46] sm:$0x7] %vm764, %v860
        %888 = vst.msk [vmem:[#allocation3 + $0x66] sm:$0x7] %vm764, %v862
        %889 = vst.msk [vmem:[#allocation3 + $0x86] sm:$0x7] %vm764, %v864
        %890 = vst.msk [vmem:[#allocation3 + $0xa6] sm:$0x7] %vm764, %v866
        %891 = vst.msk [vmem:[#allocation3 + $0xc6] sm:$0x7] %vm764, %v868
        %892 = vst.msk [vmem:[#allocation3 + $0xe6] sm:$0x7] %vm764, %v870
        %893 = vst.msk [vmem:[#allocation3 + $0x106] sm:$0x7] %vm764, %v872
        %894 = vst.msk [vmem:[#allocation3 + $0x126] sm:$0x7] %vm764, %v874
        %s895 = scalar_lea.vmem [#allocation2], 4
        %v896 = vld [vmem:[%s895] sm:$0x7]
        %v897 = vld [vmem:[%s895 + $0x4] sm:$0x7]
        %v898 = vld [vmem:[%s895 + $0x8] sm:$0x7]
        %v899 = vld [vmem:[%s895 + $0xc] sm:$0x7]
        %v900 = vld [vmem:[%s895 + $0x10] sm:$0x7]
        %v901 = vld [vmem:[%s895 + $0x14] sm:$0x7]
        %v902 = vld [vmem:[%s895 + $0x18] sm:$0x7]
        %v903 = vld [vmem:[%s895 + $0x1c] sm:$0x7]
        %v904 = vld [vmem:[%s895 + $0x20] sm:$0x7]
        %v905 = vld [vmem:[%s895 + $0x24] sm:$0x7]
        %906 = vst.msk [vmem:[#allocation3 + $0x9] sm:$0x7] %vm764, %v896
        %907 = vst.msk [vmem:[#allocation3 + $0x29] sm:$0x7] %vm764, %v897
        %908 = vst.msk [vmem:[#allocation3 + $0x49] sm:$0x7] %vm764, %v898
        %909 = vst.msk [vmem:[#allocation3 + $0x69] sm:$0x7] %vm764, %v899
        %910 = vst.msk [vmem:[#allocation3 + $0x89] sm:$0x7] %vm764, %v900
        %911 = vst.msk [vmem:[#allocation3 + $0xa9] sm:$0x7] %vm764, %v901
        %912 = vst.msk [vmem:[#allocation3 + $0xc9] sm:$0x7] %vm764, %v902
        %913 = vst.msk [vmem:[#allocation3 + $0xe9] sm:$0x7] %vm764, %v903
        %914 = vst.msk [vmem:[#allocation3 + $0x109] sm:$0x7] %vm764, %v904
        %915 = vst.msk [vmem:[#allocation3 + $0x129] sm:$0x7] %vm764, %v905
        %v916 = vld [vmem:[%s895] sm:$0x7]
        %v917 = vld [vmem:[%s895 + $0x4] sm:$0x7]
        %v918 = vld [vmem:[%s895 + $0x8] sm:$0x7]
        %v919 = vld [vmem:[%s895 + $0xc] sm:$0x7]
        %v920 = vld [vmem:[%s895 + $0x10] sm:$0x7]
        %v921 = vld [vmem:[%s895 + $0x14] sm:$0x7]
        %v922 = vld [vmem:[%s895 + $0x18] sm:$0x7]
        %v923 = vld [vmem:[%s895 + $0x1c] sm:$0x7]
        %v924 = vld [vmem:[%s895 + $0x20] sm:$0x7]
        %v925 = vld [vmem:[%s895 + $0x24] sm:$0x7]
        %936 = vrot.lane.b32.xlu0 %v916, 127
        %v937 = vpop.permute.xlu0 %936
        %938 = vrot.lane.b32.xlu0 %v917, 127
        %v939 = vpop.permute.xlu0 %938
        %940 = vrot.lane.b32.xlu0 %v918, 127
        %v941 = vpop.permute.xlu0 %940
        %942 = vrot.lane.b32.xlu0 %v919, 127
        %v943 = vpop.permute.xlu0 %942
        %944 = vrot.lane.b32.xlu0 %v920, 127
        %v945 = vpop.permute.xlu0 %944
        %946 = vrot.lane.b32.xlu0 %v921, 127
        %v947 = vpop.permute.xlu0 %946
        %948 = vrot.lane.b32.xlu0 %v922, 127
        %v949 = vpop.permute.xlu0 %948
        %950 = vrot.lane.b32.xlu0 %v923, 127
        %v951 = vpop.permute.xlu0 %950
        %952 = vrot.lane.b32.xlu0 %v924, 127
        %v953 = vpop.permute.xlu0 %952
        %954 = vrot.lane.b32.xlu0 %v925, 127
        %v955 = vpop.permute.xlu0 %954
        %966 = vst.msk [vmem:[#allocation3 + $0xc] sm:$0x7] %vm764, %v937
        %967 = vst.msk [vmem:[#allocation3 + $0x2c] sm:$0x7] %vm764, %v939
        %968 = vst.msk [vmem:[#allocation3 + $0x4c] sm:$0x7] %vm764, %v941
        %969 = vst.msk [vmem:[#allocation3 + $0x6c] sm:$0x7] %vm764, %v943
        %970 = vst.msk [vmem:[#allocation3 + $0x8c] sm:$0x7] %vm764, %v945
        %971 = vst.msk [vmem:[#allocation3 + $0xac] sm:$0x7] %vm764, %v947
        %972 = vst.msk [vmem:[#allocation3 + $0xcc] sm:$0x7] %vm764, %v949
        %973 = vst.msk [vmem:[#allocation3 + $0xec] sm:$0x7] %vm764, %v951
        %974 = vst.msk [vmem:[#allocation3 + $0x10c] sm:$0x7] %vm764, %v953
        %975 = vst.msk [vmem:[#allocation3 + $0x12c] sm:$0x7] %vm764, %v955
        %v976 = vld [vmem:[%s895] sm:$0x7]
        %v977 = vld [vmem:[%s895 + $0x4] sm:$0x7]
        %v978 = vld [vmem:[%s895 + $0x8] sm:$0x7]
        %v979 = vld [vmem:[%s895 + $0xc] sm:$0x7]
        %v980 = vld [vmem:[%s895 + $0x10] sm:$0x7]
        %v981 = vld [vmem:[%s895 + $0x14] sm:$0x7]
        %v982 = vld [vmem:[%s895 + $0x18] sm:$0x7]
        %v983 = vld [vmem:[%s895 + $0x1c] sm:$0x7]
        %v984 = vld [vmem:[%s895 + $0x20] sm:$0x7]
        %v985 = vld [vmem:[%s895 + $0x24] sm:$0x7]
        %996 = vrot.lane.b32.xlu0 %v976, 126
        %v997 = vpop.permute.xlu0 %996
        %998 = vrot.lane.b32.xlu0 %v977, 126
        %v999 = vpop.permute.xlu0 %998
        %1000 = vrot.lane.b32.xlu0 %v978, 126
        %v1001 = vpop.permute.xlu0 %1000
        %1002 = vrot.lane.b32.xlu0 %v979, 126
        %v1003 = vpop.permute.xlu0 %1002
        %1004 = vrot.lane.b32.xlu0 %v980, 126
        %v1005 = vpop.permute.xlu0 %1004
        %1006 = vrot.lane.b32.xlu0 %v981, 126
        %v1007 = vpop.permute.xlu0 %1006
        %1008 = vrot.lane.b32.xlu0 %v982, 126
        %v1009 = vpop.permute.xlu0 %1008
        %1010 = vrot.lane.b32.xlu0 %v983, 126
        %v1011 = vpop.permute.xlu0 %1010
        %1012 = vrot.lane.b32.xlu0 %v984, 126
        %v1013 = vpop.permute.xlu0 %1012
        %1014 = vrot.lane.b32.xlu0 %v985, 126
        %v1015 = vpop.permute.xlu0 %1014
        %1026 = vst.msk [vmem:[#allocation3 + $0xf] sm:$0x7] %vm764, %v997
        %1027 = vst.msk [vmem:[#allocation3 + $0x2f] sm:$0x7] %vm764, %v999
        %1028 = vst.msk [vmem:[#allocation3 + $0x4f] sm:$0x7] %vm764, %v1001
        %1029 = vst.msk [vmem:[#allocation3 + $0x6f] sm:$0x7] %vm764, %v1003
        %1030 = vst.msk [vmem:[#allocation3 + $0x8f] sm:$0x7] %vm764, %v1005
        %1031 = vst.msk [vmem:[#allocation3 + $0xaf] sm:$0x7] %vm764, %v1007
        %1032 = vst.msk [vmem:[#allocation3 + $0xcf] sm:$0x7] %vm764, %v1009
        %1033 = vst.msk [vmem:[#allocation3 + $0xef] sm:$0x7] %vm764, %v1011
        %1034 = vst.msk [vmem:[#allocation3 + $0x10f] sm:$0x7] %vm764, %v1013
        %1035 = vst.msk [vmem:[#allocation3 + $0x12f] sm:$0x7] %vm764, %v1015
        %v1036 = vld [vmem:[%s707] sm:$0x7]
        %v1037 = vld [vmem:[%s707 + $0x4] sm:$0x7]
        %v1038 = vld [vmem:[%s707 + $0x8] sm:$0x7]
        %v1039 = vld [vmem:[%s707 + $0xc] sm:$0x7]
        %v1040 = vld [vmem:[%s707 + $0x10] sm:$0x7]
        %v1041 = vld [vmem:[%s707 + $0x14] sm:$0x7]
        %v1042 = vld [vmem:[%s707 + $0x18] sm:$0x7]
        %v1043 = vld [vmem:[%s707 + $0x1c] sm:$0x7]
        %v1044 = vld [vmem:[%s707 + $0x20] sm:$0x7]
        %v1045 = vld [vmem:[%s707 + $0x24] sm:$0x7]
        %1046 = vst.msk [vmem:[#allocation3 + $0x12] sm:$0x7] %vm764, %v1036
        %1047 = vst.msk [vmem:[#allocation3 + $0x32] sm:$0x7] %vm764, %v1037
        %1048 = vst.msk [vmem:[#allocation3 + $0x52] sm:$0x7] %vm764, %v1038
        %1049 = vst.msk [vmem:[#allocation3 + $0x72] sm:$0x7] %vm764, %v1039
        %1050 = vst.msk [vmem:[#allocation3 + $0x92] sm:$0x7] %vm764, %v1040
        %1051 = vst.msk [vmem:[#allocation3 + $0xb2] sm:$0x7] %vm764, %v1041
        %1052 = vst.msk [vmem:[#allocation3 + $0xd2] sm:$0x7] %vm764, %v1042
        %1053 = vst.msk [vmem:[#allocation3 + $0xf2] sm:$0x7] %vm764, %v1043
        %1054 = vst.msk [vmem:[#allocation3 + $0x112] sm:$0x7] %vm764, %v1044
        %1055 = vst.msk [vmem:[#allocation3 + $0x132] sm:$0x7] %vm764, %v1045
        %v1056 = vld [vmem:[%s707] sm:$0x7]
        %v1057 = vld [vmem:[%s707 + $0x4] sm:$0x7]
        %v1058 = vld [vmem:[%s707 + $0x8] sm:$0x7]
        %v1059 = vld [vmem:[%s707 + $0xc] sm:$0x7]
        %v1060 = vld [vmem:[%s707 + $0x10] sm:$0x7]
        %v1061 = vld [vmem:[%s707 + $0x14] sm:$0x7]
        %v1062 = vld [vmem:[%s707 + $0x18] sm:$0x7]
        %v1063 = vld [vmem:[%s707 + $0x1c] sm:$0x7]
        %v1064 = vld [vmem:[%s707 + $0x20] sm:$0x7]
        %v1065 = vld [vmem:[%s707 + $0x24] sm:$0x7]
        %1076 = vrot.lane.b32.xlu0 %v1056, 127
        %v1077 = vpop.permute.xlu0 %1076
        %1078 = vrot.lane.b32.xlu0 %v1057, 127
        %v1079 = vpop.permute.xlu0 %1078
        %1080 = vrot.lane.b32.xlu0 %v1058, 127
        %v1081 = vpop.permute.xlu0 %1080
        %1082 = vrot.lane.b32.xlu0 %v1059, 127
        %v1083 = vpop.permute.xlu0 %1082
        %1084 = vrot.lane.b32.xlu0 %v1060, 127
        %v1085 = vpop.permute.xlu0 %1084
        %1086 = vrot.lane.b32.xlu0 %v1061, 127
        %v1087 = vpop.permute.xlu0 %1086
        %1088 = vrot.lane.b32.xlu0 %v1062, 127
        %v1089 = vpop.permute.xlu0 %1088
        %1090 = vrot.lane.b32.xlu0 %v1063, 127
        %v1091 = vpop.permute.xlu0 %1090
        %1092 = vrot.lane.b32.xlu0 %v1064, 127
        %v1093 = vpop.permute.xlu0 %1092
        %1094 = vrot.lane.b32.xlu0 %v1065, 127
        %v1095 = vpop.permute.xlu0 %1094
        %1106 = vst.msk [vmem:[#allocation3 + $0x15] sm:$0x7] %vm764, %v1077
        %1107 = vst.msk [vmem:[#allocation3 + $0x35] sm:$0x7] %vm764, %v1079
        %1108 = vst.msk [vmem:[#allocation3 + $0x55] sm:$0x7] %vm764, %v1081
        %1109 = vst.msk [vmem:[#allocation3 + $0x75] sm:$0x7] %vm764, %v1083
        %1110 = vst.msk [vmem:[#allocation3 + $0x95] sm:$0x7] %vm764, %v1085
        %1111 = vst.msk [vmem:[#allocation3 + $0xb5] sm:$0x7] %vm764, %v1087
        %1112 = vst.msk [vmem:[#allocation3 + $0xd5] sm:$0x7] %vm764, %v1089
        %1113 = vst.msk [vmem:[#allocation3 + $0xf5] sm:$0x7] %vm764, %v1091
        %1114 = vst.msk [vmem:[#allocation3 + $0x115] sm:$0x7] %vm764, %v1093
        %1115 = vst.msk [vmem:[#allocation3 + $0x135] sm:$0x7] %vm764, %v1095
        %v1116 = vld [vmem:[%s707] sm:$0x7]
        %v1117 = vld [vmem:[%s707 + $0x4] sm:$0x7]
        %v1118 = vld [vmem:[%s707 + $0x8] sm:$0x7]
        %v1119 = vld [vmem:[%s707 + $0xc] sm:$0x7]
        %v1120 = vld [vmem:[%s707 + $0x10] sm:$0x7]
        %v1121 = vld [vmem:[%s707 + $0x14] sm:$0x7]
        %v1122 = vld [vmem:[%s707 + $0x18] sm:$0x7]
        %v1123 = vld [vmem:[%s707 + $0x1c] sm:$0x7]
        %v1124 = vld [vmem:[%s707 + $0x20] sm:$0x7]
        %v1125 = vld [vmem:[%s707 + $0x24] sm:$0x7]
        %1136 = vrot.lane.b32.xlu0 %v1116, 126
        %v1137 = vpop.permute.xlu0 %1136
        %1138 = vrot.lane.b32.xlu0 %v1117, 126
        %v1139 = vpop.permute.xlu0 %1138
        %1140 = vrot.lane.b32.xlu0 %v1118, 126
        %v1141 = vpop.permute.xlu0 %1140
        %1142 = vrot.lane.b32.xlu0 %v1119, 126
        %v1143 = vpop.permute.xlu0 %1142
        %1144 = vrot.lane.b32.xlu0 %v1120, 126
        %v1145 = vpop.permute.xlu0 %1144
        %1146 = vrot.lane.b32.xlu0 %v1121, 126
        %v1147 = vpop.permute.xlu0 %1146
        %1148 = vrot.lane.b32.xlu0 %v1122, 126
        %v1149 = vpop.permute.xlu0 %1148
        %1150 = vrot.lane.b32.xlu0 %v1123, 126
        %v1151 = vpop.permute.xlu0 %1150
        %1152 = vrot.lane.b32.xlu0 %v1124, 126
        %v1153 = vpop.permute.xlu0 %1152
        %1154 = vrot.lane.b32.xlu0 %v1125, 126
        %v1155 = vpop.permute.xlu0 %1154
        %1166 = vst.msk [vmem:[#allocation3 + $0x18] sm:$0x7] %vm764, %v1137
        %1167 = vst.msk [vmem:[#allocation3 + $0x38] sm:$0x7] %vm764, %v1139
        %1168 = vst.msk [vmem:[#allocation3 + $0x58] sm:$0x7] %vm764, %v1141
        %1169 = vst.msk [vmem:[#allocation3 + $0x78] sm:$0x7] %vm764, %v1143
        %1170 = vst.msk [vmem:[#allocation3 + $0x98] sm:$0x7] %vm764, %v1145
        %1171 = vst.msk [vmem:[#allocation3 + $0xb8] sm:$0x7] %vm764, %v1147
        %1172 = vst.msk [vmem:[#allocation3 + $0xd8] sm:$0x7] %vm764, %v1149
        %1173 = vst.msk [vmem:[#allocation3 + $0xf8] sm:$0x7] %vm764, %v1151
        %1174 = vst.msk [vmem:[#allocation3 + $0x118] sm:$0x7] %vm764, %v1153
        %1175 = vst.msk [vmem:[#allocation3 + $0x138] sm:$0x7] %vm764, %v1155
        %v1176 = vld [vmem:[#allocation3] sm:$0xff]
        %v1177 = vld [vmem:[#allocation3 + $0x8] sm:$0xff]
        %v1178 = vld [vmem:[#allocation3 + $0x10] sm:$0xff]
        %v1179 = vld [vmem:[#allocation3 + $0x18] sm:$0x7]
        %v1180 = vld [vmem:[#allocation3 + $0x20] sm:$0xff]
        %v1181 = vld [vmem:[#allocation3 + $0x28] sm:$0xff]
        %v1182 = vld [vmem:[#allocation3 + $0x30] sm:$0xff]
        %v1183 = vld [vmem:[#allocation3 + $0x38] sm:$0x7]
        %v1184 = vld [vmem:[#allocation3 + $0x40] sm:$0xff]
        %v1185 = vld [vmem:[#allocation3 + $0x48] sm:$0xff]
        %v1186 = vld [vmem:[#allocation3 + $0x50] sm:$0xff]
        %v1187 = vld [vmem:[#allocation3 + $0x58] sm:$0x7]
        %v1188 = vld [vmem:[#allocation3 + $0x60] sm:$0xff]
        %v1189 = vld [vmem:[#allocation3 + $0x68] sm:$0xff]
        %v1190 = vld [vmem:[#allocation3 + $0x70] sm:$0xff]
        %v1191 = vld [vmem:[#allocation3 + $0x78] sm:$0x7]
        %v1192 = vld [vmem:[#allocation3 + $0x80] sm:$0xff]
        %v1193 = vld [vmem:[#allocation3 + $0x88] sm:$0xff]
        %v1194 = vld [vmem:[#allocation3 + $0x90] sm:$0xff]
        %v1195 = vld [vmem:[#allocation3 + $0x98] sm:$0x7]
        %v1196 = vld [vmem:[#allocation3 + $0xa0] sm:$0xff]
        %v1197 = vld [vmem:[#allocation3 + $0xa8] sm:$0xff]
        %v1198 = vld [vmem:[#allocation3 + $0xb0] sm:$0xff]
        %v1199 = vld [vmem:[#allocation3 + $0xb8] sm:$0x7]
        %v1200 = vld [vmem:[#allocation3 + $0xc0] sm:$0xff]
        %v1201 = vld [vmem:[#allocation3 + $0xc8] sm:$0xff]
        %v1202 = vld [vmem:[#allocation3 + $0xd0] sm:$0xff]
        %v1203 = vld [vmem:[#allocation3 + $0xd8] sm:$0x7]
        %v1204 = vld [vmem:[#allocation3 + $0xe0] sm:$0xff]
        %v1205 = vld [vmem:[#allocation3 + $0xe8] sm:$0xff]
        %v1206 = vld [vmem:[#allocation3 + $0xf0] sm:$0xff]
        %v1207 = vld [vmem:[#allocation3 + $0xf8] sm:$0x7]
        %v1208 = vld [vmem:[#allocation3 + $0x100] sm:$0xff]
        %v1209 = vld [vmem:[#allocation3 + $0x108] sm:$0xff]
        %v1210 = vld [vmem:[#allocation3 + $0x110] sm:$0xff]
        %v1211 = vld [vmem:[#allocation3 + $0x118] sm:$0x7]
        %v1212 = vld [vmem:[#allocation3 + $0x120] sm:$0xff]
        %v1213 = vld [vmem:[#allocation3 + $0x128] sm:$0xff]
        %v1214 = vld [vmem:[#allocation3 + $0x130] sm:$0xff]
        %v1215 = vld [vmem:[#allocation3 + $0x138] sm:$0x7]
        %v1216 = vpack.c.bf16 %v1177, %v1176
        %v1217 = vpack.c.bf16 %v1179, %v1178
        %v1218 = vpack.c.bf16 %v1181, %v1180
        %v1219 = vpack.c.bf16 %v1183, %v1182
        %v1220 = vpack.c.bf16 %v1185, %v1184
        %v1221 = vpack.c.bf16 %v1187, %v1186
        %v1222 = vpack.c.bf16 %v1189, %v1188
        %v1223 = vpack.c.bf16 %v1191, %v1190
        %v1224 = vpack.c.bf16 %v1193, %v1192
        %v1225 = vpack.c.bf16 %v1195, %v1194
        %v1226 = vpack.c.bf16 %v1197, %v1196
        %v1227 = vpack.c.bf16 %v1199, %v1198
        %v1228 = vpack.c.bf16 %v1201, %v1200
        %v1229 = vpack.c.bf16 %v1203, %v1202
        %v1230 = vpack.c.bf16 %v1205, %v1204
        %v1231 = vpack.c.bf16 %v1207, %v1206
        %v1232 = vpack.c.bf16 %v1209, %v1208
        %v1233 = vpack.c.bf16 %v1211, %v1210
        %v1234 = vpack.c.bf16 %v1213, %v1212
        %v1235 = vpack.c.bf16 %v1215, %v1214
        %v1236 = vld [vmem:[#allocation12] sm:$0xf]
        %v1237 = vld [vmem:[#allocation12 + $0x4] sm:$0xf]
        %v1238 = vld [vmem:[#allocation12 + $0x8] sm:$0xf]
        %v1239 = vld [vmem:[#allocation12 + $0xc] sm:$0xf]
        %v1240 = vld [vmem:[#allocation12 + $0x10] sm:$0xf]
        %v1241 = vld [vmem:[#allocation12 + $0x14] sm:$0xf]
        %v1242 = vld [vmem:[#allocation12 + $0x18] sm:$0xf]
        %v1243 = vld [vmem:[#allocation12 + $0x1c] sm:$0xf]
        %v1244 = vld [vmem:[#allocation13] sm:$0xff]
        %v1245 = vld [vmem:[#allocation13 + $0x8] sm:$0xff]
        %v1246 = vld [vmem:[#allocation13 + $0x10] sm:$0xff]
        %v1247 = vld [vmem:[#allocation13 + $0x18] sm:$0xff]
        %v1248 = vld [vmem:[#allocation13 + $0x20] sm:$0xff]
        %v1249 = vld [vmem:[#allocation13 + $0x28] sm:$0xff]
        %v1250 = vld [vmem:[#allocation13 + $0x30] sm:$0xff]
        %v1251 = vld [vmem:[#allocation13 + $0x38] sm:$0xff]
        %1253 = vset.pattern.permute.xlu0 0
        %1254 = vperm.xlu0 %1253, %v1244
        %v1255 = vpop.permute.xlu0 %1254
        %1258 = vset.pattern.permute.xlu0 0
        %1259 = vperm.xlu0 %1258, %v1245
        %v1260 = vpop.permute.xlu0 %1259
        %1263 = vset.pattern.permute.xlu0 0
        %1264 = vperm.xlu0 %1263, %v1246
        %v1265 = vpop.permute.xlu0 %1264
        %1268 = vset.pattern.permute.xlu0 0
        %1269 = vperm.xlu0 %1268, %v1247
        %v1270 = vpop.permute.xlu0 %1269
        %1273 = vset.pattern.permute.xlu0 0
        %1274 = vperm.xlu0 %1273, %v1248
        %v1275 = vpop.permute.xlu0 %1274
        %1278 = vset.pattern.permute.xlu0 0
        %1279 = vperm.xlu0 %1278, %v1249
        %v1280 = vpop.permute.xlu0 %1279
        %1283 = vset.pattern.permute.xlu0 0
        %1284 = vperm.xlu0 %1283, %v1250
        %v1285 = vpop.permute.xlu0 %1284
        %1288 = vset.pattern.permute.xlu0 0
        %1289 = vperm.xlu0 %1288, %v1251
        %v1290 = vpop.permute.xlu0 %1289
        %v1300 = vunpack.c.l.b16 %v1236
        %v1301 = vunpack.c.l.b16 %v1237
        %v1302 = vunpack.c.l.b16 %v1238
        %v1303 = vunpack.c.l.b16 %v1239
        %v1304 = vunpack.c.l.b16 %v1240
        %v1305 = vunpack.c.l.b16 %v1241
        %v1306 = vunpack.c.l.b16 %v1242
        %v1307 = vunpack.c.l.b16 %v1243
        %v1308 = vpack.c.b16 %v1301, %v1300
        %v1309 = vpack.c.b16 %v1303, %v1302
        %v1310 = vpack.c.b16 %v1305, %v1304
        %v1311 = vpack.c.b16 %v1307, %v1306
        %vm1312 = vcmask 220160
        %v1314 = vsel %vm1312, %v1308, 0
        %v1317 = vsel %vm1312, %v1309, 0
        %v1320 = vsel %vm1312, %v1310, 0
        %v1323 = vsel %vm1312, %v1311, 0
        %vm1325 = vcmask 1044480
        %vm1326 = vcmask 1045504
        %v1327 = vsel %vm1325, 4294967295, 65535
        %v1328 = vsel %vm1326, %v1327, 0
        %v1330 = vand.u32 %v1217, %v1328
        %1332 = vmatprep.subr.bf16.mxu0 0
        %1333 = vmatpush1.bf16.msra.mxu0 %v1216
        %1334 = vmatprep.subr.bf16.mxu0 0
        %1335 = vmatpush1.bf16.msra.mxu0 %v1330
        %1336 = vmatprep.subr.bf16.mxu0 0
        %1337 = vmatpush1.bf16.msra.mxu0 0
        %1338 = vmatprep.subr.bf16.mxu0 0
        %1339 = vmatpush1.bf16.msra.mxu0 0
        %1340 = vmatprep.subr.bf16.mxu0 0
        %1341 = vmatpush1.bf16.msra.mxu0 0
        %1342 = vmatprep.subr.bf16.mxu0 0
        %1343 = vmatpush1.bf16.msra.mxu0 0
        %1344 = vmatprep.subr.bf16.mxu0 0
        %1345 = vmatpush1.bf16.msra.mxu0 0
        %1346 = vmatprep.subr.bf16.mxu0 0
        %1347 = vmatpush1.bf16.msra.mxu0 0
        %1348 = vmatprep.subr.bf16.mxu0 0
        %1349 = vmatpush1.bf16.msra.mxu0 0
        %1350 = vmatprep.subr.bf16.mxu0 0
        %1351 = vmatpush1.bf16.msra.mxu0 0
        %1352 = vmatprep.subr.bf16.mxu0 0
        %1353 = vmatpush1.bf16.msra.mxu0 0
        %1354 = vmatprep.subr.bf16.mxu0 0
        %1355 = vmatpush1.bf16.msra.mxu0 0
        %1356 = vmatprep.subr.bf16.mxu0 0
        %1357 = vmatpush1.bf16.msra.mxu0 0
        %1358 = vmatprep.subr.bf16.mxu0 0
        %1359 = vmatpush1.bf16.msra.mxu0 0
        %1360 = vmatprep.subr.bf16.mxu0 0
        %1361 = vmatpush1.bf16.msra.mxu0 0
        %1362 = vmatprep.subr.bf16.mxu0 0
        %1363 = vmatpush1.bf16.msra.mxu0 0
        %1364 = vmatprep.mubr.bf16.mxu0 0
        %1365 = vmatmul.mubr.bf16.gmra.mrb[0].mxu0 %v1314
        %v1366 = vpop.f32.mrb[0].mxu0
        %v1367 = vadd.f32 %v1255, %v1366
        %v1368 = vpop.f32.mrb[0].mxu0
        %v1369 = vpop.f32.mrb[0].mxu0
        %v1370 = vadd.f32 %v1260, %v1369
        %v1371 = vpop.f32.mrb[0].mxu0
        %1372 = vmatprep.mubr.bf16.mxu0 0
        %1373 = vmatmul.mubr.bf16.gmra.mrb[0].mxu0 %v1317
        %v1374 = vpop.f32.mrb[0].mxu0
        %v1375 = vadd.f32 %v1265, %v1374
        %v1376 = vpop.f32.mrb[0].mxu0
        %v1377 = vpop.f32.mrb[0].mxu0
        %v1378 = vadd.f32 %v1270, %v1377
        %v1379 = vpop.f32.mrb[0].mxu0
        %1380 = vmatprep.mubr.bf16.mxu0 0
        %1381 = vmatmul.mubr.bf16.gmra.mrb[0].mxu0 %v1320
        %v1382 = vpop.f32.mrb[0].mxu0
        %v1383 = vadd.f32 %v1275, %v1382
        %v1384 = vpop.f32.mrb[0].mxu0
        %v1385 = vpop.f32.mrb[0].mxu0
        %v1386 = vadd.f32 %v1280, %v1385
        %v1387 = vpop.f32.mrb[0].mxu0
        %1388 = vmatprep.mubr.bf16.mxu0 0
        %1389 = vmatmul.mubr.bf16.gmra.mrb[0].mxu0 %v1323
        %v1390 = vpop.f32.mrb[0].mxu0
        %v1391 = vadd.f32 %v1285, %v1390
        %v1392 = vpop.f32.mrb[0].mxu0
        %v1393 = vpop.f32.mrb[0].mxu0
        %v1394 = vadd.f32 %v1290, %v1393
        %v1395 = vpop.f32.mrb[0].mxu0
        %1396 = vdwg.mxu0
        %v1398 = vand.u32 %v1219, %v1328
        %1400 = vmatprep.subr.bf16.mxu0 0
        %1401 = vmatpush1.bf16.msra.mxu0 %v1218
        %1402 = vmatprep.subr.bf16.mxu0 0
        %1403 = vmatpush1.bf16.msra.mxu0 %v1398
        %1404 = vmatprep.subr.bf16.mxu0 0
        %1405 = vmatpush1.bf16.msra.mxu0 0
        %1406 = vmatprep.subr.bf16.mxu0 0
        %1407 = vmatpush1.bf16.msra.mxu0 0
        %1408 = vmatprep.subr.bf16.mxu0 0
        %1409 = vmatpush1.bf16.msra.mxu0 0
        %1410 = vmatprep.subr.bf16.mxu0 0
        %1411 = vmatpush1.bf16.msra.mxu0 0
        %1412 = vmatprep.subr.bf16.mxu0 0
        %1413 = vmatpush1.bf16.msra.mxu0 0
        %1414 = vmatprep.subr.bf16.mxu0 0
        %1415 = vmatpush1.bf16.msra.mxu0 0
        %1416 = vmatprep.subr.bf16.mxu0 0
        %1417 = vmatpush1.bf16.msra.mxu0 0
        %1418 = vmatprep.subr.bf16.mxu0 0
        %1419 = vmatpush1.bf16.msra.mxu0 0
        %1420 = vmatprep.subr.bf16.mxu0 0
        %1421 = vmatpush1.bf16.msra.mxu0 0
        %1422 = vmatprep.subr.bf16.mxu0 0
        %1423 = vmatpush1.bf16.msra.mxu0 0
        %1424 = vmatprep.subr.bf16.mxu0 0
        %1425 = vmatpush1.bf16.msra.mxu0 0
        %1426 = vmatprep.subr.bf16.mxu0 0
        %1427 = vmatpush1.bf16.msra.mxu0 0
        %1428 = vmatprep.subr.bf16.mxu0 0
        %1429 = vmatpush1.bf16.msra.mxu0 0
        %1430 = vmatprep.subr.bf16.mxu0 0
        %1431 = vmatpush1.bf16.msra.mxu0 0
        %1432 = vmatprep.mubr.bf16.mxu0 0
        %1433 = vmatmul.mubr.bf16.gmra.mrb[0].mxu0 %v1314
        %v1434 = vpop.f32.mrb[0].mxu0
        %v1435 = vadd.f32 %v1255, %v1434
        %v1436 = vpop.f32.mrb[0].mxu0
        %v1437 = vpop.f32.mrb[0].mxu0
        %v1438 = vadd.f32 %v1260, %v1437
        %v1439 = vpop.f32.mrb[0].mxu0
        %1440 = vmatprep.mubr.bf16.mxu0 0
        %1441 = vmatmul.mubr.bf16.gmra.mrb[0].mxu0 %v1317
        %v1442 = vpop.f32.mrb[0].mxu0
        %v1443 = vadd.f32 %v1265, %v1442
        %v1444 = vpop.f32.mrb[0].mxu0
        %v1445 = vpop.f32.mrb[0].mxu0
        %v1446 = vadd.f32 %v1270, %v1445
        %v1447 = vpop.f32.mrb[0].mxu0
        %1448 = vmatprep.mubr.bf16.mxu0 0
        %1449 = vmatmul.mubr.bf16.gmra.mrb[0].mxu0 %v1320
        %v1450 = vpop.f32.mrb[0].mxu0
        %v1451 = vadd.f32 %v1275, %v1450
        %v1452 = vpop.f32.mrb[0].mxu0
        %v1453 = vpop.f32.mrb[0].mxu0
        %v1454 = vadd.f32 %v1280, %v1453
        %v1455 = vpop.f32.mrb[0].mxu0
        %1456 = vmatprep.mubr.bf16.mxu0 0
        %1457 = vmatmul.mubr.bf16.gmra.mrb[0].mxu0 %v1323
        %v1458 = vpop.f32.mrb[0].mxu0
        %v1459 = vadd.f32 %v1285, %v1458
        %v1460 = vpop.f32.mrb[0].mxu0
        %v1461 = vpop.f32.mrb[0].mxu0
        %v1462 = vadd.f32 %v1290, %v1461
        %v1463 = vpop.f32.mrb[0].mxu0
        %1464 = vdwg.mxu0
        %v1466 = vand.u32 %v1221, %v1328
        %1468 = vmatprep.subr.bf16.mxu0 0
        %1469 = vmatpush1.bf16.msra.mxu0 %v1220
        %1470 = vmatprep.subr.bf16.mxu0 0
        %1471 = vmatpush1.bf16.msra.mxu0 %v1466
        %1472 = vmatprep.subr.bf16.mxu0 0
        %1473 = vmatpush1.bf16.msra.mxu0 0
        %1474 = vmatprep.subr.bf16.mxu0 0
        %1475 = vmatpush1.bf16.msra.mxu0 0
        %1476 = vmatprep.subr.bf16.mxu0 0
        %1477 = vmatpush1.bf16.msra.mxu0 0
        %1478 = vmatprep.subr.bf16.mxu0 0
        %1479 = vmatpush1.bf16.msra.mxu0 0
        %1480 = vmatprep.subr.bf16.mxu0 0
        %1481 = vmatpush1.bf16.msra.mxu0 0
        %1482 = vmatprep.subr.bf16.mxu0 0
        %1483 = vmatpush1.bf16.msra.mxu0 0
        %1484 = vmatprep.subr.bf16.mxu0 0
        %1485 = vmatpush1.bf16.msra.mxu0 0
        %1486 = vmatprep.subr.bf16.mxu0 0
        %1487 = vmatpush1.bf16.msra.mxu0 0
        %1488 = vmatprep.subr.bf16.mxu0 0
        %1489 = vmatpush1.bf16.msra.mxu0 0
        %1490 = vmatprep.subr.bf16.mxu0 0
        %1491 = vmatpush1.bf16.msra.mxu0 0
        %1492 = vmatprep.subr.bf16.mxu0 0
        %1493 = vmatpush1.bf16.msra.mxu0 0
        %1494 = vmatprep.subr.bf16.mxu0 0
        %1495 = vmatpush1.bf16.msra.mxu0 0
        %1496 = vmatprep.subr.bf16.mxu0 0
        %1497 = vmatpush1.bf16.msra.mxu0 0
        %1498 = vmatprep.subr.bf16.mxu0 0
        %1499 = vmatpush1.bf16.msra.mxu0 0
        %1500 = vmatprep.mubr.bf16.mxu0 0
        %1501 = vmatmul.mubr.bf16.gmra.mrb[0].mxu0 %v1314
        %v1502 = vpop.f32.mrb[0].mxu0
        %v1503 = vadd.f32 %v1255, %v1502
        %v1504 = vpop.f32.mrb[0].mxu0
        %v1505 = vpop.f32.mrb[0].mxu0
        %v1506 = vadd.f32 %v1260, %v1505
        %v1507 = vpop.f32.mrb[0].mxu0
        %1508 = vmatprep.mubr.bf16.mxu0 0
        %1509 = vmatmul.mubr.bf16.gmra.mrb[0].mxu0 %v1317
        %v1510 = vpop.f32.mrb[0].mxu0
        %v1511 = vadd.f32 %v1265, %v1510
        %v1512 = vpop.f32.mrb[0].mxu0
        %v1513 = vpop.f32.mrb[0].mxu0
        %v1514 = vadd.f32 %v1270, %v1513
        %v1515 = vpop.f32.mrb[0].mxu0
        %1516 = vmatprep.mubr.bf16.mxu0 0
        %1517 = vmatmul.mubr.bf16.gmra.mrb[0].mxu0 %v1320
        %v1518 = vpop.f32.mrb[0].mxu0
        %v1519 = vadd.f32 %v1275, %v1518
        %v1520 = vpop.f32.mrb[0].mxu0
        %v1521 = vpop.f32.mrb[0].mxu0
        %v1522 = vadd.f32 %v1280, %v1521
        %v1523 = vpop.f32.mrb[0].mxu0
        %1524 = vmatprep.mubr.bf16.mxu0 0
        %1525 = vmatmul.mubr.bf16.gmra.mrb[0].mxu0 %v1323
        %v1526 = vpop.f32.mrb[0].mxu0
        %v1527 = vadd.f32 %v1285, %v1526
        %v1528 = vpop.f32.mrb[0].mxu0
        %v1529 = vpop.f32.mrb[0].mxu0
        %v1530 = vadd.f32 %v1290, %v1529
        %v1531 = vpop.f32.mrb[0].mxu0
        %1532 = vdwg.mxu0
        %v1534 = vand.u32 %v1223, %v1328
        %1536 = vmatprep.subr.bf16.mxu0 0
        %1537 = vmatpush1.bf16.msra.mxu0 %v1222
        %1538 = vmatprep.subr.bf16.mxu0 0
        %1539 = vmatpush1.bf16.msra.mxu0 %v1534
        %1540 = vmatprep.subr.bf16.mxu0 0
        %1541 = vmatpush1.bf16.msra.mxu0 0
        %1542 = vmatprep.subr.bf16.mxu0 0
        %1543 = vmatpush1.bf16.msra.mxu0 0
        %1544 = vmatprep.subr.bf16.mxu0 0
        %1545 = vmatpush1.bf16.msra.mxu0 0
        %1546 = vmatprep.subr.bf16.mxu0 0
        %1547 = vmatpush1.bf16.msra.mxu0 0
        %1548 = vmatprep.subr.bf16.mxu0 0
        %1549 = vmatpush1.bf16.msra.mxu0 0
        %1550 = vmatprep.subr.bf16.mxu0 0
        %1551 = vmatpush1.bf16.msra.mxu0 0
        %1552 = vmatprep.subr.bf16.mxu0 0
        %1553 = vmatpush1.bf16.msra.mxu0 0
        %1554 = vmatprep.subr.bf16.mxu0 0
        %1555 = vmatpush1.bf16.msra.mxu0 0
        %1556 = vmatprep.subr.bf16.mxu0 0
        %1557 = vmatpush1.bf16.msra.mxu0 0
        %1558 = vmatprep.subr.bf16.mxu0 0
        %1559 = vmatpush1.bf16.msra.mxu0 0
        %1560 = vmatprep.subr.bf16.mxu0 0
        %1561 = vmatpush1.bf16.msra.mxu0 0
        %1562 = vmatprep.subr.bf16.mxu0 0
        %1563 = vmatpush1.bf16.msra.mxu0 0
        %1564 = vmatprep.subr.bf16.mxu0 0
        %1565 = vmatpush1.bf16.msra.mxu0 0
        %1566 = vmatprep.subr.bf16.mxu0 0
        %1567 = vmatpush1.bf16.msra.mxu0 0
        %1568 = vmatprep.mubr.bf16.mxu0 0
        %1569 = vmatmul.mubr.bf16.gmra.mrb[0].mxu0 %v1314
        %v1570 = vpop.f32.mrb[0].mxu0
        %v1571 = vadd.f32 %v1255, %v1570
        %v1572 = vpop.f32.mrb[0].mxu0
        %v1573 = vpop.f32.mrb[0].mxu0
        %v1574 = vadd.f32 %v1260, %v1573
        %v1575 = vpop.f32.mrb[0].mxu0
        %1576 = vmatprep.mubr.bf16.mxu0 0
        %1577 = vmatmul.mubr.bf16.gmra.mrb[0].mxu0 %v1317
        %v1578 = vpop.f32.mrb[0].mxu0
        %v1579 = vadd.f32 %v1265, %v1578
        %v1580 = vpop.f32.mrb[0].mxu0
        %v1581 = vpop.f32.mrb[0].mxu0
        %v1582 = vadd.f32 %v1270, %v1581
        %v1583 = vpop.f32.mrb[0].mxu0
        %1584 = vmatprep.mubr.bf16.mxu0 0
        %1585 = vmatmul.mubr.bf16.gmra.mrb[0].mxu0 %v1320
        %v1586 = vpop.f32.mrb[0].mxu0
        %v1587 = vadd.f32 %v1275, %v1586
        %v1588 = vpop.f32.mrb[0].mxu0
        %v1589 = vpop.f32.mrb[0].mxu0
        %v1590 = vadd.f32 %v1280, %v1589
        %v1591 = vpop.f32.mrb[0].mxu0
        %1592 = vmatprep.mubr.bf16.mxu0 0
        %1593 = vmatmul.mubr.bf16.gmra.mrb[0].mxu0 %v1323
        %v1594 = vpop.f32.mrb[0].mxu0
        %v1595 = vadd.f32 %v1285, %v1594
        %v1596 = vpop.f32.mrb[0].mxu0
        %v1597 = vpop.f32.mrb[0].mxu0
        %v1598 = vadd.f32 %v1290, %v1597
        %v1599 = vpop.f32.mrb[0].mxu0
        %1600 = vdwg.mxu0
        %v1602 = vand.u32 %v1225, %v1328
        %1604 = vmatprep.subr.bf16.mxu0 0
        %1605 = vmatpush1.bf16.msra.mxu0 %v1224
        %1606 = vmatprep.subr.bf16.mxu0 0
        %1607 = vmatpush1.bf16.msra.mxu0 %v1602
        %1608 = vmatprep.subr.bf16.mxu0 0
        %1609 = vmatpush1.bf16.msra.mxu0 0
        %1610 = vmatprep.subr.bf16.mxu0 0
        %1611 = vmatpush1.bf16.msra.mxu0 0
        %1612 = vmatprep.subr.bf16.mxu0 0
        %1613 = vmatpush1.bf16.msra.mxu0 0
        %1614 = vmatprep.subr.bf16.mxu0 0
        %1615 = vmatpush1.bf16.msra.mxu0 0
        %1616 = vmatprep.subr.bf16.mxu0 0
        %1617 = vmatpush1.bf16.msra.mxu0 0
        %1618 = vmatprep.subr.bf16.mxu0 0
        %1619 = vmatpush1.bf16.msra.mxu0 0
        %1620 = vmatprep.subr.bf16.mxu0 0
        %1621 = vmatpush1.bf16.msra.mxu0 0
        %1622 = vmatprep.subr.bf16.mxu0 0
        %1623 = vmatpush1.bf16.msra.mxu0 0
        %1624 = vmatprep.subr.bf16.mxu0 0
        %1625 = vmatpush1.bf16.msra.mxu0 0
        %1626 = vmatprep.subr.bf16.mxu0 0
        %1627 = vmatpush1.bf16.msra.mxu0 0
        %1628 = vmatprep.subr.bf16.mxu0 0
        %1629 = vmatpush1.bf16.msra.mxu0 0
        %1630 = vmatprep.subr.bf16.mxu0 0
        %1631 = vmatpush1.bf16.msra.mxu0 0
        %1632 = vmatprep.subr.bf16.mxu0 0
        %1633 = vmatpush1.bf16.msra.mxu0 0
        %1634 = vmatprep.subr.bf16.mxu0 0
        %1635 = vmatpush1.bf16.msra.mxu0 0
        %1636 = vmatprep.mubr.bf16.mxu0 0
        %1637 = vmatmul.mubr.bf16.gmra.mrb[0].mxu0 %v1314
        %v1638 = vpop.f32.mrb[0].mxu0
        %v1639 = vadd.f32 %v1255, %v1638
        %v1640 = vpop.f32.mrb[0].mxu0
        %v1641 = vpop.f32.mrb[0].mxu0
        %v1642 = vadd.f32 %v1260, %v1641
        %v1643 = vpop.f32.mrb[0].mxu0
        %1644 = vmatprep.mubr.bf16.mxu0 0
        %1645 = vmatmul.mubr.bf16.gmra.mrb[0].mxu0 %v1317
        %v1646 = vpop.f32.mrb[0].mxu0
        %v1647 = vadd.f32 %v1265, %v1646
        %v1648 = vpop.f32.mrb[0].mxu0
        %v1649 = vpop.f32.mrb[0].mxu0
        %v1650 = vadd.f32 %v1270, %v1649
        %v1651 = vpop.f32.mrb[0].mxu0
        %1652 = vmatprep.mubr.bf16.mxu0 0
        %1653 = vmatmul.mubr.bf16.gmra.mrb[0].mxu0 %v1320
        %v1654 = vpop.f32.mrb[0].mxu0
        %v1655 = vadd.f32 %v1275, %v1654
        %v1656 = vpop.f32.mrb[0].mxu0
        %v1657 = vpop.f32.mrb[0].mxu0
        %v1658 = vadd.f32 %v1280, %v1657
        %v1659 = vpop.f32.mrb[0].mxu0
        %1660 = vmatprep.mubr.bf16.mxu0 0
        %1661 = vmatmul.mubr.bf16.gmra.mrb[0].mxu0 %v1323
        %v1662 = vpop.f32.mrb[0].mxu0
        %v1663 = vadd.f32 %v1285, %v1662
        %v1664 = vpop.f32.mrb[0].mxu0
        %v1665 = vpop.f32.mrb[0].mxu0
        %v1666 = vadd.f32 %v1290, %v1665
        %v1667 = vpop.f32.mrb[0].mxu0
        %1668 = vdwg.mxu0
        %v1670 = vand.u32 %v1227, %v1328
        %1672 = vmatprep.subr.bf16.mxu0 0
        %1673 = vmatpush1.bf16.msra.mxu0 %v1226
        %1674 = vmatprep.subr.bf16.mxu0 0
        %1675 = vmatpush1.bf16.msra.mxu0 %v1670
        %1676 = vmatprep.subr.bf16.mxu0 0
        %1677 = vmatpush1.bf16.msra.mxu0 0
        %1678 = vmatprep.subr.bf16.mxu0 0
        %1679 = vmatpush1.bf16.msra.mxu0 0
        %1680 = vmatprep.subr.bf16.mxu0 0
        %1681 = vmatpush1.bf16.msra.mxu0 0
        %1682 = vmatprep.subr.bf16.mxu0 0
        %1683 = vmatpush1.bf16.msra.mxu0 0
        %1684 = vmatprep.subr.bf16.mxu0 0
        %1685 = vmatpush1.bf16.msra.mxu0 0
        %1686 = vmatprep.subr.bf16.mxu0 0
        %1687 = vmatpush1.bf16.msra.mxu0 0
        %1688 = vmatprep.subr.bf16.mxu0 0
        %1689 = vmatpush1.bf16.msra.mxu0 0
        %1690 = vmatprep.subr.bf16.mxu0 0
        %1691 = vmatpush1.bf16.msra.mxu0 0
        %1692 = vmatprep.subr.bf16.mxu0 0
        %1693 = vmatpush1.bf16.msra.mxu0 0
        %1694 = vmatprep.subr.bf16.mxu0 0
        %1695 = vmatpush1.bf16.msra.mxu0 0
        %1696 = vmatprep.subr.bf16.mxu0 0
        %1697 = vmatpush1.bf16.msra.mxu0 0
        %1698 = vmatprep.subr.bf16.mxu0 0
        %1699 = vmatpush1.bf16.msra.mxu0 0
        %1700 = vmatprep.subr.bf16.mxu0 0
        %1701 = vmatpush1.bf16.msra.mxu0 0
        %1702 = vmatprep.subr.bf16.mxu0 0
        %1703 = vmatpush1.bf16.msra.mxu0 0
        %1704 = vmatprep.mubr.bf16.mxu0 0
        %1705 = vmatmul.mubr.bf16.gmra.mrb[0].mxu0 %v1314
        %v1706 = vpop.f32.mrb[0].mxu0
        %v1707 = vadd.f32 %v1255, %v1706
        %v1708 = vpop.f32.mrb[0].mxu0
        %v1709 = vpop.f32.mrb[0].mxu0
        %v1710 = vadd.f32 %v1260, %v1709
        %v1711 = vpop.f32.mrb[0].mxu0
        %1712 = vmatprep.mubr.bf16.mxu0 0
        %1713 = vmatmul.mubr.bf16.gmra.mrb[0].mxu0 %v1317
        %v1714 = vpop.f32.mrb[0].mxu0
        %v1715 = vadd.f32 %v1265, %v1714
        %v1716 = vpop.f32.mrb[0].mxu0
        %v1717 = vpop.f32.mrb[0].mxu0
        %v1718 = vadd.f32 %v1270, %v1717
        %v1719 = vpop.f32.mrb[0].mxu0
        %1720 = vmatprep.mubr.bf16.mxu0 0
        %1721 = vmatmul.mubr.bf16.gmra.mrb[0].mxu0 %v1320
        %v1722 = vpop.f32.mrb[0].mxu0
        %v1723 = vadd.f32 %v1275, %v1722
        %v1724 = vpop.f32.mrb[0].mxu0
        %v1725 = vpop.f32.mrb[0].mxu0
        %v1726 = vadd.f32 %v1280, %v1725
        %v1727 = vpop.f32.mrb[0].mxu0
        %1728 = vmatprep.mubr.bf16.mxu0 0
        %1729 = vmatmul.mubr.bf16.gmra.mrb[0].mxu0 %v1323
        %v1730 = vpop.f32.mrb[0].mxu0
        %v1731 = vadd.f32 %v1285, %v1730
        %v1732 = vpop.f32.mrb[0].mxu0
        %v1733 = vpop.f32.mrb[0].mxu0
        %v1734 = vadd.f32 %v1290, %v1733
        %v1735 = vpop.f32.mrb[0].mxu0
        %1736 = vdwg.mxu0
        %v1738 = vand.u32 %v1229, %v1328
        %1740 = vmatprep.subr.bf16.mxu0 0
        %1741 = vmatpush1.bf16.msra.mxu0 %v1228
        %1742 = vmatprep.subr.bf16.mxu0 0
        %1743 = vmatpush1.bf16.msra.mxu0 %v1738
        %1744 = vmatprep.subr.bf16.mxu0 0
        %1745 = vmatpush1.bf16.msra.mxu0 0
        %1746 = vmatprep.subr.bf16.mxu0 0
        %1747 = vmatpush1.bf16.msra.mxu0 0
        %1748 = vmatprep.subr.bf16.mxu0 0
        %1749 = vmatpush1.bf16.msra.mxu0 0
        %1750 = vmatprep.subr.bf16.mxu0 0
        %1751 = vmatpush1.bf16.msra.mxu0 0
        %1752 = vmatprep.subr.bf16.mxu0 0
        %1753 = vmatpush1.bf16.msra.mxu0 0
        %1754 = vmatprep.subr.bf16.mxu0 0
        %1755 = vmatpush1.bf16.msra.mxu0 0
        %1756 = vmatprep.subr.bf16.mxu0 0
        %1757 = vmatpush1.bf16.msra.mxu0 0
        %1758 = vmatprep.subr.bf16.mxu0 0
        %1759 = vmatpush1.bf16.msra.mxu0 0
        %1760 = vmatprep.subr.bf16.mxu0 0
        %1761 = vmatpush1.bf16.msra.mxu0 0
        %1762 = vmatprep.subr.bf16.mxu0 0
        %1763 = vmatpush1.bf16.msra.mxu0 0
        %1764 = vmatprep.subr.bf16.mxu0 0
        %1765 = vmatpush1.bf16.msra.mxu0 0
        %1766 = vmatprep.subr.bf16.mxu0 0
        %1767 = vmatpush1.bf16.msra.mxu0 0
        %1768 = vmatprep.subr.bf16.mxu0 0
        %1769 = vmatpush1.bf16.msra.mxu0 0
        %1770 = vmatprep.subr.bf16.mxu0 0
        %1771 = vmatpush1.bf16.msra.mxu0 0
        %1772 = vmatprep.mubr.bf16.mxu0 0
        %1773 = vmatmul.mubr.bf16.gmra.mrb[0].mxu0 %v1314
        %v1774 = vpop.f32.mrb[0].mxu0
        %v1775 = vadd.f32 %v1255, %v1774
        %v1776 = vpop.f32.mrb[0].mxu0
        %v1777 = vpop.f32.mrb[0].mxu0
        %v1778 = vadd.f32 %v1260, %v1777
        %v1779 = vpop.f32.mrb[0].mxu0
        %1780 = vmatprep.mubr.bf16.mxu0 0
        %1781 = vmatmul.mubr.bf16.gmra.mrb[0].mxu0 %v1317
        %v1782 = vpop.f32.mrb[0].mxu0
        %v1783 = vadd.f32 %v1265, %v1782
        %v1784 = vpop.f32.mrb[0].mxu0
        %v1785 = vpop.f32.mrb[0].mxu0
        %v1786 = vadd.f32 %v1270, %v1785
        %v1787 = vpop.f32.mrb[0].mxu0
        %1788 = vmatprep.mubr.bf16.mxu0 0
        %1789 = vmatmul.mubr.bf16.gmra.mrb[0].mxu0 %v1320
        %v1790 = vpop.f32.mrb[0].mxu0
        %v1791 = vadd.f32 %v1275, %v1790
        %v1792 = vpop.f32.mrb[0].mxu0
        %v1793 = vpop.f32.mrb[0].mxu0
        %v1794 = vadd.f32 %v1280, %v1793
        %v1795 = vpop.f32.mrb[0].mxu0
        %1796 = vmatprep.mubr.bf16.mxu0 0
        %1797 = vmatmul.mubr.bf16.gmra.mrb[0].mxu0 %v1323
        %v1798 = vpop.f32.mrb[0].mxu0
        %v1799 = vadd.f32 %v1285, %v1798
        %v1800 = vpop.f32.mrb[0].mxu0
        %v1801 = vpop.f32.mrb[0].mxu0
        %v1802 = vadd.f32 %v1290, %v1801
        %v1803 = vpop.f32.mrb[0].mxu0
        %1804 = vdwg.mxu0
        %v1806 = vand.u32 %v1231, %v1328
        %1808 = vmatprep.subr.bf16.mxu0 0
        %1809 = vmatpush1.bf16.msra.mxu0 %v1230
        %1810 = vmatprep.subr.bf16.mxu0 0
        %1811 = vmatpush1.bf16.msra.mxu0 %v1806
        %1812 = vmatprep.subr.bf16.mxu0 0
        %1813 = vmatpush1.bf16.msra.mxu0 0
        %1814 = vmatprep.subr.bf16.mxu0 0
        %1815 = vmatpush1.bf16.msra.mxu0 0
        %1816 = vmatprep.subr.bf16.mxu0 0
        %1817 = vmatpush1.bf16.msra.mxu0 0
        %1818 = vmatprep.subr.bf16.mxu0 0
        %1819 = vmatpush1.bf16.msra.mxu0 0
        %1820 = vmatprep.subr.bf16.mxu0 0
        %1821 = vmatpush1.bf16.msra.mxu0 0
        %1822 = vmatprep.subr.bf16.mxu0 0
        %1823 = vmatpush1.bf16.msra.mxu0 0
        %1824 = vmatprep.subr.bf16.mxu0 0
        %1825 = vmatpush1.bf16.msra.mxu0 0
        %1826 = vmatprep.subr.bf16.mxu0 0
        %1827 = vmatpush1.bf16.msra.mxu0 0
        %1828 = vmatprep.subr.bf16.mxu0 0
        %1829 = vmatpush1.bf16.msra.mxu0 0
        %1830 = vmatprep.subr.bf16.mxu0 0
        %1831 = vmatpush1.bf16.msra.mxu0 0
        %1832 = vmatprep.subr.bf16.mxu0 0
        %1833 = vmatpush1.bf16.msra.mxu0 0
        %1834 = vmatprep.subr.bf16.mxu0 0
        %1835 = vmatpush1.bf16.msra.mxu0 0
        %1836 = vmatprep.subr.bf16.mxu0 0
        %1837 = vmatpush1.bf16.msra.mxu0 0
        %1838 = vmatprep.subr.bf16.mxu0 0
        %1839 = vmatpush1.bf16.msra.mxu0 0
        %1840 = vmatprep.mubr.bf16.mxu0 0
        %1841 = vmatmul.mubr.bf16.gmra.mrb[0].mxu0 %v1314
        %v1842 = vpop.f32.mrb[0].mxu0
        %v1843 = vadd.f32 %v1255, %v1842
        %v1844 = vpop.f32.mrb[0].mxu0
        %v1845 = vpop.f32.mrb[0].mxu0
        %v1846 = vadd.f32 %v1260, %v1845
        %v1847 = vpop.f32.mrb[0].mxu0
        %1848 = vmatprep.mubr.bf16.mxu0 0
        %1849 = vmatmul.mubr.bf16.gmra.mrb[0].mxu0 %v1317
        %v1850 = vpop.f32.mrb[0].mxu0
        %v1851 = vadd.f32 %v1265, %v1850
        %v1852 = vpop.f32.mrb[0].mxu0
        %v1853 = vpop.f32.mrb[0].mxu0
        %v1854 = vadd.f32 %v1270, %v1853
        %v1855 = vpop.f32.mrb[0].mxu0
        %1856 = vmatprep.mubr.bf16.mxu0 0
        %1857 = vmatmul.mubr.bf16.gmra.mrb[0].mxu0 %v1320
        %v1858 = vpop.f32.mrb[0].mxu0
        %v1859 = vadd.f32 %v1275, %v1858
        %v1860 = vpop.f32.mrb[0].mxu0
        %v1861 = vpop.f32.mrb[0].mxu0
        %v1862 = vadd.f32 %v1280, %v1861
        %v1863 = vpop.f32.mrb[0].mxu0
        %1864 = vmatprep.mubr.bf16.mxu0 0
        %1865 = vmatmul.mubr.bf16.gmra.mrb[0].mxu0 %v1323
        %v1866 = vpop.f32.mrb[0].mxu0
        %v1867 = vadd.f32 %v1285, %v1866
        %v1868 = vpop.f32.mrb[0].mxu0
        %v1869 = vpop.f32.mrb[0].mxu0
        %v1870 = vadd.f32 %v1290, %v1869
        %v1871 = vpop.f32.mrb[0].mxu0
        %1872 = vdwg.mxu0
        %v1874 = vand.u32 %v1233, %v1328
        %1876 = vmatprep.subr.bf16.mxu0 0
        %1877 = vmatpush1.bf16.msra.mxu0 %v1232
        %1878 = vmatprep.subr.bf16.mxu0 0
        %1879 = vmatpush1.bf16.msra.mxu0 %v1874
        %1880 = vmatprep.subr.bf16.mxu0 0
        %1881 = vmatpush1.bf16.msra.mxu0 0
        %1882 = vmatprep.subr.bf16.mxu0 0
        %1883 = vmatpush1.bf16.msra.mxu0 0
        %1884 = vmatprep.subr.bf16.mxu0 0
        %1885 = vmatpush1.bf16.msra.mxu0 0
        %1886 = vmatprep.subr.bf16.mxu0 0
        %1887 = vmatpush1.bf16.msra.mxu0 0
        %1888 = vmatprep.subr.bf16.mxu0 0
        %1889 = vmatpush1.bf16.msra.mxu0 0
        %1890 = vmatprep.subr.bf16.mxu0 0
        %1891 = vmatpush1.bf16.msra.mxu0 0
        %1892 = vmatprep.subr.bf16.mxu0 0
        %1893 = vmatpush1.bf16.msra.mxu0 0
        %1894 = vmatprep.subr.bf16.mxu0 0
        %1895 = vmatpush1.bf16.msra.mxu0 0
        %1896 = vmatprep.subr.bf16.mxu0 0
        %1897 = vmatpush1.bf16.msra.mxu0 0
        %1898 = vmatprep.subr.bf16.mxu0 0
        %1899 = vmatpush1.bf16.msra.mxu0 0
        %1900 = vmatprep.subr.bf16.mxu0 0
        %1901 = vmatpush1.bf16.msra.mxu0 0
        %1902 = vmatprep.subr.bf16.mxu0 0
        %1903 = vmatpush1.bf16.msra.mxu0 0
        %1904 = vmatprep.subr.bf16.mxu0 0
        %1905 = vmatpush1.bf16.msra.mxu0 0
        %1906 = vmatprep.subr.bf16.mxu0 0
        %1907 = vmatpush1.bf16.msra.mxu0 0
        %1908 = vmatprep.mubr.bf16.mxu0 0
        %1909 = vmatmul.mubr.bf16.gmra.mrb[0].mxu0 %v1314
        %v1910 = vpop.f32.mrb[0].mxu0
        %v1911 = vadd.f32 %v1255, %v1910
        %v1912 = vpop.f32.mrb[0].mxu0
        %v1913 = vpop.f32.mrb[0].mxu0
        %v1914 = vadd.f32 %v1260, %v1913
        %v1915 = vpop.f32.mrb[0].mxu0
        %1916 = vmatprep.mubr.bf16.mxu0 0
        %1917 = vmatmul.mubr.bf16.gmra.mrb[0].mxu0 %v1317
        %v1918 = vpop.f32.mrb[0].mxu0
        %v1919 = vadd.f32 %v1265, %v1918
        %v1920 = vpop.f32.mrb[0].mxu0
        %v1921 = vpop.f32.mrb[0].mxu0
        %v1922 = vadd.f32 %v1270, %v1921
        %v1923 = vpop.f32.mrb[0].mxu0
        %1924 = vmatprep.mubr.bf16.mxu0 0
        %1925 = vmatmul.mubr.bf16.gmra.mrb[0].mxu0 %v1320
        %v1926 = vpop.f32.mrb[0].mxu0
        %v1927 = vadd.f32 %v1275, %v1926
        %v1928 = vpop.f32.mrb[0].mxu0
        %v1929 = vpop.f32.mrb[0].mxu0
        %v1930 = vadd.f32 %v1280, %v1929
        %v1931 = vpop.f32.mrb[0].mxu0
        %1932 = vmatprep.mubr.bf16.mxu0 0
        %1933 = vmatmul.mubr.bf16.gmra.mrb[0].mxu0 %v1323
        %v1934 = vpop.f32.mrb[0].mxu0
        %v1935 = vadd.f32 %v1285, %v1934
        %v1936 = vpop.f32.mrb[0].mxu0
        %v1937 = vpop.f32.mrb[0].mxu0
        %v1938 = vadd.f32 %v1290, %v1937
        %v1939 = vpop.f32.mrb[0].mxu0
        %1940 = vdwg.mxu0
        %v1942 = vand.u32 %v1235, %v1328
        %1944 = vmatprep.subr.bf16.mxu0 0
        %1945 = vmatpush1.bf16.msra.mxu0 %v1234
        %1946 = vmatprep.subr.bf16.mxu0 0
        %1947 = vmatpush1.bf16.msra.mxu0 %v1942
        %1948 = vmatprep.subr.bf16.mxu0 0
        %1949 = vmatpush1.bf16.msra.mxu0 0
        %1950 = vmatprep.subr.bf16.mxu0 0
        %1951 = vmatpush1.bf16.msra.mxu0 0
        %1952 = vmatprep.subr.bf16.mxu0 0
        %1953 = vmatpush1.bf16.msra.mxu0 0
        %1954 = vmatprep.subr.bf16.mxu0 0
        %1955 = vmatpush1.bf16.msra.mxu0 0
        %1956 = vmatprep.subr.bf16.mxu0 0
        %1957 = vmatpush1.bf16.msra.mxu0 0
        %1958 = vmatprep.subr.bf16.mxu0 0
        %1959 = vmatpush1.bf16.msra.mxu0 0
        %1960 = vmatprep.subr.bf16.mxu0 0
        %1961 = vmatpush1.bf16.msra.mxu0 0
        %1962 = vmatprep.subr.bf16.mxu0 0
        %1963 = vmatpush1.bf16.msra.mxu0 0
        %1964 = vmatprep.subr.bf16.mxu0 0
        %1965 = vmatpush1.bf16.msra.mxu0 0
        %1966 = vmatprep.subr.bf16.mxu0 0
        %1967 = vmatpush1.bf16.msra.mxu0 0
        %1968 = vmatprep.subr.bf16.mxu0 0
        %1969 = vmatpush1.bf16.msra.mxu0 0
        %1970 = vmatprep.subr.bf16.mxu0 0
        %1971 = vmatpush1.bf16.msra.mxu0 0
        %1972 = vmatprep.subr.bf16.mxu0 0
        %1973 = vmatpush1.bf16.msra.mxu0 0
        %1974 = vmatprep.subr.bf16.mxu0 0
        %1975 = vmatpush1.bf16.msra.mxu0 0
        %1976 = vmatprep.mubr.bf16.mxu0 0
        %1977 = vmatmul.mubr.bf16.gmra.mrb[0].mxu0 %v1314
        %v1978 = vpop.f32.mrb[0].mxu0
        %v1979 = vadd.f32 %v1255, %v1978
        %v1980 = vpop.f32.mrb[0].mxu0
        %v1981 = vpop.f32.mrb[0].mxu0
        %v1982 = vadd.f32 %v1260, %v1981
        %v1983 = vpop.f32.mrb[0].mxu0
        %1984 = vmatprep.mubr.bf16.mxu0 0
        %1985 = vmatmul.mubr.bf16.gmra.mrb[0].mxu0 %v1317
        %v1986 = vpop.f32.mrb[0].mxu0
        %v1987 = vadd.f32 %v1265, %v1986
        %v1988 = vpop.f32.mrb[0].mxu0
        %v1989 = vpop.f32.mrb[0].mxu0
        %v1990 = vadd.f32 %v1270, %v1989
        %v1991 = vpop.f32.mrb[0].mxu0
        %1992 = vmatprep.mubr.bf16.mxu0 0
        %1993 = vmatmul.mubr.bf16.gmra.mrb[0].mxu0 %v1320
        %v1994 = vpop.f32.mrb[0].mxu0
        %v1995 = vadd.f32 %v1275, %v1994
        %v1996 = vpop.f32.mrb[0].mxu0
        %v1997 = vpop.f32.mrb[0].mxu0
        %v1998 = vadd.f32 %v1280, %v1997
        %v1999 = vpop.f32.mrb[0].mxu0
        %2000 = vmatprep.mubr.bf16.mxu0 0
        %2001 = vmatmul.mubr.bf16.gmra.mrb[0].mxu0 %v1323
        %v2002 = vpop.f32.mrb[0].mxu0
        %v2003 = vadd.f32 %v1285, %v2002
        %v2004 = vpop.f32.mrb[0].mxu0
        %v2005 = vpop.f32.mrb[0].mxu0
        %v2006 = vadd.f32 %v1290, %v2005
        %v2007 = vpop.f32.mrb[0].mxu0
        %2008 = vdwg.mxu0
        %v2009 = vmax.f32 %v1367, 0.0
        %v2010 = vmax.f32 %v1370, 0.0
        %v2011 = vmax.f32 %v1375, 0.0
        %v2012 = vmax.f32 %v1378, 0.0
        %v2013 = vmax.f32 %v1383, 0.0
        %v2014 = vmax.f32 %v1386, 0.0
        %v2015 = vmax.f32 %v1391, 0.0
        %v2016 = vmax.f32 %v1394, 0.0
        %v2017 = vmax.f32 %v1435, 0.0
        %v2018 = vmax.f32 %v1438, 0.0
        %v2019 = vmax.f32 %v1443, 0.0
        %v2020 = vmax.f32 %v1446, 0.0
        %v2021 = vmax.f32 %v1451, 0.0
        %v2022 = vmax.f32 %v1454, 0.0
        %v2023 = vmax.f32 %v1459, 0.0
        %v2024 = vmax.f32 %v1462, 0.0
        %v2025 = vmax.f32 %v1503, 0.0
        %v2026 = vmax.f32 %v1506, 0.0
        %v2027 = vmax.f32 %v1511, 0.0
        %v2028 = vmax.f32 %v1514, 0.0
        %v2029 = vmax.f32 %v1519, 0.0
        %v2030 = vmax.f32 %v1522, 0.0
        %v2031 = vmax.f32 %v1527, 0.0
        %v2032 = vmax.f32 %v1530, 0.0
        %v2033 = vmax.f32 %v1571, 0.0
        %v2034 = vmax.f32 %v1574, 0.0
        %v2035 = vmax.f32 %v1579, 0.0
        %v2036 = vmax.f32 %v1582, 0.0
        %v2037 = vmax.f32 %v1587, 0.0
        %v2038 = vmax.f32 %v1590, 0.0
        %v2039 = vmax.f32 %v1595, 0.0
        %v2040 = vmax.f32 %v1598, 0.0
        %v2041 = vmax.f32 %v1639, 0.0
        %v2042 = vmax.f32 %v1642, 0.0
        %v2043 = vmax.f32 %v1647, 0.0
        %v2044 = vmax.f32 %v1650, 0.0
        %v2045 = vmax.f32 %v1655, 0.0
        %v2046 = vmax.f32 %v1658, 0.0
        %v2047 = vmax.f32 %v1663, 0.0
        %v2048 = vmax.f32 %v1666, 0.0
        %v2049 = vmax.f32 %v1707, 0.0
        %v2050 = vmax.f32 %v1710, 0.0
        %v2051 = vmax.f32 %v1715, 0.0
        %v2052 = vmax.f32 %v1718, 0.0
        %v2053 = vmax.f32 %v1723, 0.0
        %v2054 = vmax.f32 %v1726, 0.0
        %v2055 = vmax.f32 %v1731, 0.0
        %v2056 = vmax.f32 %v1734, 0.0
        %v2057 = vmax.f32 %v1775, 0.0
        %v2058 = vmax.f32 %v1778, 0.0
        %v2059 = vmax.f32 %v1783, 0.0
        %v2060 = vmax.f32 %v1786, 0.0
        %v2061 = vmax.f32 %v1791, 0.0
        %v2062 = vmax.f32 %v1794, 0.0
        %v2063 = vmax.f32 %v1799, 0.0
        %v2064 = vmax.f32 %v1802, 0.0
        %v2065 = vmax.f32 %v1843, 0.0
        %v2066 = vmax.f32 %v1846, 0.0
        %v2067 = vmax.f32 %v1851, 0.0
        %v2068 = vmax.f32 %v1854, 0.0
        %v2069 = vmax.f32 %v1859, 0.0
        %v2070 = vmax.f32 %v1862, 0.0
        %v2071 = vmax.f32 %v1867, 0.0
        %v2072 = vmax.f32 %v1870, 0.0
        %v2073 = vmax.f32 %v1911, 0.0
        %v2074 = vmax.f32 %v1914, 0.0
        %v2075 = vmax.f32 %v1919, 0.0
        %v2076 = vmax.f32 %v1922, 0.0
        %v2077 = vmax.f32 %v1927, 0.0
        %v2078 = vmax.f32 %v1930, 0.0
        %v2079 = vmax.f32 %v1935, 0.0
        %v2080 = vmax.f32 %v1938, 0.0
        %v2081 = vmax.f32 %v1979, 0.0
        %v2082 = vmax.f32 %v1982, 0.0
        %v2083 = vmax.f32 %v1987, 0.0
        %v2084 = vmax.f32 %v1990, 0.0
        %v2085 = vmax.f32 %v1995, 0.0
        %v2086 = vmax.f32 %v1998, 0.0
        %v2087 = vmax.f32 %v2003, 0.0
        %v2088 = vmax.f32 %v2006, 0.0
        %v2089 = vld [vmem:[#allocation15] sm:$0xf]
        %v2090 = vld [vmem:[#allocation15 + $0x4] sm:$0xf]
        %v2091 = vld [vmem:[#allocation15 + $0x8] sm:$0xf]
        %v2092 = vld [vmem:[#allocation15 + $0xc] sm:$0xf]
        %v2093 = vld [vmem:[#allocation15 + $0x10] sm:$0xf]
        %v2094 = vld [vmem:[#allocation15 + $0x14] sm:$0xf]
        %v2095 = vld [vmem:[#allocation15 + $0x18] sm:$0xf]
        %v2096 = vld [vmem:[#allocation15 + $0x1c] sm:$0xf]
        %v2097 = vpack.c.bf16 %v2010, %v2009
        %v2098 = vpack.c.bf16 %v2012, %v2011
        %v2099 = vpack.c.bf16 %v2014, %v2013
        %v2100 = vpack.c.bf16 %v2016, %v2015
        %v2101 = vpack.c.bf16 %v2018, %v2017
        %v2102 = vpack.c.bf16 %v2020, %v2019
        %v2103 = vpack.c.bf16 %v2022, %v2021
        %v2104 = vpack.c.bf16 %v2024, %v2023
        %v2105 = vpack.c.bf16 %v2026, %v2025
        %v2106 = vpack.c.bf16 %v2028, %v2027
        %v2107 = vpack.c.bf16 %v2030, %v2029
        %v2108 = vpack.c.bf16 %v2032, %v2031
        %v2109 = vpack.c.bf16 %v2034, %v2033
        %v2110 = vpack.c.bf16 %v2036, %v2035
        %v2111 = vpack.c.bf16 %v2038, %v2037
        %v2112 = vpack.c.bf16 %v2040, %v2039
        %v2113 = vpack.c.bf16 %v2042, %v2041
        %v2114 = vpack.c.bf16 %v2044, %v2043
        %v2115 = vpack.c.bf16 %v2046, %v2045
        %v2116 = vpack.c.bf16 %v2048, %v2047
        %v2117 = vpack.c.bf16 %v2050, %v2049
        %v2118 = vpack.c.bf16 %v2052, %v2051
        %v2119 = vpack.c.bf16 %v2054, %v2053
        %v2120 = vpack.c.bf16 %v2056, %v2055
        %v2121 = vpack.c.bf16 %v2058, %v2057
        %v2122 = vpack.c.bf16 %v2060, %v2059
        %v2123 = vpack.c.bf16 %v2062, %v2061
        %v2124 = vpack.c.bf16 %v2064, %v2063
        %v2125 = vpack.c.bf16 %v2066, %v2065
        %v2126 = vpack.c.bf16 %v2068, %v2067
        %v2127 = vpack.c.bf16 %v2070, %v2069
        %v2128 = vpack.c.bf16 %v2072, %v2071
        %v2129 = vpack.c.bf16 %v2074, %v2073
        %v2130 = vpack.c.bf16 %v2076, %v2075
        %v2131 = vpack.c.bf16 %v2078, %v2077
        %v2132 = vpack.c.bf16 %v2080, %v2079
        %v2133 = vpack.c.bf16 %v2082, %v2081
        %v2134 = vpack.c.bf16 %v2084, %v2083
        %v2135 = vpack.c.bf16 %v2086, %v2085
        %v2136 = vpack.c.bf16 %v2088, %v2087
        %v2137 = vld [vmem:[#allocation16] sm:$0xff]
        %v2138 = vld [vmem:[#allocation16 + $0x8] sm:$0xff]
        %v2139 = vld [vmem:[#allocation16 + $0x10] sm:$0xff]
        %v2140 = vld [vmem:[#allocation16 + $0x18] sm:$0xff]
        %v2141 = vld [vmem:[#allocation16 + $0x20] sm:$0xff]
        %v2142 = vld [vmem:[#allocation16 + $0x28] sm:$0xff]
        %v2143 = vld [vmem:[#allocation16 + $0x30] sm:$0xff]
        %v2144 = vld [vmem:[#allocation16 + $0x38] sm:$0xff]
        %2146 = vset.pattern.permute.xlu0 0
        %2147 = vperm.xlu0 %2146, %v2137
        %v2148 = vpop.permute.xlu0 %2147
        %2151 = vset.pattern.permute.xlu0 0
        %2152 = vperm.xlu0 %2151, %v2138
        %v2153 = vpop.permute.xlu0 %2152
        %2156 = vset.pattern.permute.xlu0 0
        %2157 = vperm.xlu0 %2156, %v2139
        %v2158 = vpop.permute.xlu0 %2157
        %2161 = vset.pattern.permute.xlu0 0
        %2162 = vperm.xlu0 %2161, %v2140
        %v2163 = vpop.permute.xlu0 %2162
        %2166 = vset.pattern.permute.xlu0 0
        %2167 = vperm.xlu0 %2166, %v2141
        %v2168 = vpop.permute.xlu0 %2167
        %2171 = vset.pattern.permute.xlu0 0
        %2172 = vperm.xlu0 %2171, %v2142
        %v2173 = vpop.permute.xlu0 %2172
        %2176 = vset.pattern.permute.xlu0 0
        %2177 = vperm.xlu0 %2176, %v2143
        %v2178 = vpop.permute.xlu0 %2177
        %2181 = vset.pattern.permute.xlu0 0
        %2182 = vperm.xlu0 %2181, %v2144
        %v2183 = vpop.permute.xlu0 %2182
        %v2193 = vunpack.c.l.b16 %v2089
        %v2194 = vunpack.c.l.b16 %v2090
        %v2195 = vunpack.c.l.b16 %v2091
        %v2196 = vunpack.c.l.b16 %v2092
        %v2197 = vunpack.c.l.b16 %v2093
        %v2198 = vunpack.c.l.b16 %v2094
        %v2199 = vunpack.c.l.b16 %v2095
        %v2200 = vunpack.c.l.b16 %v2096
        %v2201 = vpack.c.b16 %v2194, %v2193
        %v2202 = vpack.c.b16 %v2196, %v2195
        %v2203 = vpack.c.b16 %v2198, %v2197
        %v2204 = vpack.c.b16 %v2200, %v2199
        %vm2205 = vcmask 523264
        %v2207 = vsel %vm2205, %v2201, 0
        %v2210 = vsel %vm2205, %v2202, 0
        %v2213 = vsel %vm2205, %v2203, 0
        %v2216 = vsel %vm2205, %v2204, 0
        %2218 = vmatprep.subr.bf16.mxu0 0
        %2219 = vmatpush1.bf16.msra.mxu0 %v2097
        %2220 = vmatprep.subr.bf16.mxu0 0
        %2221 = vmatpush1.bf16.msra.mxu0 %v2098
        %2222 = vmatprep.subr.bf16.mxu0 0
        %2223 = vmatpush1.bf16.msra.mxu0 %v2099
        %2224 = vmatprep.subr.bf16.mxu0 0
        %2225 = vmatpush1.bf16.msra.mxu0 %v2100
        %2226 = vmatprep.subr.bf16.mxu0 0
        %2227 = vmatpush1.bf16.msra.mxu0 0
        %2228 = vmatprep.subr.bf16.mxu0 0
        %2229 = vmatpush1.bf16.msra.mxu0 0
        %2230 = vmatprep.subr.bf16.mxu0 0
        %2231 = vmatpush1.bf16.msra.mxu0 0
        %2232 = vmatprep.subr.bf16.mxu0 0
        %2233 = vmatpush1.bf16.msra.mxu0 0
        %2234 = vmatprep.subr.bf16.mxu0 0
        %2235 = vmatpush1.bf16.msra.mxu0 0
        %2236 = vmatprep.subr.bf16.mxu0 0
        %2237 = vmatpush1.bf16.msra.mxu0 0
        %2238 = vmatprep.subr.bf16.mxu0 0
        %2239 = vmatpush1.bf16.msra.mxu0 0
        %2240 = vmatprep.subr.bf16.mxu0 0
        %2241 = vmatpush1.bf16.msra.mxu0 0
        %2242 = vmatprep.subr.bf16.mxu0 0
        %2243 = vmatpush1.bf16.msra.mxu0 0
        %2244 = vmatprep.subr.bf16.mxu0 0
        %2245 = vmatpush1.bf16.msra.mxu0 0
        %2246 = vmatprep.subr.bf16.mxu0 0
        %2247 = vmatpush1.bf16.msra.mxu0 0
        %2248 = vmatprep.subr.bf16.mxu0 0
        %2249 = vmatpush1.bf16.msra.mxu0 0
        %2250 = vmatprep.mubr.bf16.mxu0 0
        %2251 = vmatmul.mubr.bf16.gmra.mrb[0].mxu0 %v2207
        %v2252 = vpop.f32.mrb[0].mxu0
        %v2253 = vadd.f32 %v2148, %v2252
        %v2254 = vpop.f32.mrb[0].mxu0
        %v2255 = vpop.f32.mrb[0].mxu0
        %v2256 = vadd.f32 %v2153, %v2255
        %v2257 = vpop.f32.mrb[0].mxu0
        %2258 = vmatprep.mubr.bf16.mxu0 0
        %2259 = vmatmul.mubr.bf16.gmra.mrb[0].mxu0 %v2210
        %v2260 = vpop.f32.mrb[0].mxu0
        %v2261 = vadd.f32 %v2158, %v2260
        %v2262 = vpop.f32.mrb[0].mxu0
        %v2263 = vpop.f32.mrb[0].mxu0
        %v2264 = vadd.f32 %v2163, %v2263
        %v2265 = vpop.f32.mrb[0].mxu0
        %2266 = vmatprep.mubr.bf16.mxu0 0
        %2267 = vmatmul.mubr.bf16.gmra.mrb[0].mxu0 %v2213
        %v2268 = vpop.f32.mrb[0].mxu0
        %v2269 = vadd.f32 %v2168, %v2268
        %v2270 = vpop.f32.mrb[0].mxu0
        %v2271 = vpop.f32.mrb[0].mxu0
        %v2272 = vadd.f32 %v2173, %v2271
        %v2273 = vpop.f32.mrb[0].mxu0
        %2274 = vmatprep.mubr.bf16.mxu0 0
        %2275 = vmatmul.mubr.bf16.gmra.mrb[0].mxu0 %v2216
        %v2276 = vpop.f32.mrb[0].mxu0
        %v2277 = vadd.f32 %v2178, %v2276
        %v2278 = vpop.f32.mrb[0].mxu0
        %v2279 = vpop.f32.mrb[0].mxu0
        %v2280 = vadd.f32 %v2183, %v2279
        %v2281 = vpop.f32.mrb[0].mxu0
        %2282 = vdwg.mxu0
        %2283 = vmatprep.subr.bf16.mxu0 0
        %2284 = vmatpush1.bf16.msra.mxu0 %v2101
        %2285 = vmatprep.subr.bf16.mxu0 0
        %2286 = vmatpush1.bf16.msra.mxu0 %v2102
        %2287 = vmatprep.subr.bf16.mxu0 0
        %2288 = vmatpush1.bf16.msra.mxu0 %v2103
        %2289 = vmatprep.subr.bf16.mxu0 0
        %2290 = vmatpush1.bf16.msra.mxu0 %v2104
        %2291 = vmatprep.subr.bf16.mxu0 0
        %2292 = vmatpush1.bf16.msra.mxu0 0
        %2293 = vmatprep.subr.bf16.mxu0 0
        %2294 = vmatpush1.bf16.msra.mxu0 0
        %2295 = vmatprep.subr.bf16.mxu0 0
        %2296 = vmatpush1.bf16.msra.mxu0 0
        %2297 = vmatprep.subr.bf16.mxu0 0
        %2298 = vmatpush1.bf16.msra.mxu0 0
        %2299 = vmatprep.subr.bf16.mxu0 0
        %2300 = vmatpush1.bf16.msra.mxu0 0
        %2301 = vmatprep.subr.bf16.mxu0 0
        %2302 = vmatpush1.bf16.msra.mxu0 0
        %2303 = vmatprep.subr.bf16.mxu0 0
        %2304 = vmatpush1.bf16.msra.mxu0 0
        %2305 = vmatprep.subr.bf16.mxu0 0
        %2306 = vmatpush1.bf16.msra.mxu0 0
        %2307 = vmatprep.subr.bf16.mxu0 0
        %2308 = vmatpush1.bf16.msra.mxu0 0
        %2309 = vmatprep.subr.bf16.mxu0 0
        %2310 = vmatpush1.bf16.msra.mxu0 0
        %2311 = vmatprep.subr.bf16.mxu0 0
        %2312 = vmatpush1.bf16.msra.mxu0 0
        %2313 = vmatprep.subr.bf16.mxu0 0
        %2314 = vmatpush1.bf16.msra.mxu0 0
        %2315 = vmatprep.mubr.bf16.mxu0 0
        %2316 = vmatmul.mubr.bf16.gmra.mrb[0].mxu0 %v2207
        %v2317 = vpop.f32.mrb[0].mxu0
        %v2318 = vadd.f32 %v2148, %v2317
        %v2319 = vpop.f32.mrb[0].mxu0
        %v2320 = vpop.f32.mrb[0].mxu0
        %v2321 = vadd.f32 %v2153, %v2320
        %v2322 = vpop.f32.mrb[0].mxu0
        %2323 = vmatprep.mubr.bf16.mxu0 0
        %2324 = vmatmul.mubr.bf16.gmra.mrb[0].mxu0 %v2210
        %v2325 = vpop.f32.mrb[0].mxu0
        %v2326 = vadd.f32 %v2158, %v2325
        %v2327 = vpop.f32.mrb[0].mxu0
        %v2328 = vpop.f32.mrb[0].mxu0
        %v2329 = vadd.f32 %v2163, %v2328
        %v2330 = vpop.f32.mrb[0].mxu0
        %2331 = vmatprep.mubr.bf16.mxu0 0
        %2332 = vmatmul.mubr.bf16.gmra.mrb[0].mxu0 %v2213
        %v2333 = vpop.f32.mrb[0].mxu0
        %v2334 = vadd.f32 %v2168, %v2333
        %v2335 = vpop.f32.mrb[0].mxu0
        %v2336 = vpop.f32.mrb[0].mxu0
        %v2337 = vadd.f32 %v2173, %v2336
        %v2338 = vpop.f32.mrb[0].mxu0
        %2339 = vmatprep.mubr.bf16.mxu0 0
        %2340 = vmatmul.mubr.bf16.gmra.mrb[0].mxu0 %v2216
        %v2341 = vpop.f32.mrb[0].mxu0
        %v2342 = vadd.f32 %v2178, %v2341
        %v2343 = vpop.f32.mrb[0].mxu0
        %v2344 = vpop.f32.mrb[0].mxu0
        %v2345 = vadd.f32 %v2183, %v2344
        %v2346 = vpop.f32.mrb[0].mxu0
        %2347 = vdwg.mxu0
        %2348 = vmatprep.subr.bf16.mxu0 0
        %2349 = vmatpush1.bf16.msra.mxu0 %v2105
        %2350 = vmatprep.subr.bf16.mxu0 0
        %2351 = vmatpush1.bf16.msra.mxu0 %v2106
        %2352 = vmatprep.subr.bf16.mxu0 0
        %2353 = vmatpush1.bf16.msra.mxu0 %v2107
        %2354 = vmatprep.subr.bf16.mxu0 0
        %2355 = vmatpush1.bf16.msra.mxu0 %v2108
        %2356 = vmatprep.subr.bf16.mxu0 0
        %2357 = vmatpush1.bf16.msra.mxu0 0
        %2358 = vmatprep.subr.bf16.mxu0 0
        %2359 = vmatpush1.bf16.msra.mxu0 0
        %2360 = vmatprep.subr.bf16.mxu0 0
        %2361 = vmatpush1.bf16.msra.mxu0 0
        %2362 = vmatprep.subr.bf16.mxu0 0
        %2363 = vmatpush1.bf16.msra.mxu0 0
        %2364 = vmatprep.subr.bf16.mxu0 0
        %2365 = vmatpush1.bf16.msra.mxu0 0
        %2366 = vmatprep.subr.bf16.mxu0 0
        %2367 = vmatpush1.bf16.msra.mxu0 0
        %2368 = vmatprep.subr.bf16.mxu0 0
        %2369 = vmatpush1.bf16.msra.mxu0 0
        %2370 = vmatprep.subr.bf16.mxu0 0
        %2371 = vmatpush1.bf16.msra.mxu0 0
        %2372 = vmatprep.subr.bf16.mxu0 0
        %2373 = vmatpush1.bf16.msra.mxu0 0
        %2374 = vmatprep.subr.bf16.mxu0 0
        %2375 = vmatpush1.bf16.msra.mxu0 0
        %2376 = vmatprep.subr.bf16.mxu0 0
        %2377 = vmatpush1.bf16.msra.mxu0 0
        %2378 = vmatprep.subr.bf16.mxu0 0
        %2379 = vmatpush1.bf16.msra.mxu0 0
        %2380 = vmatprep.mubr.bf16.mxu0 0
        %2381 = vmatmul.mubr.bf16.gmra.mrb[0].mxu0 %v2207
        %v2382 = vpop.f32.mrb[0].mxu0
        %v2383 = vadd.f32 %v2148, %v2382
        %v2384 = vpop.f32.mrb[0].mxu0
        %v2385 = vpop.f32.mrb[0].mxu0
        %v2386 = vadd.f32 %v2153, %v2385
        %v2387 = vpop.f32.mrb[0].mxu0
        %2388 = vmatprep.mubr.bf16.mxu0 0
        %2389 = vmatmul.mubr.bf16.gmra.mrb[0].mxu0 %v2210
        %v2390 = vpop.f32.mrb[0].mxu0
        %v2391 = vadd.f32 %v2158, %v2390
        %v2392 = vpop.f32.mrb[0].mxu0
        %v2393 = vpop.f32.mrb[0].mxu0
        %v2394 = vadd.f32 %v2163, %v2393
        %v2395 = vpop.f32.mrb[0].mxu0
        %2396 = vmatprep.mubr.bf16.mxu0 0
        %2397 = vmatmul.mubr.bf16.gmra.mrb[0].mxu0 %v2213
        %v2398 = vpop.f32.mrb[0].mxu0
        %v2399 = vadd.f32 %v2168, %v2398
        %v2400 = vpop.f32.mrb[0].mxu0
        %v2401 = vpop.f32.mrb[0].mxu0
        %v2402 = vadd.f32 %v2173, %v2401
        %v2403 = vpop.f32.mrb[0].mxu0
        %2404 = vmatprep.mubr.bf16.mxu0 0
        %2405 = vmatmul.mubr.bf16.gmra.mrb[0].mxu0 %v2216
        %v2406 = vpop.f32.mrb[0].mxu0
        %v2407 = vadd.f32 %v2178, %v2406
        %v2408 = vpop.f32.mrb[0].mxu0
        %v2409 = vpop.f32.mrb[0].mxu0
        %v2410 = vadd.f32 %v2183, %v2409
        %v2411 = vpop.f32.mrb[0].mxu0
        %2412 = vdwg.mxu0
        %2413 = vmatprep.subr.bf16.mxu0 0
        %2414 = vmatpush1.bf16.msra.mxu0 %v2109
        %2415 = vmatprep.subr.bf16.mxu0 0
        %2416 = vmatpush1.bf16.msra.mxu0 %v2110
        %2417 = vmatprep.subr.bf16.mxu0 0
        %2418 = vmatpush1.bf16.msra.mxu0 %v2111
        %2419 = vmatprep.subr.bf16.mxu0 0
        %2420 = vmatpush1.bf16.msra.mxu0 %v2112
        %2421 = vmatprep.subr.bf16.mxu0 0
        %2422 = vmatpush1.bf16.msra.mxu0 0
        %2423 = vmatprep.subr.bf16.mxu0 0
        %2424 = vmatpush1.bf16.msra.mxu0 0
        %2425 = vmatprep.subr.bf16.mxu0 0
        %2426 = vmatpush1.bf16.msra.mxu0 0
        %2427 = vmatprep.subr.bf16.mxu0 0
        %2428 = vmatpush1.bf16.msra.mxu0 0
        %2429 = vmatprep.subr.bf16.mxu0 0
        %2430 = vmatpush1.bf16.msra.mxu0 0
        %2431 = vmatprep.subr.bf16.mxu0 0
        %2432 = vmatpush1.bf16.msra.mxu0 0
        %2433 = vmatprep.subr.bf16.mxu0 0
        %2434 = vmatpush1.bf16.msra.mxu0 0
        %2435 = vmatprep.subr.bf16.mxu0 0
        %2436 = vmatpush1.bf16.msra.mxu0 0
        %2437 = vmatprep.subr.bf16.mxu0 0
        %2438 = vmatpush1.bf16.msra.mxu0 0
        %2439 = vmatprep.subr.bf16.mxu0 0
        %2440 = vmatpush1.bf16.msra.mxu0 0
        %2441 = vmatprep.subr.bf16.mxu0 0
        %2442 = vmatpush1.bf16.msra.mxu0 0
        %2443 = vmatprep.subr.bf16.mxu0 0
        %2444 = vmatpush1.bf16.msra.mxu0 0
        %2445 = vmatprep.mubr.bf16.mxu0 0
        %2446 = vmatmul.mubr.bf16.gmra.mrb[0].mxu0 %v2207
        %v2447 = vpop.f32.mrb[0].mxu0
        %v2448 = vadd.f32 %v2148, %v2447
        %v2449 = vpop.f32.mrb[0].mxu0
        %v2450 = vpop.f32.mrb[0].mxu0
        %v2451 = vadd.f32 %v2153, %v2450
        %v2452 = vpop.f32.mrb[0].mxu0
        %2453 = vmatprep.mubr.bf16.mxu0 0
        %2454 = vmatmul.mubr.bf16.gmra.mrb[0].mxu0 %v2210
        %v2455 = vpop.f32.mrb[0].mxu0
        %v2456 = vadd.f32 %v2158, %v2455
        %v2457 = vpop.f32.mrb[0].mxu0
        %v2458 = vpop.f32.mrb[0].mxu0
        %v2459 = vadd.f32 %v2163, %v2458
        %v2460 = vpop.f32.mrb[0].mxu0
        %2461 = vmatprep.mubr.bf16.mxu0 0
        %2462 = vmatmul.mubr.bf16.gmra.mrb[0].mxu0 %v2213
        %v2463 = vpop.f32.mrb[0].mxu0
        %v2464 = vadd.f32 %v2168, %v2463
        %v2465 = vpop.f32.mrb[0].mxu0
        %v2466 = vpop.f32.mrb[0].mxu0
        %v2467 = vadd.f32 %v2173, %v2466
        %v2468 = vpop.f32.mrb[0].mxu0
        %2469 = vmatprep.mubr.bf16.mxu0 0
        %2470 = vmatmul.mubr.bf16.gmra.mrb[0].mxu0 %v2216
        %v2471 = vpop.f32.mrb[0].mxu0
        %v2472 = vadd.f32 %v2178, %v2471
        %v2473 = vpop.f32.mrb[0].mxu0
        %v2474 = vpop.f32.mrb[0].mxu0
        %v2475 = vadd.f32 %v2183, %v2474
        %v2476 = vpop.f32.mrb[0].mxu0
        %2477 = vdwg.mxu0
        %2478 = vmatprep.subr.bf16.mxu0 0
        %2479 = vmatpush1.bf16.msra.mxu0 %v2113
        %2480 = vmatprep.subr.bf16.mxu0 0
        %2481 = vmatpush1.bf16.msra.mxu0 %v2114
        %2482 = vmatprep.subr.bf16.mxu0 0
        %2483 = vmatpush1.bf16.msra.mxu0 %v2115
        %2484 = vmatprep.subr.bf16.mxu0 0
        %2485 = vmatpush1.bf16.msra.mxu0 %v2116
        %2486 = vmatprep.subr.bf16.mxu0 0
        %2487 = vmatpush1.bf16.msra.mxu0 0
        %2488 = vmatprep.subr.bf16.mxu0 0
        %2489 = vmatpush1.bf16.msra.mxu0 0
        %2490 = vmatprep.subr.bf16.mxu0 0
        %2491 = vmatpush1.bf16.msra.mxu0 0
        %2492 = vmatprep.subr.bf16.mxu0 0
        %2493 = vmatpush1.bf16.msra.mxu0 0
        %2494 = vmatprep.subr.bf16.mxu0 0
        %2495 = vmatpush1.bf16.msra.mxu0 0
        %2496 = vmatprep.subr.bf16.mxu0 0
        %2497 = vmatpush1.bf16.msra.mxu0 0
        %2498 = vmatprep.subr.bf16.mxu0 0
        %2499 = vmatpush1.bf16.msra.mxu0 0
        %2500 = vmatprep.subr.bf16.mxu0 0
        %2501 = vmatpush1.bf16.msra.mxu0 0
        %2502 = vmatprep.subr.bf16.mxu0 0
        %2503 = vmatpush1.bf16.msra.mxu0 0
        %2504 = vmatprep.subr.bf16.mxu0 0
        %2505 = vmatpush1.bf16.msra.mxu0 0
        %2506 = vmatprep.subr.bf16.mxu0 0
        %2507 = vmatpush1.bf16.msra.mxu0 0
        %2508 = vmatprep.subr.bf16.mxu0 0
        %2509 = vmatpush1.bf16.msra.mxu0 0
        %2510 = vmatprep.mubr.bf16.mxu0 0
        %2511 = vmatmul.mubr.bf16.gmra.mrb[0].mxu0 %v2207
        %v2512 = vpop.f32.mrb[0].mxu0
        %v2513 = vadd.f32 %v2148, %v2512
        %v2514 = vpop.f32.mrb[0].mxu0
        %v2515 = vpop.f32.mrb[0].mxu0
        %v2516 = vadd.f32 %v2153, %v2515
        %v2517 = vpop.f32.mrb[0].mxu0
        %2518 = vmatprep.mubr.bf16.mxu0 0
        %2519 = vmatmul.mubr.bf16.gmra.mrb[0].mxu0 %v2210
        %v2520 = vpop.f32.mrb[0].mxu0
        %v2521 = vadd.f32 %v2158, %v2520
        %v2522 = vpop.f32.mrb[0].mxu0
        %v2523 = vpop.f32.mrb[0].mxu0
        %v2524 = vadd.f32 %v2163, %v2523
        %v2525 = vpop.f32.mrb[0].mxu0
        %2526 = vmatprep.mubr.bf16.mxu0 0
        %2527 = vmatmul.mubr.bf16.gmra.mrb[0].mxu0 %v2213
        %v2528 = vpop.f32.mrb[0].mxu0
        %v2529 = vadd.f32 %v2168, %v2528
        %v2530 = vpop.f32.mrb[0].mxu0
        %v2531 = vpop.f32.mrb[0].mxu0
        %v2532 = vadd.f32 %v2173, %v2531
        %v2533 = vpop.f32.mrb[0].mxu0
        %2534 = vmatprep.mubr.bf16.mxu0 0
        %2535 = vmatmul.mubr.bf16.gmra.mrb[0].mxu0 %v2216
        %v2536 = vpop.f32.mrb[0].mxu0
        %v2537 = vadd.f32 %v2178, %v2536
        %v2538 = vpop.f32.mrb[0].mxu0
        %v2539 = vpop.f32.mrb[0].mxu0
        %v2540 = vadd.f32 %v2183, %v2539
        %v2541 = vpop.f32.mrb[0].mxu0
        %2542 = vdwg.mxu0
        %2543 = vmatprep.subr.bf16.mxu0 0
        %2544 = vmatpush1.bf16.msra.mxu0 %v2117
        %2545 = vmatprep.subr.bf16.mxu0 0
        %2546 = vmatpush1.bf16.msra.mxu0 %v2118
        %2547 = vmatprep.subr.bf16.mxu0 0
        %2548 = vmatpush1.bf16.msra.mxu0 %v2119
        %2549 = vmatprep.subr.bf16.mxu0 0
        %2550 = vmatpush1.bf16.msra.mxu0 %v2120
        %2551 = vmatprep.subr.bf16.mxu0 0
        %2552 = vmatpush1.bf16.msra.mxu0 0
        %2553 = vmatprep.subr.bf16.mxu0 0
        %2554 = vmatpush1.bf16.msra.mxu0 0
        %2555 = vmatprep.subr.bf16.mxu0 0
        %2556 = vmatpush1.bf16.msra.mxu0 0
        %2557 = vmatprep.subr.bf16.mxu0 0
        %2558 = vmatpush1.bf16.msra.mxu0 0
        %2559 = vmatprep.subr.bf16.mxu0 0
        %2560 = vmatpush1.bf16.msra.mxu0 0
        %2561 = vmatprep.subr.bf16.mxu0 0
        %2562 = vmatpush1.bf16.msra.mxu0 0
        %2563 = vmatprep.subr.bf16.mxu0 0
        %2564 = vmatpush1.bf16.msra.mxu0 0
        %2565 = vmatprep.subr.bf16.mxu0 0
        %2566 = vmatpush1.bf16.msra.mxu0 0
        %2567 = vmatprep.subr.bf16.mxu0 0
        %2568 = vmatpush1.bf16.msra.mxu0 0
        %2569 = vmatprep.subr.bf16.mxu0 0
        %2570 = vmatpush1.bf16.msra.mxu0 0
        %2571 = vmatprep.subr.bf16.mxu0 0
        %2572 = vmatpush1.bf16.msra.mxu0 0
        %2573 = vmatprep.subr.bf16.mxu0 0
        %2574 = vmatpush1.bf16.msra.mxu0 0
        %2575 = vmatprep.mubr.bf16.mxu0 0
        %2576 = vmatmul.mubr.bf16.gmra.mrb[0].mxu0 %v2207
        %v2577 = vpop.f32.mrb[0].mxu0
        %v2578 = vadd.f32 %v2148, %v2577
        %v2579 = vpop.f32.mrb[0].mxu0
        %v2580 = vpop.f32.mrb[0].mxu0
        %v2581 = vadd.f32 %v2153, %v2580
        %v2582 = vpop.f32.mrb[0].mxu0
        %2583 = vmatprep.mubr.bf16.mxu0 0
        %2584 = vmatmul.mubr.bf16.gmra.mrb[0].mxu0 %v2210
        %v2585 = vpop.f32.mrb[0].mxu0
        %v2586 = vadd.f32 %v2158, %v2585
        %v2587 = vpop.f32.mrb[0].mxu0
        %v2588 = vpop.f32.mrb[0].mxu0
        %v2589 = vadd.f32 %v2163, %v2588
        %v2590 = vpop.f32.mrb[0].mxu0
        %2591 = vmatprep.mubr.bf16.mxu0 0
        %2592 = vmatmul.mubr.bf16.gmra.mrb[0].mxu0 %v2213
        %v2593 = vpop.f32.mrb[0].mxu0
        %v2594 = vadd.f32 %v2168, %v2593
        %v2595 = vpop.f32.mrb[0].mxu0
        %v2596 = vpop.f32.mrb[0].mxu0
        %v2597 = vadd.f32 %v2173, %v2596
        %v2598 = vpop.f32.mrb[0].mxu0
        %2599 = vmatprep.mubr.bf16.mxu0 0
        %2600 = vmatmul.mubr.bf16.gmra.mrb[0].mxu0 %v2216
        %v2601 = vpop.f32.mrb[0].mxu0
        %v2602 = vadd.f32 %v2178, %v2601
        %v2603 = vpop.f32.mrb[0].mxu0
        %v2604 = vpop.f32.mrb[0].mxu0
        %v2605 = vadd.f32 %v2183, %v2604
        %v2606 = vpop.f32.mrb[0].mxu0
        %2607 = vdwg.mxu0
        %2608 = vmatprep.subr.bf16.mxu0 0
        %2609 = vmatpush1.bf16.msra.mxu0 %v2121
        %2610 = vmatprep.subr.bf16.mxu0 0
        %2611 = vmatpush1.bf16.msra.mxu0 %v2122
        %2612 = vmatprep.subr.bf16.mxu0 0
        %2613 = vmatpush1.bf16.msra.mxu0 %v2123
        %2614 = vmatprep.subr.bf16.mxu0 0
        %2615 = vmatpush1.bf16.msra.mxu0 %v2124
        %2616 = vmatprep.subr.bf16.mxu0 0
        %2617 = vmatpush1.bf16.msra.mxu0 0
        %2618 = vmatprep.subr.bf16.mxu0 0
        %2619 = vmatpush1.bf16.msra.mxu0 0
        %2620 = vmatprep.subr.bf16.mxu0 0
        %2621 = vmatpush1.bf16.msra.mxu0 0
        %2622 = vmatprep.subr.bf16.mxu0 0
        %2623 = vmatpush1.bf16.msra.mxu0 0
        %2624 = vmatprep.subr.bf16.mxu0 0
        %2625 = vmatpush1.bf16.msra.mxu0 0
        %2626 = vmatprep.subr.bf16.mxu0 0
        %2627 = vmatpush1.bf16.msra.mxu0 0
        %2628 = vmatprep.subr.bf16.mxu0 0
        %2629 = vmatpush1.bf16.msra.mxu0 0
        %2630 = vmatprep.subr.bf16.mxu0 0
        %2631 = vmatpush1.bf16.msra.mxu0 0
        %2632 = vmatprep.subr.bf16.mxu0 0
        %2633 = vmatpush1.bf16.msra.mxu0 0
        %2634 = vmatprep.subr.bf16.mxu0 0
        %2635 = vmatpush1.bf16.msra.mxu0 0
        %2636 = vmatprep.subr.bf16.mxu0 0
        %2637 = vmatpush1.bf16.msra.mxu0 0
        %2638 = vmatprep.subr.bf16.mxu0 0
        %2639 = vmatpush1.bf16.msra.mxu0 0
        %2640 = vmatprep.mubr.bf16.mxu0 0
        %2641 = vmatmul.mubr.bf16.gmra.mrb[0].mxu0 %v2207
        %v2642 = vpop.f32.mrb[0].mxu0
        %v2643 = vadd.f32 %v2148, %v2642
        %v2644 = vpop.f32.mrb[0].mxu0
        %v2645 = vpop.f32.mrb[0].mxu0
        %v2646 = vadd.f32 %v2153, %v2645
        %v2647 = vpop.f32.mrb[0].mxu0
        %2648 = vmatprep.mubr.bf16.mxu0 0
        %2649 = vmatmul.mubr.bf16.gmra.mrb[0].mxu0 %v2210
        %v2650 = vpop.f32.mrb[0].mxu0
        %v2651 = vadd.f32 %v2158, %v2650
        %v2652 = vpop.f32.mrb[0].mxu0
        %v2653 = vpop.f32.mrb[0].mxu0
        %v2654 = vadd.f32 %v2163, %v2653
        %v2655 = vpop.f32.mrb[0].mxu0
        %2656 = vmatprep.mubr.bf16.mxu0 0
        %2657 = vmatmul.mubr.bf16.gmra.mrb[0].mxu0 %v2213
        %v2658 = vpop.f32.mrb[0].mxu0
        %v2659 = vadd.f32 %v2168, %v2658
        %v2660 = vpop.f32.mrb[0].mxu0
        %v2661 = vpop.f32.mrb[0].mxu0
        %v2662 = vadd.f32 %v2173, %v2661
        %v2663 = vpop.f32.mrb[0].mxu0
        %2664 = vmatprep.mubr.bf16.mxu0 0
        %2665 = vmatmul.mubr.bf16.gmra.mrb[0].mxu0 %v2216
        %v2666 = vpop.f32.mrb[0].mxu0
        %v2667 = vadd.f32 %v2178, %v2666
        %v2668 = vpop.f32.mrb[0].mxu0
        %v2669 = vpop.f32.mrb[0].mxu0
        %v2670 = vadd.f32 %v2183, %v2669
        %v2671 = vpop.f32.mrb[0].mxu0
        %2672 = vdwg.mxu0
        %2673 = vmatprep.subr.bf16.mxu0 0
        %2674 = vmatpush1.bf16.msra.mxu0 %v2125
        %2675 = vmatprep.subr.bf16.mxu0 0
        %2676 = vmatpush1.bf16.msra.mxu0 %v2126
        %2677 = vmatprep.subr.bf16.mxu0 0
        %2678 = vmatpush1.bf16.msra.mxu0 %v2127
        %2679 = vmatprep.subr.bf16.mxu0 0
        %2680 = vmatpush1.bf16.msra.mxu0 %v2128
        %2681 = vmatprep.subr.bf16.mxu0 0
        %2682 = vmatpush1.bf16.msra.mxu0 0
        %2683 = vmatprep.subr.bf16.mxu0 0
        %2684 = vmatpush1.bf16.msra.mxu0 0
        %2685 = vmatprep.subr.bf16.mxu0 0
        %2686 = vmatpush1.bf16.msra.mxu0 0
        %2687 = vmatprep.subr.bf16.mxu0 0
        %2688 = vmatpush1.bf16.msra.mxu0 0
        %2689 = vmatprep.subr.bf16.mxu0 0
        %2690 = vmatpush1.bf16.msra.mxu0 0
        %2691 = vmatprep.subr.bf16.mxu0 0
        %2692 = vmatpush1.bf16.msra.mxu0 0
        %2693 = vmatprep.subr.bf16.mxu0 0
        %2694 = vmatpush1.bf16.msra.mxu0 0
        %2695 = vmatprep.subr.bf16.mxu0 0
        %2696 = vmatpush1.bf16.msra.mxu0 0
        %2697 = vmatprep.subr.bf16.mxu0 0
        %2698 = vmatpush1.bf16.msra.mxu0 0
        %2699 = vmatprep.subr.bf16.mxu0 0
        %2700 = vmatpush1.bf16.msra.mxu0 0
        %2701 = vmatprep.subr.bf16.mxu0 0
        %2702 = vmatpush1.bf16.msra.mxu0 0
        %2703 = vmatprep.subr.bf16.mxu0 0
        %2704 = vmatpush1.bf16.msra.mxu0 0
        %2705 = vmatprep.mubr.bf16.mxu0 0
        %2706 = vmatmul.mubr.bf16.gmra.mrb[0].mxu0 %v2207
        %v2707 = vpop.f32.mrb[0].mxu0
        %v2708 = vadd.f32 %v2148, %v2707
        %v2709 = vpop.f32.mrb[0].mxu0
        %v2710 = vpop.f32.mrb[0].mxu0
        %v2711 = vadd.f32 %v2153, %v2710
        %v2712 = vpop.f32.mrb[0].mxu0
        %2713 = vmatprep.mubr.bf16.mxu0 0
        %2714 = vmatmul.mubr.bf16.gmra.mrb[0].mxu0 %v2210
        %v2715 = vpop.f32.mrb[0].mxu0
        %v2716 = vadd.f32 %v2158, %v2715
        %v2717 = vpop.f32.mrb[0].mxu0
        %v2718 = vpop.f32.mrb[0].mxu0
        %v2719 = vadd.f32 %v2163, %v2718
        %v2720 = vpop.f32.mrb[0].mxu0
        %2721 = vmatprep.mubr.bf16.mxu0 0
        %2722 = vmatmul.mubr.bf16.gmra.mrb[0].mxu0 %v2213
        %v2723 = vpop.f32.mrb[0].mxu0
        %v2724 = vadd.f32 %v2168, %v2723
        %v2725 = vpop.f32.mrb[0].mxu0
        %v2726 = vpop.f32.mrb[0].mxu0
        %v2727 = vadd.f32 %v2173, %v2726
        %v2728 = vpop.f32.mrb[0].mxu0
        %2729 = vmatprep.mubr.bf16.mxu0 0
        %2730 = vmatmul.mubr.bf16.gmra.mrb[0].mxu0 %v2216
        %v2731 = vpop.f32.mrb[0].mxu0
        %v2732 = vadd.f32 %v2178, %v2731
        %v2733 = vpop.f32.mrb[0].mxu0
        %v2734 = vpop.f32.mrb[0].mxu0
        %v2735 = vadd.f32 %v2183, %v2734
        %v2736 = vpop.f32.mrb[0].mxu0
        %2737 = vdwg.mxu0
        %2738 = vmatprep.subr.bf16.mxu0 0
        %2739 = vmatpush1.bf16.msra.mxu0 %v2129
        %2740 = vmatprep.subr.bf16.mxu0 0
        %2741 = vmatpush1.bf16.msra.mxu0 %v2130
        %2742 = vmatprep.subr.bf16.mxu0 0
        %2743 = vmatpush1.bf16.msra.mxu0 %v2131
        %2744 = vmatprep.subr.bf16.mxu0 0
        %2745 = vmatpush1.bf16.msra.mxu0 %v2132
        %2746 = vmatprep.subr.bf16.mxu0 0
        %2747 = vmatpush1.bf16.msra.mxu0 0
        %2748 = vmatprep.subr.bf16.mxu0 0
        %2749 = vmatpush1.bf16.msra.mxu0 0
        %2750 = vmatprep.subr.bf16.mxu0 0
        %2751 = vmatpush1.bf16.msra.mxu0 0
        %2752 = vmatprep.subr.bf16.mxu0 0
        %2753 = vmatpush1.bf16.msra.mxu0 0
        %2754 = vmatprep.subr.bf16.mxu0 0
        %2755 = vmatpush1.bf16.msra.mxu0 0
        %2756 = vmatprep.subr.bf16.mxu0 0
        %2757 = vmatpush1.bf16.msra.mxu0 0
        %2758 = vmatprep.subr.bf16.mxu0 0
        %2759 = vmatpush1.bf16.msra.mxu0 0
        %2760 = vmatprep.subr.bf16.mxu0 0
        %2761 = vmatpush1.bf16.msra.mxu0 0
        %2762 = vmatprep.subr.bf16.mxu0 0
        %2763 = vmatpush1.bf16.msra.mxu0 0
        %2764 = vmatprep.subr.bf16.mxu0 0
        %2765 = vmatpush1.bf16.msra.mxu0 0
        %2766 = vmatprep.subr.bf16.mxu0 0
        %2767 = vmatpush1.bf16.msra.mxu0 0
        %2768 = vmatprep.subr.bf16.mxu0 0
        %2769 = vmatpush1.bf16.msra.mxu0 0
        %2770 = vmatprep.mubr.bf16.mxu0 0
        %2771 = vmatmul.mubr.bf16.gmra.mrb[0].mxu0 %v2207
        %v2772 = vpop.f32.mrb[0].mxu0
        %v2773 = vadd.f32 %v2148, %v2772
        %v2774 = vpop.f32.mrb[0].mxu0
        %v2775 = vpop.f32.mrb[0].mxu0
        %v2776 = vadd.f32 %v2153, %v2775
        %v2777 = vpop.f32.mrb[0].mxu0
        %2778 = vmatprep.mubr.bf16.mxu0 0
        %2779 = vmatmul.mubr.bf16.gmra.mrb[0].mxu0 %v2210
        %v2780 = vpop.f32.mrb[0].mxu0
        %v2781 = vadd.f32 %v2158, %v2780
        %v2782 = vpop.f32.mrb[0].mxu0
        %v2783 = vpop.f32.mrb[0].mxu0
        %v2784 = vadd.f32 %v2163, %v2783
        %v2785 = vpop.f32.mrb[0].mxu0
        %2786 = vmatprep.mubr.bf16.mxu0 0
        %2787 = vmatmul.mubr.bf16.gmra.mrb[0].mxu0 %v2213
        %v2788 = vpop.f32.mrb[0].mxu0
        %v2789 = vadd.f32 %v2168, %v2788
        %v2790 = vpop.f32.mrb[0].mxu0
        %v2791 = vpop.f32.mrb[0].mxu0
        %v2792 = vadd.f32 %v2173, %v2791
        %v2793 = vpop.f32.mrb[0].mxu0
        %2794 = vmatprep.mubr.bf16.mxu0 0
        %2795 = vmatmul.mubr.bf16.gmra.mrb[0].mxu0 %v2216
        %v2796 = vpop.f32.mrb[0].mxu0
        %v2797 = vadd.f32 %v2178, %v2796
        %v2798 = vpop.f32.mrb[0].mxu0
        %v2799 = vpop.f32.mrb[0].mxu0
        %v2800 = vadd.f32 %v2183, %v2799
        %v2801 = vpop.f32.mrb[0].mxu0
        %2802 = vdwg.mxu0
        %2803 = vmatprep.subr.bf16.mxu0 0
        %2804 = vmatpush1.bf16.msra.mxu0 %v2133
        %2805 = vmatprep.subr.bf16.mxu0 0
        %2806 = vmatpush1.bf16.msra.mxu0 %v2134
        %2807 = vmatprep.subr.bf16.mxu0 0
        %2808 = vmatpush1.bf16.msra.mxu0 %v2135
        %2809 = vmatprep.subr.bf16.mxu0 0
        %2810 = vmatpush1.bf16.msra.mxu0 %v2136
        %2811 = vmatprep.subr.bf16.mxu0 0
        %2812 = vmatpush1.bf16.msra.mxu0 0
        %2813 = vmatprep.subr.bf16.mxu0 0
        %2814 = vmatpush1.bf16.msra.mxu0 0
        %2815 = vmatprep.subr.bf16.mxu0 0
        %2816 = vmatpush1.bf16.msra.mxu0 0
        %2817 = vmatprep.subr.bf16.mxu0 0
        %2818 = vmatpush1.bf16.msra.mxu0 0
        %2819 = vmatprep.subr.bf16.mxu0 0
        %2820 = vmatpush1.bf16.msra.mxu0 0
        %2821 = vmatprep.subr.bf16.mxu0 0
        %2822 = vmatpush1.bf16.msra.mxu0 0
        %2823 = vmatprep.subr.bf16.mxu0 0
        %2824 = vmatpush1.bf16.msra.mxu0 0
        %2825 = vmatprep.subr.bf16.mxu0 0
        %2826 = vmatpush1.bf16.msra.mxu0 0
        %2827 = vmatprep.subr.bf16.mxu0 0
        %2828 = vmatpush1.bf16.msra.mxu0 0
        %2829 = vmatprep.subr.bf16.mxu0 0
        %2830 = vmatpush1.bf16.msra.mxu0 0
        %2831 = vmatprep.subr.bf16.mxu0 0
        %2832 = vmatpush1.bf16.msra.mxu0 0
        %2833 = vmatprep.subr.bf16.mxu0 0
        %2834 = vmatpush1.bf16.msra.mxu0 0
        %2835 = vmatprep.mubr.bf16.mxu0 0
        %2836 = vmatmul.mubr.bf16.gmra.mrb[0].mxu0 %v2207
        %v2837 = vpop.f32.mrb[0].mxu0
        %v2838 = vadd.f32 %v2148, %v2837
        %v2839 = vpop.f32.mrb[0].mxu0
        %v2840 = vpop.f32.mrb[0].mxu0
        %v2841 = vadd.f32 %v2153, %v2840
        %v2842 = vpop.f32.mrb[0].mxu0
        %2843 = vmatprep.mubr.bf16.mxu0 0
        %2844 = vmatmul.mubr.bf16.gmra.mrb[0].mxu0 %v2210
        %v2845 = vpop.f32.mrb[0].mxu0
        %v2846 = vadd.f32 %v2158, %v2845
        %v2847 = vpop.f32.mrb[0].mxu0
        %v2848 = vpop.f32.mrb[0].mxu0
        %v2849 = vadd.f32 %v2163, %v2848
        %v2850 = vpop.f32.mrb[0].mxu0
        %2851 = vmatprep.mubr.bf16.mxu0 0
        %2852 = vmatmul.mubr.bf16.gmra.mrb[0].mxu0 %v2213
        %v2853 = vpop.f32.mrb[0].mxu0
        %v2854 = vadd.f32 %v2168, %v2853
        %v2855 = vpop.f32.mrb[0].mxu0
        %v2856 = vpop.f32.mrb[0].mxu0
        %v2857 = vadd.f32 %v2173, %v2856
        %v2858 = vpop.f32.mrb[0].mxu0
        %2859 = vmatprep.mubr.bf16.mxu0 0
        %2860 = vmatmul.mubr.bf16.gmra.mrb[0].mxu0 %v2216
        %v2861 = vpop.f32.mrb[0].mxu0
        %v2862 = vadd.f32 %v2178, %v2861
        %v2863 = vpop.f32.mrb[0].mxu0
        %v2864 = vpop.f32.mrb[0].mxu0
        %v2865 = vadd.f32 %v2183, %v2864
        %v2866 = vpop.f32.mrb[0].mxu0
        %2867 = vdwg.mxu0
        %v2868 = vmax.f32 %v2253, 0.0
        %v2869 = vmax.f32 %v2256, 0.0
        %v2870 = vmax.f32 %v2261, 0.0
        %v2871 = vmax.f32 %v2264, 0.0
        %v2872 = vmax.f32 %v2269, 0.0
        %v2873 = vmax.f32 %v2272, 0.0
        %v2874 = vmax.f32 %v2277, 0.0
        %v2875 = vmax.f32 %v2280, 0.0
        %v2876 = vmax.f32 %v2318, 0.0
        %v2877 = vmax.f32 %v2321, 0.0
        %v2878 = vmax.f32 %v2326, 0.0
        %v2879 = vmax.f32 %v2329, 0.0
        %v2880 = vmax.f32 %v2334, 0.0
        %v2881 = vmax.f32 %v2337, 0.0
        %v2882 = vmax.f32 %v2342, 0.0
        %v2883 = vmax.f32 %v2345, 0.0
        %v2884 = vmax.f32 %v2383, 0.0
        %v2885 = vmax.f32 %v2386, 0.0
        %v2886 = vmax.f32 %v2391, 0.0
        %v2887 = vmax.f32 %v2394, 0.0
        %v2888 = vmax.f32 %v2399, 0.0
        %v2889 = vmax.f32 %v2402, 0.0
        %v2890 = vmax.f32 %v2407, 0.0
        %v2891 = vmax.f32 %v2410, 0.0
        %v2892 = vmax.f32 %v2448, 0.0
        %v2893 = vmax.f32 %v2451, 0.0
        %v2894 = vmax.f32 %v2456, 0.0
        %v2895 = vmax.f32 %v2459, 0.0
        %v2896 = vmax.f32 %v2464, 0.0
        %v2897 = vmax.f32 %v2467, 0.0
        %v2898 = vmax.f32 %v2472, 0.0
        %v2899 = vmax.f32 %v2475, 0.0
        %v2900 = vmax.f32 %v2513, 0.0
        %v2901 = vmax.f32 %v2516, 0.0
        %v2902 = vmax.f32 %v2521, 0.0
        %v2903 = vmax.f32 %v2524, 0.0
        %v2904 = vmax.f32 %v2529, 0.0
        %v2905 = vmax.f32 %v2532, 0.0
        %v2906 = vmax.f32 %v2537, 0.0
        %v2907 = vmax.f32 %v2540, 0.0
        %v2908 = vmax.f32 %v2578, 0.0
        %v2909 = vmax.f32 %v2581, 0.0
        %v2910 = vmax.f32 %v2586, 0.0
        %v2911 = vmax.f32 %v2589, 0.0
        %v2912 = vmax.f32 %v2594, 0.0
        %v2913 = vmax.f32 %v2597, 0.0
        %v2914 = vmax.f32 %v2602, 0.0
        %v2915 = vmax.f32 %v2605, 0.0
        %v2916 = vmax.f32 %v2643, 0.0
        %v2917 = vmax.f32 %v2646, 0.0
        %v2918 = vmax.f32 %v2651, 0.0
        %v2919 = vmax.f32 %v2654, 0.0
        %v2920 = vmax.f32 %v2659, 0.0
        %v2921 = vmax.f32 %v2662, 0.0
        %v2922 = vmax.f32 %v2667, 0.0
        %v2923 = vmax.f32 %v2670, 0.0
        %v2924 = vmax.f32 %v2708, 0.0
        %v2925 = vmax.f32 %v2711, 0.0
        %v2926 = vmax.f32 %v2716, 0.0
        %v2927 = vmax.f32 %v2719, 0.0
        %v2928 = vmax.f32 %v2724, 0.0
        %v2929 = vmax.f32 %v2727, 0.0
        %v2930 = vmax.f32 %v2732, 0.0
        %v2931 = vmax.f32 %v2735, 0.0
        %v2932 = vmax.f32 %v2773, 0.0
        %v2933 = vmax.f32 %v2776, 0.0
        %v2934 = vmax.f32 %v2781, 0.0
        %v2935 = vmax.f32 %v2784, 0.0
        %v2936 = vmax.f32 %v2789, 0.0
        %v2937 = vmax.f32 %v2792, 0.0
        %v2938 = vmax.f32 %v2797, 0.0
        %v2939 = vmax.f32 %v2800, 0.0
        %v2940 = vmax.f32 %v2838, 0.0
        %v2941 = vmax.f32 %v2841, 0.0
        %v2942 = vmax.f32 %v2846, 0.0
        %v2943 = vmax.f32 %v2849, 0.0
        %v2944 = vmax.f32 %v2854, 0.0
        %v2945 = vmax.f32 %v2857, 0.0
        %v2946 = vmax.f32 %v2862, 0.0
        %v2947 = vmax.f32 %v2865, 0.0
        %s2948 = ssub.s32 %s640, 1
        %v2949 = vstv %s2948
        %v2950 = vadd.s32 %v2949, 1
        %v2951 = vadd.s32 %v2949, 2
        %v2952 = vadd.s32 %v2949, 3
        %v2953 = vadd.s32 %v2949, 4
        %v2954 = vadd.s32 %v2949, 5
        %v2955 = vadd.s32 %v2949, 6
        %v2956 = vadd.s32 %v2949, 7
        %v2957 = vadd.s32 %v2949, 8
        %v2958 = vadd.s32 %v2949, 9
        %v2959 = vlaneseq
        %v2960 = vand.u32 %v2959, 127
        %vm2961 = vcmp.ge.s32.totalorder %v2949, 0
        %vm2962 = vcmp.ge.s32.totalorder %v2950, 0
        %vm2963 = vcmp.ge.s32.totalorder %v2951, 0
        %vm2964 = vcmp.ge.s32.totalorder %v2952, 0
        %vm2965 = vcmp.ge.s32.totalorder %v2953, 0
        %vm2966 = vcmp.ge.s32.totalorder %v2954, 0
        %vm2967 = vcmp.ge.s32.totalorder %v2955, 0
        %vm2968 = vcmp.ge.s32.totalorder %v2956, 0
        %vm2969 = vcmp.ge.s32.totalorder %v2957, 0
        %vm2970 = vcmp.ge.s32.totalorder %v2958, 0
        %vm2971 = vcmp.lt.s32.totalorder %v2949, 16
        %vm2972 = vcmp.lt.s32.totalorder %v2950, 16
        %vm2973 = vcmp.lt.s32.totalorder %v2951, 16
        %vm2974 = vcmp.lt.s32.totalorder %v2952, 16
        %vm2975 = vcmp.lt.s32.totalorder %v2953, 16
        %vm2976 = vcmp.lt.s32.totalorder %v2954, 16
        %vm2977 = vcmp.lt.s32.totalorder %v2955, 16
        %vm2978 = vcmp.lt.s32.totalorder %v2956, 16
        %vm2979 = vcmp.lt.s32.totalorder %v2957, 16
        %vm2980 = vcmp.lt.s32.totalorder %v2958, 16
        %vm2981 = vmand %vm2961, %vm2971
        %vm2982 = vmand %vm2962, %vm2972
        %vm2983 = vmand %vm2963, %vm2973
        %vm2984 = vmand %vm2964, %vm2974
        %vm2985 = vmand %vm2965, %vm2975
        %vm2986 = vmand %vm2966, %vm2976
        %vm2987 = vmand %vm2967, %vm2977
        %vm2988 = vmand %vm2968, %vm2978
        %vm2989 = vmand %vm2969, %vm2979
        %vm2990 = vmand %vm2970, %vm2980
        %vm2991 = vcmp.ge.s32.totalorder %v2960, 1
        %vm2992 = vmand %vm2981, %vm2991
        %vm2993 = vmand %vm2982, %vm2991
        %vm2994 = vmand %vm2983, %vm2991
        %vm2995 = vmand %vm2984, %vm2991
        %vm2996 = vmand %vm2985, %vm2991
        %vm2997 = vmand %vm2986, %vm2991
        %vm2998 = vmand %vm2987, %vm2991
        %vm2999 = vmand %vm2988, %vm2991
        %vm3000 = vmand %vm2989, %vm2991
        %vm3001 = vmand %vm2990, %vm2991
        %vm3002 = vcmp.le.s32.totalorder %v2960, 16
        %vm3003 = vmand %vm2992, %vm3002
        %vm3004 = vmand %vm2993, %vm3002
        %vm3005 = vmand %vm2994, %vm3002
        %vm3006 = vmand %vm2995, %vm3002
        %vm3007 = vmand %vm2996, %vm3002
        %vm3008 = vmand %vm2997, %vm3002
        %vm3009 = vmand %vm2998, %vm3002
        %vm3010 = vmand %vm2999, %vm3002
        %vm3011 = vmand %vm3000, %vm3002
        %vm3012 = vmand %vm3001, %vm3002
        %v3013 = vsel %vm3003, 1, 0
        %v3014 = vsel %vm3004, 1, 0
        %v3015 = vsel %vm3005, 1, 0
        %v3016 = vsel %vm3006, 1, 0
        %v3017 = vsel %vm3007, 1, 0
        %v3018 = vsel %vm3008, 1, 0
        %v3019 = vsel %vm3009, 1, 0
        %v3020 = vsel %vm3010, 1, 0
        %v3021 = vsel %vm3011, 1, 0
        %v3022 = vsel %vm3012, 1, 0
        %v3023 = vcvt.s32.f32 %v3013
        %v3024 = vcvt.s32.f32 %v3014
        %v3025 = vcvt.s32.f32 %v3015
        %v3026 = vcvt.s32.f32 %v3016
        %v3027 = vcvt.s32.f32 %v3017
        %v3028 = vcvt.s32.f32 %v3018
        %v3029 = vcvt.s32.f32 %v3019
        %v3030 = vcvt.s32.f32 %v3020
        %v3031 = vcvt.s32.f32 %v3021
        %v3032 = vcvt.s32.f32 %v3022
        %v3033 = vmul.f32 %v2868, %v3023
        %v3034 = vmul.f32 %v2869, %v3023
        %v3035 = vmul.f32 %v2870, %v3023
        %v3036 = vmul.f32 %v2871, %v3023
        %v3037 = vmul.f32 %v2872, %v3023
        %v3038 = vmul.f32 %v2873, %v3023
        %v3039 = vmul.f32 %v2874, %v3023
        %v3040 = vmul.f32 %v2875, %v3023
        %v3041 = vmul.f32 %v2876, %v3024
        %v3042 = vmul.f32 %v2877, %v3024
        %v3043 = vmul.f32 %v2878, %v3024
        %v3044 = vmul.f32 %v2879, %v3024
        %v3045 = vmul.f32 %v2880, %v3024
        %v3046 = vmul.f32 %v2881, %v3024
        %v3047 = vmul.f32 %v2882, %v3024
        %v3048 = vmul.f32 %v2883, %v3024
        %v3049 = vmul.f32 %v2884, %v3025
        %v3050 = vmul.f32 %v2885, %v3025
        %v3051 = vmul.f32 %v2886, %v3025
        %v3052 = vmul.f32 %v2887, %v3025
        %v3053 = vmul.f32 %v2888, %v3025
        %v3054 = vmul.f32 %v2889, %v3025
        %v3055 = vmul.f32 %v2890, %v3025
        %v3056 = vmul.f32 %v2891, %v3025
        %v3057 = vmul.f32 %v2892, %v3026
        %v3058 = vmul.f32 %v2893, %v3026
        %v3059 = vmul.f32 %v2894, %v3026
        %v3060 = vmul.f32 %v2895, %v3026
        %v3061 = vmul.f32 %v2896, %v3026
        %v3062 = vmul.f32 %v2897, %v3026
        %v3063 = vmul.f32 %v2898, %v3026
        %v3064 = vmul.f32 %v2899, %v3026
        %v3065 = vmul.f32 %v2900, %v3027
        %v3066 = vmul.f32 %v2901, %v3027
        %v3067 = vmul.f32 %v2902, %v3027
        %v3068 = vmul.f32 %v2903, %v3027
        %v3069 = vmul.f32 %v2904, %v3027
        %v3070 = vmul.f32 %v2905, %v3027
        %v3071 = vmul.f32 %v2906, %v3027
        %v3072 = vmul.f32 %v2907, %v3027
        %v3073 = vmul.f32 %v2908, %v3028
        %v3074 = vmul.f32 %v2909, %v3028
        %v3075 = vmul.f32 %v2910, %v3028
        %v3076 = vmul.f32 %v2911, %v3028
        %v3077 = vmul.f32 %v2912, %v3028
        %v3078 = vmul.f32 %v2913, %v3028
        %v3079 = vmul.f32 %v2914, %v3028
        %v3080 = vmul.f32 %v2915, %v3028
        %v3081 = vmul.f32 %v2916, %v3029
        %v3082 = vmul.f32 %v2917, %v3029
        %v3083 = vmul.f32 %v2918, %v3029
        %v3084 = vmul.f32 %v2919, %v3029
        %v3085 = vmul.f32 %v2920, %v3029
        %v3086 = vmul.f32 %v2921, %v3029
        %v3087 = vmul.f32 %v2922, %v3029
        %v3088 = vmul.f32 %v2923, %v3029
        %v3089 = vmul.f32 %v2924, %v3030
        %v3090 = vmul.f32 %v2925, %v3030
        %v3091 = vmul.f32 %v2926, %v3030
        %v3092 = vmul.f32 %v2927, %v3030
        %v3093 = vmul.f32 %v2928, %v3030
        %v3094 = vmul.f32 %v2929, %v3030
        %v3095 = vmul.f32 %v2930, %v3030
        %v3096 = vmul.f32 %v2931, %v3030
        %v3097 = vmul.f32 %v2932, %v3031
        %v3098 = vmul.f32 %v2933, %v3031
        %v3099 = vmul.f32 %v2934, %v3031
        %v3100 = vmul.f32 %v2935, %v3031
        %v3101 = vmul.f32 %v2936, %v3031
        %v3102 = vmul.f32 %v2937, %v3031
        %v3103 = vmul.f32 %v2938, %v3031
        %v3104 = vmul.f32 %v2939, %v3031
        %v3105 = vmul.f32 %v2940, %v3032
        %v3106 = vmul.f32 %v2941, %v3032
        %v3107 = vmul.f32 %v2942, %v3032
        %v3108 = vmul.f32 %v2943, %v3032
        %v3109 = vmul.f32 %v2944, %v3032
        %v3110 = vmul.f32 %v2945, %v3032
        %v3111 = vmul.f32 %v2946, %v3032
        %v3112 = vmul.f32 %v2947, %v3032
        %v3113 = vld [vmem:[#allocation18] sm:$0xf]
        %v3114 = vld [vmem:[#allocation18 + $0x4] sm:$0xf]
        %v3115 = vld [vmem:[#allocation18 + $0x8] sm:$0xf]
        %v3116 = vld [vmem:[#allocation18 + $0xc] sm:$0x3]
        %v3117 = vpack.c.bf16 %v3034, %v3033
        %v3118 = vpack.c.bf16 %v3036, %v3035
        %v3119 = vpack.c.bf16 %v3038, %v3037
        %v3120 = vpack.c.bf16 %v3040, %v3039
        %v3121 = vpack.c.bf16 %v3042, %v3041
        %v3122 = vpack.c.bf16 %v3044, %v3043
        %v3123 = vpack.c.bf16 %v3046, %v3045
        %v3124 = vpack.c.bf16 %v3048, %v3047
        %v3125 = vpack.c.bf16 %v3050, %v3049
        %v3126 = vpack.c.bf16 %v3052, %v3051
        %v3127 = vpack.c.bf16 %v3054, %v3053
        %v3128 = vpack.c.bf16 %v3056, %v3055
        %v3129 = vpack.c.bf16 %v3058, %v3057
        %v3130 = vpack.c.bf16 %v3060, %v3059
        %v3131 = vpack.c.bf16 %v3062, %v3061
        %v3132 = vpack.c.bf16 %v3064, %v3063
        %v3133 = vpack.c.bf16 %v3066, %v3065
        %v3134 = vpack.c.bf16 %v3068, %v3067
        %v3135 = vpack.c.bf16 %v3070, %v3069
        %v3136 = vpack.c.bf16 %v3072, %v3071
        %v3137 = vpack.c.bf16 %v3074, %v3073
        %v3138 = vpack.c.bf16 %v3076, %v3075
        %v3139 = vpack.c.bf16 %v3078, %v3077
        %v3140 = vpack.c.bf16 %v3080, %v3079
        %v3141 = vpack.c.bf16 %v3082, %v3081
        %v3142 = vpack.c.bf16 %v3084, %v3083
        %v3143 = vpack.c.bf16 %v3086, %v3085
        %v3144 = vpack.c.bf16 %v3088, %v3087
        %v3145 = vpack.c.bf16 %v3090, %v3089
        %v3146 = vpack.c.bf16 %v3092, %v3091
        %v3147 = vpack.c.bf16 %v3094, %v3093
        %v3148 = vpack.c.bf16 %v3096, %v3095
        %v3149 = vpack.c.bf16 %v3098, %v3097
        %v3150 = vpack.c.bf16 %v3100, %v3099
        %v3151 = vpack.c.bf16 %v3102, %v3101
        %v3152 = vpack.c.bf16 %v3104, %v3103
        %v3153 = vpack.c.bf16 %v3106, %v3105
        %v3154 = vpack.c.bf16 %v3108, %v3107
        %v3155 = vpack.c.bf16 %v3110, %v3109
        %v3156 = vpack.c.bf16 %v3112, %v3111
        %v3161 = vunpack.c.l.b16 %v3113
        %v3162 = vunpack.c.l.b16 %v3114
        %v3163 = vunpack.c.l.b16 %v3115
        %v3164 = vunpack.c.l.b16 %v3116
        %v3165 = vpack.c.b16 %v3162, %v3161
        %v3166 = vpack.c.b16 %v3164, %v3163
        %v3168 = vsel %vm2205, %v3165, 0
        %v3171 = vsel %vm2205, %v3166, 0
        %3173 = vmatprep.subr.bf16.mxu0 0
        %3174 = vmatpush1.bf16.msra.mxu0 %v3117
        %3175 = vmatprep.subr.bf16.mxu0 0
        %3176 = vmatpush1.bf16.msra.mxu0 %v3118
        %3177 = vmatprep.subr.bf16.mxu0 0
        %3178 = vmatpush1.bf16.msra.mxu0 %v3119
        %3179 = vmatprep.subr.bf16.mxu0 0
        %3180 = vmatpush1.bf16.msra.mxu0 %v3120
        %3181 = vmatprep.subr.bf16.mxu0 0
        %3182 = vmatpush1.bf16.msra.mxu0 0
        %3183 = vmatprep.subr.bf16.mxu0 0
        %3184 = vmatpush1.bf16.msra.mxu0 0
        %3185 = vmatprep.subr.bf16.mxu0 0
        %3186 = vmatpush1.bf16.msra.mxu0 0
        %3187 = vmatprep.subr.bf16.mxu0 0
        %3188 = vmatpush1.bf16.msra.mxu0 0
        %3189 = vmatprep.subr.bf16.mxu0 0
        %3190 = vmatpush1.bf16.msra.mxu0 0
        %3191 = vmatprep.subr.bf16.mxu0 0
        %3192 = vmatpush1.bf16.msra.mxu0 0
        %3193 = vmatprep.subr.bf16.mxu0 0
        %3194 = vmatpush1.bf16.msra.mxu0 0
        %3195 = vmatprep.subr.bf16.mxu0 0
        %3196 = vmatpush1.bf16.msra.mxu0 0
        %3197 = vmatprep.subr.bf16.mxu0 0
        %3198 = vmatpush1.bf16.msra.mxu0 0
        %3199 = vmatprep.subr.bf16.mxu0 0
        %3200 = vmatpush1.bf16.msra.mxu0 0
        %3201 = vmatprep.subr.bf16.mxu0 0
        %3202 = vmatpush1.bf16.msra.mxu0 0
        %3203 = vmatprep.subr.bf16.mxu0 0
        %3204 = vmatpush1.bf16.msra.mxu0 0
        %3205 = vmatprep.mubr.bf16.mxu0 0
        %3206 = vmatmul.mubr.bf16.gmra.mrb[0].mxu0 %v3168
        %v3207 = vpop.f32.mrb[0].mxu0
        %v3208 = vadd.f32 0.0, %v3207
        %v3209 = vpop.f32.mrb[0].mxu0
        %v3210 = vpop.f32.mrb[0].mxu0
        %v3211 = vadd.f32 0.0, %v3210
        %v3212 = vpop.f32.mrb[0].mxu0
        %3213 = vmatprep.mubr.bf16.mxu0 0
        %3214 = vmatmul.mubr.bf16.gmra.mrb[0].mxu0 %v3171
        %v3215 = vpop.f32.mrb[0].mxu0
        %v3216 = vpop.f32.mrb[0].mxu0
        %v3217 = vpop.f32.mrb[0].mxu0
        %v3218 = vpop.f32.mrb[0].mxu0
        %3219 = vdwg.mxu0
        %3220 = vmatprep.subr.bf16.mxu0 0
        %3221 = vmatpush1.bf16.msra.mxu0 %v3121
        %3222 = vmatprep.subr.bf16.mxu0 0
        %3223 = vmatpush1.bf16.msra.mxu0 %v3122
        %3224 = vmatprep.subr.bf16.mxu0 0
        %3225 = vmatpush1.bf16.msra.mxu0 %v3123
        %3226 = vmatprep.subr.bf16.mxu0 0
        %3227 = vmatpush1.bf16.msra.mxu0 %v3124
        %3228 = vmatprep.subr.bf16.mxu0 0
        %3229 = vmatpush1.bf16.msra.mxu0 0
        %3230 = vmatprep.subr.bf16.mxu0 0
        %3231 = vmatpush1.bf16.msra.mxu0 0
        %3232 = vmatprep.subr.bf16.mxu0 0
        %3233 = vmatpush1.bf16.msra.mxu0 0
        %3234 = vmatprep.subr.bf16.mxu0 0
        %3235 = vmatpush1.bf16.msra.mxu0 0
        %3236 = vmatprep.subr.bf16.mxu0 0
        %3237 = vmatpush1.bf16.msra.mxu0 0
        %3238 = vmatprep.subr.bf16.mxu0 0
        %3239 = vmatpush1.bf16.msra.mxu0 0
        %3240 = vmatprep.subr.bf16.mxu0 0
        %3241 = vmatpush1.bf16.msra.mxu0 0
        %3242 = vmatprep.subr.bf16.mxu0 0
        %3243 = vmatpush1.bf16.msra.mxu0 0
        %3244 = vmatprep.subr.bf16.mxu0 0
        %3245 = vmatpush1.bf16.msra.mxu0 0
        %3246 = vmatprep.subr.bf16.mxu0 0
        %3247 = vmatpush1.bf16.msra.mxu0 0
        %3248 = vmatprep.subr.bf16.mxu0 0
        %3249 = vmatpush1.bf16.msra.mxu0 0
        %3250 = vmatprep.subr.bf16.mxu0 0
        %3251 = vmatpush1.bf16.msra.mxu0 0
        %3252 = vmatprep.mubr.bf16.mxu0 0
        %3253 = vmatmul.mubr.bf16.gmra.mrb[0].mxu0 %v3168
        %v3254 = vpop.f32.mrb[0].mxu0
        %v3255 = vadd.f32 0.0, %v3254
        %v3256 = vpop.f32.mrb[0].mxu0
        %v3257 = vpop.f32.mrb[0].mxu0
        %v3258 = vadd.f32 0.0, %v3257
        %v3259 = vpop.f32.mrb[0].mxu0
        %3260 = vmatprep.mubr.bf16.mxu0 0
        %3261 = vmatmul.mubr.bf16.gmra.mrb[0].mxu0 %v3171
        %v3262 = vpop.f32.mrb[0].mxu0
        %v3263 = vadd.f32 0.0, %v3262
        %v3264 = vpop.f32.mrb[0].mxu0
        %v3265 = vpop.f32.mrb[0].mxu0
        %v3266 = vpop.f32.mrb[0].mxu0
        %3267 = vdwg.mxu0
        %3268 = vmatprep.subr.bf16.mxu0 0
        %3269 = vmatpush1.bf16.msra.mxu0 %v3125
        %3270 = vmatprep.subr.bf16.mxu0 0
        %3271 = vmatpush1.bf16.msra.mxu0 %v3126
        %3272 = vmatprep.subr.bf16.mxu0 0
        %3273 = vmatpush1.bf16.msra.mxu0 %v3127
        %3274 = vmatprep.subr.bf16.mxu0 0
        %3275 = vmatpush1.bf16.msra.mxu0 %v3128
        %3276 = vmatprep.subr.bf16.mxu0 0
        %3277 = vmatpush1.bf16.msra.mxu0 0
        %3278 = vmatprep.subr.bf16.mxu0 0
        %3279 = vmatpush1.bf16.msra.mxu0 0
        %3280 = vmatprep.subr.bf16.mxu0 0
        %3281 = vmatpush1.bf16.msra.mxu0 0
        %3282 = vmatprep.subr.bf16.mxu0 0
        %3283 = vmatpush1.bf16.msra.mxu0 0
        %3284 = vmatprep.subr.bf16.mxu0 0
        %3285 = vmatpush1.bf16.msra.mxu0 0
        %3286 = vmatprep.subr.bf16.mxu0 0
        %3287 = vmatpush1.bf16.msra.mxu0 0
        %3288 = vmatprep.subr.bf16.mxu0 0
        %3289 = vmatpush1.bf16.msra.mxu0 0
        %3290 = vmatprep.subr.bf16.mxu0 0
        %3291 = vmatpush1.bf16.msra.mxu0 0
        %3292 = vmatprep.subr.bf16.mxu0 0
        %3293 = vmatpush1.bf16.msra.mxu0 0
        %3294 = vmatprep.subr.bf16.mxu0 0
        %3295 = vmatpush1.bf16.msra.mxu0 0
        %3296 = vmatprep.subr.bf16.mxu0 0
        %3297 = vmatpush1.bf16.msra.mxu0 0
        %3298 = vmatprep.subr.bf16.mxu0 0
        %3299 = vmatpush1.bf16.msra.mxu0 0
        %3300 = vmatprep.mubr.bf16.mxu0 0
        %3301 = vmatmul.mubr.bf16.gmra.mrb[0].mxu0 %v3168
        %v3302 = vpop.f32.mrb[0].mxu0
        %v3303 = vadd.f32 0.0, %v3302
        %v3304 = vpop.f32.mrb[0].mxu0
        %v3305 = vpop.f32.mrb[0].mxu0
        %v3306 = vadd.f32 0.0, %v3305
        %v3307 = vpop.f32.mrb[0].mxu0
        %3308 = vmatprep.mubr.bf16.mxu0 0
        %3309 = vmatmul.mubr.bf16.gmra.mrb[0].mxu0 %v3171
        %v3310 = vpop.f32.mrb[0].mxu0
        %v3311 = vadd.f32 0.0, %v3310
        %v3312 = vpop.f32.mrb[0].mxu0
        %v3313 = vpop.f32.mrb[0].mxu0
        %v3314 = vadd.f32 0.0, %v3313
        %v3315 = vpop.f32.mrb[0].mxu0
        %3316 = vdwg.mxu0
        %3317 = vmatprep.subr.bf16.mxu0 0
        %3318 = vmatpush1.bf16.msra.mxu0 %v3129
        %3319 = vmatprep.subr.bf16.mxu0 0
        %3320 = vmatpush1.bf16.msra.mxu0 %v3130
        %3321 = vmatprep.subr.bf16.mxu0 0
        %3322 = vmatpush1.bf16.msra.mxu0 %v3131
        %3323 = vmatprep.subr.bf16.mxu0 0
        %3324 = vmatpush1.bf16.msra.mxu0 %v3132
        %3325 = vmatprep.subr.bf16.mxu0 0
        %3326 = vmatpush1.bf16.msra.mxu0 0
        %3327 = vmatprep.subr.bf16.mxu0 0
        %3328 = vmatpush1.bf16.msra.mxu0 0
        %3329 = vmatprep.subr.bf16.mxu0 0
        %3330 = vmatpush1.bf16.msra.mxu0 0
        %3331 = vmatprep.subr.bf16.mxu0 0
        %3332 = vmatpush1.bf16.msra.mxu0 0
        %3333 = vmatprep.subr.bf16.mxu0 0
        %3334 = vmatpush1.bf16.msra.mxu0 0
        %3335 = vmatprep.subr.bf16.mxu0 0
        %3336 = vmatpush1.bf16.msra.mxu0 0
        %3337 = vmatprep.subr.bf16.mxu0 0
        %3338 = vmatpush1.bf16.msra.mxu0 0
        %3339 = vmatprep.subr.bf16.mxu0 0
        %3340 = vmatpush1.bf16.msra.mxu0 0
        %3341 = vmatprep.subr.bf16.mxu0 0
        %3342 = vmatpush1.bf16.msra.mxu0 0
        %3343 = vmatprep.subr.bf16.mxu0 0
        %3344 = vmatpush1.bf16.msra.mxu0 0
        %3345 = vmatprep.subr.bf16.mxu0 0
        %3346 = vmatpush1.bf16.msra.mxu0 0
        %3347 = vmatprep.subr.bf16.mxu0 0
        %3348 = vmatpush1.bf16.msra.mxu0 0
        %3349 = vmatprep.mubr.bf16.mxu0 0
        %3350 = vmatmul.mubr.bf16.gmra.mrb[0].mxu0 %v3168
        %v3351 = vpop.f32.mrb[0].mxu0
        %v3352 = vadd.f32 0.0, %v3351
        %v3353 = vpop.f32.mrb[0].mxu0
        %v3354 = vpop.f32.mrb[0].mxu0
        %v3355 = vadd.f32 0.0, %v3354
        %v3356 = vpop.f32.mrb[0].mxu0
        %3357 = vmatprep.mubr.bf16.mxu0 0
        %3358 = vmatmul.mubr.bf16.gmra.mrb[0].mxu0 %v3171
        %v3359 = vpop.f32.mrb[0].mxu0
        %v3360 = vadd.f32 0.0, %v3359
        %v3361 = vpop.f32.mrb[0].mxu0
        %v3362 = vpop.f32.mrb[0].mxu0
        %v3363 = vadd.f32 0.0, %v3362
        %v3364 = vpop.f32.mrb[0].mxu0
        %3365 = vdwg.mxu0
        %3366 = vmatprep.subr.bf16.mxu0 0
        %3367 = vmatpush1.bf16.msra.mxu0 %v3133
        %3368 = vmatprep.subr.bf16.mxu0 0
        %3369 = vmatpush1.bf16.msra.mxu0 %v3134
        %3370 = vmatprep.subr.bf16.mxu0 0
        %3371 = vmatpush1.bf16.msra.mxu0 %v3135
        %3372 = vmatprep.subr.bf16.mxu0 0
        %3373 = vmatpush1.bf16.msra.mxu0 %v3136
        %3374 = vmatprep.subr.bf16.mxu0 0
        %3375 = vmatpush1.bf16.msra.mxu0 0
        %3376 = vmatprep.subr.bf16.mxu0 0
        %3377 = vmatpush1.bf16.msra.mxu0 0
        %3378 = vmatprep.subr.bf16.mxu0 0
        %3379 = vmatpush1.bf16.msra.mxu0 0
        %3380 = vmatprep.subr.bf16.mxu0 0
        %3381 = vmatpush1.bf16.msra.mxu0 0
        %3382 = vmatprep.subr.bf16.mxu0 0
        %3383 = vmatpush1.bf16.msra.mxu0 0
        %3384 = vmatprep.subr.bf16.mxu0 0
        %3385 = vmatpush1.bf16.msra.mxu0 0
        %3386 = vmatprep.subr.bf16.mxu0 0
        %3387 = vmatpush1.bf16.msra.mxu0 0
        %3388 = vmatprep.subr.bf16.mxu0 0
        %3389 = vmatpush1.bf16.msra.mxu0 0
        %3390 = vmatprep.subr.bf16.mxu0 0
        %3391 = vmatpush1.bf16.msra.mxu0 0
        %3392 = vmatprep.subr.bf16.mxu0 0
        %3393 = vmatpush1.bf16.msra.mxu0 0
        %3394 = vmatprep.subr.bf16.mxu0 0
        %3395 = vmatpush1.bf16.msra.mxu0 0
        %3396 = vmatprep.subr.bf16.mxu0 0
        %3397 = vmatpush1.bf16.msra.mxu0 0
        %3398 = vmatprep.mubr.bf16.mxu0 0
        %3399 = vmatmul.mubr.bf16.gmra.mrb[0].mxu0 %v3168
        %v3400 = vpop.f32.mrb[0].mxu0
        %v3401 = vadd.f32 0.0, %v3400
        %v3402 = vpop.f32.mrb[0].mxu0
        %v3403 = vpop.f32.mrb[0].mxu0
        %v3404 = vadd.f32 0.0, %v3403
        %v3405 = vpop.f32.mrb[0].mxu0
        %3406 = vmatprep.mubr.bf16.mxu0 0
        %3407 = vmatmul.mubr.bf16.gmra.mrb[0].mxu0 %v3171
        %v3408 = vpop.f32.mrb[0].mxu0
        %v3409 = vadd.f32 0.0, %v3408
        %v3410 = vpop.f32.mrb[0].mxu0
        %v3411 = vpop.f32.mrb[0].mxu0
        %v3412 = vadd.f32 0.0, %v3411
        %v3413 = vpop.f32.mrb[0].mxu0
        %3414 = vdwg.mxu0
        %3415 = vmatprep.subr.bf16.mxu0 0
        %3416 = vmatpush1.bf16.msra.mxu0 %v3137
        %3417 = vmatprep.subr.bf16.mxu0 0
        %3418 = vmatpush1.bf16.msra.mxu0 %v3138
        %3419 = vmatprep.subr.bf16.mxu0 0
        %3420 = vmatpush1.bf16.msra.mxu0 %v3139
        %3421 = vmatprep.subr.bf16.mxu0 0
        %3422 = vmatpush1.bf16.msra.mxu0 %v3140
        %3423 = vmatprep.subr.bf16.mxu0 0
        %3424 = vmatpush1.bf16.msra.mxu0 0
        %3425 = vmatprep.subr.bf16.mxu0 0
        %3426 = vmatpush1.bf16.msra.mxu0 0
        %3427 = vmatprep.subr.bf16.mxu0 0
        %3428 = vmatpush1.bf16.msra.mxu0 0
        %3429 = vmatprep.subr.bf16.mxu0 0
        %3430 = vmatpush1.bf16.msra.mxu0 0
        %3431 = vmatprep.subr.bf16.mxu0 0
        %3432 = vmatpush1.bf16.msra.mxu0 0
        %3433 = vmatprep.subr.bf16.mxu0 0
        %3434 = vmatpush1.bf16.msra.mxu0 0
        %3435 = vmatprep.subr.bf16.mxu0 0
        %3436 = vmatpush1.bf16.msra.mxu0 0
        %3437 = vmatprep.subr.bf16.mxu0 0
        %3438 = vmatpush1.bf16.msra.mxu0 0
        %3439 = vmatprep.subr.bf16.mxu0 0
        %3440 = vmatpush1.bf16.msra.mxu0 0
        %3441 = vmatprep.subr.bf16.mxu0 0
        %3442 = vmatpush1.bf16.msra.mxu0 0
        %3443 = vmatprep.subr.bf16.mxu0 0
        %3444 = vmatpush1.bf16.msra.mxu0 0
        %3445 = vmatprep.subr.bf16.mxu0 0
        %3446 = vmatpush1.bf16.msra.mxu0 0
        %3447 = vmatprep.mubr.bf16.mxu0 0
        %3448 = vmatmul.mubr.bf16.gmra.mrb[0].mxu0 %v3168
        %v3449 = vpop.f32.mrb[0].mxu0
        %v3450 = vadd.f32 0.0, %v3449
        %v3451 = vpop.f32.mrb[0].mxu0
        %v3452 = vpop.f32.mrb[0].mxu0
        %v3453 = vadd.f32 0.0, %v3452
        %v3454 = vpop.f32.mrb[0].mxu0
        %3455 = vmatprep.mubr.bf16.mxu0 0
        %3456 = vmatmul.mubr.bf16.gmra.mrb[0].mxu0 %v3171
        %v3457 = vpop.f32.mrb[0].mxu0
        %v3458 = vadd.f32 0.0, %v3457
        %v3459 = vpop.f32.mrb[0].mxu0
        %v3460 = vpop.f32.mrb[0].mxu0
        %v3461 = vadd.f32 0.0, %v3460
        %v3462 = vpop.f32.mrb[0].mxu0
        %3463 = vdwg.mxu0
        %3464 = vmatprep.subr.bf16.mxu0 0
        %3465 = vmatpush1.bf16.msra.mxu0 %v3141
        %3466 = vmatprep.subr.bf16.mxu0 0
        %3467 = vmatpush1.bf16.msra.mxu0 %v3142
        %3468 = vmatprep.subr.bf16.mxu0 0
        %3469 = vmatpush1.bf16.msra.mxu0 %v3143
        %3470 = vmatprep.subr.bf16.mxu0 0
        %3471 = vmatpush1.bf16.msra.mxu0 %v3144
        %3472 = vmatprep.subr.bf16.mxu0 0
        %3473 = vmatpush1.bf16.msra.mxu0 0
        %3474 = vmatprep.subr.bf16.mxu0 0
        %3475 = vmatpush1.bf16.msra.mxu0 0
        %3476 = vmatprep.subr.bf16.mxu0 0
        %3477 = vmatpush1.bf16.msra.mxu0 0
        %3478 = vmatprep.subr.bf16.mxu0 0
        %3479 = vmatpush1.bf16.msra.mxu0 0
        %3480 = vmatprep.subr.bf16.mxu0 0
        %3481 = vmatpush1.bf16.msra.mxu0 0
        %3482 = vmatprep.subr.bf16.mxu0 0
        %3483 = vmatpush1.bf16.msra.mxu0 0
        %3484 = vmatprep.subr.bf16.mxu0 0
        %3485 = vmatpush1.bf16.msra.mxu0 0
        %3486 = vmatprep.subr.bf16.mxu0 0
        %3487 = vmatpush1.bf16.msra.mxu0 0
        %3488 = vmatprep.subr.bf16.mxu0 0
        %3489 = vmatpush1.bf16.msra.mxu0 0
        %3490 = vmatprep.subr.bf16.mxu0 0
        %3491 = vmatpush1.bf16.msra.mxu0 0
        %3492 = vmatprep.subr.bf16.mxu0 0
        %3493 = vmatpush1.bf16.msra.mxu0 0
        %3494 = vmatprep.subr.bf16.mxu0 0
        %3495 = vmatpush1.bf16.msra.mxu0 0
        %3496 = vmatprep.mubr.bf16.mxu0 0
        %3497 = vmatmul.mubr.bf16.gmra.mrb[0].mxu0 %v3168
        %v3498 = vpop.f32.mrb[0].mxu0
        %v3499 = vadd.f32 0.0, %v3498
        %v3500 = vpop.f32.mrb[0].mxu0
        %v3501 = vpop.f32.mrb[0].mxu0
        %v3502 = vadd.f32 0.0, %v3501
        %v3503 = vpop.f32.mrb[0].mxu0
        %3504 = vmatprep.mubr.bf16.mxu0 0
        %3505 = vmatmul.mubr.bf16.gmra.mrb[0].mxu0 %v3171
        %v3506 = vpop.f32.mrb[0].mxu0
        %v3507 = vadd.f32 0.0, %v3506
        %v3508 = vpop.f32.mrb[0].mxu0
        %v3509 = vpop.f32.mrb[0].mxu0
        %v3510 = vadd.f32 0.0, %v3509
        %v3511 = vpop.f32.mrb[0].mxu0
        %3512 = vdwg.mxu0
        %3513 = vmatprep.subr.bf16.mxu0 0
        %3514 = vmatpush1.bf16.msra.mxu0 %v3145
        %3515 = vmatprep.subr.bf16.mxu0 0
        %3516 = vmatpush1.bf16.msra.mxu0 %v3146
        %3517 = vmatprep.subr.bf16.mxu0 0
        %3518 = vmatpush1.bf16.msra.mxu0 %v3147
        %3519 = vmatprep.subr.bf16.mxu0 0
        %3520 = vmatpush1.bf16.msra.mxu0 %v3148
        %3521 = vmatprep.subr.bf16.mxu0 0
        %3522 = vmatpush1.bf16.msra.mxu0 0
        %3523 = vmatprep.subr.bf16.mxu0 0
        %3524 = vmatpush1.bf16.msra.mxu0 0
        %3525 = vmatprep.subr.bf16.mxu0 0
        %3526 = vmatpush1.bf16.msra.mxu0 0
        %3527 = vmatprep.subr.bf16.mxu0 0
        %3528 = vmatpush1.bf16.msra.mxu0 0
        %3529 = vmatprep.subr.bf16.mxu0 0
        %3530 = vmatpush1.bf16.msra.mxu0 0
        %3531 = vmatprep.subr.bf16.mxu0 0
        %3532 = vmatpush1.bf16.msra.mxu0 0
        %3533 = vmatprep.subr.bf16.mxu0 0
        %3534 = vmatpush1.bf16.msra.mxu0 0
        %3535 = vmatprep.subr.bf16.mxu0 0
        %3536 = vmatpush1.bf16.msra.mxu0 0
        %3537 = vmatprep.subr.bf16.mxu0 0
        %3538 = vmatpush1.bf16.msra.mxu0 0
        %3539 = vmatprep.subr.bf16.mxu0 0
        %3540 = vmatpush1.bf16.msra.mxu0 0
        %3541 = vmatprep.subr.bf16.mxu0 0
        %3542 = vmatpush1.bf16.msra.mxu0 0
        %3543 = vmatprep.subr.bf16.mxu0 0
        %3544 = vmatpush1.bf16.msra.mxu0 0
        %3545 = vmatprep.mubr.bf16.mxu0 0
        %3546 = vmatmul.mubr.bf16.gmra.mrb[0].mxu0 %v3168
        %v3547 = vpop.f32.mrb[0].mxu0
        %v3548 = vadd.f32 0.0, %v3547
        %v3549 = vpop.f32.mrb[0].mxu0
        %v3550 = vpop.f32.mrb[0].mxu0
        %v3551 = vadd.f32 0.0, %v3550
        %v3552 = vpop.f32.mrb[0].mxu0
        %3553 = vmatprep.mubr.bf16.mxu0 0
        %3554 = vmatmul.mubr.bf16.gmra.mrb[0].mxu0 %v3171
        %v3555 = vpop.f32.mrb[0].mxu0
        %v3556 = vadd.f32 0.0, %v3555
        %v3557 = vpop.f32.mrb[0].mxu0
        %v3558 = vpop.f32.mrb[0].mxu0
        %v3559 = vadd.f32 0.0, %v3558
        %v3560 = vpop.f32.mrb[0].mxu0
        %3561 = vdwg.mxu0
        %3562 = vmatprep.subr.bf16.mxu0 0
        %3563 = vmatpush1.bf16.msra.mxu0 %v3149
        %3564 = vmatprep.subr.bf16.mxu0 0
        %3565 = vmatpush1.bf16.msra.mxu0 %v3150
        %3566 = vmatprep.subr.bf16.mxu0 0
        %3567 = vmatpush1.bf16.msra.mxu0 %v3151
        %3568 = vmatprep.subr.bf16.mxu0 0
        %3569 = vmatpush1.bf16.msra.mxu0 %v3152
        %3570 = vmatprep.subr.bf16.mxu0 0
        %3571 = vmatpush1.bf16.msra.mxu0 0
        %3572 = vmatprep.subr.bf16.mxu0 0
        %3573 = vmatpush1.bf16.msra.mxu0 0
        %3574 = vmatprep.subr.bf16.mxu0 0
        %3575 = vmatpush1.bf16.msra.mxu0 0
        %3576 = vmatprep.subr.bf16.mxu0 0
        %3577 = vmatpush1.bf16.msra.mxu0 0
        %3578 = vmatprep.subr.bf16.mxu0 0
        %3579 = vmatpush1.bf16.msra.mxu0 0
        %3580 = vmatprep.subr.bf16.mxu0 0
        %3581 = vmatpush1.bf16.msra.mxu0 0
        %3582 = vmatprep.subr.bf16.mxu0 0
        %3583 = vmatpush1.bf16.msra.mxu0 0
        %3584 = vmatprep.subr.bf16.mxu0 0
        %3585 = vmatpush1.bf16.msra.mxu0 0
        %3586 = vmatprep.subr.bf16.mxu0 0
        %3587 = vmatpush1.bf16.msra.mxu0 0
        %3588 = vmatprep.subr.bf16.mxu0 0
        %3589 = vmatpush1.bf16.msra.mxu0 0
        %3590 = vmatprep.subr.bf16.mxu0 0
        %3591 = vmatpush1.bf16.msra.mxu0 0
        %3592 = vmatprep.subr.bf16.mxu0 0
        %3593 = vmatpush1.bf16.msra.mxu0 0
        %3594 = vmatprep.mubr.bf16.mxu0 0
        %3595 = vmatmul.mubr.bf16.gmra.mrb[0].mxu0 %v3168
        %v3596 = vpop.f32.mrb[0].mxu0
        %v3597 = vpop.f32.mrb[0].mxu0
        %v3598 = vpop.f32.mrb[0].mxu0
        %v3599 = vadd.f32 0.0, %v3598
        %v3600 = vpop.f32.mrb[0].mxu0
        %3601 = vmatprep.mubr.bf16.mxu0 0
        %3602 = vmatmul.mubr.bf16.gmra.mrb[0].mxu0 %v3171
        %v3603 = vpop.f32.mrb[0].mxu0
        %v3604 = vadd.f32 0.0, %v3603
        %v3605 = vpop.f32.mrb[0].mxu0
        %v3606 = vpop.f32.mrb[0].mxu0
        %v3607 = vadd.f32 0.0, %v3606
        %v3608 = vpop.f32.mrb[0].mxu0
        %3609 = vdwg.mxu0
        %3610 = vmatprep.subr.bf16.mxu0 0
        %3611 = vmatpush1.bf16.msra.mxu0 %v3153
        %3612 = vmatprep.subr.bf16.mxu0 0
        %3613 = vmatpush1.bf16.msra.mxu0 %v3154
        %3614 = vmatprep.subr.bf16.mxu0 0
        %3615 = vmatpush1.bf16.msra.mxu0 %v3155
        %3616 = vmatprep.subr.bf16.mxu0 0
        %3617 = vmatpush1.bf16.msra.mxu0 %v3156
        %3618 = vmatprep.subr.bf16.mxu0 0
        %3619 = vmatpush1.bf16.msra.mxu0 0
        %3620 = vmatprep.subr.bf16.mxu0 0
        %3621 = vmatpush1.bf16.msra.mxu0 0
        %3622 = vmatprep.subr.bf16.mxu0 0
        %3623 = vmatpush1.bf16.msra.mxu0 0
        %3624 = vmatprep.subr.bf16.mxu0 0
        %3625 = vmatpush1.bf16.msra.mxu0 0
        %3626 = vmatprep.subr.bf16.mxu0 0
        %3627 = vmatpush1.bf16.msra.mxu0 0
        %3628 = vmatprep.subr.bf16.mxu0 0
        %3629 = vmatpush1.bf16.msra.mxu0 0
        %3630 = vmatprep.subr.bf16.mxu0 0
        %3631 = vmatpush1.bf16.msra.mxu0 0
        %3632 = vmatprep.subr.bf16.mxu0 0
        %3633 = vmatpush1.bf16.msra.mxu0 0
        %3634 = vmatprep.subr.bf16.mxu0 0
        %3635 = vmatpush1.bf16.msra.mxu0 0
        %3636 = vmatprep.subr.bf16.mxu0 0
        %3637 = vmatpush1.bf16.msra.mxu0 0
        %3638 = vmatprep.subr.bf16.mxu0 0
        %3639 = vmatpush1.bf16.msra.mxu0 0
        %3640 = vmatprep.subr.bf16.mxu0 0
        %3641 = vmatpush1.bf16.msra.mxu0 0
        %3642 = vmatprep.mubr.bf16.mxu0 0
        %3643 = vmatmul.mubr.bf16.gmra.mrb[0].mxu0 %v3168
        %v3644 = vpop.f32.mrb[0].mxu0
        %v3645 = vpop.f32.mrb[0].mxu0
        %v3646 = vpop.f32.mrb[0].mxu0
        %v3647 = vpop.f32.mrb[0].mxu0
        %3648 = vmatprep.mubr.bf16.mxu0 0
        %3649 = vmatmul.mubr.bf16.gmra.mrb[0].mxu0 %v3171
        %v3650 = vpop.f32.mrb[0].mxu0
        %v3651 = vadd.f32 0.0, %v3650
        %v3652 = vpop.f32.mrb[0].mxu0
        %v3653 = vpop.f32.mrb[0].mxu0
        %v3654 = vadd.f32 0.0, %v3653
        %v3655 = vpop.f32.mrb[0].mxu0
        %3656 = vdwg.mxu0
        %v3665 = vrot.slane %v3208, 3
        %v3666 = vrot.slane %v3255, 3
        %v3667 = vrot.slane %v3303, 3
        %v3668 = vrot.slane %v3352, 3
        %v3669 = vrot.slane %v3401, 3
        %v3670 = vrot.slane %v3450, 3
        %v3671 = vrot.slane %v3499, 3
        %v3672 = vrot.slane %v3548, 3
        %3673 = vrot.lane.b32.xlu0 %v3665, 127
        %v3674 = vpop.permute.xlu0 %3673
        %3675 = vrot.lane.b32.xlu0 %v3666, 127
        %v3676 = vpop.permute.xlu0 %3675
        %3677 = vrot.lane.b32.xlu0 %v3667, 127
        %v3678 = vpop.permute.xlu0 %3677
        %3679 = vrot.lane.b32.xlu0 %v3668, 127
        %v3680 = vpop.permute.xlu0 %3679
        %3681 = vrot.lane.b32.xlu0 %v3669, 127
        %v3682 = vpop.permute.xlu0 %3681
        %3683 = vrot.lane.b32.xlu0 %v3670, 127
        %v3684 = vpop.permute.xlu0 %3683
        %3685 = vrot.lane.b32.xlu0 %v3671, 127
        %v3686 = vpop.permute.xlu0 %3685
        %3687 = vrot.lane.b32.xlu0 %v3672, 127
        %v3688 = vpop.permute.xlu0 %3687
        %v3697 = vadd.f32 %v3208, %v3674
        %v3698 = vadd.f32 %v3255, %v3676
        %v3699 = vadd.f32 %v3303, %v3678
        %v3700 = vadd.f32 %v3352, %v3680
        %v3701 = vadd.f32 %v3401, %v3682
        %v3702 = vadd.f32 %v3450, %v3684
        %v3703 = vadd.f32 %v3499, %v3686
        %v3704 = vadd.f32 %v3548, %v3688
        %vm3713 = vcmask 1041408
        %v3714 = vrot.slane %v3208, 6
        %v3715 = vrot.slane %v3211, 6
        %v3716 = vsel %vm3713, %v3714, %v3715
        %v3717 = vrot.slane %v3255, 6
        %v3718 = vrot.slane %v3258, 6
        %v3719 = vsel %vm3713, %v3717, %v3718
        %v3720 = vrot.slane %v3303, 6
        %v3721 = vrot.slane %v3306, 6
        %v3722 = vsel %vm3713, %v3720, %v3721
        %v3723 = vrot.slane %v3352, 6
        %v3724 = vrot.slane %v3355, 6
        %v3725 = vsel %vm3713, %v3723, %v3724
        %v3726 = vrot.slane %v3401, 6
        %v3727 = vrot.slane %v3404, 6
        %v3728 = vsel %vm3713, %v3726, %v3727
        %v3729 = vrot.slane %v3450, 6
        %v3730 = vrot.slane %v3453, 6
        %v3731 = vsel %vm3713, %v3729, %v3730
        %v3732 = vrot.slane %v3499, 6
        %v3733 = vrot.slane %v3502, 6
        %v3734 = vsel %vm3713, %v3732, %v3733
        %v3735 = vrot.slane %v3548, 6
        %v3736 = vrot.slane %v3551, 6
        %v3737 = vsel %vm3713, %v3735, %v3736
        %3738 = vrot.lane.b32.xlu0 %v3716, 126
        %v3739 = vpop.permute.xlu0 %3738
        %3740 = vrot.lane.b32.xlu0 %v3719, 126
        %v3741 = vpop.permute.xlu0 %3740
        %3742 = vrot.lane.b32.xlu0 %v3722, 126
        %v3743 = vpop.permute.xlu0 %3742
        %3744 = vrot.lane.b32.xlu0 %v3725, 126
        %v3745 = vpop.permute.xlu0 %3744
        %3746 = vrot.lane.b32.xlu0 %v3728, 126
        %v3747 = vpop.permute.xlu0 %3746
        %3748 = vrot.lane.b32.xlu0 %v3731, 126
        %v3749 = vpop.permute.xlu0 %3748
        %3750 = vrot.lane.b32.xlu0 %v3734, 126
        %v3751 = vpop.permute.xlu0 %3750
        %3752 = vrot.lane.b32.xlu0 %v3737, 126
        %v3753 = vpop.permute.xlu0 %3752
        %v3762 = vadd.f32 %v3697, %v3739
        %v3763 = vadd.f32 %v3698, %v3741
        %v3764 = vadd.f32 %v3699, %v3743
        %v3765 = vadd.f32 %v3700, %v3745
        %v3766 = vadd.f32 %v3701, %v3747
        %v3767 = vadd.f32 %v3702, %v3749
        %v3768 = vadd.f32 %v3703, %v3751
        %v3769 = vadd.f32 %v3704, %v3753
        %v3771 = vrot.slane %v3258, 1
        %v3772 = vrot.slane %v3306, 1
        %v3773 = vrot.slane %v3355, 1
        %v3774 = vrot.slane %v3404, 1
        %v3775 = vrot.slane %v3453, 1
        %v3776 = vrot.slane %v3502, 1
        %v3777 = vrot.slane %v3551, 1
        %v3778 = vrot.slane %v3599, 1
        %v3787 = vadd.f32 %v3762, %v3771
        %v3788 = vadd.f32 %v3763, %v3772
        %v3789 = vadd.f32 %v3764, %v3773
        %v3790 = vadd.f32 %v3765, %v3774
        %v3791 = vadd.f32 %v3766, %v3775
        %v3792 = vadd.f32 %v3767, %v3776
        %v3793 = vadd.f32 %v3768, %v3777
        %v3794 = vadd.f32 %v3769, %v3778
        %v3795 = vrot.slane %v3258, 4
        %v3796 = vrot.slane %v3306, 4
        %v3797 = vrot.slane %v3355, 4
        %v3798 = vrot.slane %v3404, 4
        %v3799 = vrot.slane %v3453, 4
        %v3800 = vrot.slane %v3502, 4
        %v3801 = vrot.slane %v3551, 4
        %v3802 = vrot.slane %v3599, 4
        %3803 = vrot.lane.b32.xlu0 %v3795, 127
        %v3804 = vpop.permute.xlu0 %3803
        %3805 = vrot.lane.b32.xlu0 %v3796, 127
        %v3806 = vpop.permute.xlu0 %3805
        %3807 = vrot.lane.b32.xlu0 %v3797, 127
        %v3808 = vpop.permute.xlu0 %3807
        %3809 = vrot.lane.b32.xlu0 %v3798, 127
        %v3810 = vpop.permute.xlu0 %3809
        %3811 = vrot.lane.b32.xlu0 %v3799, 127
        %v3812 = vpop.permute.xlu0 %3811
        %3813 = vrot.lane.b32.xlu0 %v3800, 127
        %v3814 = vpop.permute.xlu0 %3813
        %3815 = vrot.lane.b32.xlu0 %v3801, 127
        %v3816 = vpop.permute.xlu0 %3815
        %3817 = vrot.lane.b32.xlu0 %v3802, 127
        %v3818 = vpop.permute.xlu0 %3817
        %v3827 = vadd.f32 %v3787, %v3804
        %v3828 = vadd.f32 %v3788, %v3806
        %v3829 = vadd.f32 %v3789, %v3808
        %v3830 = vadd.f32 %v3790, %v3810
        %v3831 = vadd.f32 %v3791, %v3812
        %v3832 = vadd.f32 %v3792, %v3814
        %v3833 = vadd.f32 %v3793, %v3816
        %v3834 = vadd.f32 %v3794, %v3818
        %vm3843 = vcmask 1040384
        %v3844 = vrot.slane %v3258, 7
        %v3845 = vrot.slane %v3263, 7
        %v3846 = vsel %vm3843, %v3844, %v3845
        %v3847 = vrot.slane %v3306, 7
        %v3848 = vrot.slane %v3311, 7
        %v3849 = vsel %vm3843, %v3847, %v3848
        %v3850 = vrot.slane %v3355, 7
        %v3851 = vrot.slane %v3360, 7
        %v3852 = vsel %vm3843, %v3850, %v3851
        %v3853 = vrot.slane %v3404, 7
        %v3854 = vrot.slane %v3409, 7
        %v3855 = vsel %vm3843, %v3853, %v3854
        %v3856 = vrot.slane %v3453, 7
        %v3857 = vrot.slane %v3458, 7
        %v3858 = vsel %vm3843, %v3856, %v3857
        %v3859 = vrot.slane %v3502, 7
        %v3860 = vrot.slane %v3507, 7
        %v3861 = vsel %vm3843, %v3859, %v3860
        %v3862 = vrot.slane %v3551, 7
        %v3863 = vrot.slane %v3556, 7
        %v3864 = vsel %vm3843, %v3862, %v3863
        %v3865 = vrot.slane %v3599, 7
        %v3866 = vrot.slane %v3604, 7
        %v3867 = vsel %vm3843, %v3865, %v3866
        %3868 = vrot.lane.b32.xlu0 %v3846, 126
        %v3869 = vpop.permute.xlu0 %3868
        %3870 = vrot.lane.b32.xlu0 %v3849, 126
        %v3871 = vpop.permute.xlu0 %3870
        %3872 = vrot.lane.b32.xlu0 %v3852, 126
        %v3873 = vpop.permute.xlu0 %3872
        %3874 = vrot.lane.b32.xlu0 %v3855, 126
        %v3875 = vpop.permute.xlu0 %3874
        %3876 = vrot.lane.b32.xlu0 %v3858, 126
        %v3877 = vpop.permute.xlu0 %3876
        %3878 = vrot.lane.b32.xlu0 %v3861, 126
        %v3879 = vpop.permute.xlu0 %3878
        %3880 = vrot.lane.b32.xlu0 %v3864, 126
        %v3881 = vpop.permute.xlu0 %3880
        %3882 = vrot.lane.b32.xlu0 %v3867, 126
        %v3883 = vpop.permute.xlu0 %3882
        %v3892 = vadd.f32 %v3827, %v3869
        %v3893 = vadd.f32 %v3828, %v3871
        %v3894 = vadd.f32 %v3829, %v3873
        %v3895 = vadd.f32 %v3830, %v3875
        %v3896 = vadd.f32 %v3831, %v3877
        %v3897 = vadd.f32 %v3832, %v3879
        %v3898 = vadd.f32 %v3833, %v3881
        %v3899 = vadd.f32 %v3834, %v3883
        %v3901 = vrot.slane %v3311, 2
        %v3902 = vrot.slane %v3360, 2
        %v3903 = vrot.slane %v3409, 2
        %v3904 = vrot.slane %v3458, 2
        %v3905 = vrot.slane %v3507, 2
        %v3906 = vrot.slane %v3556, 2
        %v3907 = vrot.slane %v3604, 2
        %v3908 = vrot.slane %v3651, 2
        %v3917 = vadd.f32 %v3892, %v3901
        %v3918 = vadd.f32 %v3893, %v3902
        %v3919 = vadd.f32 %v3894, %v3903
        %v3920 = vadd.f32 %v3895, %v3904
        %v3921 = vadd.f32 %v3896, %v3905
        %v3922 = vadd.f32 %v3897, %v3906
        %v3923 = vadd.f32 %v3898, %v3907
        %v3924 = vadd.f32 %v3899, %v3908
        %v3925 = vrot.slane %v3311, 5
        %v3926 = vrot.slane %v3360, 5
        %v3927 = vrot.slane %v3409, 5
        %v3928 = vrot.slane %v3458, 5
        %v3929 = vrot.slane %v3507, 5
        %v3930 = vrot.slane %v3556, 5
        %v3931 = vrot.slane %v3604, 5
        %v3932 = vrot.slane %v3651, 5
        %3933 = vrot.lane.b32.xlu0 %v3925, 127
        %v3934 = vpop.permute.xlu0 %3933
        %3935 = vrot.lane.b32.xlu0 %v3926, 127
        %v3936 = vpop.permute.xlu0 %3935
        %3937 = vrot.lane.b32.xlu0 %v3927, 127
        %v3938 = vpop.permute.xlu0 %3937
        %3939 = vrot.lane.b32.xlu0 %v3928, 127
        %v3940 = vpop.permute.xlu0 %3939
        %3941 = vrot.lane.b32.xlu0 %v3929, 127
        %v3942 = vpop.permute.xlu0 %3941
        %3943 = vrot.lane.b32.xlu0 %v3930, 127
        %v3944 = vpop.permute.xlu0 %3943
        %3945 = vrot.lane.b32.xlu0 %v3931, 127
        %v3946 = vpop.permute.xlu0 %3945
        %3947 = vrot.lane.b32.xlu0 %v3932, 127
        %v3948 = vpop.permute.xlu0 %3947
        %v3957 = vadd.f32 %v3917, %v3934
        %v3958 = vadd.f32 %v3918, %v3936
        %v3959 = vadd.f32 %v3919, %v3938
        %v3960 = vadd.f32 %v3920, %v3940
        %v3961 = vadd.f32 %v3921, %v3942
        %v3962 = vadd.f32 %v3922, %v3944
        %v3963 = vadd.f32 %v3923, %v3946
        %v3964 = vadd.f32 %v3924, %v3948
        %3973 = vrot.lane.b32.xlu0 %v3314, 126
        %v3974 = vpop.permute.xlu0 %3973
        %3975 = vrot.lane.b32.xlu0 %v3363, 126
        %v3976 = vpop.permute.xlu0 %3975
        %3977 = vrot.lane.b32.xlu0 %v3412, 126
        %v3978 = vpop.permute.xlu0 %3977
        %3979 = vrot.lane.b32.xlu0 %v3461, 126
        %v3980 = vpop.permute.xlu0 %3979
        %3981 = vrot.lane.b32.xlu0 %v3510, 126
        %v3982 = vpop.permute.xlu0 %3981
        %3983 = vrot.lane.b32.xlu0 %v3559, 126
        %v3984 = vpop.permute.xlu0 %3983
        %3985 = vrot.lane.b32.xlu0 %v3607, 126
        %v3986 = vpop.permute.xlu0 %3985
        %3987 = vrot.lane.b32.xlu0 %v3654, 126
        %v3988 = vpop.permute.xlu0 %3987
        %v3997 = vadd.f32 %v3957, %v3974
        %v3998 = vadd.f32 %v3958, %v3976
        %v3999 = vadd.f32 %v3959, %v3978
        %v4000 = vadd.f32 %v3960, %v3980
        %v4001 = vadd.f32 %v3961, %v3982
        %v4002 = vadd.f32 %v3962, %v3984
        %v4003 = vadd.f32 %v3963, %v3986
        %v4004 = vadd.f32 %v3964, %v3988
        %v4005 = vld [vmem:[#allocation19] sm:$0x7]
        %4007 = vset.pattern.permute.xlu0 0
        %4008 = vperm.xlu0 %4007, %v4005
        %v4009 = vpop.permute.xlu0 %4008
        %v4011 = vadd.f32 %v3997, %v4009
        %v4012 = vadd.f32 %v3998, %v4009
        %v4013 = vadd.f32 %v3999, %v4009
        %v4014 = vadd.f32 %v4000, %v4009
        %v4015 = vadd.f32 %v4001, %v4009
        %v4016 = vadd.f32 %v4002, %v4009
        %v4017 = vadd.f32 %v4003, %v4009
        %v4018 = vadd.f32 %v4004, %v4009
        %v4019 = vld [vmem:[%s552] sm:$0x7]
        %v4020 = vld [vmem:[%s552 + $0x4] sm:$0x7]
        %v4021 = vld [vmem:[%s552 + $0x8] sm:$0x7]
        %v4022 = vld [vmem:[%s552 + $0xc] sm:$0x7]
        %v4023 = vld [vmem:[%s552 + $0x10] sm:$0x7]
        %v4024 = vld [vmem:[%s552 + $0x14] sm:$0x7]
        %v4025 = vld [vmem:[%s552 + $0x18] sm:$0x7]
        %v4026 = vld [vmem:[%s552 + $0x1c] sm:$0x7]
        %v4027 = vadd.f32 %v4011, %v4019
        %v4028 = vadd.f32 %v4012, %v4020
        %v4029 = vadd.f32 %v4013, %v4021
        %v4030 = vadd.f32 %v4014, %v4022
        %v4031 = vadd.f32 %v4015, %v4023
        %v4032 = vadd.f32 %v4016, %v4024
        %v4033 = vadd.f32 %v4017, %v4025
        %v4034 = vadd.f32 %v4018, %v4026
        %vm4035 = vcmask 124928
        %4036 = vst.msk [vmem:[%s627] sm:$0x7] %vm4035, %v4027
        %4037 = vst.msk [vmem:[%s627 + $0x4] sm:$0x7] %vm4035, %v4028
        %4038 = vst.msk [vmem:[%s627 + $0x8] sm:$0x7] %vm4035, %v4029
        %4039 = vst.msk [vmem:[%s627 + $0xc] sm:$0x7] %vm4035, %v4030
        %4040 = vst.msk [vmem:[%s627 + $0x10] sm:$0x7] %vm4035, %v4031
        %4041 = vst.msk [vmem:[%s627 + $0x14] sm:$0x7] %vm4035, %v4032
        %4042 = vst.msk [vmem:[%s627 + $0x18] sm:$0x7] %vm4035, %v4033
        %4043 = vst.msk [vmem:[%s627 + $0x1c] sm:$0x7] %vm4035, %v4034
        %s4044 = sand.u32 %s308, 1
        %s4045 = scalar_lea.sflag [#allocation6], %s4044
        %s4046 = sand.u32 %s308, 1
        %s4047 = smul.addr %s4046, 32
        %s4048 = scalar_lea.vmem [#allocation21], %s4047
        // Predicated region
        $region109: #{enhancement_net.5} parent=59 // pred_check
          %p4049 = pneg %p318
        $region110: #{enhancement_net.5} parent=59 // pred_check_branch
          %4051 = sbr.rel (%p4049) target = $region112
        $region111: #{enhancement_net.5} parent=59 // pred_region
          %s4052 = smul.u32 8, %s41
          %s4054 = ssub.s32 512, 512
          %4055 = vsyncadd %s4045, %s4054
          %s4056 = smul.addr %s40, 16
          %s4057 = sadd.s32 %s4052, %s4056
          %s4058 = smul.addr %s4057, 64
          %s4059 = scalar_lea.hbm %s10, %s4058
          %s4060 = sshll.u32 %s4048, 4
          %s4061 = int_to_ptr.vmem [resolvable:$true] %s4060
          %4066 = dma.vmem_to_hbm [thread:$0]  %s4061, 512, %s4059, %s4045, 64, 64, 4
        $region112: #{enhancement_net.5} parent=59 // pred_fallthru
          _
      $region60: #{enhancement_net.5} parent=5 // pred_fallthru
        _
      %p4067 = scmp.le.s32.totalorder 2, %s31
      // Predicated region
      $region113: #{enhancement_net.5} parent=5 // pred_check
        %p4068 = pneg %p4067
      $region114: #{enhancement_net.5} parent=5 // pred_check_branch
        %4070 = sbr.rel (%p4068) target = $region116
      $region115: #{enhancement_net.5} parent=5 // pred_region
        %s4071 = ssub.s32 %s31, 2
        // Predicated region
        $region117: #{enhancement_net.5} parent=115 // pred_check
          %p4072 = pneg %p324
        $region118: #{enhancement_net.5} parent=115 // pred_check_branch
          %4074 = sbr.rel (%p4072) target = $region120
        $region119: #{enhancement_net.5} parent=115 // pred_region
          %s4075 = sand.u32 %s309, 1
          %s4076 = scalar_lea.sflag [#allocation6], %s4075
          %s4077 = sand.u32 %s309, 1
          %s4078 = smul.addr %s4077, 32
          %s4079 = scalar_lea.vmem [#allocation21], %s4078
          %4080 = dma.done %s4076, 512
        $region120: #{enhancement_net.5} parent=115 // pred_fallthru
          _
      $region116: #{enhancement_net.5} parent=5 // pred_fallthru
        _
    $region6: #{enhancement_net.5} parent=1 // loop_footer
      %s35 = sadd.s32 1, %s31
    $region7: #{enhancement_net.5} parent=1 // loop_footer_branch
      %30 = sbr.rel target = $region3
    $region8: #{enhancement_net.5} parent=1 // loop_exit
      _
    %4081 = vsyncpa [#allocation5], 1
    %s4082 = scalar_lea.sflag [#allocation5], 1
    %4083 = vsyncpa %s4082, 1
    %4084 = vsyncpa [#allocation8], 1
    %s4085 = scalar_lea.sflag [#allocation8], 1
    %4086 = vsyncpa %s4085, 1
    %4087 = vsyncpa [#allocation11], 1
    %s4088 = scalar_lea.sflag [#allocation11], 1
    %4089 = vsyncpa %s4088, 1
    %4090 = vsyncpa [#allocation14], 1
    %4091 = vsyncpa [#allocation17], 1
    %4092 = vsyncpa [#allocation20], 1
    %4093 = vsyncpa [#allocation6], 1
    %s4094 = scalar_lea.sflag [#allocation6], 1
    %4095 = vsyncpa %s4094, 1

// kernel: enhancement_net.3
$region0: #{enhancement_net.3}
  #allocation0 [shape = 'u32[]', space=smem, size = 0x4, offset = 0x4, fixed_abs, tag = 'smem constant byte address 0x4 - core index']
  #allocation1 [shape = 'u32[144,128]{1,0:T(1,128)}', space=vmem, size = 0x12000, scoped, tag = 'internal scratch']
  #allocation2 [shape = 'f32[12,3,20]{2,1,0:T(4,128)}', space=vmem, size = 0x6000, scoped, tag = 'scratch operand']
  #allocation3 [shape = 'f32[10,27,18]{2,1,0:T(8,128)}', space=vmem, size = 0x28000, scoped, tag = 'scratch operand']
  %s0 = inlined_call_operand.hbm [shape: f32[2,16,3,16], index: 0, kind: input, shape index: {}, may-alias: {0,1,2,3}]
  %s1 = inlined_call_operand.hbm [shape: f32[2,16,3,16], index: 1, kind: input, shape index: {}, may-alias: {0,1,2,3}]
  %s2 = inlined_call_operand.hbm [shape: f32[2,16,3,16], index: 2, kind: input, shape index: {}, may-alias: {0,1,2,3}]
  %s3 = inlined_call_operand.hbm [shape: f32[2,16,3,16], index: 3, kind: input, shape index: {}, may-alias: {0,1,2,3}]
  %s4 = inlined_call_operand.hbm [shape: bf16[64,27], index: 4, kind: input, shape index: {}]
  %s5 = inlined_call_operand.hbm [shape: f32[1,64,1], index: 5, kind: input, shape index: {}]
  %s6 = inlined_call_operand.hbm [shape: bf16[64,64], index: 6, kind: input, shape index: {}]
  %s7 = inlined_call_operand.hbm [shape: f32[1,64,1], index: 7, kind: input, shape index: {}]
  %s8 = inlined_call_operand.hbm [shape: bf16[27,64], index: 8, kind: input, shape index: {}]
  %s9 = inlined_call_operand.hbm [shape: f32[1,3,1], index: 9, kind: input, shape index: {}]
  %s10 = inlined_call_operand.hbm [shape: f32[2,16,3,16], index: 10, kind: output, shape index: {}]
  %s11 = sld [smem:[#allocation0]]
  $region121: #{enhancement_net.3} parent=0
    _
  %s13 = ssub.s32 1, %s11
  %s14 = scalar_select 0, %s13, %s11
  $region1: #{enhancement_net.3} parent=0
    #allocation4 [shape = 'u8[32768]{0}', space=vmem, size = 0x8000, scoped, tag = 'input window, operand 0']
    #allocation5 [shape = 's32[2]{0}', space=sflag, size = 0x8, scoped, tag = 'scoped memory for enhancement_net.3']
    #allocation6 [shape = 's32[2]{0}', space=sflag, size = 0x8, scoped, tag = 'scoped memory for enhancement_net.3']
    #allocation7 [shape = 'u8[32768]{0}', space=vmem, size = 0x8000, scoped, tag = 'input window, operand 1']
    #allocation8 [shape = 's32[2]{0}', space=sflag, size = 0x8, scoped, tag = 'scoped memory for enhancement_net.3']
    #allocation9 [shape = 'u8[32768]{0}', space=vmem, size = 0x8000, scoped, tag = 'input window, operand 2']
    #allocation10 [shape = 'u8[32768]{0}', space=vmem, size = 0x8000, scoped, tag = 'input window, operand 3']
    #allocation11 [shape = 's32[2]{0}', space=sflag, size = 0x8, scoped, tag = 'scoped memory for enhancement_net.3']
    #allocation12 [shape = 'u8[16384]{0}', space=vmem, size = 0x4000, scoped, tag = 'input window, operand 4, single buffered']
    #allocation13 [shape = 'u8[32768]{0}', space=vmem, size = 0x8000, scoped, tag = 'input window, operand 5, single buffered']
    #allocation14 [shape = 's32[1]{0}', space=sflag, size = 0x4, scoped, tag = 'scoped memory for enhancement_net.3']
    #allocation15 [shape = 'u8[16384]{0}', space=vmem, size = 0x4000, scoped, tag = 'input window, operand 6, single buffered']
    #allocation16 [shape = 'u8[32768]{0}', space=vmem, size = 0x8000, scoped, tag = 'input window, operand 7, single buffered']
    #allocation17 [shape = 's32[1]{0}', space=sflag, size = 0x4, scoped, tag = 'scoped memory for enhancement_net.3']
    #allocation18 [shape = 'u8[8192]{0}', space=vmem, size = 0x2000, scoped, tag = 'input window, operand 8, single buffered']
    #allocation19 [shape = 'u8[2048]{0}', space=vmem, size = 0x800, scoped, tag = 'input window, operand 9, single buffered']
    #allocation20 [shape = 's32[1]{0}', space=sflag, size = 0x4, scoped, tag = 'scoped memory for enhancement_net.3']
    #allocation21 [shape = 'u8[32768]{0}', space=vmem, size = 0x8000, scoped, tag = 'output window, operand 0']
    %15 = vsyncpa [#allocation5], 0
    %s16 = scalar_lea.sflag [#allocation5], 1
    %17 = vsyncpa %s16, 0
    %18 = vsyncpa [#allocation8], 0
    %s19 = scalar_lea.sflag [#allocation8], 1
    %20 = vsyncpa %s19, 0
    %21 = vsyncpa [#allocation11], 0
    %s22 = scalar_lea.sflag [#allocation11], 1
    %23 = vsyncpa %s22, 0
    %24 = vsyncpa [#allocation14], 0
    %25 = vsyncpa [#allocation17], 0
    %26 = vsyncpa [#allocation20], 0
    %27 = vsyncpa [#allocation6], 0
    %s28 = scalar_lea.sflag [#allocation6], 1
    %29 = vsyncpa %s28, 0
    loop: start=0, step=1, limit=6
    $region2: #{enhancement_net.3} parent=1 // loop_pre_header
      _
    $region3: #{enhancement_net.3} parent=1 // loop_header
      %s31 = sphi 0, %s35
      %p32 = scmp.ge.s32.totalorder %s31, 6
      %s38 = sphi 0, %s50
      %s39 = sphi 0, %s46
      %s40 = sphi 0, %s38
      %s41 = sphi 0, %s39
      %s42 = sphi 0, %s40
      %s43 = sphi 0, %s41
      %s55 = sphi 0, %s57
      %s58 = sphi 0, %s55
      %s59 = sphi 0, %s58
      %s75 = sphi 0, %s59
      %s89 = sphi 0, %s91
      %s92 = sphi 0, %s89
      %s93 = sphi 0, %s92
      %s109 = sphi 0, %s93
      %s123 = sphi 0, %s125
      %s126 = sphi 0, %s123
      %s127 = sphi 0, %s126
      %s143 = sphi 0, %s127
      %s151 = sphi 0, %s153
      %s154 = sphi 0, %s151
      %s155 = sphi 0, %s154
      %s171 = sphi 0, %s155
      %s175 = sphi 0, %s175
      %s177 = sphi 0, %s175
      %s178 = sphi 0, %s177
      %s192 = sphi 0, %s178
      %s196 = sphi 0, %s196
      %s198 = sphi 0, %s196
      %s199 = sphi 0, %s198
      %s213 = sphi 0, %s199
      %s217 = sphi 0, %s217
      %s219 = sphi 0, %s217
      %s220 = sphi 0, %s219
      %s234 = sphi 0, %s220
      %s238 = sphi 0, %s238
      %s240 = sphi 0, %s238
      %s241 = sphi 0, %s240
      %s255 = sphi 0, %s241
      %s259 = sphi 0, %s259
      %s261 = sphi 0, %s259
      %s262 = sphi 0, %s261
      %s276 = sphi 0, %s262
      %s280 = sphi 0, %s280
      %s282 = sphi 0, %s280
      %s283 = sphi 0, %s282
      %s297 = sphi 0, %s283
      %s305 = sphi 0, %s307
      %s308 = sphi 0, %s305
      %s309 = sphi 0, %s308
      %s325 = sphi 0, %s309
    $region4: #{enhancement_net.3} parent=1 // loop_header_branch
      %34 = sbr.rel (%p32) target = $region8
    $region5: #{enhancement_net.3} parent=1 // loop_body
      %s36 = ssub.s32 %s31, 1
      %s37 = ssub.s32 %s31, 2
      %s44 = sadd.s32 1, %s39
      %p45 = scmp.ge.s32.totalorder %s44, 2
      %s46 = scalar_select %p45, 0, %s44
      %s47 = sadd.s32 1, %s38
      %s48 = scalar_select %p45, %s47, %s38
      %p49 = scmp.ge.s32.totalorder %s48, 2
      %s50 = scalar_select %p49, 0, %s48
      %s51 = ssub.s32 %s38, %s50
      %s52 = ssub.s32 %s39, %s46
      %s53 = sor.u32 %s51, %s52
      %p54 = scmp.eq.s32.totalorder %s53, 0
      %s56 = sadd.s32 %s55, 1
      %s57 = scalar_select %p54, %s55, %s56
      %p60 = pneg %p54
      %p61 = scmp.eq.s32.totalorder %s31, 3
      %p62 = por %p60, %p61
      %p63 = scmp.ne.s32.totalorder %s55, %s58
      %p64 = scmp.eq.s32.totalorder %s31, 0
      %p65 = por %p63, %p64
      %p66 = scmp.ne.s32.totalorder %s55, %s58
      %p67 = scmp.eq.s32.totalorder %s36, 3
      %p68 = por %p66, %p67
      %p69 = scmp.ne.s32.totalorder %s58, %s59
      %p70 = scmp.eq.s32.totalorder %s36, 0
      %p71 = por %p69, %p70
      %p72 = scmp.ne.s32.totalorder %s58, %s59
      %p73 = scmp.eq.s32.totalorder %s37, 3
      %p74 = por %p72, %p73
      %p76 = scmp.ne.s32.totalorder %s59, %s75
      %p77 = scmp.eq.s32.totalorder %s37, 0
      %p78 = por %p76, %p77
      %s79 = ssub.s32 %s39, 1
      %p80 = scmp.gt.s32.totalorder %s79, 0
      %s81 = scalar_select %p80, %s79, 0
      %s82 = ssub.s32 %s46, 1
      %p83 = scmp.gt.s32.totalorder %s82, 0
      %s84 = scalar_select %p83, %s82, 0
      %s85 = ssub.s32 %s38, %s50
      %s86 = ssub.s32 %s81, %s84
      %s87 = sor.u32 %s85, %s86
      %p88 = scmp.eq.s32.totalorder %s87, 0
      %s90 = sadd.s32 %s89, 1
      %s91 = scalar_select %p88, %s89, %s90
      %p94 = pneg %p88
      %p95 = scmp.eq.s32.totalorder %s31, 3
      %p96 = por %p94, %p95
      %p97 = scmp.ne.s32.totalorder %s89, %s92
      %p98 = scmp.eq.s32.totalorder %s31, 0
      %p99 = por %p97, %p98
      %p100 = scmp.ne.s32.totalorder %s89, %s92
      %p101 = scmp.eq.s32.totalorder %s36, 3
      %p102 = por %p100, %p101
      %p103 = scmp.ne.s32.totalorder %s92, %s93
      %p104 = scmp.eq.s32.totalorder %s36, 0
      %p105 = por %p103, %p104
      %p106 = scmp.ne.s32.totalorder %s92, %s93
      %p107 = scmp.eq.s32.totalorder %s37, 3
      %p108 = por %p106, %p107
      %p110 = scmp.ne.s32.totalorder %s93, %s109
      %p111 = scmp.eq.s32.totalorder %s37, 0
      %p112 = por %p110, %p111
      %s113 = sadd.s32 %s39, 1
      %p114 = scmp.lt.s32.totalorder %s113, 1
      %s115 = scalar_select %p114, %s113, 1
      %s116 = sadd.s32 %s46, 1
      %p117 = scmp.lt.s32.totalorder %s116, 1
      %s118 = scalar_select %p117, %s116, 1
      %s119 = ssub.s32 %s38, %s50
      %s120 = ssub.s32 %s115, %s118
      %s121 = sor.u32 %s119, %s120
      %p122 = scmp.eq.s32.totalorder %s121, 0
      %s124 = sadd.s32 %s123, 1
      %s125 = scalar_select %p122, %s123, %s124
      %p128 = pneg %p122
      %p129 = scmp.eq.s32.totalorder %s31, 3
      %p130 = por %p128, %p129
      %p131 = scmp.ne.s32.totalorder %s123, %s126
      %p132 = scmp.eq.s32.totalorder %s31, 0
      %p133 = por %p131, %p132
      %p134 = scmp.ne.s32.totalorder %s123, %s126
      %p135 = scmp.eq.s32.totalorder %s36, 3
      %p136 = por %p134, %p135
      %p137 = scmp.ne.s32.totalorder %s126, %s127
      %p138 = scmp.eq.s32.totalorder %s36, 0
      %p139 = por %p137, %p138
      %p140 = scmp.ne.s32.totalorder %s126, %s127
      %p141 = scmp.eq.s32.totalorder %s37, 3
      %p142 = por %p140, %p141
      %p144 = scmp.ne.s32.totalorder %s127, %s143
      %p145 = scmp.eq.s32.totalorder %s37, 0
      %p146 = por %p144, %p145
      %s147 = ssub.s32 %s38, %s50
      %s148 = ssub.s32 %s39, %s46
      %s149 = sor.u32 %s147, %s148
      %p150 = scmp.eq.s32.totalorder %s149, 0
      %s152 = sadd.s32 %s151, 1
      %s153 = scalar_select %p150, %s151, %s152
      %p156 = pneg %p150
      %p157 = scmp.eq.s32.totalorder %s31, 3
      %p158 = por %p156, %p157
      %p159 = scmp.ne.s32.totalorder %s151, %s154
      %p160 = scmp.eq.s32.totalorder %s31, 0
      %p161 = por %p159, %p160
      %p162 = scmp.ne.s32.totalorder %s151, %s154
      %p163 = scmp.eq.s32.totalorder %s36, 3
      %p164 = por %p162, %p163
      %p165 = scmp.ne.s32.totalorder %s154, %s155
      %p166 = scmp.eq.s32.totalorder %s36, 0
      %p167 = por %p165, %p166
      %p168 = scmp.ne.s32.totalorder %s154, %s155
      %p169 = scmp.eq.s32.totalorder %s37, 3
      %p170 = por %p168, %p169
      %p172 = scmp.ne.s32.totalorder %s155, %s171
      %p173 = scmp.eq.s32.totalorder %s37, 0
      %p174 = por %p172, %p173
      %s176 = sadd.s32 %s175, 1
      %p179 = scmp.eq.s32.totalorder %s31, 3
      %p180 = scmp.ne.s32.totalorder %s175, %s177
      %p181 = scmp.eq.s32.totalorder %s31, 0
      %p182 = por %p180, %p181
      %p183 = scmp.ne.s32.totalorder %s175, %s177
      %p184 = scmp.eq.s32.totalorder %s36, 3
      %p185 = por %p183, %p184
      %p186 = scmp.ne.s32.totalorder %s177, %s178
      %p187 = scmp.eq.s32.totalorder %s36, 0
      %p188 = por %p186, %p187
      %p189 = scmp.ne.s32.totalorder %s177, %s178
      %p190 = scmp.eq.s32.totalorder %s37, 3
      %p191 = por %p189, %p190
      %p193 = scmp.ne.s32.totalorder %s178, %s192
      %p194 = scmp.eq.s32.totalorder %s37, 0
      %p195 = por %p193, %p194
      %s197 = sadd.s32 %s196, 1
      %p200 = scmp.eq.s32.totalorder %s31, 3
      %p201 = scmp.ne.s32.totalorder %s196, %s198
      %p202 = scmp.eq.s32.totalorder %s31, 0
      %p203 = por %p201, %p202
      %p204 = scmp.ne.s32.totalorder %s196, %s198
      %p205 = scmp.eq.s32.totalorder %s36, 3
      %p206 = por %p204, %p205
      %p207 = scmp.ne.s32.totalorder %s198, %s199
      %p208 = scmp.eq.s32.totalorder %s36, 0
      %p209 = por %p207, %p208
      %p210 = scmp.ne.s32.totalorder %s198, %s199
      %p211 = scmp.eq.s32.totalorder %s37, 3
      %p212 = por %p210, %p211
      %p214 = scmp.ne.s32.totalorder %s199, %s213
      %p215 = scmp.eq.s32.totalorder %s37, 0
      %p216 = por %p214, %p215
      %s218 = sadd.s32 %s217, 1
      %p221 = scmp.eq.s32.totalorder %s31, 3
      %p222 = scmp.ne.s32.totalorder %s217, %s219
      %p223 = scmp.eq.s32.totalorder %s31, 0
      %p224 = por %p222, %p223
      %p225 = scmp.ne.s32.totalorder %s217, %s219
      %p226 = scmp.eq.s32.totalorder %s36, 3
      %p227 = por %p225, %p226
      %p228 = scmp.ne.s32.totalorder %s219, %s220
      %p229 = scmp.eq.s32.totalorder %s36, 0
      %p230 = por %p228, %p229
      %p231 = scmp.ne.s32.totalorder %s219, %s220
      %p232 = scmp.eq.s32.totalorder %s37, 3
      %p233 = por %p231, %p232
      %p235 = scmp.ne.s32.totalorder %s220, %s234
      %p236 = scmp.eq.s32.totalorder %s37, 0
      %p237 = por %p235, %p236
      %s239 = sadd.s32 %s238, 1
      %p242 = scmp.eq.s32.totalorder %s31, 3
      %p243 = scmp.ne.s32.totalorder %s238, %s240
      %p244 = scmp.eq.s32.totalorder %s31, 0
      %p245 = por %p243, %p244
      %p246 = scmp.ne.s32.totalorder %s238, %s240
      %p247 = scmp.eq.s32.totalorder %s36, 3
      %p248 = por %p246, %p247
      %p249 = scmp.ne.s32.totalorder %s240, %s241
      %p250 = scmp.eq.s32.totalorder %s36, 0
      %p251 = por %p249, %p250
      %p252 = scmp.ne.s32.totalorder %s240, %s241
      %p253 = scmp.eq.s32.totalorder %s37, 3
      %p254 = por %p252, %p253
      %p256 = scmp.ne.s32.totalorder %s241, %s255
      %p257 = scmp.eq.s32.totalorder %s37, 0
      %p258 = por %p256, %p257
      %s260 = sadd.s32 %s259, 1
      %p263 = scmp.eq.s32.totalorder %s31, 3
      %p264 = scmp.ne.s32.totalorder %s259, %s261
      %p265 = scmp.eq.s32.totalorder %s31, 0
      %p266 = por %p264, %p265
      %p267 = scmp.ne.s32.totalorder %s259, %s261
      %p268 = scmp.eq.s32.totalorder %s36, 3
      %p269 = por %p267, %p268
      %p270 = scmp.ne.s32.totalorder %s261, %s262
      %p271 = scmp.eq.s32.totalorder %s36, 0
      %p272 = por %p270, %p271
      %p273 = scmp.ne.s32.totalorder %s261, %s262
      %p274 = scmp.eq.s32.totalorder %s37, 3
      %p275 = por %p273, %p274
      %p277 = scmp.ne.s32.totalorder %s262, %s276
      %p278 = scmp.eq.s32.totalorder %s37, 0
      %p279 = por %p277, %p278
      %s281 = sadd.s32 %s280, 1
      %p284 = scmp.eq.s32.totalorder %s31, 3
      %p285 = scmp.ne.s32.totalorder %s280, %s282
      %p286 = scmp.eq.s32.totalorder %s31, 0
      %p287 = por %p285, %p286
      %p288 = scmp.ne.s32.totalorder %s280, %s282
      %p289 = scmp.eq.s32.totalorder %s36, 3
      %p290 = por %p288, %p289
      %p291 = scmp.ne.s32.totalorder %s282, %s283
      %p292 = scmp.eq.s32.totalorder %s36, 0
      %p293 = por %p291, %p292
      %p294 = scmp.ne.s32.totalorder %s282, %s283
      %p295 = scmp.eq.s32.totalorder %s37, 3
      %p296 = por %p294, %p295
      %p298 = scmp.ne.s32.totalorder %s283, %s297
      %p299 = scmp.eq.s32.totalorder %s37, 0
      %p300 = por %p298, %p299
      %s301 = ssub.s32 %s38, %s50
      %s302 = ssub.s32 %s39, %s46
      %s303 = sor.u32 %s301, %s302
      %p304 = scmp.eq.s32.totalorder %s303, 0
      %s306 = sadd.s32 %s305, 1
      %s307 = scalar_select %p304, %s305, %s306
      %p310 = pneg %p304
      %p311 = scmp.eq.s32.totalorder %s31, 3
      %p312 = por %p310, %p311
      %p313 = scmp.ne.s32.totalorder %s305, %s308
      %p314 = scmp.eq.s32.totalorder %s31, 0
      %p315 = por %p313, %p314
      %p316 = scmp.ne.s32.totalorder %s305, %s308
      %p317 = scmp.eq.s32.totalorder %s36, 3
      %p318 = por %p316, %p317
      %p319 = scmp.ne.s32.totalorder %s308, %s309
      %p320 = scmp.eq.s32.totalorder %s36, 0
      %p321 = por %p319, %p320
      %p322 = scmp.ne.s32.totalorder %s308, %s309
      %p323 = scmp.eq.s32.totalorder %s37, 3
      %p324 = por %p322, %p323
      %p326 = scmp.ne.s32.totalorder %s309, %s325
      %p327 = scmp.eq.s32.totalorder %s37, 0
      %p328 = por %p326, %p327
      %p329 = scmp.le.s32.totalorder 1, %s31
      %p330 = scmp.lt.s32.totalorder %s31, 5
      %p331 = pnand %p329, %p330
      %p332 = pneg %p331
      // Predicated region
      $region9: #{enhancement_net.3} parent=5 // pred_check
        _
      $region10: #{enhancement_net.3} parent=5 // pred_check_branch
        %334 = sbr.rel (%p331) target = $region12
      $region11: #{enhancement_net.3} parent=5 // pred_region
        %s335 = ssub.s32 %s31, 1
        // Predicated region
        $region13: #{enhancement_net.3} parent=11 // pred_check
          %p336 = pneg %p188
        $region14: #{enhancement_net.3} parent=11 // pred_check_branch
          %338 = sbr.rel (%p336) target = $region16
        $region15: #{enhancement_net.3} parent=11 // pred_region
          %s340 = ssub.s32 512, 512
          %341 = vsyncadd [#allocation11], %s340
          %s342 = sshll.u32 [#allocation12], 4
          %s343 = int_to_ptr.vmem [resolvable:$true] %s342
          %348 = dma.hbm_to_vmem [thread:$0]  %s4, 512, %s343, [#allocation11], 64, 64, 4
        $region16: #{enhancement_net.3} parent=11 // pred_fallthru
          _
        // Predicated region
        $region17: #{enhancement_net.3} parent=11 // pred_check
          %p349 = pneg %p209
        $region18: #{enhancement_net.3} parent=11 // pred_check_branch
          %351 = sbr.rel (%p349) target = $region20
        $region19: #{enhancement_net.3} parent=11 // pred_region
          %s353 = ssub.s32 1024, 1024
          %354 = vsyncadd [#allocation14], %s353
          %s355 = sshll.u32 [#allocation13], 4
          %s356 = int_to_ptr.vmem [resolvable:$true] %s355
          %361 = dma.hbm_to_vmem [thread:$0]  %s5, 1024, %s356, [#allocation14], 128, 128, 8
        $region20: #{enhancement_net.3} parent=11 // pred_fallthru
          _
        // Predicated region
        $region21: #{enhancement_net.3} parent=11 // pred_check
          %p362 = pneg %p230
        $region22: #{enhancement_net.3} parent=11 // pred_check_branch
          %364 = sbr.rel (%p362) target = $region24
        $region23: #{enhancement_net.3} parent=11 // pred_region
          %s366 = ssub.s32 512, 512
          %367 = vsyncadd [#allocation14], %s366
          %s368 = sshll.u32 [#allocation15], 4
          %s369 = int_to_ptr.vmem [resolvable:$true] %s368
          %374 = dma.hbm_to_vmem [thread:$0]  %s6, 512, %s369, [#allocation14], 64, 64, 4
        $region24: #{enhancement_net.3} parent=11 // pred_fallthru
          _
        // Predicated region
        $region25: #{enhancement_net.3} parent=11 // pred_check
          %p375 = pneg %p251
        $region26: #{enhancement_net.3} parent=11 // pred_check_branch
          %377 = sbr.rel (%p375) target = $region28
        $region27: #{enhancement_net.3} parent=11 // pred_region
          %s379 = ssub.s32 1024, 1024
          %380 = vsyncadd [#allocation17], %s379
          %s381 = sshll.u32 [#allocation16], 4
          %s382 = int_to_ptr.vmem [resolvable:$true] %s381
          %387 = dma.hbm_to_vmem [thread:$0]  %s7, 1024, %s382, [#allocation17], 128, 128, 8
        $region28: #{enhancement_net.3} parent=11 // pred_fallthru
          _
        // Predicated region
        $region29: #{enhancement_net.3} parent=11 // pred_check
          %p388 = pneg %p272
        $region30: #{enhancement_net.3} parent=11 // pred_check_branch
          %390 = sbr.rel (%p388) target = $region32
        $region31: #{enhancement_net.3} parent=11 // pred_region
          %s392 = ssub.s32 256, 256
          %393 = vsyncadd [#allocation17], %s392
          %s394 = sshll.u32 [#allocation18], 4
          %s395 = int_to_ptr.vmem [resolvable:$true] %s394
          %400 = dma.hbm_to_vmem [thread:$0]  %s8, 256, %s395, [#allocation17], 64, 64, 4
        $region32: #{enhancement_net.3} parent=11 // pred_fallthru
          _
        // Predicated region
        $region33: #{enhancement_net.3} parent=11 // pred_check
          %p401 = pneg %p293
        $region34: #{enhancement_net.3} parent=11 // pred_check_branch
          %403 = sbr.rel (%p401) target = $region36
        $region35: #{enhancement_net.3} parent=11 // pred_region
          %s405 = ssub.s32 64, 64
          %406 = vsyncadd [#allocation20], %s405
          %s408 = sshll.u32 [#allocation19], 4
          %s409 = int_to_ptr.vmem [resolvable:$true] %s408
          %411 = dma.hbm_to_vmem [thread:$0]  %s9, 64, %s409, [#allocation20]
        $region36: #{enhancement_net.3} parent=11 // pred_fallthru
          _
      $region12: #{enhancement_net.3} parent=5 // pred_fallthru
        _
      %p412 = scmp.lt.s32.totalorder %s31, 4
      // Predicated region
      $region37: #{enhancement_net.3} parent=5 // pred_check
        %p413 = pneg %p412
      $region38: #{enhancement_net.3} parent=5 // pred_check_branch
        %415 = sbr.rel (%p413) target = $region40
      $region39: #{enhancement_net.3} parent=5 // pred_region
        // Predicated region
        $region41: #{enhancement_net.3} parent=39 // pred_check
          %p416 = pneg %p65
        $region42: #{enhancement_net.3} parent=39 // pred_check_branch
          %418 = sbr.rel (%p416) target = $region44
        $region43: #{enhancement_net.3} parent=39 // pred_region
          %s419 = sand.u32 %s55, 1
          %s420 = scalar_lea.sflag [#allocation5], %s419
          %s421 = sand.u32 %s55, 1
          %s422 = smul.addr %s421, 32
          %s423 = scalar_lea.vmem [#allocation4], %s422
          %s424 = smul.u32 8, %s39
          %s426 = ssub.s32 512, 512
          %427 = vsyncadd %s420, %s426
          %s428 = smul.addr %s38, 16
          %s429 = sadd.s32 %s424, %s428
          %s430 = smul.addr %s429, 64
          %s431 = scalar_lea.hbm %s0, %s430
          %s432 = sshll.u32 %s423, 4
          %s433 = int_to_ptr.vmem [resolvable:$true] %s432
          %438 = dma.hbm_to_vmem [thread:$0]  %s431, 512, %s433, %s420, 64, 64, 4
        $region44: #{enhancement_net.3} parent=39 // pred_fallthru
          _
        // Predicated region
        $region45: #{enhancement_net.3} parent=39 // pred_check
          %p439 = pneg %p99
        $region46: #{enhancement_net.3} parent=39 // pred_check_branch
          %441 = sbr.rel (%p439) target = $region48
        $region47: #{enhancement_net.3} parent=39 // pred_region
          %s442 = sand.u32 %s31, 1
          %s443 = scalar_lea.sflag [#allocation8], %s442
          %s444 = sand.u32 %s89, 1
          %s445 = smul.addr %s444, 32
          %s446 = scalar_lea.vmem [#allocation7], %s445
          %s447 = ssub.s32 %s39, 1
          %p448 = scmp.gt.s32.totalorder %s447, 0
          %s449 = scalar_select %p448, %s447, 0
          %s450 = smul.u32 8, %s449
          %s452 = ssub.s32 512, 512
          %453 = vsyncadd %s443, %s452
          %s454 = smul.addr %s38, 16
          %s455 = sadd.s32 %s450, %s454
          %s456 = smul.addr %s455, 64
          %s457 = scalar_lea.hbm %s1, %s456
          %s458 = sshll.u32 %s446, 4
          %s459 = int_to_ptr.vmem [resolvable:$true] %s458
          %464 = dma.hbm_to_vmem [thread:$0]  %s457, 512, %s459, %s443, 64, 64, 4
        $region48: #{enhancement_net.3} parent=39 // pred_fallthru
          _
        // Predicated region
        $region49: #{enhancement_net.3} parent=39 // pred_check
          %p465 = pneg %p133
        $region50: #{enhancement_net.3} parent=39 // pred_check_branch
          %467 = sbr.rel (%p465) target = $region52
        $region51: #{enhancement_net.3} parent=39 // pred_region
          %s468 = sand.u32 %s31, 1
          %s469 = scalar_lea.sflag [#allocation8], %s468
          %s470 = sand.u32 %s123, 1
          %s471 = smul.addr %s470, 32
          %s472 = scalar_lea.vmem [#allocation9], %s471
          %s473 = sadd.s32 %s39, 1
          %p474 = scmp.lt.s32.totalorder %s473, 1
          %s475 = scalar_select %p474, %s473, 1
          %s476 = smul.u32 8, %s475
          %s478 = ssub.s32 512, 512
          %479 = vsyncadd %s469, %s478
          %s480 = smul.addr %s38, 16
          %s481 = sadd.s32 %s476, %s480
          %s482 = smul.addr %s481, 64
          %s483 = scalar_lea.hbm %s2, %s482
          %s484 = sshll.u32 %s472, 4
          %s485 = int_to_ptr.vmem [resolvable:$true] %s484
          %490 = dma.hbm_to_vmem [thread:$0]  %s483, 512, %s485, %s469, 64, 64, 4
        $region52: #{enhancement_net.3} parent=39 // pred_fallthru
          _
        // Predicated region
        $region53: #{enhancement_net.3} parent=39 // pred_check
          %p491 = pneg %p161
        $region54: #{enhancement_net.3} parent=39 // pred_check_branch
          %493 = sbr.rel (%p491) target = $region56
        $region55: #{enhancement_net.3} parent=39 // pred_region
          %s494 = sand.u32 %s31, 1
          %s495 = scalar_lea.sflag [#allocation11], %s494
          %s496 = sand.u32 %s151, 1
          %s497 = smul.addr %s496, 32
          %s498 = scalar_lea.vmem [#allocation10], %s497
          %s499 = smul.u32 8, %s39
          %s501 = ssub.s32 512, 512
          %502 = vsyncadd %s495, %s501
          %s503 = smul.addr %s38, 16
          %s504 = sadd.s32 %s499, %s503
          %s505 = smul.addr %s504, 64
          %s506 = scalar_lea.hbm %s3, %s505
          %s507 = sshll.u32 %s498, 4
          %s508 = int_to_ptr.vmem [resolvable:$true] %s507
          %513 = dma.hbm_to_vmem [thread:$0]  %s506, 512, %s508, %s495, 64, 64, 4
        $region56: #{enhancement_net.3} parent=39 // pred_fallthru
          _
      $region40: #{enhancement_net.3} parent=5 // pred_fallthru
        _
      %p514 = scmp.le.s32.totalorder 1, %s31
      %p515 = scmp.lt.s32.totalorder %s31, 5
      %p516 = pnand %p514, %p515
      %p517 = pneg %p516
      // Predicated region
      $region57: #{enhancement_net.3} parent=5 // pred_check
        _
      $region58: #{enhancement_net.3} parent=5 // pred_check_branch
        %519 = sbr.rel (%p516) target = $region60
      $region59: #{enhancement_net.3} parent=5 // pred_region
        %s520 = ssub.s32 %s31, 1
        %s521 = sand.u32 %s58, 1
        %s522 = scalar_lea.sflag [#allocation5], %s521
        %s523 = sand.u32 %s58, 1
        %s524 = smul.addr %s523, 32
        %s525 = scalar_lea.vmem [#allocation4], %s524
        // Predicated region
        $region61: #{enhancement_net.3} parent=59 // pred_check
          %p526 = pneg %p71
        $region62: #{enhancement_net.3} parent=59 // pred_check_branch
          %528 = sbr.rel (%p526) target = $region64
        $region63: #{enhancement_net.3} parent=59 // pred_region
          %529 = dma.done %s522, 512
        $region64: #{enhancement_net.3} parent=59 // pred_fallthru
          _
        %s530 = sand.u32 %s36, 1
        %s531 = scalar_lea.sflag [#allocation8], %s530
        %s532 = sand.u32 %s92, 1
        %s533 = smul.addr %s532, 32
        %s534 = scalar_lea.vmem [#allocation7], %s533
        // Predicated region
        $region65: #{enhancement_net.3} parent=59 // pred_check
          %p535 = pneg %p105
        $region66: #{enhancement_net.3} parent=59 // pred_check_branch
          %537 = sbr.rel (%p535) target = $region68
        $region67: #{enhancement_net.3} parent=59 // pred_region
          %538 = dma.done %s531, 512
        $region68: #{enhancement_net.3} parent=59 // pred_fallthru
          _
        %s539 = sand.u32 %s36, 1
        %s540 = scalar_lea.sflag [#allocation8], %s539
        %s541 = sand.u32 %s126, 1
        %s542 = smul.addr %s541, 32
        %s543 = scalar_lea.vmem [#allocation9], %s542
        // Predicated region
        $region69: #{enhancement_net.3} parent=59 // pred_check
          %p544 = pneg %p139
        $region70: #{enhancement_net.3} parent=59 // pred_check_branch
          %546 = sbr.rel (%p544) target = $region72
        $region71: #{enhancement_net.3} parent=59 // pred_region
          %547 = dma.done %s540, 512
        $region72: #{enhancement_net.3} parent=59 // pred_fallthru
          _
        %s548 = sand.u32 %s36, 1
        %s549 = scalar_lea.sflag [#allocation11], %s548
        %s550 = sand.u32 %s154, 1
        %s551 = smul.addr %s550, 32
        %s552 = scalar_lea.vmem [#allocation10], %s551
        // Predicated region
        $region73: #{enhancement_net.3} parent=59 // pred_check
          %p553 = pneg %p167
        $region74: #{enhancement_net.3} parent=59 // pred_check_branch
          %555 = sbr.rel (%p553) target = $region76
        $region75: #{enhancement_net.3} parent=59 // pred_region
          %556 = dma.done %s549, 512
        $region76: #{enhancement_net.3} parent=59 // pred_fallthru
          _
        // Predicated region
        $region77: #{enhancement_net.3} parent=59 // pred_check
          %p557 = pneg %p188
        $region78: #{enhancement_net.3} parent=59 // pred_check_branch
          %559 = sbr.rel (%p557) target = $region80
        $region79: #{enhancement_net.3} parent=59 // pred_region
          %560 = dma.done [#allocation11], 512
        $region80: #{enhancement_net.3} parent=59 // pred_fallthru
          _
        // Predicated region
        $region81: #{enhancement_net.3} parent=59 // pred_check
          %p561 = pneg %p209
        $region82: #{enhancement_net.3} parent=59 // pred_check_branch
          %563 = sbr.rel (%p561) target = $region84
        $region83: #{enhancement_net.3} parent=59 // pred_region
          %564 = dma.done [#allocation14], 1024
        $region84: #{enhancement_net.3} parent=59 // pred_fallthru
          _
        // Predicated region
        $region85: #{enhancement_net.3} parent=59 // pred_check
          %p565 = pneg %p230
        $region86: #{enhancement_net.3} parent=59 // pred_check_branch
          %567 = sbr.rel (%p565) target = $region88
        $region87: #{enhancement_net.3} parent=59 // pred_region
          %568 = dma.done [#allocation14], 512
        $region88: #{enhancement_net.3} parent=59 // pred_fallthru
          _
        // Predicated region
        $region89: #{enhancement_net.3} parent=59 // pred_check
          %p569 = pneg %p251
        $region90: #{enhancement_net.3} parent=59 // pred_check_branch
          %571 = sbr.rel (%p569) target = $region92
        $region91: #{enhancement_net.3} parent=59 // pred_region
          %572 = dma.done [#allocation17], 1024
        $region92: #{enhancement_net.3} parent=59 // pred_fallthru
          _
        // Predicated region
        $region93: #{enhancement_net.3} parent=59 // pred_check
          %p573 = pneg %p272
        $region94: #{enhancement_net.3} parent=59 // pred_check_branch
          %575 = sbr.rel (%p573) target = $region96
        $region95: #{enhancement_net.3} parent=59 // pred_region
          %576 = dma.done [#allocation17], 256
        $region96: #{enhancement_net.3} parent=59 // pred_fallthru
          _
        // Predicated region
        $region97: #{enhancement_net.3} parent=59 // pred_check
          %p577 = pneg %p293
        $region98: #{enhancement_net.3} parent=59 // pred_check_branch
          %579 = sbr.rel (%p577) target = $region100
        $region99: #{enhancement_net.3} parent=59 // pred_region
          %580 = dma.done [#allocation20], 64
        $region100: #{enhancement_net.3} parent=59 // pred_fallthru
          _
        %s581 = sand.u32 %s58, 1
        %s582 = scalar_lea.sflag [#allocation5], %s581
        %s583 = sand.u32 %s58, 1
        %s584 = smul.addr %s583, 32
        %s585 = scalar_lea.vmem [#allocation4], %s584
        %p586 = pneg %p71
        %p587 = pneg %p68
        %s588 = sand.u32 %s36, 1
        %s589 = scalar_lea.sflag [#allocation8], %s588
        %s590 = sand.u32 %s92, 1
        %s591 = smul.addr %s590, 32
        %s592 = scalar_lea.vmem [#allocation7], %s591
        %p593 = pneg %p105
        %p594 = pneg %p102
        %s595 = sand.u32 %s36, 1
        %s596 = scalar_lea.sflag [#allocation8], %s595
        %s597 = sand.u32 %s126, 1
        %s598 = smul.addr %s597, 32
        %s599 = scalar_lea.vmem [#allocation9], %s598
        %p600 = pneg %p139
        %p601 = pneg %p136
        %s602 = sand.u32 %s36, 1
        %s603 = scalar_lea.sflag [#allocation11], %s602
        %s604 = sand.u32 %s154, 1
        %s605 = smul.addr %s604, 32
        %s606 = scalar_lea.vmem [#allocation10], %s605
        %p607 = pneg %p167
        %p608 = pneg %p164
        %p609 = pneg %p188
        %p610 = pneg %p185
        %p611 = pneg %p209
        %p612 = pneg %p206
        %p613 = pneg %p230
        %p614 = pneg %p227
        %p615 = pneg %p251
        %p616 = pneg %p248
        %p617 = pneg %p272
        %p618 = pneg %p269
        %p619 = pneg %p293
        %p620 = pneg %p290
        %p621 = pneg %p321
        %p622 = pneg %p318
        %s623 = sand.u32 %s308, 1
        %s624 = scalar_lea.sflag [#allocation6], %s623
        %s625 = sand.u32 %s308, 1
        %s626 = smul.addr %s625, 32
        %s627 = scalar_lea.vmem [#allocation21], %s626
        %s628 = smul.u32 8, %s41
        %s629 = ssub.s32 %s41, 1
        %p630 = scmp.gt.s32.totalorder %s629, 0
        %s631 = scalar_select %p630, %s629, 0
        %s632 = smul.u32 8, %s631
        %s633 = sadd.s32 %s41, 1
        %p634 = scmp.lt.s32.totalorder %s633, 1
        %s635 = scalar_select %p634, %s633, 1
        %s636 = smul.u32 8, %s635
        %s637 = smul.u32 8, %s41
        %s638 = smul.u32 8, %s41
        %s640 = smul.u32 %s41, 8
        %vm641 = vcmask 10240
        %642 = vst.msk [vmem:[#allocation2] sm:$0x7] %vm641, 0.0
        %643 = vst.msk [vmem:[#allocation2 + $0x4] sm:$0x7] %vm641, 0.0
        %644 = vst.msk [vmem:[#allocation2 + $0x8] sm:$0x7] %vm641, 0.0
        %645 = vst.msk [vmem:[#allocation2 + $0xc] sm:$0x7] %vm641, 0.0
        %646 = vst.msk [vmem:[#allocation2 + $0x10] sm:$0x7] %vm641, 0.0
        %647 = vst.msk [vmem:[#allocation2 + $0x14] sm:$0x7] %vm641, 0.0
        %648 = vst.msk [vmem:[#allocation2 + $0x18] sm:$0x7] %vm641, 0.0
        %649 = vst.msk [vmem:[#allocation2 + $0x1c] sm:$0x7] %vm641, 0.0
        %650 = vst.msk [vmem:[#allocation2 + $0x20] sm:$0x7] %vm641, 0.0
        %651 = vst.msk [vmem:[#allocation2 + $0x24] sm:$0x7] %vm641, 0.0
        %652 = vst.msk [vmem:[#allocation2 + $0x28] sm:$0x7] %vm641, 0.0
        %653 = vst.msk [vmem:[#allocation2 + $0x2c] sm:$0x7] %vm641, 0.0
        %vm654 = vcmask 157840
        %655 = vst.msk [vmem:[#allocation2] sm:$0x7] %vm654, 0.0
        %656 = vst.msk [vmem:[#allocation2 + $0x4] sm:$0x7] %vm654, 0.0
        %657 = vst.msk [vmem:[#allocation2 + $0x8] sm:$0x7] %vm654, 0.0
        %658 = vst.msk [vmem:[#allocation2 + $0xc] sm:$0x7] %vm654, 0.0
        %659 = vst.msk [vmem:[#allocation2 + $0x10] sm:$0x7] %vm654, 0.0
        %660 = vst.msk [vmem:[#allocation2 + $0x14] sm:$0x7] %vm654, 0.0
        %661 = vst.msk [vmem:[#allocation2 + $0x18] sm:$0x7] %vm654, 0.0
        %662 = vst.msk [vmem:[#allocation2 + $0x1c] sm:$0x7] %vm654, 0.0
        %663 = vst.msk [vmem:[#allocation2 + $0x20] sm:$0x7] %vm654, 0.0
        %664 = vst.msk [vmem:[#allocation2 + $0x24] sm:$0x7] %vm654, 0.0
        %665 = vst.msk [vmem:[#allocation2 + $0x28] sm:$0x7] %vm654, 0.0
        %666 = vst.msk [vmem:[#allocation2 + $0x2c] sm:$0x7] %vm654, 0.0
        %v667 = vld [vmem:[%s525] sm:$0x7]
        %v668 = vld [vmem:[%s525 + $0x4] sm:$0x7]
        %v669 = vld [vmem:[%s525 + $0x8] sm:$0x7]
        %v670 = vld [vmem:[%s525 + $0xc] sm:$0x7]
        %v671 = vld [vmem:[%s525 + $0x10] sm:$0x7]
        %v672 = vld [vmem:[%s525 + $0x14] sm:$0x7]
        %v673 = vld [vmem:[%s525 + $0x18] sm:$0x7]
        %v674 = vld [vmem:[%s525 + $0x1c] sm:$0x7]
        %683 = vrot.lane.b32.xlu0 %v667, 2
        %v684 = vpop.permute.xlu0 %683
        %685 = vrot.lane.b32.xlu0 %v668, 2
        %v686 = vpop.permute.xlu0 %685
        %687 = vrot.lane.b32.xlu0 %v669, 2
        %v688 = vpop.permute.xlu0 %687
        %689 = vrot.lane.b32.xlu0 %v670, 2
        %v690 = vpop.permute.xlu0 %689
        %691 = vrot.lane.b32.xlu0 %v671, 2
        %v692 = vpop.permute.xlu0 %691
        %693 = vrot.lane.b32.xlu0 %v672, 2
        %v694 = vpop.permute.xlu0 %693
        %695 = vrot.lane.b32.xlu0 %v673, 2
        %v696 = vpop.permute.xlu0 %695
        %697 = vrot.lane.b32.xlu0 %v674, 2
        %v698 = vpop.permute.xlu0 %697
        %s707 = scalar_lea.vmem [#allocation2], 8
        %vm708 = vcmask 141328
        %709 = vst.msk [vmem:[%s707] sm:$0x7] %vm708, %v684
        %710 = vst.msk [vmem:[%s707 + $0x4] sm:$0x7] %vm708, %v686
        %711 = vst.msk [vmem:[%s707 + $0x8] sm:$0x7] %vm708, %v688
        %712 = vst.msk [vmem:[%s707 + $0xc] sm:$0x7] %vm708, %v690
        %713 = vst.msk [vmem:[%s707 + $0x10] sm:$0x7] %vm708, %v692
        %714 = vst.msk [vmem:[%s707 + $0x14] sm:$0x7] %vm708, %v694
        %715 = vst.msk [vmem:[%s707 + $0x18] sm:$0x7] %vm708, %v696
        %716 = vst.msk [vmem:[%s707 + $0x1c] sm:$0x7] %vm708, %v698
        %717 = vst.msk [vmem:[#allocation2] sm:$0x7] %vm708, 0.0
        %718 = vst.msk [vmem:[#allocation2 + $0x4] sm:$0x7] %vm708, 0.0
        %s719 = scalar_lea.vmem [#allocation2], 40
        %720 = vst.msk [vmem:[%s719] sm:$0x7] %vm708, 0.0
        %721 = vst.msk [vmem:[%s719 + $0x4] sm:$0x7] %vm708, 0.0
        %p722 = scmp.gt.s32.totalorder %s41, 0
        // Predicated region
        $region101: #{enhancement_net.3} parent=59 // pred_check
          %p723 = pneg %p722
        $region102: #{enhancement_net.3} parent=59 // pred_check_branch
          %725 = sbr.rel (%p723) target = $region104
        $region103: #{enhancement_net.3} parent=59 // pred_region
          %v726 = vld [vmem:[%s534 + $0x18] sm:$0x7]
          %v727 = vld [vmem:[%s534 + $0x1c] sm:$0x7]
          %730 = vrot.lane.b32.xlu0 %v726, 2
          %v731 = vpop.permute.xlu0 %730
          %732 = vrot.lane.b32.xlu0 %v727, 2
          %v733 = vpop.permute.xlu0 %732
          %736 = vst.msk [vmem:[#allocation2] sm:$0x7] %vm708, %v731
          %737 = vst.msk [vmem:[#allocation2 + $0x4] sm:$0x7] %vm708, %v733
        $region104: #{enhancement_net.3} parent=59 // pred_fallthru
          _
        %p738 = scmp.lt.s32.totalorder %s41, 1
        // Predicated region
        $region105: #{enhancement_net.3} parent=59 // pred_check
          %p739 = pneg %p738
        $region106: #{enhancement_net.3} parent=59 // pred_check_branch
          %741 = sbr.rel (%p739) target = $region108
        $region107: #{enhancement_net.3} parent=59 // pred_region
          %v742 = vld [vmem:[%s543] sm:$0x7]
          %v743 = vld [vmem:[%s543 + $0x4] sm:$0x7]
          %746 = vrot.lane.b32.xlu0 %v742, 2
          %v747 = vpop.permute.xlu0 %746
          %748 = vrot.lane.b32.xlu0 %v743, 2
          %v749 = vpop.permute.xlu0 %748
          %752 = vst.msk [vmem:[%s719] sm:$0x7] %vm708, %v747
          %753 = vst.msk [vmem:[%s719 + $0x4] sm:$0x7] %vm708, %v749
        $region108: #{enhancement_net.3} parent=59 // pred_fallthru
          _
        %v754 = vld [vmem:[#allocation2] sm:$0x7]
        %v755 = vld [vmem:[#allocation2 + $0x4] sm:$0x7]
        %v756 = vld [vmem:[#allocation2 + $0x8] sm:$0x7]
        %v757 = vld [vmem:[#allocation2 + $0xc] sm:$0x7]
        %v758 = vld [vmem:[#allocation2 + $0x10] sm:$0x7]
        %v759 = vld [vmem:[#allocation2 + $0x14] sm:$0x7]
        %v760 = vld [vmem:[#allocation2 + $0x18] sm:$0x7]
        %v761 = vld [vmem:[#allocation2 + $0x1c] sm:$0x7]
        %v762 = vld [vmem:[#allocation2 + $0x20] sm:$0x7]
        %v763 = vld [vmem:[#allocation2 + $0x24] sm:$0x7]
        %vm764 = vcmask 141312
        %765 = vst.msk [vmem:[#allocation3] sm:$0x7] %vm764, %v754
        %766 = vst.msk [vmem:[#allocation3 + $0x20] sm:$0x7] %vm764, %v755
        %767 = vst.msk [vmem:[#allocation3 + $0x40] sm:$0x7] %vm764, %v756
        %768 = vst.msk [vmem:[#allocation3 + $0x60] sm:$0x7] %vm764, %v757
        %769 = vst.msk [vmem:[#allocation3 + $0x80] sm:$0x7] %vm764, %v758
        %770 = vst.msk [vmem:[#allocation3 + $0xa0] sm:$0x7] %vm764, %v759
        %771 = vst.msk [vmem:[#allocation3 + $0xc0] sm:$0x7] %vm764, %v760
        %772 = vst.msk [vmem:[#allocation3 + $0xe0] sm:$0x7] %vm764, %v761
        %773 = vst.msk [vmem:[#allocation3 + $0x100] sm:$0x7] %vm764, %v762
        %774 = vst.msk [vmem:[#allocation3 + $0x120] sm:$0x7] %vm764, %v763
        %v775 = vld [vmem:[#allocation2] sm:$0x7]
        %v776 = vld [vmem:[#allocation2 + $0x4] sm:$0x7]
        %v777 = vld [vmem:[#allocation2 + $0x8] sm:$0x7]
        %v778 = vld [vmem:[#allocation2 + $0xc] sm:$0x7]
        %v779 = vld [vmem:[#allocation2 + $0x10] sm:$0x7]
        %v780 = vld [vmem:[#allocation2 + $0x14] sm:$0x7]
        %v781 = vld [vmem:[#allocation2 + $0x18] sm:$0x7]
        %v782 = vld [vmem:[#allocation2 + $0x1c] sm:$0x7]
        %v783 = vld [vmem:[#allocation2 + $0x20] sm:$0x7]
        %v784 = vld [vmem:[#allocation2 + $0x24] sm:$0x7]
        %795 = vrot.lane.b32.xlu0 %v775, 127
        %v796 = vpop.permute.xlu0 %795
        %797 = vrot.lane.b32.xlu0 %v776, 127
        %v798 = vpop.permute.xlu0 %797
        %799 = vrot.lane.b32.xlu0 %v777, 127
        %v800 = vpop.permute.xlu0 %799
        %801 = vrot.lane.b32.xlu0 %v778, 127
        %v802 = vpop.permute.xlu0 %801
        %803 = vrot.lane.b32.xlu0 %v779, 127
        %v804 = vpop.permute.xlu0 %803
        %805 = vrot.lane.b32.xlu0 %v780, 127
        %v806 = vpop.permute.xlu0 %805
        %807 = vrot.lane.b32.xlu0 %v781, 127
        %v808 = vpop.permute.xlu0 %807
        %809 = vrot.lane.b32.xlu0 %v782, 127
        %v810 = vpop.permute.xlu0 %809
        %811 = vrot.lane.b32.xlu0 %v783, 127
        %v812 = vpop.permute.xlu0 %811
        %813 = vrot.lane.b32.xlu0 %v784, 127
        %v814 = vpop.permute.xlu0 %813
        %825 = vst.msk [vmem:[#allocation3 + $0x3] sm:$0x7] %vm764, %v796
        %826 = vst.msk [vmem:[#allocation3 + $0x23] sm:$0x7] %vm764, %v798
        %827 = vst.msk [vmem:[#allocation3 + $0x43] sm:$0x7] %vm764, %v800
        %828 = vst.msk [vmem:[#allocation3 + $0x63] sm:$0x7] %vm764, %v802
        %829 = vst.msk [vmem:[#allocation3 + $0x83] sm:$0x7] %vm764, %v804
        %830 = vst.msk [vmem:[#allocation3 + $0xa3] sm:$0x7] %vm764, %v806
        %831 = vst.msk [vmem:[#allocation3 + $0xc3] sm:$0x7] %vm764, %v808
        %832 = vst.msk [vmem:[#allocation3 + $0xe3] sm:$0x7] %vm764, %v810
        %833 = vst.msk [vmem:[#allocation3 + $0x103] sm:$0x7] %vm764, %v812
        %834 = vst.msk [vmem:[#allocation3 + $0x123] sm:$0x7] %vm764, %v814
        %v835 = vld [vmem:[#allocation2] sm:$0x7]
        %v836 = vld [vmem:[#allocation2 + $0x4] sm:$0x7]
        %v837 = vld [vmem:[#allocation2 + $0x8] sm:$0x7]
        %v838 = vld [vmem:[#allocation2 + $0xc] sm:$0x7]
        %v839 = vld [vmem:[#allocation2 + $0x10] sm:$0x7]
        %v840 = vld [vmem:[#allocation2 + $0x14] sm:$0x7]
        %v841 = vld [vmem:[#allocation2 + $0x18] sm:$0x7]
        %v842 = vld [vmem:[#allocation2 + $0x1c] sm:$0x7]
        %v843 = vld [vmem:[#allocation2 + $0x20] sm:$0x7]
        %v844 = vld [vmem:[#allocation2 + $0x24] sm:$0x7]
        %855 = vrot.lane.b32.xlu0 %v835, 126
        %v856 = vpop.permute.xlu0 %855
        %857 = vrot.lane.b32.xlu0 %v836, 126
        %v858 = vpop.permute.xlu0 %857
        %859 = vrot.lane.b32.xlu0 %v837, 126
        %v860 = vpop.permute.xlu0 %859
        %861 = vrot.lane.b32.xlu0 %v838, 126
        %v862 = vpop.permute.xlu0 %861
        %863 = vrot.lane.b32.xlu0 %v839, 126
        %v864 = vpop.permute.xlu0 %863
        %865 = vrot.lane.b32.xlu0 %v840, 126
        %v866 = vpop.permute.xlu0 %865
        %867 = vrot.lane.b32.xlu0 %v841, 126
        %v868 = vpop.permute.xlu0 %867
        %869 = vrot.lane.b32.xlu0 %v842, 126
        %v870 = vpop.permute.xlu0 %869
        %871 = vrot.lane.b32.xlu0 %v843, 126
        %v872 = vpop.permute.xlu0 %871
        %873 = vrot.lane.b32.xlu0 %v844, 126
        %v874 = vpop.permute.xlu0 %873
        %885 = vst.msk [vmem:[#allocation3 + $0x6] sm:$0x7] %vm764, %v856
        %886 = vst.msk [vmem:[#allocation3 + $0x26] sm:$0x7] %vm764, %v858
        %887 = vst.msk [vmem:[#allocation3 + $0x46] sm:$0x7] %vm764, %v860
        %888 = vst.msk [vmem:[#allocation3 + $0x66] sm:$0x7] %vm764, %v862
        %889 = vst.msk [vmem:[#allocation3 + $0x86] sm:$0x7] %vm764, %v864
        %890 = vst.msk [vmem:[#allocation3 + $0xa6] sm:$0x7] %vm764, %v866
        %891 = vst.msk [vmem:[#allocation3 + $0xc6] sm:$0x7] %vm764, %v868
        %892 = vst.msk [vmem:[#allocation3 + $0xe6] sm:$0x7] %vm764, %v870
        %893 = vst.msk [vmem:[#allocation3 + $0x106] sm:$0x7] %vm764, %v872
        %894 = vst.msk [vmem:[#allocation3 + $0x126] sm:$0x7] %vm764, %v874
        %s895 = scalar_lea.vmem [#allocation2], 4
        %v896 = vld [vmem:[%s895] sm:$0x7]
        %v897 = vld [vmem:[%s895 + $0x4] sm:$0x7]
        %v898 = vld [vmem:[%s895 + $0x8] sm:$0x7]
        %v899 = vld [vmem:[%s895 + $0xc] sm:$0x7]
        %v900 = vld [vmem:[%s895 + $0x10] sm:$0x7]
        %v901 = vld [vmem:[%s895 + $0x14] sm:$0x7]
        %v902 = vld [vmem:[%s895 + $0x18] sm:$0x7]
        %v903 = vld [vmem:[%s895 + $0x1c] sm:$0x7]
        %v904 = vld [vmem:[%s895 + $0x20] sm:$0x7]
        %v905 = vld [vmem:[%s895 + $0x24] sm:$0x7]
        %906 = vst.msk [vmem:[#allocation3 + $0x9] sm:$0x7] %vm764, %v896
        %907 = vst.msk [vmem:[#allocation3 + $0x29] sm:$0x7] %vm764, %v897
        %908 = vst.msk [vmem:[#allocation3 + $0x49] sm:$0x7] %vm764, %v898
        %909 = vst.msk [vmem:[#allocation3 + $0x69] sm:$0x7] %vm764, %v899
        %910 = vst.msk [vmem:[#allocation3 + $0x89] sm:$0x7] %vm764, %v900
        %911 = vst.msk [vmem:[#allocation3 + $0xa9] sm:$0x7] %vm764, %v901
        %912 = vst.msk [vmem:[#allocation3 + $0xc9] sm:$0x7] %vm764, %v902
        %913 = vst.msk [vmem:[#allocation3 + $0xe9] sm:$0x7] %vm764, %v903
        %914 = vst.msk [vmem:[#allocation3 + $0x109] sm:$0x7] %vm764, %v904
        %915 = vst.msk [vmem:[#allocation3 + $0x129] sm:$0x7] %vm764, %v905
        %v916 = vld [vmem:[%s895] sm:$0x7]
        %v917 = vld [vmem:[%s895 + $0x4] sm:$0x7]
        %v918 = vld [vmem:[%s895 + $0x8] sm:$0x7]
        %v919 = vld [vmem:[%s895 + $0xc] sm:$0x7]
        %v920 = vld [vmem:[%s895 + $0x10] sm:$0x7]
        %v921 = vld [vmem:[%s895 + $0x14] sm:$0x7]
        %v922 = vld [vmem:[%s895 + $0x18] sm:$0x7]
        %v923 = vld [vmem:[%s895 + $0x1c] sm:$0x7]
        %v924 = vld [vmem:[%s895 + $0x20] sm:$0x7]
        %v925 = vld [vmem:[%s895 + $0x24] sm:$0x7]
        %936 = vrot.lane.b32.xlu0 %v916, 127
        %v937 = vpop.permute.xlu0 %936
        %938 = vrot.lane.b32.xlu0 %v917, 127
        %v939 = vpop.permute.xlu0 %938
        %940 = vrot.lane.b32.xlu0 %v918, 127
        %v941 = vpop.permute.xlu0 %940
        %942 = vrot.lane.b32.xlu0 %v919, 127
        %v943 = vpop.permute.xlu0 %942
        %944 = vrot.lane.b32.xlu0 %v920, 127
        %v945 = vpop.permute.xlu0 %944
        %946 = vrot.lane.b32.xlu0 %v921, 127
        %v947 = vpop.permute.xlu0 %946
        %948 = vrot.lane.b32.xlu0 %v922, 127
        %v949 = vpop.permute.xlu0 %948
        %950 = vrot.lane.b32.xlu0 %v923, 127
        %v951 = vpop.permute.xlu0 %950
        %952 = vrot.lane.b32.xlu0 %v924, 127
        %v953 = vpop.permute.xlu0 %952
        %954 = vrot.lane.b32.xlu0 %v925, 127
        %v955 = vpop.permute.xlu0 %954
        %966 = vst.msk [vmem:[#allocation3 + $0xc] sm:$0x7] %vm764, %v937
        %967 = vst.msk [vmem:[#allocation3 + $0x2c] sm:$0x7] %vm764, %v939
        %968 = vst.msk [vmem:[#allocation3 + $0x4c] sm:$0x7] %vm764, %v941
        %969 = vst.msk [vmem:[#allocation3 + $0x6c] sm:$0x7] %vm764, %v943
        %970 = vst.msk [vmem:[#allocation3 + $0x8c] sm:$0x7] %vm764, %v945
        %971 = vst.msk [vmem:[#allocation3 + $0xac] sm:$0x7] %vm764, %v947
        %972 = vst.msk [vmem:[#allocation3 + $0xcc] sm:$0x7] %vm764, %v949
        %973 = vst.msk [vmem:[#allocation3 + $0xec] sm:$0x7] %vm764, %v951
        %974 = vst.msk [vmem:[#allocation3 + $0x10c] sm:$0x7] %vm764, %v953
        %975 = vst.msk [vmem:[#allocation3 + $0x12c] sm:$0x7] %vm764, %v955
        %v976 = vld [vmem:[%s895] sm:$0x7]
        %v977 = vld [vmem:[%s895 + $0x4] sm:$0x7]
        %v978 = vld [vmem:[%s895 + $0x8] sm:$0x7]
        %v979 = vld [vmem:[%s895 + $0xc] sm:$0x7]
        %v980 = vld [vmem:[%s895 + $0x10] sm:$0x7]
        %v981 = vld [vmem:[%s895 + $0x14] sm:$0x7]
        %v982 = vld [vmem:[%s895 + $0x18] sm:$0x7]
        %v983 = vld [vmem:[%s895 + $0x1c] sm:$0x7]
        %v984 = vld [vmem:[%s895 + $0x20] sm:$0x7]
        %v985 = vld [vmem:[%s895 + $0x24] sm:$0x7]
        %996 = vrot.lane.b32.xlu0 %v976, 126
        %v997 = vpop.permute.xlu0 %996
        %998 = vrot.lane.b32.xlu0 %v977, 126
        %v999 = vpop.permute.xlu0 %998
        %1000 = vrot.lane.b32.xlu0 %v978, 126
        %v1001 = vpop.permute.xlu0 %1000
        %1002 = vrot.lane.b32.xlu0 %v979, 126
        %v1003 = vpop.permute.xlu0 %1002
        %1004 = vrot.lane.b32.xlu0 %v980, 126
        %v1005 = vpop.permute.xlu0 %1004
        %1006 = vrot.lane.b32.xlu0 %v981, 126
        %v1007 = vpop.permute.xlu0 %1006
        %1008 = vrot.lane.b32.xlu0 %v982, 126
        %v1009 = vpop.permute.xlu0 %1008
        %1010 = vrot.lane.b32.xlu0 %v983, 126
        %v1011 = vpop.permute.xlu0 %1010
        %1012 = vrot.lane.b32.xlu0 %v984, 126
        %v1013 = vpop.permute.xlu0 %1012
        %1014 = vrot.lane.b32.xlu0 %v985, 126
        %v1015 = vpop.permute.xlu0 %1014
        %1026 = vst.msk [vmem:[#allocation3 + $0xf] sm:$0x7] %vm764, %v997
        %1027 = vst.msk [vmem:[#allocation3 + $0x2f] sm:$0x7] %vm764, %v999
        %1028 = vst.msk [vmem:[#allocation3 + $0x4f] sm:$0x7] %vm764, %v1001
        %1029 = vst.msk [vmem:[#allocation3 + $0x6f] sm:$0x7] %vm764, %v1003
        %1030 = vst.msk [vmem:[#allocation3 + $0x8f] sm:$0x7] %vm764, %v1005
        %1031 = vst.msk [vmem:[#allocation3 + $0xaf] sm:$0x7] %vm764, %v1007
        %1032 = vst.msk [vmem:[#allocation3 + $0xcf] sm:$0x7] %vm764, %v1009
        %1033 = vst.msk [vmem:[#allocation3 + $0xef] sm:$0x7] %vm764, %v1011
        %1034 = vst.msk [vmem:[#allocation3 + $0x10f] sm:$0x7] %vm764, %v1013
        %1035 = vst.msk [vmem:[#allocation3 + $0x12f] sm:$0x7] %vm764, %v1015
        %v1036 = vld [vmem:[%s707] sm:$0x7]
        %v1037 = vld [vmem:[%s707 + $0x4] sm:$0x7]
        %v1038 = vld [vmem:[%s707 + $0x8] sm:$0x7]
        %v1039 = vld [vmem:[%s707 + $0xc] sm:$0x7]
        %v1040 = vld [vmem:[%s707 + $0x10] sm:$0x7]
        %v1041 = vld [vmem:[%s707 + $0x14] sm:$0x7]
        %v1042 = vld [vmem:[%s707 + $0x18] sm:$0x7]
        %v1043 = vld [vmem:[%s707 + $0x1c] sm:$0x7]
        %v1044 = vld [vmem:[%s707 + $0x20] sm:$0x7]
        %v1045 = vld [vmem:[%s707 + $0x24] sm:$0x7]
        %1046 = vst.msk [vmem:[#allocation3 + $0x12] sm:$0x7] %vm764, %v1036
        %1047 = vst.msk [vmem:[#allocation3 + $0x32] sm:$0x7] %vm764, %v1037
        %1048 = vst.msk [vmem:[#allocation3 + $0x52] sm:$0x7] %vm764, %v1038
        %1049 = vst.msk [vmem:[#allocation3 + $0x72] sm:$0x7] %vm764, %v1039
        %1050 = vst.msk [vmem:[#allocation3 + $0x92] sm:$0x7] %vm764, %v1040
        %1051 = vst.msk [vmem:[#allocation3 + $0xb2] sm:$0x7] %vm764, %v1041
        %1052 = vst.msk [vmem:[#allocation3 + $0xd2] sm:$0x7] %vm764, %v1042
        %1053 = vst.msk [vmem:[#allocation3 + $0xf2] sm:$0x7] %vm764, %v1043
        %1054 = vst.msk [vmem:[#allocation3 + $0x112] sm:$0x7] %vm764, %v1044
        %1055 = vst.msk [vmem:[#allocation3 + $0x132] sm:$0x7] %vm764, %v1045
        %v1056 = vld [vmem:[%s707] sm:$0x7]
        %v1057 = vld [vmem:[%s707 + $0x4] sm:$0x7]
        %v1058 = vld [vmem:[%s707 + $0x8] sm:$0x7]
        %v1059 = vld [vmem:[%s707 + $0xc] sm:$0x7]
        %v1060 = vld [vmem:[%s707 + $0x10] sm:$0x7]
        %v1061 = vld [vmem:[%s707 + $0x14] sm:$0x7]
        %v1062 = vld [vmem:[%s707 + $0x18] sm:$0x7]
        %v1063 = vld [vmem:[%s707 + $0x1c] sm:$0x7]
        %v1064 = vld [vmem:[%s707 + $0x20] sm:$0x7]
        %v1065 = vld [vmem:[%s707 + $0x24] sm:$0x7]
        %1076 = vrot.lane.b32.xlu0 %v1056, 127
        %v1077 = vpop.permute.xlu0 %1076
        %1078 = vrot.lane.b32.xlu0 %v1057, 127
        %v1079 = vpop.permute.xlu0 %1078
        %1080 = vrot.lane.b32.xlu0 %v1058, 127
        %v1081 = vpop.permute.xlu0 %1080
        %1082 = vrot.lane.b32.xlu0 %v1059, 127
        %v1083 = vpop.permute.xlu0 %1082
        %1084 = vrot.lane.b32.xlu0 %v1060, 127
        %v1085 = vpop.permute.xlu0 %1084
        %1086 = vrot.lane.b32.xlu0 %v1061, 127
        %v1087 = vpop.permute.xlu0 %1086
        %1088 = vrot.lane.b32.xlu0 %v1062, 127
        %v1089 = vpop.permute.xlu0 %1088
        %1090 = vrot.lane.b32.xlu0 %v1063, 127
        %v1091 = vpop.permute.xlu0 %1090
        %1092 = vrot.lane.b32.xlu0 %v1064, 127
        %v1093 = vpop.permute.xlu0 %1092
        %1094 = vrot.lane.b32.xlu0 %v1065, 127
        %v1095 = vpop.permute.xlu0 %1094
        %1106 = vst.msk [vmem:[#allocation3 + $0x15] sm:$0x7] %vm764, %v1077
        %1107 = vst.msk [vmem:[#allocation3 + $0x35] sm:$0x7] %vm764, %v1079
        %1108 = vst.msk [vmem:[#allocation3 + $0x55] sm:$0x7] %vm764, %v1081
        %1109 = vst.msk [vmem:[#allocation3 + $0x75] sm:$0x7] %vm764, %v1083
        %1110 = vst.msk [vmem:[#allocation3 + $0x95] sm:$0x7] %vm764, %v1085
        %1111 = vst.msk [vmem:[#allocation3 + $0xb5] sm:$0x7] %vm764, %v1087
        %1112 = vst.msk [vmem:[#allocation3 + $0xd5] sm:$0x7] %vm764, %v1089
        %1113 = vst.msk [vmem:[#allocation3 + $0xf5] sm:$0x7] %vm764, %v1091
        %1114 = vst.msk [vmem:[#allocation3 + $0x115] sm:$0x7] %vm764, %v1093
        %1115 = vst.msk [vmem:[#allocation3 + $0x135] sm:$0x7] %vm764, %v1095
        %v1116 = vld [vmem:[%s707] sm:$0x7]
        %v1117 = vld [vmem:[%s707 + $0x4] sm:$0x7]
        %v1118 = vld [vmem:[%s707 + $0x8] sm:$0x7]
        %v1119 = vld [vmem:[%s707 + $0xc] sm:$0x7]
        %v1120 = vld [vmem:[%s707 + $0x10] sm:$0x7]
        %v1121 = vld [vmem:[%s707 + $0x14] sm:$0x7]
        %v1122 = vld [vmem:[%s707 + $0x18] sm:$0x7]
        %v1123 = vld [vmem:[%s707 + $0x1c] sm:$0x7]
        %v1124 = vld [vmem:[%s707 + $0x20] sm:$0x7]
        %v1125 = vld [vmem:[%s707 + $0x24] sm:$0x7]
        %1136 = vrot.lane.b32.xlu0 %v1116, 126
        %v1137 = vpop.permute.xlu0 %1136
        %1138 = vrot.lane.b32.xlu0 %v1117, 126
        %v1139 = vpop.permute.xlu0 %1138
        %1140 = vrot.lane.b32.xlu0 %v1118, 126
        %v1141 = vpop.permute.xlu0 %1140
        %1142 = vrot.lane.b32.xlu0 %v1119, 126
        %v1143 = vpop.permute.xlu0 %1142
        %1144 = vrot.lane.b32.xlu0 %v1120, 126
        %v1145 = vpop.permute.xlu0 %1144
        %1146 = vrot.lane.b32.xlu0 %v1121, 126
        %v1147 = vpop.permute.xlu0 %1146
        %1148 = vrot.lane.b32.xlu0 %v1122, 126
        %v1149 = vpop.permute.xlu0 %1148
        %1150 = vrot.lane.b32.xlu0 %v1123, 126
        %v1151 = vpop.permute.xlu0 %1150
        %1152 = vrot.lane.b32.xlu0 %v1124, 126
        %v1153 = vpop.permute.xlu0 %1152
        %1154 = vrot.lane.b32.xlu0 %v1125, 126
        %v1155 = vpop.permute.xlu0 %1154
        %1166 = vst.msk [vmem:[#allocation3 + $0x18] sm:$0x7] %vm764, %v1137
        %1167 = vst.msk [vmem:[#allocation3 + $0x38] sm:$0x7] %vm764, %v1139
        %1168 = vst.msk [vmem:[#allocation3 + $0x58] sm:$0x7] %vm764, %v1141
        %1169 = vst.msk [vmem:[#allocation3 + $0x78] sm:$0x7] %vm764, %v1143
        %1170 = vst.msk [vmem:[#allocation3 + $0x98] sm:$0x7] %vm764, %v1145
        %1171 = vst.msk [vmem:[#allocation3 + $0xb8] sm:$0x7] %vm764, %v1147
        %1172 = vst.msk [vmem:[#allocation3 + $0xd8] sm:$0x7] %vm764, %v1149
        %1173 = vst.msk [vmem:[#allocation3 + $0xf8] sm:$0x7] %vm764, %v1151
        %1174 = vst.msk [vmem:[#allocation3 + $0x118] sm:$0x7] %vm764, %v1153
        %1175 = vst.msk [vmem:[#allocation3 + $0x138] sm:$0x7] %vm764, %v1155
        %v1176 = vld [vmem:[#allocation3] sm:$0xff]
        %v1177 = vld [vmem:[#allocation3 + $0x8] sm:$0xff]
        %v1178 = vld [vmem:[#allocation3 + $0x10] sm:$0xff]
        %v1179 = vld [vmem:[#allocation3 + $0x18] sm:$0x7]
        %v1180 = vld [vmem:[#allocation3 + $0x20] sm:$0xff]
        %v1181 = vld [vmem:[#allocation3 + $0x28] sm:$0xff]
        %v1182 = vld [vmem:[#allocation3 + $0x30] sm:$0xff]
        %v1183 = vld [vmem:[#allocation3 + $0x38] sm:$0x7]
        %v1184 = vld [vmem:[#allocation3 + $0x40] sm:$0xff]
        %v1185 = vld [vmem:[#allocation3 + $0x48] sm:$0xff]
        %v1186 = vld [vmem:[#allocation3 + $0x50] sm:$0xff]
        %v1187 = vld [vmem:[#allocation3 + $0x58] sm:$0x7]
        %v1188 = vld [vmem:[#allocation3 + $0x60] sm:$0xff]
        %v1189 = vld [vmem:[#allocation3 + $0x68] sm:$0xff]
        %v1190 = vld [vmem:[#allocation3 + $0x70] sm:$0xff]
        %v1191 = vld [vmem:[#allocation3 + $0x78] sm:$0x7]
        %v1192 = vld [vmem:[#allocation3 + $0x80] sm:$0xff]
        %v1193 = vld [vmem:[#allocation3 + $0x88] sm:$0xff]
        %v1194 = vld [vmem:[#allocation3 + $0x90] sm:$0xff]
        %v1195 = vld [vmem:[#allocation3 + $0x98] sm:$0x7]
        %v1196 = vld [vmem:[#allocation3 + $0xa0] sm:$0xff]
        %v1197 = vld [vmem:[#allocation3 + $0xa8] sm:$0xff]
        %v1198 = vld [vmem:[#allocation3 + $0xb0] sm:$0xff]
        %v1199 = vld [vmem:[#allocation3 + $0xb8] sm:$0x7]
        %v1200 = vld [vmem:[#allocation3 + $0xc0] sm:$0xff]
        %v1201 = vld [vmem:[#allocation3 + $0xc8] sm:$0xff]
        %v1202 = vld [vmem:[#allocation3 + $0xd0] sm:$0xff]
        %v1203 = vld [vmem:[#allocation3 + $0xd8] sm:$0x7]
        %v1204 = vld [vmem:[#allocation3 + $0xe0] sm:$0xff]
        %v1205 = vld [vmem:[#allocation3 + $0xe8] sm:$0xff]
        %v1206 = vld [vmem:[#allocation3 + $0xf0] sm:$0xff]
        %v1207 = vld [vmem:[#allocation3 + $0xf8] sm:$0x7]
        %v1208 = vld [vmem:[#allocation3 + $0x100] sm:$0xff]
        %v1209 = vld [vmem:[#allocation3 + $0x108] sm:$0xff]
        %v1210 = vld [vmem:[#allocation3 + $0x110] sm:$0xff]
        %v1211 = vld [vmem:[#allocation3 + $0x118] sm:$0x7]
        %v1212 = vld [vmem:[#allocation3 + $0x120] sm:$0xff]
        %v1213 = vld [vmem:[#allocation3 + $0x128] sm:$0xff]
        %v1214 = vld [vmem:[#allocation3 + $0x130] sm:$0xff]
        %v1215 = vld [vmem:[#allocation3 + $0x138] sm:$0x7]
        %v1216 = vpack.c.bf16 %v1177, %v1176
        %v1217 = vpack.c.bf16 %v1179, %v1178
        %v1218 = vpack.c.bf16 %v1181, %v1180
        %v1219 = vpack.c.bf16 %v1183, %v1182
        %v1220 = vpack.c.bf16 %v1185, %v1184
        %v1221 = vpack.c.bf16 %v1187, %v1186
        %v1222 = vpack.c.bf16 %v1189, %v1188
        %v1223 = vpack.c.bf16 %v1191, %v1190
        %v1224 = vpack.c.bf16 %v1193, %v1192
        %v1225 = vpack.c.bf16 %v1195, %v1194
        %v1226 = vpack.c.bf16 %v1197, %v1196
        %v1227 = vpack.c.bf16 %v1199, %v1198
        %v1228 = vpack.c.bf16 %v1201, %v1200
        %v1229 = vpack.c.bf16 %v1203, %v1202
        %v1230 = vpack.c.bf16 %v1205, %v1204
        %v1231 = vpack.c.bf16 %v1207, %v1206
        %v1232 = vpack.c.bf16 %v1209, %v1208
        %v1233 = vpack.c.bf16 %v1211, %v1210
        %v1234 = vpack.c.bf16 %v1213, %v1212
        %v1235 = vpack.c.bf16 %v1215, %v1214
        %v1236 = vld [vmem:[#allocation12] sm:$0xf]
        %v1237 = vld [vmem:[#allocation12 + $0x4] sm:$0xf]
        %v1238 = vld [vmem:[#allocation12 + $0x8] sm:$0xf]
        %v1239 = vld [vmem:[#allocation12 + $0xc] sm:$0xf]
        %v1240 = vld [vmem:[#allocation12 + $0x10] sm:$0xf]
        %v1241 = vld [vmem:[#allocation12 + $0x14] sm:$0xf]
        %v1242 = vld [vmem:[#allocation12 + $0x18] sm:$0xf]
        %v1243 = vld [vmem:[#allocation12 + $0x1c] sm:$0xf]
        %v1244 = vld [vmem:[#allocation13] sm:$0xff]
        %v1245 = vld [vmem:[#allocation13 + $0x8] sm:$0xff]
        %v1246 = vld [vmem:[#allocation13 + $0x10] sm:$0xff]
        %v1247 = vld [vmem:[#allocation13 + $0x18] sm:$0xff]
        %v1248 = vld [vmem:[#allocation13 + $0x20] sm:$0xff]
        %v1249 = vld [vmem:[#allocation13 + $0x28] sm:$0xff]
        %v1250 = vld [vmem:[#allocation13 + $0x30] sm:$0xff]
        %v1251 = vld [vmem:[#allocation13 + $0x38] sm:$0xff]
        %1253 = vset.pattern.permute.xlu0 0
        %1254 = vperm.xlu0 %1253, %v1244
        %v1255 = vpop.permute.xlu0 %1254
        %1258 = vset.pattern.permute.xlu0 0
        %1259 = vperm.xlu0 %1258, %v1245
        %v1260 = vpop.permute.xlu0 %1259
        %1263 = vset.pattern.permute.xlu0 0
        %1264 = vperm.xlu0 %1263, %v1246
        %v1265 = vpop.permute.xlu0 %1264
        %1268 = vset.pattern.permute.xlu0 0
        %1269 = vperm.xlu0 %1268, %v1247
        %v1270 = vpop.permute.xlu0 %1269
        %1273 = vset.pattern.permute.xlu0 0
        %1274 = vperm.xlu0 %1273, %v1248
        %v1275 = vpop.permute.xlu0 %1274
        %1278 = vset.pattern.permute.xlu0 0
        %1279 = vperm.xlu0 %1278, %v1249
        %v1280 = vpop.permute.xlu0 %1279
        %1283 = vset.pattern.permute.xlu0 0
        %1284 = vperm.xlu0 %1283, %v1250
        %v1285 = vpop.permute.xlu0 %1284
        %1288 = vset.pattern.permute.xlu0 0
        %1289 = vperm.xlu0 %1288, %v1251
        %v1290 = vpop.permute.xlu0 %1289
        %v1300 = vunpack.c.l.b16 %v1236
        %v1301 = vunpack.c.l.b16 %v1237
        %v1302 = vunpack.c.l.b16 %v1238
        %v1303 = vunpack.c.l.b16 %v1239
        %v1304 = vunpack.c.l.b16 %v1240
        %v1305 = vunpack.c.l.b16 %v1241
        %v1306 = vunpack.c.l.b16 %v1242
        %v1307 = vunpack.c.l.b16 %v1243
        %v1308 = vpack.c.b16 %v1301, %v1300
        %v1309 = vpack.c.b16 %v1303, %v1302
        %v1310 = vpack.c.b16 %v1305, %v1304
        %v1311 = vpack.c.b16 %v1307, %v1306
        %vm1312 = vcmask 220160
        %v1314 = vsel %vm1312, %v1308, 0
        %v1317 = vsel %vm1312, %v1309, 0
        %v1320 = vsel %vm1312, %v1310, 0
        %v1323 = vsel %vm1312, %v1311, 0
        %vm1325 = vcmask 1044480
        %vm1326 = vcmask 1045504
        %v1327 = vsel %vm1325, 4294967295, 65535
        %v1328 = vsel %vm1326, %v1327, 0
        %v1330 = vand.u32 %v1217, %v1328
        %1332 = vmatprep.subr.bf16.mxu0 0
        %1333 = vmatpush1.bf16.msra.mxu0 %v1216
        %1334 = vmatprep.subr.bf16.mxu0 0
        %1335 = vmatpush1.bf16.msra.mxu0 %v1330
        %1336 = vmatprep.subr.bf16.mxu0 0
        %1337 = vmatpush1.bf16.msra.mxu0 0
        %1338 = vmatprep.subr.bf16.mxu0 0
        %1339 = vmatpush1.bf16.msra.mxu0 0
        %1340 = vmatprep.subr.bf16.mxu0 0
        %1341 = vmatpush1.bf16.msra.mxu0 0
        %1342 = vmatprep.subr.bf16.mxu0 0
        %1343 = vmatpush1.bf16.msra.mxu0 0
        %1344 = vmatprep.subr.bf16.mxu0 0
        %1345 = vmatpush1.bf16.msra.mxu0 0
        %1346 = vmatprep.subr.bf16.mxu0 0
        %1347 = vmatpush1.bf16.msra.mxu0 0
        %1348 = vmatprep.subr.bf16.mxu0 0
        %1349 = vmatpush1.bf16.msra.mxu0 0
        %1350 = vmatprep.subr.bf16.mxu0 0
        %1351 = vmatpush1.bf16.msra.mxu0 0
        %1352 = vmatprep.subr.bf16.mxu0 0
        %1353 = vmatpush1.bf16.msra.mxu0 0
        %1354 = vmatprep.subr.bf16.mxu0 0
        %1355 = vmatpush1.bf16.msra.mxu0 0
        %1356 = vmatprep.subr.bf16.mxu0 0
        %1357 = vmatpush1.bf16.msra.mxu0 0
        %1358 = vmatprep.subr.bf16.mxu0 0
        %1359 = vmatpush1.bf16.msra.mxu0 0
        %1360 = vmatprep.subr.bf16.mxu0 0
        %1361 = vmatpush1.bf16.msra.mxu0 0
        %1362 = vmatprep.subr.bf16.mxu0 0
        %1363 = vmatpush1.bf16.msra.mxu0 0
        %1364 = vmatprep.mubr.bf16.mxu0 0
        %1365 = vmatmul.mubr.bf16.gmra.mrb[0].mxu0 %v1314
        %v1366 = vpop.f32.mrb[0].mxu0
        %v1367 = vadd.f32 %v1255, %v1366
        %v1368 = vpop.f32.mrb[0].mxu0
        %v1369 = vpop.f32.mrb[0].mxu0
        %v1370 = vadd.f32 %v1260, %v1369
        %v1371 = vpop.f32.mrb[0].mxu0
        %1372 = vmatprep.mubr.bf16.mxu0 0
        %1373 = vmatmul.mubr.bf16.gmra.mrb[0].mxu0 %v1317
        %v1374 = vpop.f32.mrb[0].mxu0
        %v1375 = vadd.f32 %v1265, %v1374
        %v1376 = vpop.f32.mrb[0].mxu0
        %v1377 = vpop.f32.mrb[0].mxu0
        %v1378 = vadd.f32 %v1270, %v1377
        %v1379 = vpop.f32.mrb[0].mxu0
        %1380 = vmatprep.mubr.bf16.mxu0 0
        %1381 = vmatmul.mubr.bf16.gmra.mrb[0].mxu0 %v1320
        %v1382 = vpop.f32.mrb[0].mxu0
        %v1383 = vadd.f32 %v1275, %v1382
        %v1384 = vpop.f32.mrb[0].mxu0
        %v1385 = vpop.f32.mrb[0].mxu0
        %v1386 = vadd.f32 %v1280, %v1385
        %v1387 = vpop.f32.mrb[0].mxu0
        %1388 = vmatprep.mubr.bf16.mxu0 0
        %1389 = vmatmul.mubr.bf16.gmra.mrb[0].mxu0 %v1323
        %v1390 = vpop.f32.mrb[0].mxu0
        %v1391 = vadd.f32 %v1285, %v1390
        %v1392 = vpop.f32.mrb[0].mxu0
        %v1393 = vpop.f32.mrb[0].mxu0
        %v1394 = vadd.f32 %v1290, %v1393
        %v1395 = vpop.f32.mrb[0].mxu0
        %1396 = vdwg.mxu0
        %v1398 = vand.u32 %v1219, %v1328
        %1400 = vmatprep.subr.bf16.mxu0 0
        %1401 = vmatpush1.bf16.msra.mxu0 %v1218
        %1402 = vmatprep.subr.bf16.mxu0 0
        %1403 = vmatpush1.bf16.msra.mxu0 %v1398
        %1404 = vmatprep.subr.bf16.mxu0 0
        %1405 = vmatpush1.bf16.msra.mxu0 0
        %1406 = vmatprep.subr.bf16.mxu0 0
        %1407 = vmatpush1.bf16.msra.mxu0 0
        %1408 = vmatprep.subr.bf16.mxu0 0
        %1409 = vmatpush1.bf16.msra.mxu0 0
        %1410 = vmatprep.subr.bf16.mxu0 0
        %1411 = vmatpush1.bf16.msra.mxu0 0
        %1412 = vmatprep.subr.bf16.mxu0 0
        %1413 = vmatpush1.bf16.msra.mxu0 0
        %1414 = vmatprep.subr.bf16.mxu0 0
        %1415 = vmatpush1.bf16.msra.mxu0 0
        %1416 = vmatprep.subr.bf16.mxu0 0
        %1417 = vmatpush1.bf16.msra.mxu0 0
        %1418 = vmatprep.subr.bf16.mxu0 0
        %1419 = vmatpush1.bf16.msra.mxu0 0
        %1420 = vmatprep.subr.bf16.mxu0 0
        %1421 = vmatpush1.bf16.msra.mxu0 0
        %1422 = vmatprep.subr.bf16.mxu0 0
        %1423 = vmatpush1.bf16.msra.mxu0 0
        %1424 = vmatprep.subr.bf16.mxu0 0
        %1425 = vmatpush1.bf16.msra.mxu0 0
        %1426 = vmatprep.subr.bf16.mxu0 0
        %1427 = vmatpush1.bf16.msra.mxu0 0
        %1428 = vmatprep.subr.bf16.mxu0 0
        %1429 = vmatpush1.bf16.msra.mxu0 0
        %1430 = vmatprep.subr.bf16.mxu0 0
        %1431 = vmatpush1.bf16.msra.mxu0 0
        %1432 = vmatprep.mubr.bf16.mxu0 0
        %1433 = vmatmul.mubr.bf16.gmra.mrb[0].mxu0 %v1314
        %v1434 = vpop.f32.mrb[0].mxu0
        %v1435 = vadd.f32 %v1255, %v1434
        %v1436 = vpop.f32.mrb[0].mxu0
        %v1437 = vpop.f32.mrb[0].mxu0
        %v1438 = vadd.f32 %v1260, %v1437
        %v1439 = vpop.f32.mrb[0].mxu0
        %1440 = vmatprep.mubr.bf16.mxu0 0
        %1441 = vmatmul.mubr.bf16.gmra.mrb[0].mxu0 %v1317
        %v1442 = vpop.f32.mrb[0].mxu0
        %v1443 = vadd.f32 %v1265, %v1442
        %v1444 = vpop.f32.mrb[0].mxu0
        %v1445 = vpop.f32.mrb[0].mxu0
        %v1446 = vadd.f32 %v1270, %v1445
        %v1447 = vpop.f32.mrb[0].mxu0
        %1448 = vmatprep.mubr.bf16.mxu0 0
        %1449 = vmatmul.mubr.bf16.gmra.mrb[0].mxu0 %v1320
        %v1450 = vpop.f32.mrb[0].mxu0
        %v1451 = vadd.f32 %v1275, %v1450
        %v1452 = vpop.f32.mrb[0].mxu0
        %v1453 = vpop.f32.mrb[0].mxu0
        %v1454 = vadd.f32 %v1280, %v1453
        %v1455 = vpop.f32.mrb[0].mxu0
        %1456 = vmatprep.mubr.bf16.mxu0 0
        %1457 = vmatmul.mubr.bf16.gmra.mrb[0].mxu0 %v1323
        %v1458 = vpop.f32.mrb[0].mxu0
        %v1459 = vadd.f32 %v1285, %v1458
        %v1460 = vpop.f32.mrb[0].mxu0
        %v1461 = vpop.f32.mrb[0].mxu0
        %v1462 = vadd.f32 %v1290, %v1461
        %v1463 = vpop.f32.mrb[0].mxu0
        %1464 = vdwg.mxu0
        %v1466 = vand.u32 %v1221, %v1328
        %1468 = vmatprep.subr.bf16.mxu0 0
        %1469 = vmatpush1.bf16.msra.mxu0 %v1220
        %1470 = vmatprep.subr.bf16.mxu0 0
        %1471 = vmatpush1.bf16.msra.mxu0 %v1466
        %1472 = vmatprep.subr.bf16.mxu0 0
        %1473 = vmatpush1.bf16.msra.mxu0 0
        %1474 = vmatprep.subr.bf16.mxu0 0
        %1475 = vmatpush1.bf16.msra.mxu0 0
        %1476 = vmatprep.subr.bf16.mxu0 0
        %1477 = vmatpush1.bf16.msra.mxu0 0
        %1478 = vmatprep.subr.bf16.mxu0 0
        %1479 = vmatpush1.bf16.msra.mxu0 0
        %1480 = vmatprep.subr.bf16.mxu0 0
        %1481 = vmatpush1.bf16.msra.mxu0 0
        %1482 = vmatprep.subr.bf16.mxu0 0
        %1483 = vmatpush1.bf16.msra.mxu0 0
        %1484 = vmatprep.subr.bf16.mxu0 0
        %1485 = vmatpush1.bf16.msra.mxu0 0
        %1486 = vmatprep.subr.bf16.mxu0 0
        %1487 = vmatpush1.bf16.msra.mxu0 0
        %1488 = vmatprep.subr.bf16.mxu0 0
        %1489 = vmatpush1.bf16.msra.mxu0 0
        %1490 = vmatprep.subr.bf16.mxu0 0
        %1491 = vmatpush1.bf16.msra.mxu0 0
        %1492 = vmatprep.subr.bf16.mxu0 0
        %1493 = vmatpush1.bf16.msra.mxu0 0
        %1494 = vmatprep.subr.bf16.mxu0 0
        %1495 = vmatpush1.bf16.msra.mxu0 0
        %1496 = vmatprep.subr.bf16.mxu0 0
        %1497 = vmatpush1.bf16.msra.mxu0 0
        %1498 = vmatprep.subr.bf16.mxu0 0
        %1499 = vmatpush1.bf16.msra.mxu0 0
        %1500 = vmatprep.mubr.bf16.mxu0 0
        %1501 = vmatmul.mubr.bf16.gmra.mrb[0].mxu0 %v1314
        %v1502 = vpop.f32.mrb[0].mxu0
        %v1503 = vadd.f32 %v1255, %v1502
        %v1504 = vpop.f32.mrb[0].mxu0
        %v1505 = vpop.f32.mrb[0].mxu0
        %v1506 = vadd.f32 %v1260, %v1505
        %v1507 = vpop.f32.mrb[0].mxu0
        %1508 = vmatprep.mubr.bf16.mxu0 0
        %1509 = vmatmul.mubr.bf16.gmra.mrb[0].mxu0 %v1317
        %v1510 = vpop.f32.mrb[0].mxu0
        %v1511 = vadd.f32 %v1265, %v1510
        %v1512 = vpop.f32.mrb[0].mxu0
        %v1513 = vpop.f32.mrb[0].mxu0
        %v1514 = vadd.f32 %v1270, %v1513
        %v1515 = vpop.f32.mrb[0].mxu0
        %1516 = vmatprep.mubr.bf16.mxu0 0
        %1517 = vmatmul.mubr.bf16.gmra.mrb[0].mxu0 %v1320
        %v1518 = vpop.f32.mrb[0].mxu0
        %v1519 = vadd.f32 %v1275, %v1518
        %v1520 = vpop.f32.mrb[0].mxu0
        %v1521 = vpop.f32.mrb[0].mxu0
        %v1522 = vadd.f32 %v1280, %v1521
        %v1523 = vpop.f32.mrb[0].mxu0
        %1524 = vmatprep.mubr.bf16.mxu0 0
        %1525 = vmatmul.mubr.bf16.gmra.mrb[0].mxu0 %v1323
        %v1526 = vpop.f32.mrb[0].mxu0
        %v1527 = vadd.f32 %v1285, %v1526
        %v1528 = vpop.f32.mrb[0].mxu0
        %v1529 = vpop.f32.mrb[0].mxu0
        %v1530 = vadd.f32 %v1290, %v1529
        %v1531 = vpop.f32.mrb[0].mxu0
        %1532 = vdwg.mxu0
        %v1534 = vand.u32 %v1223, %v1328
        %1536 = vmatprep.subr.bf16.mxu0 0
        %1537 = vmatpush1.bf16.msra.mxu0 %v1222
        %1538 = vmatprep.subr.bf16.mxu0 0
        %1539 = vmatpush1.bf16.msra.mxu0 %v1534
        %1540 = vmatprep.subr.bf16.mxu0 0
        %1541 = vmatpush1.bf16.msra.mxu0 0
        %1542 = vmatprep.subr.bf16.mxu0 0
        %1543 = vmatpush1.bf16.msra.mxu0 0
        %1544 = vmatprep.subr.bf16.mxu0 0
        %1545 = vmatpush1.bf16.msra.mxu0 0
        %1546 = vmatprep.subr.bf16.mxu0 0
        %1547 = vmatpush1.bf16.msra.mxu0 0
        %1548 = vmatprep.subr.bf16.mxu0 0
        %1549 = vmatpush1.bf16.msra.mxu0 0
        %1550 = vmatprep.subr.bf16.mxu0 0
        %1551 = vmatpush1.bf16.msra.mxu0 0
        %1552 = vmatprep.subr.bf16.mxu0 0
        %1553 = vmatpush1.bf16.msra.mxu0 0
        %1554 = vmatprep.subr.bf16.mxu0 0
        %1555 = vmatpush1.bf16.msra.mxu0 0
        %1556 = vmatprep.subr.bf16.mxu0 0
        %1557 = vmatpush1.bf16.msra.mxu0 0
        %1558 = vmatprep.subr.bf16.mxu0 0
        %1559 = vmatpush1.bf16.msra.mxu0 0
        %1560 = vmatprep.subr.bf16.mxu0 0
        %1561 = vmatpush1.bf16.msra.mxu0 0
        %1562 = vmatprep.subr.bf16.mxu0 0
        %1563 = vmatpush1.bf16.msra.mxu0 0
        %1564 = vmatprep.subr.bf16.mxu0 0
        %1565 = vmatpush1.bf16.msra.mxu0 0
        %1566 = vmatprep.subr.bf16.mxu0 0
        %1567 = vmatpush1.bf16.msra.mxu0 0
        %1568 = vmatprep.mubr.bf16.mxu0 0
        %1569 = vmatmul.mubr.bf16.gmra.mrb[0].mxu0 %v1314
        %v1570 = vpop.f32.mrb[0].mxu0
        %v1571 = vadd.f32 %v1255, %v1570
        %v1572 = vpop.f32.mrb[0].mxu0
        %v1573 = vpop.f32.mrb[0].mxu0
        %v1574 = vadd.f32 %v1260, %v1573
        %v1575 = vpop.f32.mrb[0].mxu0
        %1576 = vmatprep.mubr.bf16.mxu0 0
        %1577 = vmatmul.mubr.bf16.gmra.mrb[0].mxu0 %v1317
        %v1578 = vpop.f32.mrb[0].mxu0
        %v1579 = vadd.f32 %v1265, %v1578
        %v1580 = vpop.f32.mrb[0].mxu0
        %v1581 = vpop.f32.mrb[0].mxu0
        %v1582 = vadd.f32 %v1270, %v1581
        %v1583 = vpop.f32.mrb[0].mxu0
        %1584 = vmatprep.mubr.bf16.mxu0 0
        %1585 = vmatmul.mubr.bf16.gmra.mrb[0].mxu0 %v1320
        %v1586 = vpop.f32.mrb[0].mxu0
        %v1587 = vadd.f32 %v1275, %v1586
        %v1588 = vpop.f32.mrb[0].mxu0
        %v1589 = vpop.f32.mrb[0].mxu0
        %v1590 = vadd.f32 %v1280, %v1589
        %v1591 = vpop.f32.mrb[0].mxu0
        %1592 = vmatprep.mubr.bf16.mxu0 0
        %1593 = vmatmul.mubr.bf16.gmra.mrb[0].mxu0 %v1323
        %v1594 = vpop.f32.mrb[0].mxu0
        %v1595 = vadd.f32 %v1285, %v1594
        %v1596 = vpop.f32.mrb[0].mxu0
        %v1597 = vpop.f32.mrb[0].mxu0
        %v1598 = vadd.f32 %v1290, %v1597
        %v1599 = vpop.f32.mrb[0].mxu0
        %1600 = vdwg.mxu0
        %v1602 = vand.u32 %v1225, %v1328
        %1604 = vmatprep.subr.bf16.mxu0 0
        %1605 = vmatpush1.bf16.msra.mxu0 %v1224
        %1606 = vmatprep.subr.bf16.mxu0 0
        %1607 = vmatpush1.bf16.msra.mxu0 %v1602
        %1608 = vmatprep.subr.bf16.mxu0 0
        %1609 = vmatpush1.bf16.msra.mxu0 0
        %1610 = vmatprep.subr.bf16.mxu0 0
        %1611 = vmatpush1.bf16.msra.mxu0 0
        %1612 = vmatprep.subr.bf16.mxu0 0
        %1613 = vmatpush1.bf16.msra.mxu0 0
        %1614 = vmatprep.subr.bf16.mxu0 0
        %1615 = vmatpush1.bf16.msra.mxu0 0
        %1616 = vmatprep.subr.bf16.mxu0 0
        %1617 = vmatpush1.bf16.msra.mxu0 0
        %1618 = vmatprep.subr.bf16.mxu0 0
        %1619 = vmatpush1.bf16.msra.mxu0 0
        %1620 = vmatprep.subr.bf16.mxu0 0
        %1621 = vmatpush1.bf16.msra.mxu0 0
        %1622 = vmatprep.subr.bf16.mxu0 0
        %1623 = vmatpush1.bf16.msra.mxu0 0
        %1624 = vmatprep.subr.bf16.mxu0 0
        %1625 = vmatpush1.bf16.msra.mxu0 0
        %1626 = vmatprep.subr.bf16.mxu0 0
        %1627 = vmatpush1.bf16.msra.mxu0 0
        %1628 = vmatprep.subr.bf16.mxu0 0
        %1629 = vmatpush1.bf16.msra.mxu0 0
        %1630 = vmatprep.subr.bf16.mxu0 0
        %1631 = vmatpush1.bf16.msra.mxu0 0
        %1632 = vmatprep.subr.bf16.mxu0 0
        %1633 = vmatpush1.bf16.msra.mxu0 0
        %1634 = vmatprep.subr.bf16.mxu0 0
        %1635 = vmatpush1.bf16.msra.mxu0 0
        %1636 = vmatprep.mubr.bf16.mxu0 0
        %1637 = vmatmul.mubr.bf16.gmra.mrb[0].mxu0 %v1314
        %v1638 = vpop.f32.mrb[0].mxu0
        %v1639 = vadd.f32 %v1255, %v1638
        %v1640 = vpop.f32.mrb[0].mxu0
        %v1641 = vpop.f32.mrb[0].mxu0
        %v1642 = vadd.f32 %v1260, %v1641
        %v1643 = vpop.f32.mrb[0].mxu0
        %1644 = vmatprep.mubr.bf16.mxu0 0
        %1645 = vmatmul.mubr.bf16.gmra.mrb[0].mxu0 %v1317
        %v1646 = vpop.f32.mrb[0].mxu0
        %v1647 = vadd.f32 %v1265, %v1646
        %v1648 = vpop.f32.mrb[0].mxu0
        %v1649 = vpop.f32.mrb[0].mxu0
        %v1650 = vadd.f32 %v1270, %v1649
        %v1651 = vpop.f32.mrb[0].mxu0
        %1652 = vmatprep.mubr.bf16.mxu0 0
        %1653 = vmatmul.mubr.bf16.gmra.mrb[0].mxu0 %v1320
        %v1654 = vpop.f32.mrb[0].mxu0
        %v1655 = vadd.f32 %v1275, %v1654
        %v1656 = vpop.f32.mrb[0].mxu0
        %v1657 = vpop.f32.mrb[0].mxu0
        %v1658 = vadd.f32 %v1280, %v1657
        %v1659 = vpop.f32.mrb[0].mxu0
        %1660 = vmatprep.mubr.bf16.mxu0 0
        %1661 = vmatmul.mubr.bf16.gmra.mrb[0].mxu0 %v1323
        %v1662 = vpop.f32.mrb[0].mxu0
        %v1663 = vadd.f32 %v1285, %v1662
        %v1664 = vpop.f32.mrb[0].mxu0
        %v1665 = vpop.f32.mrb[0].mxu0
        %v1666 = vadd.f32 %v1290, %v1665
        %v1667 = vpop.f32.mrb[0].mxu0
        %1668 = vdwg.mxu0
        %v1670 = vand.u32 %v1227, %v1328
        %1672 = vmatprep.subr.bf16.mxu0 0
        %1673 = vmatpush1.bf16.msra.mxu0 %v1226
        %1674 = vmatprep.subr.bf16.mxu0 0
        %1675 = vmatpush1.bf16.msra.mxu0 %v1670
        %1676 = vmatprep.subr.bf16.mxu0 0
        %1677 = vmatpush1.bf16.msra.mxu0 0
        %1678 = vmatprep.subr.bf16.mxu0 0
        %1679 = vmatpush1.bf16.msra.mxu0 0
        %1680 = vmatprep.subr.bf16.mxu0 0
        %1681 = vmatpush1.bf16.msra.mxu0 0
        %1682 = vmatprep.subr.bf16.mxu0 0
        %1683 = vmatpush1.bf16.msra.mxu0 0
        %1684 = vmatprep.subr.bf16.mxu0 0
        %1685 = vmatpush1.bf16.msra.mxu0 0
        %1686 = vmatprep.subr.bf16.mxu0 0
        %1687 = vmatpush1.bf16.msra.mxu0 0
        %1688 = vmatprep.subr.bf16.mxu0 0
        %1689 = vmatpush1.bf16.msra.mxu0 0
        %1690 = vmatprep.subr.bf16.mxu0 0
        %1691 = vmatpush1.bf16.msra.mxu0 0
        %1692 = vmatprep.subr.bf16.mxu0 0
        %1693 = vmatpush1.bf16.msra.mxu0 0
        %1694 = vmatprep.subr.bf16.mxu0 0
        %1695 = vmatpush1.bf16.msra.mxu0 0
        %1696 = vmatprep.subr.bf16.mxu0 0
        %1697 = vmatpush1.bf16.msra.mxu0 0
        %1698 = vmatprep.subr.bf16.mxu0 0
        %1699 = vmatpush1.bf16.msra.mxu0 0
        %1700 = vmatprep.subr.bf16.mxu0 0
        %1701 = vmatpush1.bf16.msra.mxu0 0
        %1702 = vmatprep.subr.bf16.mxu0 0
        %1703 = vmatpush1.bf16.msra.mxu0 0
        %1704 = vmatprep.mubr.bf16.mxu0 0
        %1705 = vmatmul.mubr.bf16.gmra.mrb[0].mxu0 %v1314
        %v1706 = vpop.f32.mrb[0].mxu0
        %v1707 = vadd.f32 %v1255, %v1706
        %v1708 = vpop.f32.mrb[0].mxu0
        %v1709 = vpop.f32.mrb[0].mxu0
        %v1710 = vadd.f32 %v1260, %v1709
        %v1711 = vpop.f32.mrb[0].mxu0
        %1712 = vmatprep.mubr.bf16.mxu0 0
        %1713 = vmatmul.mubr.bf16.gmra.mrb[0].mxu0 %v1317
        %v1714 = vpop.f32.mrb[0].mxu0
        %v1715 = vadd.f32 %v1265, %v1714
        %v1716 = vpop.f32.mrb[0].mxu0
        %v1717 = vpop.f32.mrb[0].mxu0
        %v1718 = vadd.f32 %v1270, %v1717
        %v1719 = vpop.f32.mrb[0].mxu0
        %1720 = vmatprep.mubr.bf16.mxu0 0
        %1721 = vmatmul.mubr.bf16.gmra.mrb[0].mxu0 %v1320
        %v1722 = vpop.f32.mrb[0].mxu0
        %v1723 = vadd.f32 %v1275, %v1722
        %v1724 = vpop.f32.mrb[0].mxu0
        %v1725 = vpop.f32.mrb[0].mxu0
        %v1726 = vadd.f32 %v1280, %v1725
        %v1727 = vpop.f32.mrb[0].mxu0
        %1728 = vmatprep.mubr.bf16.mxu0 0
        %1729 = vmatmul.mubr.bf16.gmra.mrb[0].mxu0 %v1323
        %v1730 = vpop.f32.mrb[0].mxu0
        %v1731 = vadd.f32 %v1285, %v1730
        %v1732 = vpop.f32.mrb[0].mxu0
        %v1733 = vpop.f32.mrb[0].mxu0
        %v1734 = vadd.f32 %v1290, %v1733
        %v1735 = vpop.f32.mrb[0].mxu0
        %1736 = vdwg.mxu0
        %v1738 = vand.u32 %v1229, %v1328
        %1740 = vmatprep.subr.bf16.mxu0 0
        %1741 = vmatpush1.bf16.msra.mxu0 %v1228
        %1742 = vmatprep.subr.bf16.mxu0 0
        %1743 = vmatpush1.bf16.msra.mxu0 %v1738
        %1744 = vmatprep.subr.bf16.mxu0 0
        %1745 = vmatpush1.bf16.msra.mxu0 0
        %1746 = vmatprep.subr.bf16.mxu0 0
        %1747 = vmatpush1.bf16.msra.mxu0 0
        %1748 = vmatprep.subr.bf16.mxu0 0
        %1749 = vmatpush1.bf16.msra.mxu0 0
        %1750 = vmatprep.subr.bf16.mxu0 0
        %1751 = vmatpush1.bf16.msra.mxu0 0
        %1752 = vmatprep.subr.bf16.mxu0 0
        %1753 = vmatpush1.bf16.msra.mxu0 0
        %1754 = vmatprep.subr.bf16.mxu0 0
        %1755 = vmatpush1.bf16.msra.mxu0 0
        %1756 = vmatprep.subr.bf16.mxu0 0
        %1757 = vmatpush1.bf16.msra.mxu0 0
        %1758 = vmatprep.subr.bf16.mxu0 0
        %1759 = vmatpush1.bf16.msra.mxu0 0
        %1760 = vmatprep.subr.bf16.mxu0 0
        %1761 = vmatpush1.bf16.msra.mxu0 0
        %1762 = vmatprep.subr.bf16.mxu0 0
        %1763 = vmatpush1.bf16.msra.mxu0 0
        %1764 = vmatprep.subr.bf16.mxu0 0
        %1765 = vmatpush1.bf16.msra.mxu0 0
        %1766 = vmatprep.subr.bf16.mxu0 0
        %1767 = vmatpush1.bf16.msra.mxu0 0
        %1768 = vmatprep.subr.bf16.mxu0 0
        %1769 = vmatpush1.bf16.msra.mxu0 0
        %1770 = vmatprep.subr.bf16.mxu0 0
        %1771 = vmatpush1.bf16.msra.mxu0 0
        %1772 = vmatprep.mubr.bf16.mxu0 0
        %1773 = vmatmul.mubr.bf16.gmra.mrb[0].mxu0 %v1314
        %v1774 = vpop.f32.mrb[0].mxu0
        %v1775 = vadd.f32 %v1255, %v1774
        %v1776 = vpop.f32.mrb[0].mxu0
        %v1777 = vpop.f32.mrb[0].mxu0
        %v1778 = vadd.f32 %v1260, %v1777
        %v1779 = vpop.f32.mrb[0].mxu0
        %1780 = vmatprep.mubr.bf16.mxu0 0
        %1781 = vmatmul.mubr.bf16.gmra.mrb[0].mxu0 %v1317
        %v1782 = vpop.f32.mrb[0].mxu0
        %v1783 = vadd.f32 %v1265, %v1782
        %v1784 = vpop.f32.mrb[0].mxu0
        %v1785 = vpop.f32.mrb[0].mxu0
        %v1786 = vadd.f32 %v1270, %v1785
        %v1787 = vpop.f32.mrb[0].mxu0
        %1788 = vmatprep.mubr.bf16.mxu0 0
        %1789 = vmatmul.mubr.bf16.gmra.mrb[0].mxu0 %v1320
        %v1790 = vpop.f32.mrb[0].mxu0
        %v1791 = vadd.f32 %v1275, %v1790
        %v1792 = vpop.f32.mrb[0].mxu0
        %v1793 = vpop.f32.mrb[0].mxu0
        %v1794 = vadd.f32 %v1280, %v1793
        %v1795 = vpop.f32.mrb[0].mxu0
        %1796 = vmatprep.mubr.bf16.mxu0 0
        %1797 = vmatmul.mubr.bf16.gmra.mrb[0].mxu0 %v1323
        %v1798 = vpop.f32.mrb[0].mxu0
        %v1799 = vadd.f32 %v1285, %v1798
        %v1800 = vpop.f32.mrb[0].mxu0
        %v1801 = vpop.f32.mrb[0].mxu0
        %v1802 = vadd.f32 %v1290, %v1801
        %v1803 = vpop.f32.mrb[0].mxu0
        %1804 = vdwg.mxu0
        %v1806 = vand.u32 %v1231, %v1328
        %1808 = vmatprep.subr.bf16.mxu0 0
        %1809 = vmatpush1.bf16.msra.mxu0 %v1230
        %1810 = vmatprep.subr.bf16.mxu0 0
        %1811 = vmatpush1.bf16.msra.mxu0 %v1806
        %1812 = vmatprep.subr.bf16.mxu0 0
        %1813 = vmatpush1.bf16.msra.mxu0 0
        %1814 = vmatprep.subr.bf16.mxu0 0
        %1815 = vmatpush1.bf16.msra.mxu0 0
        %1816 = vmatprep.subr.bf16.mxu0 0
        %1817 = vmatpush1.bf16.msra.mxu0 0
        %1818 = vmatprep.subr.bf16.mxu0 0
        %1819 = vmatpush1.bf16.msra.mxu0 0
        %1820 = vmatprep.subr.bf16.mxu0 0
        %1821 = vmatpush1.bf16.msra.mxu0 0
        %1822 = vmatprep.subr.bf16.mxu0 0
        %1823 = vmatpush1.bf16.msra.mxu0 0
        %1824 = vmatprep.subr.bf16.mxu0 0
        %1825 = vmatpush1.bf16.msra.mxu0 0
        %1826 = vmatprep.subr.bf16.mxu0 0
        %1827 = vmatpush1.bf16.msra.mxu0 0
        %1828 = vmatprep.subr.bf16.mxu0 0
        %1829 = vmatpush1.bf16.msra.mxu0 0
        %1830 = vmatprep.subr.bf16.mxu0 0
        %1831 = vmatpush1.bf16.msra.mxu0 0
        %1832 = vmatprep.subr.bf16.mxu0 0
        %1833 = vmatpush1.bf16.msra.mxu0 0
        %1834 = vmatprep.subr.bf16.mxu0 0
        %1835 = vmatpush1.bf16.msra.mxu0 0
        %1836 = vmatprep.subr.bf16.mxu0 0
        %1837 = vmatpush1.bf16.msra.mxu0 0
        %1838 = vmatprep.subr.bf16.mxu0 0
        %1839 = vmatpush1.bf16.msra.mxu0 0
        %1840 = vmatprep.mubr.bf16.mxu0 0
        %1841 = vmatmul.mubr.bf16.gmra.mrb[0].mxu0 %v1314
        %v1842 = vpop.f32.mrb[0].mxu0
        %v1843 = vadd.f32 %v1255, %v1842
        %v1844 = vpop.f32.mrb[0].mxu0
        %v1845 = vpop.f32.mrb[0].mxu0
        %v1846 = vadd.f32 %v1260, %v1845
        %v1847 = vpop.f32.mrb[0].mxu0
        %1848 = vmatprep.mubr.bf16.mxu0 0
        %1849 = vmatmul.mubr.bf16.gmra.mrb[0].mxu0 %v1317
        %v1850 = vpop.f32.mrb[0].mxu0
        %v1851 = vadd.f32 %v1265, %v1850
        %v1852 = vpop.f32.mrb[0].mxu0
        %v1853 = vpop.f32.mrb[0].mxu0
        %v1854 = vadd.f32 %v1270, %v1853
        %v1855 = vpop.f32.mrb[0].mxu0
        %1856 = vmatprep.mubr.bf16.mxu0 0
        %1857 = vmatmul.mubr.bf16.gmra.mrb[0].mxu0 %v1320
        %v1858 = vpop.f32.mrb[0].mxu0
        %v1859 = vadd.f32 %v1275, %v1858
        %v1860 = vpop.f32.mrb[0].mxu0
        %v1861 = vpop.f32.mrb[0].mxu0
        %v1862 = vadd.f32 %v1280, %v1861
        %v1863 = vpop.f32.mrb[0].mxu0
        %1864 = vmatprep.mubr.bf16.mxu0 0
        %1865 = vmatmul.mubr.bf16.gmra.mrb[0].mxu0 %v1323
        %v1866 = vpop.f32.mrb[0].mxu0
        %v1867 = vadd.f32 %v1285, %v1866
        %v1868 = vpop.f32.mrb[0].mxu0
        %v1869 = vpop.f32.mrb[0].mxu0
        %v1870 = vadd.f32 %v1290, %v1869
        %v1871 = vpop.f32.mrb[0].mxu0
        %1872 = vdwg.mxu0
        %v1874 = vand.u32 %v1233, %v1328
        %1876 = vmatprep.subr.bf16.mxu0 0
        %1877 = vmatpush1.bf16.msra.mxu0 %v1232
        %1878 = vmatprep.subr.bf16.mxu0 0
        %1879 = vmatpush1.bf16.msra.mxu0 %v1874
        %1880 = vmatprep.subr.bf16.mxu0 0
        %1881 = vmatpush1.bf16.msra.mxu0 0
        %1882 = vmatprep.subr.bf16.mxu0 0
        %1883 = vmatpush1.bf16.msra.mxu0 0
        %1884 = vmatprep.subr.bf16.mxu0 0
        %1885 = vmatpush1.bf16.msra.mxu0 0
        %1886 = vmatprep.subr.bf16.mxu0 0
        %1887 = vmatpush1.bf16.msra.mxu0 0
        %1888 = vmatprep.subr.bf16.mxu0 0
        %1889 = vmatpush1.bf16.msra.mxu0 0
        %1890 = vmatprep.subr.bf16.mxu0 0
        %1891 = vmatpush1.bf16.msra.mxu0 0
        %1892 = vmatprep.subr.bf16.mxu0 0
        %1893 = vmatpush1.bf16.msra.mxu0 0
        %1894 = vmatprep.subr.bf16.mxu0 0
        %1895 = vmatpush1.bf16.msra.mxu0 0
        %1896 = vmatprep.subr.bf16.mxu0 0
        %1897 = vmatpush1.bf16.msra.mxu0 0
        %1898 = vmatprep.subr.bf16.mxu0 0
        %1899 = vmatpush1.bf16.msra.mxu0 0
        %1900 = vmatprep.subr.bf16.mxu0 0
        %1901 = vmatpush1.bf16.msra.mxu0 0
        %1902 = vmatprep.subr.bf16.mxu0 0
        %1903 = vmatpush1.bf16.msra.mxu0 0
        %1904 = vmatprep.subr.bf16.mxu0 0
        %1905 = vmatpush1.bf16.msra.mxu0 0
        %1906 = vmatprep.subr.bf16.mxu0 0
        %1907 = vmatpush1.bf16.msra.mxu0 0
        %1908 = vmatprep.mubr.bf16.mxu0 0
        %1909 = vmatmul.mubr.bf16.gmra.mrb[0].mxu0 %v1314
        %v1910 = vpop.f32.mrb[0].mxu0
        %v1911 = vadd.f32 %v1255, %v1910
        %v1912 = vpop.f32.mrb[0].mxu0
        %v1913 = vpop.f32.mrb[0].mxu0
        %v1914 = vadd.f32 %v1260, %v1913
        %v1915 = vpop.f32.mrb[0].mxu0
        %1916 = vmatprep.mubr.bf16.mxu0 0
        %1917 = vmatmul.mubr.bf16.gmra.mrb[0].mxu0 %v1317
        %v1918 = vpop.f32.mrb[0].mxu0
        %v1919 = vadd.f32 %v1265, %v1918
        %v1920 = vpop.f32.mrb[0].mxu0
        %v1921 = vpop.f32.mrb[0].mxu0
        %v1922 = vadd.f32 %v1270, %v1921
        %v1923 = vpop.f32.mrb[0].mxu0
        %1924 = vmatprep.mubr.bf16.mxu0 0
        %1925 = vmatmul.mubr.bf16.gmra.mrb[0].mxu0 %v1320
        %v1926 = vpop.f32.mrb[0].mxu0
        %v1927 = vadd.f32 %v1275, %v1926
        %v1928 = vpop.f32.mrb[0].mxu0
        %v1929 = vpop.f32.mrb[0].mxu0
        %v1930 = vadd.f32 %v1280, %v1929
        %v1931 = vpop.f32.mrb[0].mxu0
        %1932 = vmatprep.mubr.bf16.mxu0 0
        %1933 = vmatmul.mubr.bf16.gmra.mrb[0].mxu0 %v1323
        %v1934 = vpop.f32.mrb[0].mxu0
        %v1935 = vadd.f32 %v1285, %v1934
        %v1936 = vpop.f32.mrb[0].mxu0
        %v1937 = vpop.f32.mrb[0].mxu0
        %v1938 = vadd.f32 %v1290, %v1937
        %v1939 = vpop.f32.mrb[0].mxu0
        %1940 = vdwg.mxu0
        %v1942 = vand.u32 %v1235, %v1328
        %1944 = vmatprep.subr.bf16.mxu0 0
        %1945 = vmatpush1.bf16.msra.mxu0 %v1234
        %1946 = vmatprep.subr.bf16.mxu0 0
        %1947 = vmatpush1.bf16.msra.mxu0 %v1942
        %1948 = vmatprep.subr.bf16.mxu0 0
        %1949 = vmatpush1.bf16.msra.mxu0 0
        %1950 = vmatprep.subr.bf16.mxu0 0
        %1951 = vmatpush1.bf16.msra.mxu0 0
        %1952 = vmatprep.subr.bf16.mxu0 0
        %1953 = vmatpush1.bf16.msra.mxu0 0
        %1954 = vmatprep.subr.bf16.mxu0 0
        %1955 = vmatpush1.bf16.msra.mxu0 0
        %1956 = vmatprep.subr.bf16.mxu0 0
        %1957 = vmatpush1.bf16.msra.mxu0 0
        %1958 = vmatprep.subr.bf16.mxu0 0
        %1959 = vmatpush1.bf16.msra.mxu0 0
        %1960 = vmatprep.subr.bf16.mxu0 0
        %1961 = vmatpush1.bf16.msra.mxu0 0
        %1962 = vmatprep.subr.bf16.mxu0 0
        %1963 = vmatpush1.bf16.msra.mxu0 0
        %1964 = vmatprep.subr.bf16.mxu0 0
        %1965 = vmatpush1.bf16.msra.mxu0 0
        %1966 = vmatprep.subr.bf16.mxu0 0
        %1967 = vmatpush1.bf16.msra.mxu0 0
        %1968 = vmatprep.subr.bf16.mxu0 0
        %1969 = vmatpush1.bf16.msra.mxu0 0
        %1970 = vmatprep.subr.bf16.mxu0 0
        %1971 = vmatpush1.bf16.msra.mxu0 0
        %1972 = vmatprep.subr.bf16.mxu0 0
        %1973 = vmatpush1.bf16.msra.mxu0 0
        %1974 = vmatprep.subr.bf16.mxu0 0
        %1975 = vmatpush1.bf16.msra.mxu0 0
        %1976 = vmatprep.mubr.bf16.mxu0 0
        %1977 = vmatmul.mubr.bf16.gmra.mrb[0].mxu0 %v1314
        %v1978 = vpop.f32.mrb[0].mxu0
        %v1979 = vadd.f32 %v1255, %v1978
        %v1980 = vpop.f32.mrb[0].mxu0
        %v1981 = vpop.f32.mrb[0].mxu0
        %v1982 = vadd.f32 %v1260, %v1981
        %v1983 = vpop.f32.mrb[0].mxu0
        %1984 = vmatprep.mubr.bf16.mxu0 0
        %1985 = vmatmul.mubr.bf16.gmra.mrb[0].mxu0 %v1317
        %v1986 = vpop.f32.mrb[0].mxu0
        %v1987 = vadd.f32 %v1265, %v1986
        %v1988 = vpop.f32.mrb[0].mxu0
        %v1989 = vpop.f32.mrb[0].mxu0
        %v1990 = vadd.f32 %v1270, %v1989
        %v1991 = vpop.f32.mrb[0].mxu0
        %1992 = vmatprep.mubr.bf16.mxu0 0
        %1993 = vmatmul.mubr.bf16.gmra.mrb[0].mxu0 %v1320
        %v1994 = vpop.f32.mrb[0].mxu0
        %v1995 = vadd.f32 %v1275, %v1994
        %v1996 = vpop.f32.mrb[0].mxu0
        %v1997 = vpop.f32.mrb[0].mxu0
        %v1998 = vadd.f32 %v1280, %v1997
        %v1999 = vpop.f32.mrb[0].mxu0
        %2000 = vmatprep.mubr.bf16.mxu0 0
        %2001 = vmatmul.mubr.bf16.gmra.mrb[0].mxu0 %v1323
        %v2002 = vpop.f32.mrb[0].mxu0
        %v2003 = vadd.f32 %v1285, %v2002
        %v2004 = vpop.f32.mrb[0].mxu0
        %v2005 = vpop.f32.mrb[0].mxu0
        %v2006 = vadd.f32 %v1290, %v2005
        %v2007 = vpop.f32.mrb[0].mxu0
        %2008 = vdwg.mxu0
        %v2009 = vmax.f32 %v1367, 0.0
        %v2010 = vmax.f32 %v1370, 0.0
        %v2011 = vmax.f32 %v1375, 0.0
        %v2012 = vmax.f32 %v1378, 0.0
        %v2013 = vmax.f32 %v1383, 0.0
        %v2014 = vmax.f32 %v1386, 0.0
        %v2015 = vmax.f32 %v1391, 0.0
        %v2016 = vmax.f32 %v1394, 0.0
        %v2017 = vmax.f32 %v1435, 0.0
        %v2018 = vmax.f32 %v1438, 0.0
        %v2019 = vmax.f32 %v1443, 0.0
        %v2020 = vmax.f32 %v1446, 0.0
        %v2021 = vmax.f32 %v1451, 0.0
        %v2022 = vmax.f32 %v1454, 0.0
        %v2023 = vmax.f32 %v1459, 0.0
        %v2024 = vmax.f32 %v1462, 0.0
        %v2025 = vmax.f32 %v1503, 0.0
        %v2026 = vmax.f32 %v1506, 0.0
        %v2027 = vmax.f32 %v1511, 0.0
        %v2028 = vmax.f32 %v1514, 0.0
        %v2029 = vmax.f32 %v1519, 0.0
        %v2030 = vmax.f32 %v1522, 0.0
        %v2031 = vmax.f32 %v1527, 0.0
        %v2032 = vmax.f32 %v1530, 0.0
        %v2033 = vmax.f32 %v1571, 0.0
        %v2034 = vmax.f32 %v1574, 0.0
        %v2035 = vmax.f32 %v1579, 0.0
        %v2036 = vmax.f32 %v1582, 0.0
        %v2037 = vmax.f32 %v1587, 0.0
        %v2038 = vmax.f32 %v1590, 0.0
        %v2039 = vmax.f32 %v1595, 0.0
        %v2040 = vmax.f32 %v1598, 0.0
        %v2041 = vmax.f32 %v1639, 0.0
        %v2042 = vmax.f32 %v1642, 0.0
        %v2043 = vmax.f32 %v1647, 0.0
        %v2044 = vmax.f32 %v1650, 0.0
        %v2045 = vmax.f32 %v1655, 0.0
        %v2046 = vmax.f32 %v1658, 0.0
        %v2047 = vmax.f32 %v1663, 0.0
        %v2048 = vmax.f32 %v1666, 0.0
        %v2049 = vmax.f32 %v1707, 0.0
        %v2050 = vmax.f32 %v1710, 0.0
        %v2051 = vmax.f32 %v1715, 0.0
        %v2052 = vmax.f32 %v1718, 0.0
        %v2053 = vmax.f32 %v1723, 0.0
        %v2054 = vmax.f32 %v1726, 0.0
        %v2055 = vmax.f32 %v1731, 0.0
        %v2056 = vmax.f32 %v1734, 0.0
        %v2057 = vmax.f32 %v1775, 0.0
        %v2058 = vmax.f32 %v1778, 0.0
        %v2059 = vmax.f32 %v1783, 0.0
        %v2060 = vmax.f32 %v1786, 0.0
        %v2061 = vmax.f32 %v1791, 0.0
        %v2062 = vmax.f32 %v1794, 0.0
        %v2063 = vmax.f32 %v1799, 0.0
        %v2064 = vmax.f32 %v1802, 0.0
        %v2065 = vmax.f32 %v1843, 0.0
        %v2066 = vmax.f32 %v1846, 0.0
        %v2067 = vmax.f32 %v1851, 0.0
        %v2068 = vmax.f32 %v1854, 0.0
        %v2069 = vmax.f32 %v1859, 0.0
        %v2070 = vmax.f32 %v1862, 0.0
        %v2071 = vmax.f32 %v1867, 0.0
        %v2072 = vmax.f32 %v1870, 0.0
        %v2073 = vmax.f32 %v1911, 0.0
        %v2074 = vmax.f32 %v1914, 0.0
        %v2075 = vmax.f32 %v1919, 0.0
        %v2076 = vmax.f32 %v1922, 0.0
        %v2077 = vmax.f32 %v1927, 0.0
        %v2078 = vmax.f32 %v1930, 0.0
        %v2079 = vmax.f32 %v1935, 0.0
        %v2080 = vmax.f32 %v1938, 0.0
        %v2081 = vmax.f32 %v1979, 0.0
        %v2082 = vmax.f32 %v1982, 0.0
        %v2083 = vmax.f32 %v1987, 0.0
        %v2084 = vmax.f32 %v1990, 0.0
        %v2085 = vmax.f32 %v1995, 0.0
        %v2086 = vmax.f32 %v1998, 0.0
        %v2087 = vmax.f32 %v2003, 0.0
        %v2088 = vmax.f32 %v2006, 0.0
        %v2089 = vld [vmem:[#allocation15] sm:$0xf]
        %v2090 = vld [vmem:[#allocation15 + $0x4] sm:$0xf]
        %v2091 = vld [vmem:[#allocation15 + $0x8] sm:$0xf]
        %v2092 = vld [vmem:[#allocation15 + $0xc] sm:$0xf]
        %v2093 = vld [vmem:[#allocation15 + $0x10] sm:$0xf]
        %v2094 = vld [vmem:[#allocation15 + $0x14] sm:$0xf]
        %v2095 = vld [vmem:[#allocation15 + $0x18] sm:$0xf]
        %v2096 = vld [vmem:[#allocation15 + $0x1c] sm:$0xf]
        %v2097 = vpack.c.bf16 %v2010, %v2009
        %v2098 = vpack.c.bf16 %v2012, %v2011
        %v2099 = vpack.c.bf16 %v2014, %v2013
        %v2100 = vpack.c.bf16 %v2016, %v2015
        %v2101 = vpack.c.bf16 %v2018, %v2017
        %v2102 = vpack.c.bf16 %v2020, %v2019
        %v2103 = vpack.c.bf16 %v2022, %v2021
        %v2104 = vpack.c.bf16 %v2024, %v2023
        %v2105 = vpack.c.bf16 %v2026, %v2025
        %v2106 = vpack.c.bf16 %v2028, %v2027
        %v2107 = vpack.c.bf16 %v2030, %v2029
        %v2108 = vpack.c.bf16 %v2032, %v2031
        %v2109 = vpack.c.bf16 %v2034, %v2033
        %v2110 = vpack.c.bf16 %v2036, %v2035
        %v2111 = vpack.c.bf16 %v2038, %v2037
        %v2112 = vpack.c.bf16 %v2040, %v2039
        %v2113 = vpack.c.bf16 %v2042, %v2041
        %v2114 = vpack.c.bf16 %v2044, %v2043
        %v2115 = vpack.c.bf16 %v2046, %v2045
        %v2116 = vpack.c.bf16 %v2048, %v2047
        %v2117 = vpack.c.bf16 %v2050, %v2049
        %v2118 = vpack.c.bf16 %v2052, %v2051
        %v2119 = vpack.c.bf16 %v2054, %v2053
        %v2120 = vpack.c.bf16 %v2056, %v2055
        %v2121 = vpack.c.bf16 %v2058, %v2057
        %v2122 = vpack.c.bf16 %v2060, %v2059
        %v2123 = vpack.c.bf16 %v2062, %v2061
        %v2124 = vpack.c.bf16 %v2064, %v2063
        %v2125 = vpack.c.bf16 %v2066, %v2065
        %v2126 = vpack.c.bf16 %v2068, %v2067
        %v2127 = vpack.c.bf16 %v2070, %v2069
        %v2128 = vpack.c.bf16 %v2072, %v2071
        %v2129 = vpack.c.bf16 %v2074, %v2073
        %v2130 = vpack.c.bf16 %v2076, %v2075
        %v2131 = vpack.c.bf16 %v2078, %v2077
        %v2132 = vpack.c.bf16 %v2080, %v2079
        %v2133 = vpack.c.bf16 %v2082, %v2081
        %v2134 = vpack.c.bf16 %v2084, %v2083
        %v2135 = vpack.c.bf16 %v2086, %v2085
        %v2136 = vpack.c.bf16 %v2088, %v2087
        %v2137 = vld [vmem:[#allocation16] sm:$0xff]
        %v2138 = vld [vmem:[#allocation16 + $0x8] sm:$0xff]
        %v2139 = vld [vmem:[#allocation16 + $0x10] sm:$0xff]
        %v2140 = vld [vmem:[#allocation16 + $0x18] sm:$0xff]
        %v2141 = vld [vmem:[#allocation16 + $0x20] sm:$0xff]
        %v2142 = vld [vmem:[#allocation16 + $0x28] sm:$0xff]
        %v2143 = vld [vmem:[#allocation16 + $0x30] sm:$0xff]
        %v2144 = vld [vmem:[#allocation16 + $0x38] sm:$0xff]
        %2146 = vset.pattern.permute.xlu0 0
        %2147 = vperm.xlu0 %2146, %v2137
        %v2148 = vpop.permute.xlu0 %2147
        %2151 = vset.pattern.permute.xlu0 0
        %2152 = vperm.xlu0 %2151, %v2138
        %v2153 = vpop.permute.xlu0 %2152
        %2156 = vset.pattern.permute.xlu0 0
        %2157 = vperm.xlu0 %2156, %v2139
        %v2158 = vpop.permute.xlu0 %2157
        %2161 = vset.pattern.permute.xlu0 0
        %2162 = vperm.xlu0 %2161, %v2140
        %v2163 = vpop.permute.xlu0 %2162
        %2166 = vset.pattern.permute.xlu0 0
        %2167 = vperm.xlu0 %2166, %v2141
        %v2168 = vpop.permute.xlu0 %2167
        %2171 = vset.pattern.permute.xlu0 0
        %2172 = vperm.xlu0 %2171, %v2142
        %v2173 = vpop.permute.xlu0 %2172
        %2176 = vset.pattern.permute.xlu0 0
        %2177 = vperm.xlu0 %2176, %v2143
        %v2178 = vpop.permute.xlu0 %2177
        %2181 = vset.pattern.permute.xlu0 0
        %2182 = vperm.xlu0 %2181, %v2144
        %v2183 = vpop.permute.xlu0 %2182
        %v2193 = vunpack.c.l.b16 %v2089
        %v2194 = vunpack.c.l.b16 %v2090
        %v2195 = vunpack.c.l.b16 %v2091
        %v2196 = vunpack.c.l.b16 %v2092
        %v2197 = vunpack.c.l.b16 %v2093
        %v2198 = vunpack.c.l.b16 %v2094
        %v2199 = vunpack.c.l.b16 %v2095
        %v2200 = vunpack.c.l.b16 %v2096
        %v2201 = vpack.c.b16 %v2194, %v2193
        %v2202 = vpack.c.b16 %v2196, %v2195
        %v2203 = vpack.c.b16 %v2198, %v2197
        %v2204 = vpack.c.b16 %v2200, %v2199
        %vm2205 = vcmask 523264
        %v2207 = vsel %vm2205, %v2201, 0
        %v2210 = vsel %vm2205, %v2202, 0
        %v2213 = vsel %vm2205, %v2203, 0
        %v2216 = vsel %vm2205, %v2204, 0
        %2218 = vmatprep.subr.bf16.mxu0 0
        %2219 = vmatpush1.bf16.msra.mxu0 %v2097
        %2220 = vmatprep.subr.bf16.mxu0 0
        %2221 = vmatpush1.bf16.msra.mxu0 %v2098
        %2222 = vmatprep.subr.bf16.mxu0 0
        %2223 = vmatpush1.bf16.msra.mxu0 %v2099
        %2224 = vmatprep.subr.bf16.mxu0 0
        %2225 = vmatpush1.bf16.msra.mxu0 %v2100
        %2226 = vmatprep.subr.bf16.mxu0 0
        %2227 = vmatpush1.bf16.msra.mxu0 0
        %2228 = vmatprep.subr.bf16.mxu0 0
        %2229 = vmatpush1.bf16.msra.mxu0 0
        %2230 = vmatprep.subr.bf16.mxu0 0
        %2231 = vmatpush1.bf16.msra.mxu0 0
        %2232 = vmatprep.subr.bf16.mxu0 0
        %2233 = vmatpush1.bf16.msra.mxu0 0
        %2234 = vmatprep.subr.bf16.mxu0 0
        %2235 = vmatpush1.bf16.msra.mxu0 0
        %2236 = vmatprep.subr.bf16.mxu0 0
        %2237 = vmatpush1.bf16.msra.mxu0 0
        %2238 = vmatprep.subr.bf16.mxu0 0
        %2239 = vmatpush1.bf16.msra.mxu0 0
        %2240 = vmatprep.subr.bf16.mxu0 0
        %2241 = vmatpush1.bf16.msra.mxu0 0
        %2242 = vmatprep.subr.bf16.mxu0 0
        %2243 = vmatpush1.bf16.msra.mxu0 0
        %2244 = vmatprep.subr.bf16.mxu0 0
        %2245 = vmatpush1.bf16.msra.mxu0 0
        %2246 = vmatprep.subr.bf16.mxu0 0
        %2247 = vmatpush1.bf16.msra.mxu0 0
        %2248 = vmatprep.subr.bf16.mxu0 0
        %2249 = vmatpush1.bf16.msra.mxu0 0
        %2250 = vmatprep.mubr.bf16.mxu0 0
        %2251 = vmatmul.mubr.bf16.gmra.mrb[0].mxu0 %v2207
        %v2252 = vpop.f32.mrb[0].mxu0
        %v2253 = vadd.f32 %v2148, %v2252
        %v2254 = vpop.f32.mrb[0].mxu0
        %v2255 = vpop.f32.mrb[0].mxu0
        %v2256 = vadd.f32 %v2153, %v2255
        %v2257 = vpop.f32.mrb[0].mxu0
        %2258 = vmatprep.mubr.bf16.mxu0 0
        %2259 = vmatmul.mubr.bf16.gmra.mrb[0].mxu0 %v2210
        %v2260 = vpop.f32.mrb[0].mxu0
        %v2261 = vadd.f32 %v2158, %v2260
        %v2262 = vpop.f32.mrb[0].mxu0
        %v2263 = vpop.f32.mrb[0].mxu0
        %v2264 = vadd.f32 %v2163, %v2263
        %v2265 = vpop.f32.mrb[0].mxu0
        %2266 = vmatprep.mubr.bf16.mxu0 0
        %2267 = vmatmul.mubr.bf16.gmra.mrb[0].mxu0 %v2213
        %v2268 = vpop.f32.mrb[0].mxu0
        %v2269 = vadd.f32 %v2168, %v2268
        %v2270 = vpop.f32.mrb[0].mxu0
        %v2271 = vpop.f32.mrb[0].mxu0
        %v2272 = vadd.f32 %v2173, %v2271
        %v2273 = vpop.f32.mrb[0].mxu0
        %2274 = vmatprep.mubr.bf16.mxu0 0
        %2275 = vmatmul.mubr.bf16.gmra.mrb[0].mxu0 %v2216
        %v2276 = vpop.f32.mrb[0].mxu0
        %v2277 = vadd.f32 %v2178, %v2276
        %v2278 = vpop.f32.mrb[0].mxu0
        %v2279 = vpop.f32.mrb[0].mxu0
        %v2280 = vadd.f32 %v2183, %v2279
        %v2281 = vpop.f32.mrb[0].mxu0
        %2282 = vdwg.mxu0
        %2283 = vmatprep.subr.bf16.mxu0 0
        %2284 = vmatpush1.bf16.msra.mxu0 %v2101
        %2285 = vmatprep.subr.bf16.mxu0 0
        %2286 = vmatpush1.bf16.msra.mxu0 %v2102
        %2287 = vmatprep.subr.bf16.mxu0 0
        %2288 = vmatpush1.bf16.msra.mxu0 %v2103
        %2289 = vmatprep.subr.bf16.mxu0 0
        %2290 = vmatpush1.bf16.msra.mxu0 %v2104
        %2291 = vmatprep.subr.bf16.mxu0 0
        %2292 = vmatpush1.bf16.msra.mxu0 0
        %2293 = vmatprep.subr.bf16.mxu0 0
        %2294 = vmatpush1.bf16.msra.mxu0 0
        %2295 = vmatprep.subr.bf16.mxu0 0
        %2296 = vmatpush1.bf16.msra.mxu0 0
        %2297 = vmatprep.subr.bf16.mxu0 0
        %2298 = vmatpush1.bf16.msra.mxu0 0
        %2299 = vmatprep.subr.bf16.mxu0 0
        %2300 = vmatpush1.bf16.msra.mxu0 0
        %2301 = vmatprep.subr.bf16.mxu0 0
        %2302 = vmatpush1.bf16.msra.mxu0 0
        %2303 = vmatprep.subr.bf16.mxu0 0
        %2304 = vmatpush1.bf16.msra.mxu0 0
        %2305 = vmatprep.subr.bf16.mxu0 0
        %2306 = vmatpush1.bf16.msra.mxu0 0
        %2307 = vmatprep.subr.bf16.mxu0 0
        %2308 = vmatpush1.bf16.msra.mxu0 0
        %2309 = vmatprep.subr.bf16.mxu0 0
        %2310 = vmatpush1.bf16.msra.mxu0 0
        %2311 = vmatprep.subr.bf16.mxu0 0
        %2312 = vmatpush1.bf16.msra.mxu0 0
        %2313 = vmatprep.subr.bf16.mxu0 0
        %2314 = vmatpush1.bf16.msra.mxu0 0
        %2315 = vmatprep.mubr.bf16.mxu0 0
        %2316 = vmatmul.mubr.bf16.gmra.mrb[0].mxu0 %v2207
        %v2317 = vpop.f32.mrb[0].mxu0
        %v2318 = vadd.f32 %v2148, %v2317
        %v2319 = vpop.f32.mrb[0].mxu0
        %v2320 = vpop.f32.mrb[0].mxu0
        %v2321 = vadd.f32 %v2153, %v2320
        %v2322 = vpop.f32.mrb[0].mxu0
        %2323 = vmatprep.mubr.bf16.mxu0 0
        %2324 = vmatmul.mubr.bf16.gmra.mrb[0].mxu0 %v2210
        %v2325 = vpop.f32.mrb[0].mxu0
        %v2326 = vadd.f32 %v2158, %v2325
        %v2327 = vpop.f32.mrb[0].mxu0
        %v2328 = vpop.f32.mrb[0].mxu0
        %v2329 = vadd.f32 %v2163, %v2328
        %v2330 = vpop.f32.mrb[0].mxu0
        %2331 = vmatprep.mubr.bf16.mxu0 0
        %2332 = vmatmul.mubr.bf16.gmra.mrb[0].mxu0 %v2213
        %v2333 = vpop.f32.mrb[0].mxu0
        %v2334 = vadd.f32 %v2168, %v2333
        %v2335 = vpop.f32.mrb[0].mxu0
        %v2336 = vpop.f32.mrb[0].mxu0
        %v2337 = vadd.f32 %v2173, %v2336
        %v2338 = vpop.f32.mrb[0].mxu0
        %2339 = vmatprep.mubr.bf16.mxu0 0
        %2340 = vmatmul.mubr.bf16.gmra.mrb[0].mxu0 %v2216
        %v2341 = vpop.f32.mrb[0].mxu0
        %v2342 = vadd.f32 %v2178, %v2341
        %v2343 = vpop.f32.mrb[0].mxu0
        %v2344 = vpop.f32.mrb[0].mxu0
        %v2345 = vadd.f32 %v2183, %v2344
        %v2346 = vpop.f32.mrb[0].mxu0
        %2347 = vdwg.mxu0
        %2348 = vmatprep.subr.bf16.mxu0 0
        %2349 = vmatpush1.bf16.msra.mxu0 %v2105
        %2350 = vmatprep.subr.bf16.mxu0 0
        %2351 = vmatpush1.bf16.msra.mxu0 %v2106
        %2352 = vmatprep.subr.bf16.mxu0 0
        %2353 = vmatpush1.bf16.msra.mxu0 %v2107
        %2354 = vmatprep.subr.bf16.mxu0 0
        %2355 = vmatpush1.bf16.msra.mxu0 %v2108
        %2356 = vmatprep.subr.bf16.mxu0 0
        %2357 = vmatpush1.bf16.msra.mxu0 0
        %2358 = vmatprep.subr.bf16.mxu0 0
        %2359 = vmatpush1.bf16.msra.mxu0 0
        %2360 = vmatprep.subr.bf16.mxu0 0
        %2361 = vmatpush1.bf16.msra.mxu0 0
        %2362 = vmatprep.subr.bf16.mxu0 0
        %2363 = vmatpush1.bf16.msra.mxu0 0
        %2364 = vmatprep.subr.bf16.mxu0 0
        %2365 = vmatpush1.bf16.msra.mxu0 0
        %2366 = vmatprep.subr.bf16.mxu0 0
        %2367 = vmatpush1.bf16.msra.mxu0 0
        %2368 = vmatprep.subr.bf16.mxu0 0
        %2369 = vmatpush1.bf16.msra.mxu0 0
        %2370 = vmatprep.subr.bf16.mxu0 0
        %2371 = vmatpush1.bf16.msra.mxu0 0
        %2372 = vmatprep.subr.bf16.mxu0 0
        %2373 = vmatpush1.bf16.msra.mxu0 0
        %2374 = vmatprep.subr.bf16.mxu0 0
        %2375 = vmatpush1.bf16.msra.mxu0 0
        %2376 = vmatprep.subr.bf16.mxu0 0
        %2377 = vmatpush1.bf16.msra.mxu0 0
        %2378 = vmatprep.subr.bf16.mxu0 0
        %2379 = vmatpush1.bf16.msra.mxu0 0
        %2380 = vmatprep.mubr.bf16.mxu0 0
        %2381 = vmatmul.mubr.bf16.gmra.mrb[0].mxu0 %v2207
        %v2382 = vpop.f32.mrb[0].mxu0
        %v2383 = vadd.f32 %v2148, %v2382
        %v2384 = vpop.f32.mrb[0].mxu0
        %v2385 = vpop.f32.mrb[0].mxu0
        %v2386 = vadd.f32 %v2153, %v2385
        %v2387 = vpop.f32.mrb[0].mxu0
        %2388 = vmatprep.mubr.bf16.mxu0 0
        %2389 = vmatmul.mubr.bf16.gmra.mrb[0].mxu0 %v2210
        %v2390 = vpop.f32.mrb[0].mxu0
        %v2391 = vadd.f32 %v2158, %v2390
        %v2392 = vpop.f32.mrb[0].mxu0
        %v2393 = vpop.f32.mrb[0].mxu0
        %v2394 = vadd.f32 %v2163, %v2393
        %v2395 = vpop.f32.mrb[0].mxu0
        %2396 = vmatprep.mubr.bf16.mxu0 0
        %2397 = vmatmul.mubr.bf16.gmra.mrb[0].mxu0 %v2213
        %v2398 = vpop.f32.mrb[0].mxu0
        %v2399 = vadd.f32 %v2168, %v2398
        %v2400 = vpop.f32.mrb[0].mxu0
        %v2401 = vpop.f32.mrb[0].mxu0
        %v2402 = vadd.f32 %v2173, %v2401
        %v2403 = vpop.f32.mrb[0].mxu0
        %2404 = vmatprep.mubr.bf16.mxu0 0
        %2405 = vmatmul.mubr.bf16.gmra.mrb[0].mxu0 %v2216
        %v2406 = vpop.f32.mrb[0].mxu0
        %v2407 = vadd.f32 %v2178, %v2406
        %v2408 = vpop.f32.mrb[0].mxu0
        %v2409 = vpop.f32.mrb[0].mxu0
        %v2410 = vadd.f32 %v2183, %v2409
        %v2411 = vpop.f32.mrb[0].mxu0
        %2412 = vdwg.mxu0
        %2413 = vmatprep.subr.bf16.mxu0 0
        %2414 = vmatpush1.bf16.msra.mxu0 %v2109
        %2415 = vmatprep.subr.bf16.mxu0 0
        %2416 = vmatpush1.bf16.msra.mxu0 %v2110
        %2417 = vmatprep.subr.bf16.mxu0 0
        %2418 = vmatpush1.bf16.msra.mxu0 %v2111
        %2419 = vmatprep.subr.bf16.mxu0 0
        %2420 = vmatpush1.bf16.msra.mxu0 %v2112
        %2421 = vmatprep.subr.bf16.mxu0 0
        %2422 = vmatpush1.bf16.msra.mxu0 0
        %2423 = vmatprep.subr.bf16.mxu0 0
        %2424 = vmatpush1.bf16.msra.mxu0 0
        %2425 = vmatprep.subr.bf16.mxu0 0
        %2426 = vmatpush1.bf16.msra.mxu0 0
        %2427 = vmatprep.subr.bf16.mxu0 0
        %2428 = vmatpush1.bf16.msra.mxu0 0
        %2429 = vmatprep.subr.bf16.mxu0 0
        %2430 = vmatpush1.bf16.msra.mxu0 0
        %2431 = vmatprep.subr.bf16.mxu0 0
        %2432 = vmatpush1.bf16.msra.mxu0 0
        %2433 = vmatprep.subr.bf16.mxu0 0
        %2434 = vmatpush1.bf16.msra.mxu0 0
        %2435 = vmatprep.subr.bf16.mxu0 0
        %2436 = vmatpush1.bf16.msra.mxu0 0
        %2437 = vmatprep.subr.bf16.mxu0 0
        %2438 = vmatpush1.bf16.msra.mxu0 0
        %2439 = vmatprep.subr.bf16.mxu0 0
        %2440 = vmatpush1.bf16.msra.mxu0 0
        %2441 = vmatprep.subr.bf16.mxu0 0
        %2442 = vmatpush1.bf16.msra.mxu0 0
        %2443 = vmatprep.subr.bf16.mxu0 0
        %2444 = vmatpush1.bf16.msra.mxu0 0
        %2445 = vmatprep.mubr.bf16.mxu0 0
        %2446 = vmatmul.mubr.bf16.gmra.mrb[0].mxu0 %v2207
        %v2447 = vpop.f32.mrb[0].mxu0
        %v2448 = vadd.f32 %v2148, %v2447
        %v2449 = vpop.f32.mrb[0].mxu0
        %v2450 = vpop.f32.mrb[0].mxu0
        %v2451 = vadd.f32 %v2153, %v2450
        %v2452 = vpop.f32.mrb[0].mxu0
        %2453 = vmatprep.mubr.bf16.mxu0 0
        %2454 = vmatmul.mubr.bf16.gmra.mrb[0].mxu0 %v2210
        %v2455 = vpop.f32.mrb[0].mxu0
        %v2456 = vadd.f32 %v2158, %v2455
        %v2457 = vpop.f32.mrb[0].mxu0
        %v2458 = vpop.f32.mrb[0].mxu0
        %v2459 = vadd.f32 %v2163, %v2458
        %v2460 = vpop.f32.mrb[0].mxu0
        %2461 = vmatprep.mubr.bf16.mxu0 0
        %2462 = vmatmul.mubr.bf16.gmra.mrb[0].mxu0 %v2213
        %v2463 = vpop.f32.mrb[0].mxu0
        %v2464 = vadd.f32 %v2168, %v2463
        %v2465 = vpop.f32.mrb[0].mxu0
        %v2466 = vpop.f32.mrb[0].mxu0
        %v2467 = vadd.f32 %v2173, %v2466
        %v2468 = vpop.f32.mrb[0].mxu0
        %2469 = vmatprep.mubr.bf16.mxu0 0
        %2470 = vmatmul.mubr.bf16.gmra.mrb[0].mxu0 %v2216
        %v2471 = vpop.f32.mrb[0].mxu0
        %v2472 = vadd.f32 %v2178, %v2471
        %v2473 = vpop.f32.mrb[0].mxu0
        %v2474 = vpop.f32.mrb[0].mxu0
        %v2475 = vadd.f32 %v2183, %v2474
        %v2476 = vpop.f32.mrb[0].mxu0
        %2477 = vdwg.mxu0
        %2478 = vmatprep.subr.bf16.mxu0 0
        %2479 = vmatpush1.bf16.msra.mxu0 %v2113
        %2480 = vmatprep.subr.bf16.mxu0 0
        %2481 = vmatpush1.bf16.msra.mxu0 %v2114
        %2482 = vmatprep.subr.bf16.mxu0 0
        %2483 = vmatpush1.bf16.msra.mxu0 %v2115
        %2484 = vmatprep.subr.bf16.mxu0 0
        %2485 = vmatpush1.bf16.msra.mxu0 %v2116
        %2486 = vmatprep.subr.bf16.mxu0 0
        %2487 = vmatpush1.bf16.msra.mxu0 0
        %2488 = vmatprep.subr.bf16.mxu0 0
        %2489 = vmatpush1.bf16.msra.mxu0 0
        %2490 = vmatprep.subr.bf16.mxu0 0
        %2491 = vmatpush1.bf16.msra.mxu0 0
        %2492 = vmatprep.subr.bf16.mxu0 0
        %2493 = vmatpush1.bf16.msra.mxu0 0
        %2494 = vmatprep.subr.bf16.mxu0 0
        %2495 = vmatpush1.bf16.msra.mxu0 0
        %2496 = vmatprep.subr.bf16.mxu0 0
        %2497 = vmatpush1.bf16.msra.mxu0 0
        %2498 = vmatprep.subr.bf16.mxu0 0
        %2499 = vmatpush1.bf16.msra.mxu0 0
        %2500 = vmatprep.subr.bf16.mxu0 0
        %2501 = vmatpush1.bf16.msra.mxu0 0
        %2502 = vmatprep.subr.bf16.mxu0 0
        %2503 = vmatpush1.bf16.msra.mxu0 0
        %2504 = vmatprep.subr.bf16.mxu0 0
        %2505 = vmatpush1.bf16.msra.mxu0 0
        %2506 = vmatprep.subr.bf16.mxu0 0
        %2507 = vmatpush1.bf16.msra.mxu0 0
        %2508 = vmatprep.subr.bf16.mxu0 0
        %2509 = vmatpush1.bf16.msra.mxu0 0
        %2510 = vmatprep.mubr.bf16.mxu0 0
        %2511 = vmatmul.mubr.bf16.gmra.mrb[0].mxu0 %v2207
        %v2512 = vpop.f32.mrb[0].mxu0
        %v2513 = vadd.f32 %v2148, %v2512
        %v2514 = vpop.f32.mrb[0].mxu0
        %v2515 = vpop.f32.mrb[0].mxu0
        %v2516 = vadd.f32 %v2153, %v2515
        %v2517 = vpop.f32.mrb[0].mxu0
        %2518 = vmatprep.mubr.bf16.mxu0 0
        %2519 = vmatmul.mubr.bf16.gmra.mrb[0].mxu0 %v2210
        %v2520 = vpop.f32.mrb[0].mxu0
        %v2521 = vadd.f32 %v2158, %v2520
        %v2522 = vpop.f32.mrb[0].mxu0
        %v2523 = vpop.f32.mrb[0].mxu0
        %v2524 = vadd.f32 %v2163, %v2523
        %v2525 = vpop.f32.mrb[0].mxu0
        %2526 = vmatprep.mubr.bf16.mxu0 0
        %2527 = vmatmul.mubr.bf16.gmra.mrb[0].mxu0 %v2213
        %v2528 = vpop.f32.mrb[0].mxu0
        %v2529 = vadd.f32 %v2168, %v2528
        %v2530 = vpop.f32.mrb[0].mxu0
        %v2531 = vpop.f32.mrb[0].mxu0
        %v2532 = vadd.f32 %v2173, %v2531
        %v2533 = vpop.f32.mrb[0].mxu0
        %2534 = vmatprep.mubr.bf16.mxu0 0
        %2535 = vmatmul.mubr.bf16.gmra.mrb[0].mxu0 %v2216
        %v2536 = vpop.f32.mrb[0].mxu0
        %v2537 = vadd.f32 %v2178, %v2536
        %v2538 = vpop.f32.mrb[0].mxu0
        %v2539 = vpop.f32.mrb[0].mxu0
        %v2540 = vadd.f32 %v2183, %v2539
        %v2541 = vpop.f32.mrb[0].mxu0
        %2542 = vdwg.mxu0
        %2543 = vmatprep.subr.bf16.mxu0 0
        %2544 = vmatpush1.bf16.msra.mxu0 %v2117
        %2545 = vmatprep.subr.bf16.mxu0 0
        %2546 = vmatpush1.bf16.msra.mxu0 %v2118
        %2547 = vmatprep.subr.bf16.mxu0 0
        %2548 = vmatpush1.bf16.msra.mxu0 %v2119
        %2549 = vmatprep.subr.bf16.mxu0 0
        %2550 = vmatpush1.bf16.msra.mxu0 %v2120
        %2551 = vmatprep.subr.bf16.mxu0 0
        %2552 = vmatpush1.bf16.msra.mxu0 0
        %2553 = vmatprep.subr.bf16.mxu0 0
        %2554 = vmatpush1.bf16.msra.mxu0 0
        %2555 = vmatprep.subr.bf16.mxu0 0
        %2556 = vmatpush1.bf16.msra.mxu0 0
        %2557 = vmatprep.subr.bf16.mxu0 0
        %2558 = vmatpush1.bf16.msra.mxu0 0
        %2559 = vmatprep.subr.bf16.mxu0 0
        %2560 = vmatpush1.bf16.msra.mxu0 0
        %2561 = vmatprep.subr.bf16.mxu0 0
        %2562 = vmatpush1.bf16.msra.mxu0 0
        %2563 = vmatprep.subr.bf16.mxu0 0
        %2564 = vmatpush1.bf16.msra.mxu0 0
        %2565 = vmatprep.subr.bf16.mxu0 0
        %2566 = vmatpush1.bf16.msra.mxu0 0
        %2567 = vmatprep.subr.bf16.mxu0 0
        %2568 = vmatpush1.bf16.msra.mxu0 0
        %2569 = vmatprep.subr.bf16.mxu0 0
        %2570 = vmatpush1.bf16.msra.mxu0 0
        %2571 = vmatprep.subr.bf16.mxu0 0
        %2572 = vmatpush1.bf16.msra.mxu0 0
        %2573 = vmatprep.subr.bf16.mxu0 0
        %2574 = vmatpush1.bf16.msra.mxu0 0
        %2575 = vmatprep.mubr.bf16.mxu0 0
        %2576 = vmatmul.mubr.bf16.gmra.mrb[0].mxu0 %v2207
        %v2577 = vpop.f32.mrb[0].mxu0
        %v2578 = vadd.f32 %v2148, %v2577
        %v2579 = vpop.f32.mrb[0].mxu0
        %v2580 = vpop.f32.mrb[0].mxu0
        %v2581 = vadd.f32 %v2153, %v2580
        %v2582 = vpop.f32.mrb[0].mxu0
        %2583 = vmatprep.mubr.bf16.mxu0 0
        %2584 = vmatmul.mubr.bf16.gmra.mrb[0].mxu0 %v2210
        %v2585 = vpop.f32.mrb[0].mxu0
        %v2586 = vadd.f32 %v2158, %v2585
        %v2587 = vpop.f32.mrb[0].mxu0
        %v2588 = vpop.f32.mrb[0].mxu0
        %v2589 = vadd.f32 %v2163, %v2588
        %v2590 = vpop.f32.mrb[0].mxu0
        %2591 = vmatprep.mubr.bf16.mxu0 0
        %2592 = vmatmul.mubr.bf16.gmra.mrb[0].mxu0 %v2213
        %v2593 = vpop.f32.mrb[0].mxu0
        %v2594 = vadd.f32 %v2168, %v2593
        %v2595 = vpop.f32.mrb[0].mxu0
        %v2596 = vpop.f32.mrb[0].mxu0
        %v2597 = vadd.f32 %v2173, %v2596
        %v2598 = vpop.f32.mrb[0].mxu0
        %2599 = vmatprep.mubr.bf16.mxu0 0
        %2600 = vmatmul.mubr.bf16.gmra.mrb[0].mxu0 %v2216
        %v2601 = vpop.f32.mrb[0].mxu0
        %v2602 = vadd.f32 %v2178, %v2601
        %v2603 = vpop.f32.mrb[0].mxu0
        %v2604 = vpop.f32.mrb[0].mxu0
        %v2605 = vadd.f32 %v2183, %v2604
        %v2606 = vpop.f32.mrb[0].mxu0
        %2607 = vdwg.mxu0
        %2608 = vmatprep.subr.bf16.mxu0 0
        %2609 = vmatpush1.bf16.msra.mxu0 %v2121
        %2610 = vmatprep.subr.bf16.mxu0 0
        %2611 = vmatpush1.bf16.msra.mxu0 %v2122
        %2612 = vmatprep.subr.bf16.mxu0 0
        %2613 = vmatpush1.bf16.msra.mxu0 %v2123
        %2614 = vmatprep.subr.bf16.mxu0 0
        %2615 = vmatpush1.bf16.msra.mxu0 %v2124
        %2616 = vmatprep.subr.bf16.mxu0 0
        %2617 = vmatpush1.bf16.msra.mxu0 0
        %2618 = vmatprep.subr.bf16.mxu0 0
        %2619 = vmatpush1.bf16.msra.mxu0 0
        %2620 = vmatprep.subr.bf16.mxu0 0
        %2621 = vmatpush1.bf16.msra.mxu0 0
        %2622 = vmatprep.subr.bf16.mxu0 0
        %2623 = vmatpush1.bf16.msra.mxu0 0
        %2624 = vmatprep.subr.bf16.mxu0 0
        %2625 = vmatpush1.bf16.msra.mxu0 0
        %2626 = vmatprep.subr.bf16.mxu0 0
        %2627 = vmatpush1.bf16.msra.mxu0 0
        %2628 = vmatprep.subr.bf16.mxu0 0
        %2629 = vmatpush1.bf16.msra.mxu0 0
        %2630 = vmatprep.subr.bf16.mxu0 0
        %2631 = vmatpush1.bf16.msra.mxu0 0
        %2632 = vmatprep.subr.bf16.mxu0 0
        %2633 = vmatpush1.bf16.msra.mxu0 0
        %2634 = vmatprep.subr.bf16.mxu0 0
        %2635 = vmatpush1.bf16.msra.mxu0 0
        %2636 = vmatprep.subr.bf16.mxu0 0
        %2637 = vmatpush1.bf16.msra.mxu0 0
        %2638 = vmatprep.subr.bf16.mxu0 0
        %2639 = vmatpush1.bf16.msra.mxu0 0
        %2640 = vmatprep.mubr.bf16.mxu0 0
        %2641 = vmatmul.mubr.bf16.gmra.mrb[0].mxu0 %v2207
        %v2642 = vpop.f32.mrb[0].mxu0
        %v2643 = vadd.f32 %v2148, %v2642
        %v2644 = vpop.f32.mrb[0].mxu0
        %v2645 = vpop.f32.mrb[0].mxu0
        %v2646 = vadd.f32 %v2153, %v2645
        %v2647 = vpop.f32.mrb[0].mxu0
        %2648 = vmatprep.mubr.bf16.mxu0 0
        %2649 = vmatmul.mubr.bf16.gmra.mrb[0].mxu0 %v2210
        %v2650 = vpop.f32.mrb[0].mxu0
        %v2651 = vadd.f32 %v2158, %v2650
        %v2652 = vpop.f32.mrb[0].mxu0
        %v2653 = vpop.f32.mrb[0].mxu0
        %v2654 = vadd.f32 %v2163, %v2653
        %v2655 = vpop.f32.mrb[0].mxu0
        %2656 = vmatprep.mubr.bf16.mxu0 0
        %2657 = vmatmul.mubr.bf16.gmra.mrb[0].mxu0 %v2213
        %v2658 = vpop.f32.mrb[0].mxu0
        %v2659 = vadd.f32 %v2168, %v2658
        %v2660 = vpop.f32.mrb[0].mxu0
        %v2661 = vpop.f32.mrb[0].mxu0
        %v2662 = vadd.f32 %v2173, %v2661
        %v2663 = vpop.f32.mrb[0].mxu0
        %2664 = vmatprep.mubr.bf16.mxu0 0
        %2665 = vmatmul.mubr.bf16.gmra.mrb[0].mxu0 %v2216
        %v2666 = vpop.f32.mrb[0].mxu0
        %v2667 = vadd.f32 %v2178, %v2666
        %v2668 = vpop.f32.mrb[0].mxu0
        %v2669 = vpop.f32.mrb[0].mxu0
        %v2670 = vadd.f32 %v2183, %v2669
        %v2671 = vpop.f32.mrb[0].mxu0
        %2672 = vdwg.mxu0
        %2673 = vmatprep.subr.bf16.mxu0 0
        %2674 = vmatpush1.bf16.msra.mxu0 %v2125
        %2675 = vmatprep.subr.bf16.mxu0 0
        %2676 = vmatpush1.bf16.msra.mxu0 %v2126
        %2677 = vmatprep.subr.bf16.mxu0 0
        %2678 = vmatpush1.bf16.msra.mxu0 %v2127
        %2679 = vmatprep.subr.bf16.mxu0 0
        %2680 = vmatpush1.bf16.msra.mxu0 %v2128
        %2681 = vmatprep.subr.bf16.mxu0 0
        %2682 = vmatpush1.bf16.msra.mxu0 0
        %2683 = vmatprep.subr.bf16.mxu0 0
        %2684 = vmatpush1.bf16.msra.mxu0 0
        %2685 = vmatprep.subr.bf16.mxu0 0
        %2686 = vmatpush1.bf16.msra.mxu0 0
        %2687 = vmatprep.subr.bf16.mxu0 0
        %2688 = vmatpush1.bf16.msra.mxu0 0
        %2689 = vmatprep.subr.bf16.mxu0 0
        %2690 = vmatpush1.bf16.msra.mxu0 0
        %2691 = vmatprep.subr.bf16.mxu0 0
        %2692 = vmatpush1.bf16.msra.mxu0 0
        %2693 = vmatprep.subr.bf16.mxu0 0
        %2694 = vmatpush1.bf16.msra.mxu0 0
        %2695 = vmatprep.subr.bf16.mxu0 0
        %2696 = vmatpush1.bf16.msra.mxu0 0
        %2697 = vmatprep.subr.bf16.mxu0 0
        %2698 = vmatpush1.bf16.msra.mxu0 0
        %2699 = vmatprep.subr.bf16.mxu0 0
        %2700 = vmatpush1.bf16.msra.mxu0 0
        %2701 = vmatprep.subr.bf16.mxu0 0
        %2702 = vmatpush1.bf16.msra.mxu0 0
        %2703 = vmatprep.subr.bf16.mxu0 0
        %2704 = vmatpush1.bf16.msra.mxu0 0
        %2705 = vmatprep.mubr.bf16.mxu0 0
        %2706 = vmatmul.mubr.bf16.gmra.mrb[0].mxu0 %v2207
        %v2707 = vpop.f32.mrb[0].mxu0
        %v2708 = vadd.f32 %v2148, %v2707
        %v2709 = vpop.f32.mrb[0].mxu0
        %v2710 = vpop.f32.mrb[0].mxu0
        %v2711 = vadd.f32 %v2153, %v2710
        %v2712 = vpop.f32.mrb[0].mxu0
        %2713 = vmatprep.mubr.bf16.mxu0 0
        %2714 = vmatmul.mubr.bf16.gmra.mrb[0].mxu0 %v2210
        %v2715 = vpop.f32.mrb[0].mxu0
        %v2716 = vadd.f32 %v2158, %v2715
        %v2717 = vpop.f32.mrb[0].mxu0
        %v2718 = vpop.f32.mrb[0].mxu0
        %v2719 = vadd.f32 %v2163, %v2718
        %v2720 = vpop.f32.mrb[0].mxu0
        %2721 = vmatprep.mubr.bf16.mxu0 0
        %2722 = vmatmul.mubr.bf16.gmra.mrb[0].mxu0 %v2213
        %v2723 = vpop.f32.mrb[0].mxu0
        %v2724 = vadd.f32 %v2168, %v2723
        %v2725 = vpop.f32.mrb[0].mxu0
        %v2726 = vpop.f32.mrb[0].mxu0
        %v2727 = vadd.f32 %v2173, %v2726
        %v2728 = vpop.f32.mrb[0].mxu0
        %2729 = vmatprep.mubr.bf16.mxu0 0
        %2730 = vmatmul.mubr.bf16.gmra.mrb[0].mxu0 %v2216
        %v2731 = vpop.f32.mrb[0].mxu0
        %v2732 = vadd.f32 %v2178, %v2731
        %v2733 = vpop.f32.mrb[0].mxu0
        %v2734 = vpop.f32.mrb[0].mxu0
        %v2735 = vadd.f32 %v2183, %v2734
        %v2736 = vpop.f32.mrb[0].mxu0
        %2737 = vdwg.mxu0
        %2738 = vmatprep.subr.bf16.mxu0 0
        %2739 = vmatpush1.bf16.msra.mxu0 %v2129
        %2740 = vmatprep.subr.bf16.mxu0 0
        %2741 = vmatpush1.bf16.msra.mxu0 %v2130
        %2742 = vmatprep.subr.bf16.mxu0 0
        %2743 = vmatpush1.bf16.msra.mxu0 %v2131
        %2744 = vmatprep.subr.bf16.mxu0 0
        %2745 = vmatpush1.bf16.msra.mxu0 %v2132
        %2746 = vmatprep.subr.bf16.mxu0 0
        %2747 = vmatpush1.bf16.msra.mxu0 0
        %2748 = vmatprep.subr.bf16.mxu0 0
        %2749 = vmatpush1.bf16.msra.mxu0 0
        %2750 = vmatprep.subr.bf16.mxu0 0
        %2751 = vmatpush1.bf16.msra.mxu0 0
        %2752 = vmatprep.subr.bf16.mxu0 0
        %2753 = vmatpush1.bf16.msra.mxu0 0
        %2754 = vmatprep.subr.bf16.mxu0 0
        %2755 = vmatpush1.bf16.msra.mxu0 0
        %2756 = vmatprep.subr.bf16.mxu0 0
        %2757 = vmatpush1.bf16.msra.mxu0 0
        %2758 = vmatprep.subr.bf16.mxu0 0
        %2759 = vmatpush1.bf16.msra.mxu0 0
        %2760 = vmatprep.subr.bf16.mxu0 0
        %2761 = vmatpush1.bf16.msra.mxu0 0
        %2762 = vmatprep.subr.bf16.mxu0 0
        %2763 = vmatpush1.bf16.msra.mxu0 0
        %2764 = vmatprep.subr.bf16.mxu0 0
        %2765 = vmatpush1.bf16.msra.mxu0 0
        %2766 = vmatprep.subr.bf16.mxu0 0
        %2767 = vmatpush1.bf16.msra.mxu0 0
        %2768 = vmatprep.subr.bf16.mxu0 0
        %2769 = vmatpush1.bf16.msra.mxu0 0
        %2770 = vmatprep.mubr.bf16.mxu0 0
        %2771 = vmatmul.mubr.bf16.gmra.mrb[0].mxu0 %v2207
        %v2772 = vpop.f32.mrb[0].mxu0
        %v2773 = vadd.f32 %v2148, %v2772
        %v2774 = vpop.f32.mrb[0].mxu0
        %v2775 = vpop.f32.mrb[0].mxu0
        %v2776 = vadd.f32 %v2153, %v2775
        %v2777 = vpop.f32.mrb[0].mxu0
        %2778 = vmatprep.mubr.bf16.mxu0 0
        %2779 = vmatmul.mubr.bf16.gmra.mrb[0].mxu0 %v2210
        %v2780 = vpop.f32.mrb[0].mxu0
        %v2781 = vadd.f32 %v2158, %v2780
        %v2782 = vpop.f32.mrb[0].mxu0
        %v2783 = vpop.f32.mrb[0].mxu0
        %v2784 = vadd.f32 %v2163, %v2783
        %v2785 = vpop.f32.mrb[0].mxu0
        %2786 = vmatprep.mubr.bf16.mxu0 0
        %2787 = vmatmul.mubr.bf16.gmra.mrb[0].mxu0 %v2213
        %v2788 = vpop.f32.mrb[0].mxu0
        %v2789 = vadd.f32 %v2168, %v2788
        %v2790 = vpop.f32.mrb[0].mxu0
        %v2791 = vpop.f32.mrb[0].mxu0
        %v2792 = vadd.f32 %v2173, %v2791
        %v2793 = vpop.f32.mrb[0].mxu0
        %2794 = vmatprep.mubr.bf16.mxu0 0
        %2795 = vmatmul.mubr.bf16.gmra.mrb[0].mxu0 %v2216
        %v2796 = vpop.f32.mrb[0].mxu0
        %v2797 = vadd.f32 %v2178, %v2796
        %v2798 = vpop.f32.mrb[0].mxu0
        %v2799 = vpop.f32.mrb[0].mxu0
        %v2800 = vadd.f32 %v2183, %v2799
        %v2801 = vpop.f32.mrb[0].mxu0
        %2802 = vdwg.mxu0
        %2803 = vmatprep.subr.bf16.mxu0 0
        %2804 = vmatpush1.bf16.msra.mxu0 %v2133
        %2805 = vmatprep.subr.bf16.mxu0 0
        %2806 = vmatpush1.bf16.msra.mxu0 %v2134
        %2807 = vmatprep.subr.bf16.mxu0 0
        %2808 = vmatpush1.bf16.msra.mxu0 %v2135
        %2809 = vmatprep.subr.bf16.mxu0 0
        %2810 = vmatpush1.bf16.msra.mxu0 %v2136
        %2811 = vmatprep.subr.bf16.mxu0 0
        %2812 = vmatpush1.bf16.msra.mxu0 0
        %2813 = vmatprep.subr.bf16.mxu0 0
        %2814 = vmatpush1.bf16.msra.mxu0 0
        %2815 = vmatprep.subr.bf16.mxu0 0
        %2816 = vmatpush1.bf16.msra.mxu0 0
        %2817 = vmatprep.subr.bf16.mxu0 0
        %2818 = vmatpush1.bf16.msra.mxu0 0
        %2819 = vmatprep.subr.bf16.mxu0 0
        %2820 = vmatpush1.bf16.msra.mxu0 0
        %2821 = vmatprep.subr.bf16.mxu0 0
        %2822 = vmatpush1.bf16.msra.mxu0 0
        %2823 = vmatprep.subr.bf16.mxu0 0
        %2824 = vmatpush1.bf16.msra.mxu0 0
        %2825 = vmatprep.subr.bf16.mxu0 0
        %2826 = vmatpush1.bf16.msra.mxu0 0
        %2827 = vmatprep.subr.bf16.mxu0 0
        %2828 = vmatpush1.bf16.msra.mxu0 0
        %2829 = vmatprep.subr.bf16.mxu0 0
        %2830 = vmatpush1.bf16.msra.mxu0 0
        %2831 = vmatprep.subr.bf16.mxu0 0
        %2832 = vmatpush1.bf16.msra.mxu0 0
        %2833 = vmatprep.subr.bf16.mxu0 0
        %2834 = vmatpush1.bf16.msra.mxu0 0
        %2835 = vmatprep.mubr.bf16.mxu0 0
        %2836 = vmatmul.mubr.bf16.gmra.mrb[0].mxu0 %v2207
        %v2837 = vpop.f32.mrb[0].mxu0
        %v2838 = vadd.f32 %v2148, %v2837
        %v2839 = vpop.f32.mrb[0].mxu0
        %v2840 = vpop.f32.mrb[0].mxu0
        %v2841 = vadd.f32 %v2153, %v2840
        %v2842 = vpop.f32.mrb[0].mxu0
        %2843 = vmatprep.mubr.bf16.mxu0 0
        %2844 = vmatmul.mubr.bf16.gmra.mrb[0].mxu0 %v2210
        %v2845 = vpop.f32.mrb[0].mxu0
        %v2846 = vadd.f32 %v2158, %v2845
        %v2847 = vpop.f32.mrb[0].mxu0
        %v2848 = vpop.f32.mrb[0].mxu0
        %v2849 = vadd.f32 %v2163, %v2848
        %v2850 = vpop.f32.mrb[0].mxu0
        %2851 = vmatprep.mubr.bf16.mxu0 0
        %2852 = vmatmul.mubr.bf16.gmra.mrb[0].mxu0 %v2213
        %v2853 = vpop.f32.mrb[0].mxu0
        %v2854 = vadd.f32 %v2168, %v2853
        %v2855 = vpop.f32.mrb[0].mxu0
        %v2856 = vpop.f32.mrb[0].mxu0
        %v2857 = vadd.f32 %v2173, %v2856
        %v2858 = vpop.f32.mrb[0].mxu0
        %2859 = vmatprep.mubr.bf16.mxu0 0
        %2860 = vmatmul.mubr.bf16.gmra.mrb[0].mxu0 %v2216
        %v2861 = vpop.f32.mrb[0].mxu0
        %v2862 = vadd.f32 %v2178, %v2861
        %v2863 = vpop.f32.mrb[0].mxu0
        %v2864 = vpop.f32.mrb[0].mxu0
        %v2865 = vadd.f32 %v2183, %v2864
        %v2866 = vpop.f32.mrb[0].mxu0
        %2867 = vdwg.mxu0
        %v2868 = vmax.f32 %v2253, 0.0
        %v2869 = vmax.f32 %v2256, 0.0
        %v2870 = vmax.f32 %v2261, 0.0
        %v2871 = vmax.f32 %v2264, 0.0
        %v2872 = vmax.f32 %v2269, 0.0
        %v2873 = vmax.f32 %v2272, 0.0
        %v2874 = vmax.f32 %v2277, 0.0
        %v2875 = vmax.f32 %v2280, 0.0
        %v2876 = vmax.f32 %v2318, 0.0
        %v2877 = vmax.f32 %v2321, 0.0
        %v2878 = vmax.f32 %v2326, 0.0
        %v2879 = vmax.f32 %v2329, 0.0
        %v2880 = vmax.f32 %v2334, 0.0
        %v2881 = vmax.f32 %v2337, 0.0
        %v2882 = vmax.f32 %v2342, 0.0
        %v2883 = vmax.f32 %v2345, 0.0
        %v2884 = vmax.f32 %v2383, 0.0
        %v2885 = vmax.f32 %v2386, 0.0
        %v2886 = vmax.f32 %v2391, 0.0
        %v2887 = vmax.f32 %v2394, 0.0
        %v2888 = vmax.f32 %v2399, 0.0
        %v2889 = vmax.f32 %v2402, 0.0
        %v2890 = vmax.f32 %v2407, 0.0
        %v2891 = vmax.f32 %v2410, 0.0
        %v2892 = vmax.f32 %v2448, 0.0
        %v2893 = vmax.f32 %v2451, 0.0
        %v2894 = vmax.f32 %v2456, 0.0
        %v2895 = vmax.f32 %v2459, 0.0
        %v2896 = vmax.f32 %v2464, 0.0
        %v2897 = vmax.f32 %v2467, 0.0
        %v2898 = vmax.f32 %v2472, 0.0
        %v2899 = vmax.f32 %v2475, 0.0
        %v2900 = vmax.f32 %v2513, 0.0
        %v2901 = vmax.f32 %v2516, 0.0
        %v2902 = vmax.f32 %v2521, 0.0
        %v2903 = vmax.f32 %v2524, 0.0
        %v2904 = vmax.f32 %v2529, 0.0
        %v2905 = vmax.f32 %v2532, 0.0
        %v2906 = vmax.f32 %v2537, 0.0
        %v2907 = vmax.f32 %v2540, 0.0
        %v2908 = vmax.f32 %v2578, 0.0
        %v2909 = vmax.f32 %v2581, 0.0
        %v2910 = vmax.f32 %v2586, 0.0
        %v2911 = vmax.f32 %v2589, 0.0
        %v2912 = vmax.f32 %v2594, 0.0
        %v2913 = vmax.f32 %v2597, 0.0
        %v2914 = vmax.f32 %v2602, 0.0
        %v2915 = vmax.f32 %v2605, 0.0
        %v2916 = vmax.f32 %v2643, 0.0
        %v2917 = vmax.f32 %v2646, 0.0
        %v2918 = vmax.f32 %v2651, 0.0
        %v2919 = vmax.f32 %v2654, 0.0
        %v2920 = vmax.f32 %v2659, 0.0
        %v2921 = vmax.f32 %v2662, 0.0
        %v2922 = vmax.f32 %v2667, 0.0
        %v2923 = vmax.f32 %v2670, 0.0
        %v2924 = vmax.f32 %v2708, 0.0
        %v2925 = vmax.f32 %v2711, 0.0
        %v2926 = vmax.f32 %v2716, 0.0
        %v2927 = vmax.f32 %v2719, 0.0
        %v2928 = vmax.f32 %v2724, 0.0
        %v2929 = vmax.f32 %v2727, 0.0
        %v2930 = vmax.f32 %v2732, 0.0
        %v2931 = vmax.f32 %v2735, 0.0
        %v2932 = vmax.f32 %v2773, 0.0
        %v2933 = vmax.f32 %v2776, 0.0
        %v2934 = vmax.f32 %v2781, 0.0
        %v2935 = vmax.f32 %v2784, 0.0
        %v2936 = vmax.f32 %v2789, 0.0
        %v2937 = vmax.f32 %v2792, 0.0
        %v2938 = vmax.f32 %v2797, 0.0
        %v2939 = vmax.f32 %v2800, 0.0
        %v2940 = vmax.f32 %v2838, 0.0
        %v2941 = vmax.f32 %v2841, 0.0
        %v2942 = vmax.f32 %v2846, 0.0
        %v2943 = vmax.f32 %v2849, 0.0
        %v2944 = vmax.f32 %v2854, 0.0
        %v2945 = vmax.f32 %v2857, 0.0
        %v2946 = vmax.f32 %v2862, 0.0
        %v2947 = vmax.f32 %v2865, 0.0
        %s2948 = ssub.s32 %s640, 1
        %v2949 = vstv %s2948
        %v2950 = vadd.s32 %v2949, 1
        %v2951 = vadd.s32 %v2949, 2
        %v2952 = vadd.s32 %v2949, 3
        %v2953 = vadd.s32 %v2949, 4
        %v2954 = vadd.s32 %v2949, 5
        %v2955 = vadd.s32 %v2949, 6
        %v2956 = vadd.s32 %v2949, 7
        %v2957 = vadd.s32 %v2949, 8
        %v2958 = vadd.s32 %v2949, 9
        %v2959 = vlaneseq
        %v2960 = vand.u32 %v2959, 127
        %vm2961 = vcmp.ge.s32.totalorder %v2949, 0
        %vm2962 = vcmp.ge.s32.totalorder %v2950, 0
        %vm2963 = vcmp.ge.s32.totalorder %v2951, 0
        %vm2964 = vcmp.ge.s32.totalorder %v2952, 0
        %vm2965 = vcmp.ge.s32.totalorder %v2953, 0
        %vm2966 = vcmp.ge.s32.totalorder %v2954, 0
        %vm2967 = vcmp.ge.s32.totalorder %v2955, 0
        %vm2968 = vcmp.ge.s32.totalorder %v2956, 0
        %vm2969 = vcmp.ge.s32.totalorder %v2957, 0
        %vm2970 = vcmp.ge.s32.totalorder %v2958, 0
        %vm2971 = vcmp.lt.s32.totalorder %v2949, 16
        %vm2972 = vcmp.lt.s32.totalorder %v2950, 16
        %vm2973 = vcmp.lt.s32.totalorder %v2951, 16
        %vm2974 = vcmp.lt.s32.totalorder %v2952, 16
        %vm2975 = vcmp.lt.s32.totalorder %v2953, 16
        %vm2976 = vcmp.lt.s32.totalorder %v2954, 16
        %vm2977 = vcmp.lt.s32.totalorder %v2955, 16
        %vm2978 = vcmp.lt.s32.totalorder %v2956, 16
        %vm2979 = vcmp.lt.s32.totalorder %v2957, 16
        %vm2980 = vcmp.lt.s32.totalorder %v2958, 16
        %vm2981 = vmand %vm2961, %vm2971
        %vm2982 = vmand %vm2962, %vm2972
        %vm2983 = vmand %vm2963, %vm2973
        %vm2984 = vmand %vm2964, %vm2974
        %vm2985 = vmand %vm2965, %vm2975
        %vm2986 = vmand %vm2966, %vm2976
        %vm2987 = vmand %vm2967, %vm2977
        %vm2988 = vmand %vm2968, %vm2978
        %vm2989 = vmand %vm2969, %vm2979
        %vm2990 = vmand %vm2970, %vm2980
        %vm2991 = vcmp.ge.s32.totalorder %v2960, 1
        %vm2992 = vmand %vm2981, %vm2991
        %vm2993 = vmand %vm2982, %vm2991
        %vm2994 = vmand %vm2983, %vm2991
        %vm2995 = vmand %vm2984, %vm2991
        %vm2996 = vmand %vm2985, %vm2991
        %vm2997 = vmand %vm2986, %vm2991
        %vm2998 = vmand %vm2987, %vm2991
        %vm2999 = vmand %vm2988, %vm2991
        %vm3000 = vmand %vm2989, %vm2991
        %vm3001 = vmand %vm2990, %vm2991
        %vm3002 = vcmp.le.s32.totalorder %v2960, 16
        %vm3003 = vmand %vm2992, %vm3002
        %vm3004 = vmand %vm2993, %vm3002
        %vm3005 = vmand %vm2994, %vm3002
        %vm3006 = vmand %vm2995, %vm3002
        %vm3007 = vmand %vm2996, %vm3002
        %vm3008 = vmand %vm2997, %vm3002
        %vm3009 = vmand %vm2998, %vm3002
        %vm3010 = vmand %vm2999, %vm3002
        %vm3011 = vmand %vm3000, %vm3002
        %vm3012 = vmand %vm3001, %vm3002
        %v3013 = vsel %vm3003, 1, 0
        %v3014 = vsel %vm3004, 1, 0
        %v3015 = vsel %vm3005, 1, 0
        %v3016 = vsel %vm3006, 1, 0
        %v3017 = vsel %vm3007, 1, 0
        %v3018 = vsel %vm3008, 1, 0
        %v3019 = vsel %vm3009, 1, 0
        %v3020 = vsel %vm3010, 1, 0
        %v3021 = vsel %vm3011, 1, 0
        %v3022 = vsel %vm3012, 1, 0
        %v3023 = vcvt.s32.f32 %v3013
        %v3024 = vcvt.s32.f32 %v3014
        %v3025 = vcvt.s32.f32 %v3015
        %v3026 = vcvt.s32.f32 %v3016
        %v3027 = vcvt.s32.f32 %v3017
        %v3028 = vcvt.s32.f32 %v3018
        %v3029 = vcvt.s32.f32 %v3019
        %v3030 = vcvt.s32.f32 %v3020
        %v3031 = vcvt.s32.f32 %v3021
        %v3032 = vcvt.s32.f32 %v3022
        %v3033 = vmul.f32 %v2868, %v3023
        %v3034 = vmul.f32 %v2869, %v3023
        %v3035 = vmul.f32 %v2870, %v3023
        %v3036 = vmul.f32 %v2871, %v3023
        %v3037 = vmul.f32 %v2872, %v3023
        %v3038 = vmul.f32 %v2873, %v3023
        %v3039 = vmul.f32 %v2874, %v3023
        %v3040 = vmul.f32 %v2875, %v3023
        %v3041 = vmul.f32 %v2876, %v3024
        %v3042 = vmul.f32 %v2877, %v3024
        %v3043 = vmul.f32 %v2878, %v3024
        %v3044 = vmul.f32 %v2879, %v3024
        %v3045 = vmul.f32 %v2880, %v3024
        %v3046 = vmul.f32 %v2881, %v3024
        %v3047 = vmul.f32 %v2882, %v3024
        %v3048 = vmul.f32 %v2883, %v3024
        %v3049 = vmul.f32 %v2884, %v3025
        %v3050 = vmul.f32 %v2885, %v3025
        %v3051 = vmul.f32 %v2886, %v3025
        %v3052 = vmul.f32 %v2887, %v3025
        %v3053 = vmul.f32 %v2888, %v3025
        %v3054 = vmul.f32 %v2889, %v3025
        %v3055 = vmul.f32 %v2890, %v3025
        %v3056 = vmul.f32 %v2891, %v3025
        %v3057 = vmul.f32 %v2892, %v3026
        %v3058 = vmul.f32 %v2893, %v3026
        %v3059 = vmul.f32 %v2894, %v3026
        %v3060 = vmul.f32 %v2895, %v3026
        %v3061 = vmul.f32 %v2896, %v3026
        %v3062 = vmul.f32 %v2897, %v3026
        %v3063 = vmul.f32 %v2898, %v3026
        %v3064 = vmul.f32 %v2899, %v3026
        %v3065 = vmul.f32 %v2900, %v3027
        %v3066 = vmul.f32 %v2901, %v3027
        %v3067 = vmul.f32 %v2902, %v3027
        %v3068 = vmul.f32 %v2903, %v3027
        %v3069 = vmul.f32 %v2904, %v3027
        %v3070 = vmul.f32 %v2905, %v3027
        %v3071 = vmul.f32 %v2906, %v3027
        %v3072 = vmul.f32 %v2907, %v3027
        %v3073 = vmul.f32 %v2908, %v3028
        %v3074 = vmul.f32 %v2909, %v3028
        %v3075 = vmul.f32 %v2910, %v3028
        %v3076 = vmul.f32 %v2911, %v3028
        %v3077 = vmul.f32 %v2912, %v3028
        %v3078 = vmul.f32 %v2913, %v3028
        %v3079 = vmul.f32 %v2914, %v3028
        %v3080 = vmul.f32 %v2915, %v3028
        %v3081 = vmul.f32 %v2916, %v3029
        %v3082 = vmul.f32 %v2917, %v3029
        %v3083 = vmul.f32 %v2918, %v3029
        %v3084 = vmul.f32 %v2919, %v3029
        %v3085 = vmul.f32 %v2920, %v3029
        %v3086 = vmul.f32 %v2921, %v3029
        %v3087 = vmul.f32 %v2922, %v3029
        %v3088 = vmul.f32 %v2923, %v3029
        %v3089 = vmul.f32 %v2924, %v3030
        %v3090 = vmul.f32 %v2925, %v3030
        %v3091 = vmul.f32 %v2926, %v3030
        %v3092 = vmul.f32 %v2927, %v3030
        %v3093 = vmul.f32 %v2928, %v3030
        %v3094 = vmul.f32 %v2929, %v3030
        %v3095 = vmul.f32 %v2930, %v3030
        %v3096 = vmul.f32 %v2931, %v3030
        %v3097 = vmul.f32 %v2932, %v3031
        %v3098 = vmul.f32 %v2933, %v3031
        %v3099 = vmul.f32 %v2934, %v3031
        %v3100 = vmul.f32 %v2935, %v3031
        %v3101 = vmul.f32 %v2936, %v3031
        %v3102 = vmul.f32 %v2937, %v3031
        %v3103 = vmul.f32 %v2938, %v3031
        %v3104 = vmul.f32 %v2939, %v3031
        %v3105 = vmul.f32 %v2940, %v3032
        %v3106 = vmul.f32 %v2941, %v3032
        %v3107 = vmul.f32 %v2942, %v3032
        %v3108 = vmul.f32 %v2943, %v3032
        %v3109 = vmul.f32 %v2944, %v3032
        %v3110 = vmul.f32 %v2945, %v3032
        %v3111 = vmul.f32 %v2946, %v3032
        %v3112 = vmul.f32 %v2947, %v3032
        %v3113 = vld [vmem:[#allocation18] sm:$0xf]
        %v3114 = vld [vmem:[#allocation18 + $0x4] sm:$0xf]
        %v3115 = vld [vmem:[#allocation18 + $0x8] sm:$0xf]
        %v3116 = vld [vmem:[#allocation18 + $0xc] sm:$0x3]
        %v3117 = vpack.c.bf16 %v3034, %v3033
        %v3118 = vpack.c.bf16 %v3036, %v3035
        %v3119 = vpack.c.bf16 %v3038, %v3037
        %v3120 = vpack.c.bf16 %v3040, %v3039
        %v3121 = vpack.c.bf16 %v3042, %v3041
        %v3122 = vpack.c.bf16 %v3044, %v3043
        %v3123 = vpack.c.bf16 %v3046, %v3045
        %v3124 = vpack.c.bf16 %v3048, %v3047
        %v3125 = vpack.c.bf16 %v3050, %v3049
        %v3126 = vpack.c.bf16 %v3052, %v3051
        %v3127 = vpack.c.bf16 %v3054, %v3053
        %v3128 = vpack.c.bf16 %v3056, %v3055
        %v3129 = vpack.c.bf16 %v3058, %v3057
        %v3130 = vpack.c.bf16 %v3060, %v3059
        %v3131 = vpack.c.bf16 %v3062, %v3061
        %v3132 = vpack.c.bf16 %v3064, %v3063
        %v3133 = vpack.c.bf16 %v3066, %v3065
        %v3134 = vpack.c.bf16 %v3068, %v3067
        %v3135 = vpack.c.bf16 %v3070, %v3069
        %v3136 = vpack.c.bf16 %v3072, %v3071
        %v3137 = vpack.c.bf16 %v3074, %v3073
        %v3138 = vpack.c.bf16 %v3076, %v3075
        %v3139 = vpack.c.bf16 %v3078, %v3077
        %v3140 = vpack.c.bf16 %v3080, %v3079
        %v3141 = vpack.c.bf16 %v3082, %v3081
        %v3142 = vpack.c.bf16 %v3084, %v3083
        %v3143 = vpack.c.bf16 %v3086, %v3085
        %v3144 = vpack.c.bf16 %v3088, %v3087
        %v3145 = vpack.c.bf16 %v3090, %v3089
        %v3146 = vpack.c.bf16 %v3092, %v3091
        %v3147 = vpack.c.bf16 %v3094, %v3093
        %v3148 = vpack.c.bf16 %v3096, %v3095
        %v3149 = vpack.c.bf16 %v3098, %v3097
        %v3150 = vpack.c.bf16 %v3100, %v3099
        %v3151 = vpack.c.bf16 %v3102, %v3101
        %v3152 = vpack.c.bf16 %v3104, %v3103
        %v3153 = vpack.c.bf16 %v3106, %v3105
        %v3154 = vpack.c.bf16 %v3108, %v3107
        %v3155 = vpack.c.bf16 %v3110, %v3109
        %v3156 = vpack.c.bf16 %v3112, %v3111
        %v3161 = vunpack.c.l.b16 %v3113
        %v3162 = vunpack.c.l.b16 %v3114
        %v3163 = vunpack.c.l.b16 %v3115
        %v3164 = vunpack.c.l.b16 %v3116
        %v3165 = vpack.c.b16 %v3162, %v3161
        %v3166 = vpack.c.b16 %v3164, %v3163
        %v3168 = vsel %vm2205, %v3165, 0
        %v3171 = vsel %vm2205, %v3166, 0
        %3173 = vmatprep.subr.bf16.mxu0 0
        %3174 = vmatpush1.bf16.msra.mxu0 %v3117
        %3175 = vmatprep.subr.bf16.mxu0 0
        %3176 = vmatpush1.bf16.msra.mxu0 %v3118
        %3177 = vmatprep.subr.bf16.mxu0 0
        %3178 = vmatpush1.bf16.msra.mxu0 %v3119
        %3179 = vmatprep.subr.bf16.mxu0 0
        %3180 = vmatpush1.bf16.msra.mxu0 %v3120
        %3181 = vmatprep.subr.bf16.mxu0 0
        %3182 = vmatpush1.bf16.msra.mxu0 0
        %3183 = vmatprep.subr.bf16.mxu0 0
        %3184 = vmatpush1.bf16.msra.mxu0 0
        %3185 = vmatprep.subr.bf16.mxu0 0
        %3186 = vmatpush1.bf16.msra.mxu0 0
        %3187 = vmatprep.subr.bf16.mxu0 0
        %3188 = vmatpush1.bf16.msra.mxu0 0
        %3189 = vmatprep.subr.bf16.mxu0 0
        %3190 = vmatpush1.bf16.msra.mxu0 0
        %3191 = vmatprep.subr.bf16.mxu0 0
        %3192 = vmatpush1.bf16.msra.mxu0 0
        %3193 = vmatprep.subr.bf16.mxu0 0
        %3194 = vmatpush1.bf16.msra.mxu0 0
        %3195 = vmatprep.subr.bf16.mxu0 0
        %3196 = vmatpush1.bf16.msra.mxu0 0
        %3197 = vmatprep.subr.bf16.mxu0 0
        %3198 = vmatpush1.bf16.msra.mxu0 0
        %3199 = vmatprep.subr.bf16.mxu0 0
        %3200 = vmatpush1.bf16.msra.mxu0 0
        %3201 = vmatprep.subr.bf16.mxu0 0
        %3202 = vmatpush1.bf16.msra.mxu0 0
        %3203 = vmatprep.subr.bf16.mxu0 0
        %3204 = vmatpush1.bf16.msra.mxu0 0
        %3205 = vmatprep.mubr.bf16.mxu0 0
        %3206 = vmatmul.mubr.bf16.gmra.mrb[0].mxu0 %v3168
        %v3207 = vpop.f32.mrb[0].mxu0
        %v3208 = vadd.f32 0.0, %v3207
        %v3209 = vpop.f32.mrb[0].mxu0
        %v3210 = vpop.f32.mrb[0].mxu0
        %v3211 = vadd.f32 0.0, %v3210
        %v3212 = vpop.f32.mrb[0].mxu0
        %3213 = vmatprep.mubr.bf16.mxu0 0
        %3214 = vmatmul.mubr.bf16.gmra.mrb[0].mxu0 %v3171
        %v3215 = vpop.f32.mrb[0].mxu0
        %v3216 = vpop.f32.mrb[0].mxu0
        %v3217 = vpop.f32.mrb[0].mxu0
        %v3218 = vpop.f32.mrb[0].mxu0
        %3219 = vdwg.mxu0
        %3220 = vmatprep.subr.bf16.mxu0 0
        %3221 = vmatpush1.bf16.msra.mxu0 %v3121
        %3222 = vmatprep.subr.bf16.mxu0 0
        %3223 = vmatpush1.bf16.msra.mxu0 %v3122
        %3224 = vmatprep.subr.bf16.mxu0 0
        %3225 = vmatpush1.bf16.msra.mxu0 %v3123
        %3226 = vmatprep.subr.bf16.mxu0 0
        %3227 = vmatpush1.bf16.msra.mxu0 %v3124
        %3228 = vmatprep.subr.bf16.mxu0 0
        %3229 = vmatpush1.bf16.msra.mxu0 0
        %3230 = vmatprep.subr.bf16.mxu0 0
        %3231 = vmatpush1.bf16.msra.mxu0 0
        %3232 = vmatprep.subr.bf16.mxu0 0
        %3233 = vmatpush1.bf16.msra.mxu0 0
        %3234 = vmatprep.subr.bf16.mxu0 0
        %3235 = vmatpush1.bf16.msra.mxu0 0
        %3236 = vmatprep.subr.bf16.mxu0 0
        %3237 = vmatpush1.bf16.msra.mxu0 0
        %3238 = vmatprep.subr.bf16.mxu0 0
        %3239 = vmatpush1.bf16.msra.mxu0 0
        %3240 = vmatprep.subr.bf16.mxu0 0
        %3241 = vmatpush1.bf16.msra.mxu0 0
        %3242 = vmatprep.subr.bf16.mxu0 0
        %3243 = vmatpush1.bf16.msra.mxu0 0
        %3244 = vmatprep.subr.bf16.mxu0 0
        %3245 = vmatpush1.bf16.msra.mxu0 0
        %3246 = vmatprep.subr.bf16.mxu0 0
        %3247 = vmatpush1.bf16.msra.mxu0 0
        %3248 = vmatprep.subr.bf16.mxu0 0
        %3249 = vmatpush1.bf16.msra.mxu0 0
        %3250 = vmatprep.subr.bf16.mxu0 0
        %3251 = vmatpush1.bf16.msra.mxu0 0
        %3252 = vmatprep.mubr.bf16.mxu0 0
        %3253 = vmatmul.mubr.bf16.gmra.mrb[0].mxu0 %v3168
        %v3254 = vpop.f32.mrb[0].mxu0
        %v3255 = vadd.f32 0.0, %v3254
        %v3256 = vpop.f32.mrb[0].mxu0
        %v3257 = vpop.f32.mrb[0].mxu0
        %v3258 = vadd.f32 0.0, %v3257
        %v3259 = vpop.f32.mrb[0].mxu0
        %3260 = vmatprep.mubr.bf16.mxu0 0
        %3261 = vmatmul.mubr.bf16.gmra.mrb[0].mxu0 %v3171
        %v3262 = vpop.f32.mrb[0].mxu0
        %v3263 = vadd.f32 0.0, %v3262
        %v3264 = vpop.f32.mrb[0].mxu0
        %v3265 = vpop.f32.mrb[0].mxu0
        %v3266 = vpop.f32.mrb[0].mxu0
        %3267 = vdwg.mxu0
        %3268 = vmatprep.subr.bf16.mxu0 0
        %3269 = vmatpush1.bf16.msra.mxu0 %v3125
        %3270 = vmatprep.subr.bf16.mxu0 0
        %3271 = vmatpush1.bf16.msra.mxu0 %v3126
        %3272 = vmatprep.subr.bf16.mxu0 0
        %3273 = vmatpush1.bf16.msra.mxu0 %v3127
        %3274 = vmatprep.subr.bf16.mxu0 0
        %3275 = vmatpush1.bf16.msra.mxu0 %v3128
        %3276 = vmatprep.subr.bf16.mxu0 0
        %3277 = vmatpush1.bf16.msra.mxu0 0
        %3278 = vmatprep.subr.bf16.mxu0 0
        %3279 = vmatpush1.bf16.msra.mxu0 0
        %3280 = vmatprep.subr.bf16.mxu0 0
        %3281 = vmatpush1.bf16.msra.mxu0 0
        %3282 = vmatprep.subr.bf16.mxu0 0
        %3283 = vmatpush1.bf16.msra.mxu0 0
        %3284 = vmatprep.subr.bf16.mxu0 0
        %3285 = vmatpush1.bf16.msra.mxu0 0
        %3286 = vmatprep.subr.bf16.mxu0 0
        %3287 = vmatpush1.bf16.msra.mxu0 0
        %3288 = vmatprep.subr.bf16.mxu0 0
        %3289 = vmatpush1.bf16.msra.mxu0 0
        %3290 = vmatprep.subr.bf16.mxu0 0
        %3291 = vmatpush1.bf16.msra.mxu0 0
        %3292 = vmatprep.subr.bf16.mxu0 0
        %3293 = vmatpush1.bf16.msra.mxu0 0
        %3294 = vmatprep.subr.bf16.mxu0 0
        %3295 = vmatpush1.bf16.msra.mxu0 0
        %3296 = vmatprep.subr.bf16.mxu0 0
        %3297 = vmatpush1.bf16.msra.mxu0 0
        %3298 = vmatprep.subr.bf16.mxu0 0
        %3299 = vmatpush1.bf16.msra.mxu0 0
        %3300 = vmatprep.mubr.bf16.mxu0 0
        %3301 = vmatmul.mubr.bf16.gmra.mrb[0].mxu0 %v3168
        %v3302 = vpop.f32.mrb[0].mxu0
        %v3303 = vadd.f32 0.0, %v3302
        %v3304 = vpop.f32.mrb[0].mxu0
        %v3305 = vpop.f32.mrb[0].mxu0
        %v3306 = vadd.f32 0.0, %v3305
        %v3307 = vpop.f32.mrb[0].mxu0
        %3308 = vmatprep.mubr.bf16.mxu0 0
        %3309 = vmatmul.mubr.bf16.gmra.mrb[0].mxu0 %v3171
        %v3310 = vpop.f32.mrb[0].mxu0
        %v3311 = vadd.f32 0.0, %v3310
        %v3312 = vpop.f32.mrb[0].mxu0
        %v3313 = vpop.f32.mrb[0].mxu0
        %v3314 = vadd.f32 0.0, %v3313
        %v3315 = vpop.f32.mrb[0].mxu0
        %3316 = vdwg.mxu0
        %3317 = vmatprep.subr.bf16.mxu0 0
        %3318 = vmatpush1.bf16.msra.mxu0 %v3129
        %3319 = vmatprep.subr.bf16.mxu0 0
        %3320 = vmatpush1.bf16.msra.mxu0 %v3130
        %3321 = vmatprep.subr.bf16.mxu0 0
        %3322 = vmatpush1.bf16.msra.mxu0 %v3131
        %3323 = vmatprep.subr.bf16.mxu0 0
        %3324 = vmatpush1.bf16.msra.mxu0 %v3132
        %3325 = vmatprep.subr.bf16.mxu0 0
        %3326 = vmatpush1.bf16.msra.mxu0 0
        %3327 = vmatprep.subr.bf16.mxu0 0
        %3328 = vmatpush1.bf16.msra.mxu0 0
        %3329 = vmatprep.subr.bf16.mxu0 0
        %3330 = vmatpush1.bf16.msra.mxu0 0
        %3331 = vmatprep.subr.bf16.mxu0 0
        %3332 = vmatpush1.bf16.msra.mxu0 0
        %3333 = vmatprep.subr.bf16.mxu0 0
        %3334 = vmatpush1.bf16.msra.mxu0 0
        %3335 = vmatprep.subr.bf16.mxu0 0
        %3336 = vmatpush1.bf16.msra.mxu0 0
        %3337 = vmatprep.subr.bf16.mxu0 0
        %3338 = vmatpush1.bf16.msra.mxu0 0
        %3339 = vmatprep.subr.bf16.mxu0 0
        %3340 = vmatpush1.bf16.msra.mxu0 0
        %3341 = vmatprep.subr.bf16.mxu0 0
        %3342 = vmatpush1.bf16.msra.mxu0 0
        %3343 = vmatprep.subr.bf16.mxu0 0
        %3344 = vmatpush1.bf16.msra.mxu0 0
        %3345 = vmatprep.subr.bf16.mxu0 0
        %3346 = vmatpush1.bf16.msra.mxu0 0
        %3347 = vmatprep.subr.bf16.mxu0 0
        %3348 = vmatpush1.bf16.msra.mxu0 0
        %3349 = vmatprep.mubr.bf16.mxu0 0
        %3350 = vmatmul.mubr.bf16.gmra.mrb[0].mxu0 %v3168
        %v3351 = vpop.f32.mrb[0].mxu0
        %v3352 = vadd.f32 0.0, %v3351
        %v3353 = vpop.f32.mrb[0].mxu0
        %v3354 = vpop.f32.mrb[0].mxu0
        %v3355 = vadd.f32 0.0, %v3354
        %v3356 = vpop.f32.mrb[0].mxu0
        %3357 = vmatprep.mubr.bf16.mxu0 0
        %3358 = vmatmul.mubr.bf16.gmra.mrb[0].mxu0 %v3171
        %v3359 = vpop.f32.mrb[0].mxu0
        %v3360 = vadd.f32 0.0, %v3359
        %v3361 = vpop.f32.mrb[0].mxu0
        %v3362 = vpop.f32.mrb[0].mxu0
        %v3363 = vadd.f32 0.0, %v3362
        %v3364 = vpop.f32.mrb[0].mxu0
        %3365 = vdwg.mxu0
        %3366 = vmatprep.subr.bf16.mxu0 0
        %3367 = vmatpush1.bf16.msra.mxu0 %v3133
        %3368 = vmatprep.subr.bf16.mxu0 0
        %3369 = vmatpush1.bf16.msra.mxu0 %v3134
        %3370 = vmatprep.subr.bf16.mxu0 0
        %3371 = vmatpush1.bf16.msra.mxu0 %v3135
        %3372 = vmatprep.subr.bf16.mxu0 0
        %3373 = vmatpush1.bf16.msra.mxu0 %v3136
        %3374 = vmatprep.subr.bf16.mxu0 0
        %3375 = vmatpush1.bf16.msra.mxu0 0
        %3376 = vmatprep.subr.bf16.mxu0 0
        %3377 = vmatpush1.bf16.msra.mxu0 0
        %3378 = vmatprep.subr.bf16.mxu0 0
        %3379 = vmatpush1.bf16.msra.mxu0 0
        %3380 = vmatprep.subr.bf16.mxu0 0
        %3381 = vmatpush1.bf16.msra.mxu0 0
        %3382 = vmatprep.subr.bf16.mxu0 0
        %3383 = vmatpush1.bf16.msra.mxu0 0
        %3384 = vmatprep.subr.bf16.mxu0 0
        %3385 = vmatpush1.bf16.msra.mxu0 0
        %3386 = vmatprep.subr.bf16.mxu0 0
        %3387 = vmatpush1.bf16.msra.mxu0 0
        %3388 = vmatprep.subr.bf16.mxu0 0
        %3389 = vmatpush1.bf16.msra.mxu0 0
        %3390 = vmatprep.subr.bf16.mxu0 0
        %3391 = vmatpush1.bf16.msra.mxu0 0
        %3392 = vmatprep.subr.bf16.mxu0 0
        %3393 = vmatpush1.bf16.msra.mxu0 0
        %3394 = vmatprep.subr.bf16.mxu0 0
        %3395 = vmatpush1.bf16.msra.mxu0 0
        %3396 = vmatprep.subr.bf16.mxu0 0
        %3397 = vmatpush1.bf16.msra.mxu0 0
        %3398 = vmatprep.mubr.bf16.mxu0 0
        %3399 = vmatmul.mubr.bf16.gmra.mrb[0].mxu0 %v3168
        %v3400 = vpop.f32.mrb[0].mxu0
        %v3401 = vadd.f32 0.0, %v3400
        %v3402 = vpop.f32.mrb[0].mxu0
        %v3403 = vpop.f32.mrb[0].mxu0
        %v3404 = vadd.f32 0.0, %v3403
        %v3405 = vpop.f32.mrb[0].mxu0
        %3406 = vmatprep.mubr.bf16.mxu0 0
        %3407 = vmatmul.mubr.bf16.gmra.mrb[0].mxu0 %v3171
        %v3408 = vpop.f32.mrb[0].mxu0
        %v3409 = vadd.f32 0.0, %v3408
        %v3410 = vpop.f32.mrb[0].mxu0
        %v3411 = vpop.f32.mrb[0].mxu0
        %v3412 = vadd.f32 0.0, %v3411
        %v3413 = vpop.f32.mrb[0].mxu0
        %3414 = vdwg.mxu0
        %3415 = vmatprep.subr.bf16.mxu0 0
        %3416 = vmatpush1.bf16.msra.mxu0 %v3137
        %3417 = vmatprep.subr.bf16.mxu0 0
        %3418 = vmatpush1.bf16.msra.mxu0 %v3138
        %3419 = vmatprep.subr.bf16.mxu0 0
        %3420 = vmatpush1.bf16.msra.mxu0 %v3139
        %3421 = vmatprep.subr.bf16.mxu0 0
        %3422 = vmatpush1.bf16.msra.mxu0 %v3140
        %3423 = vmatprep.subr.bf16.mxu0 0
        %3424 = vmatpush1.bf16.msra.mxu0 0
        %3425 = vmatprep.subr.bf16.mxu0 0
        %3426 = vmatpush1.bf16.msra.mxu0 0
        %3427 = vmatprep.subr.bf16.mxu0 0
        %3428 = vmatpush1.bf16.msra.mxu0 0
        %3429 = vmatprep.subr.bf16.mxu0 0
        %3430 = vmatpush1.bf16.msra.mxu0 0
        %3431 = vmatprep.subr.bf16.mxu0 0
        %3432 = vmatpush1.bf16.msra.mxu0 0
        %3433 = vmatprep.subr.bf16.mxu0 0
        %3434 = vmatpush1.bf16.msra.mxu0 0
        %3435 = vmatprep.subr.bf16.mxu0 0
        %3436 = vmatpush1.bf16.msra.mxu0 0
        %3437 = vmatprep.subr.bf16.mxu0 0
        %3438 = vmatpush1.bf16.msra.mxu0 0
        %3439 = vmatprep.subr.bf16.mxu0 0
        %3440 = vmatpush1.bf16.msra.mxu0 0
        %3441 = vmatprep.subr.bf16.mxu0 0
        %3442 = vmatpush1.bf16.msra.mxu0 0
        %3443 = vmatprep.subr.bf16.mxu0 0
        %3444 = vmatpush1.bf16.msra.mxu0 0
        %3445 = vmatprep.subr.bf16.mxu0 0
        %3446 = vmatpush1.bf16.msra.mxu0 0
        %3447 = vmatprep.mubr.bf16.mxu0 0
        %3448 = vmatmul.mubr.bf16.gmra.mrb[0].mxu0 %v3168
        %v3449 = vpop.f32.mrb[0].mxu0
        %v3450 = vadd.f32 0.0, %v3449
        %v3451 = vpop.f32.mrb[0].mxu0
        %v3452 = vpop.f32.mrb[0].mxu0
        %v3453 = vadd.f32 0.0, %v3452
        %v3454 = vpop.f32.mrb[0].mxu0
        %3455 = vmatprep.mubr.bf16.mxu0 0
        %3456 = vmatmul.mubr.bf16.gmra.mrb[0].mxu0 %v3171
        %v3457 = vpop.f32.mrb[0].mxu0
        %v3458 = vadd.f32 0.0, %v3457
        %v3459 = vpop.f32.mrb[0].mxu0
        %v3460 = vpop.f32.mrb[0].mxu0
        %v3461 = vadd.f32 0.0, %v3460
        %v3462 = vpop.f32.mrb[0].mxu0
        %3463 = vdwg.mxu0
        %3464 = vmatprep.subr.bf16.mxu0 0
        %3465 = vmatpush1.bf16.msra.mxu0 %v3141
        %3466 = vmatprep.subr.bf16.mxu0 0
        %3467 = vmatpush1.bf16.msra.mxu0 %v3142
        %3468 = vmatprep.subr.bf16.mxu0 0
        %3469 = vmatpush1.bf16.msra.mxu0 %v3143
        %3470 = vmatprep.subr.bf16.mxu0 0
        %3471 = vmatpush1.bf16.msra.mxu0 %v3144
        %3472 = vmatprep.subr.bf16.mxu0 0
        %3473 = vmatpush1.bf16.msra.mxu0 0
        %3474 = vmatprep.subr.bf16.mxu0 0
        %3475 = vmatpush1.bf16.msra.mxu0 0
        %3476 = vmatprep.subr.bf16.mxu0 0
        %3477 = vmatpush1.bf16.msra.mxu0 0
        %3478 = vmatprep.subr.bf16.mxu0 0
        %3479 = vmatpush1.bf16.msra.mxu0 0
        %3480 = vmatprep.subr.bf16.mxu0 0
        %3481 = vmatpush1.bf16.msra.mxu0 0
        %3482 = vmatprep.subr.bf16.mxu0 0
        %3483 = vmatpush1.bf16.msra.mxu0 0
        %3484 = vmatprep.subr.bf16.mxu0 0
        %3485 = vmatpush1.bf16.msra.mxu0 0
        %3486 = vmatprep.subr.bf16.mxu0 0
        %3487 = vmatpush1.bf16.msra.mxu0 0
        %3488 = vmatprep.subr.bf16.mxu0 0
        %3489 = vmatpush1.bf16.msra.mxu0 0
        %3490 = vmatprep.subr.bf16.mxu0 0
        %3491 = vmatpush1.bf16.msra.mxu0 0
        %3492 = vmatprep.subr.bf16.mxu0 0
        %3493 = vmatpush1.bf16.msra.mxu0 0
        %3494 = vmatprep.subr.bf16.mxu0 0
        %3495 = vmatpush1.bf16.msra.mxu0 0
        %3496 = vmatprep.mubr.bf16.mxu0 0
        %3497 = vmatmul.mubr.bf16.gmra.mrb[0].mxu0 %v3168
        %v3498 = vpop.f32.mrb[0].mxu0
        %v3499 = vadd.f32 0.0, %v3498
        %v3500 = vpop.f32.mrb[0].mxu0
        %v3501 = vpop.f32.mrb[0].mxu0
        %v3502 = vadd.f32 0.0, %v3501
        %v3503 = vpop.f32.mrb[0].mxu0
        %3504 = vmatprep.mubr.bf16.mxu0 0
        %3505 = vmatmul.mubr.bf16.gmra.mrb[0].mxu0 %v3171
        %v3506 = vpop.f32.mrb[0].mxu0
        %v3507 = vadd.f32 0.0, %v3506
        %v3508 = vpop.f32.mrb[0].mxu0
        %v3509 = vpop.f32.mrb[0].mxu0
        %v3510 = vadd.f32 0.0, %v3509
        %v3511 = vpop.f32.mrb[0].mxu0
        %3512 = vdwg.mxu0
        %3513 = vmatprep.subr.bf16.mxu0 0
        %3514 = vmatpush1.bf16.msra.mxu0 %v3145
        %3515 = vmatprep.subr.bf16.mxu0 0
        %3516 = vmatpush1.bf16.msra.mxu0 %v3146
        %3517 = vmatprep.subr.bf16.mxu0 0
        %3518 = vmatpush1.bf16.msra.mxu0 %v3147
        %3519 = vmatprep.subr.bf16.mxu0 0
        %3520 = vmatpush1.bf16.msra.mxu0 %v3148
        %3521 = vmatprep.subr.bf16.mxu0 0
        %3522 = vmatpush1.bf16.msra.mxu0 0
        %3523 = vmatprep.subr.bf16.mxu0 0
        %3524 = vmatpush1.bf16.msra.mxu0 0
        %3525 = vmatprep.subr.bf16.mxu0 0
        %3526 = vmatpush1.bf16.msra.mxu0 0
        %3527 = vmatprep.subr.bf16.mxu0 0
        %3528 = vmatpush1.bf16.msra.mxu0 0
        %3529 = vmatprep.subr.bf16.mxu0 0
        %3530 = vmatpush1.bf16.msra.mxu0 0
        %3531 = vmatprep.subr.bf16.mxu0 0
        %3532 = vmatpush1.bf16.msra.mxu0 0
        %3533 = vmatprep.subr.bf16.mxu0 0
        %3534 = vmatpush1.bf16.msra.mxu0 0
        %3535 = vmatprep.subr.bf16.mxu0 0
        %3536 = vmatpush1.bf16.msra.mxu0 0
        %3537 = vmatprep.subr.bf16.mxu0 0
        %3538 = vmatpush1.bf16.msra.mxu0 0
        %3539 = vmatprep.subr.bf16.mxu0 0
        %3540 = vmatpush1.bf16.msra.mxu0 0
        %3541 = vmatprep.subr.bf16.mxu0 0
        %3542 = vmatpush1.bf16.msra.mxu0 0
        %3543 = vmatprep.subr.bf16.mxu0 0
        %3544 = vmatpush1.bf16.msra.mxu0 0
        %3545 = vmatprep.mubr.bf16.mxu0 0
        %3546 = vmatmul.mubr.bf16.gmra.mrb[0].mxu0 %v3168
        %v3547 = vpop.f32.mrb[0].mxu0
        %v3548 = vadd.f32 0.0, %v3547
        %v3549 = vpop.f32.mrb[0].mxu0
        %v3550 = vpop.f32.mrb[0].mxu0
        %v3551 = vadd.f32 0.0, %v3550
        %v3552 = vpop.f32.mrb[0].mxu0
        %3553 = vmatprep.mubr.bf16.mxu0 0
        %3554 = vmatmul.mubr.bf16.gmra.mrb[0].mxu0 %v3171
        %v3555 = vpop.f32.mrb[0].mxu0
        %v3556 = vadd.f32 0.0, %v3555
        %v3557 = vpop.f32.mrb[0].mxu0
        %v3558 = vpop.f32.mrb[0].mxu0
        %v3559 = vadd.f32 0.0, %v3558
        %v3560 = vpop.f32.mrb[0].mxu0
        %3561 = vdwg.mxu0
        %3562 = vmatprep.subr.bf16.mxu0 0
        %3563 = vmatpush1.bf16.msra.mxu0 %v3149
        %3564 = vmatprep.subr.bf16.mxu0 0
        %3565 = vmatpush1.bf16.msra.mxu0 %v3150
        %3566 = vmatprep.subr.bf16.mxu0 0
        %3567 = vmatpush1.bf16.msra.mxu0 %v3151
        %3568 = vmatprep.subr.bf16.mxu0 0
        %3569 = vmatpush1.bf16.msra.mxu0 %v3152
        %3570 = vmatprep.subr.bf16.mxu0 0
        %3571 = vmatpush1.bf16.msra.mxu0 0
        %3572 = vmatprep.subr.bf16.mxu0 0
        %3573 = vmatpush1.bf16.msra.mxu0 0
        %3574 = vmatprep.subr.bf16.mxu0 0
        %3575 = vmatpush1.bf16.msra.mxu0 0
        %3576 = vmatprep.subr.bf16.mxu0 0
        %3577 = vmatpush1.bf16.msra.mxu0 0
        %3578 = vmatprep.subr.bf16.mxu0 0
        %3579 = vmatpush1.bf16.msra.mxu0 0
        %3580 = vmatprep.subr.bf16.mxu0 0
        %3581 = vmatpush1.bf16.msra.mxu0 0
        %3582 = vmatprep.subr.bf16.mxu0 0
        %3583 = vmatpush1.bf16.msra.mxu0 0
        %3584 = vmatprep.subr.bf16.mxu0 0
        %3585 = vmatpush1.bf16.msra.mxu0 0
        %3586 = vmatprep.subr.bf16.mxu0 0
        %3587 = vmatpush1.bf16.msra.mxu0 0
        %3588 = vmatprep.subr.bf16.mxu0 0
        %3589 = vmatpush1.bf16.msra.mxu0 0
        %3590 = vmatprep.subr.bf16.mxu0 0
        %3591 = vmatpush1.bf16.msra.mxu0 0
        %3592 = vmatprep.subr.bf16.mxu0 0
        %3593 = vmatpush1.bf16.msra.mxu0 0
        %3594 = vmatprep.mubr.bf16.mxu0 0
        %3595 = vmatmul.mubr.bf16.gmra.mrb[0].mxu0 %v3168
        %v3596 = vpop.f32.mrb[0].mxu0
        %v3597 = vpop.f32.mrb[0].mxu0
        %v3598 = vpop.f32.mrb[0].mxu0
        %v3599 = vadd.f32 0.0, %v3598
        %v3600 = vpop.f32.mrb[0].mxu0
        %3601 = vmatprep.mubr.bf16.mxu0 0
        %3602 = vmatmul.mubr.bf16.gmra.mrb[0].mxu0 %v3171
        %v3603 = vpop.f32.mrb[0].mxu0
        %v3604 = vadd.f32 0.0, %v3603
        %v3605 = vpop.f32.mrb[0].mxu0
        %v3606 = vpop.f32.mrb[0].mxu0
        %v3607 = vadd.f32 0.0, %v3606
        %v3608 = vpop.f32.mrb[0].mxu0
        %3609 = vdwg.mxu0
        %3610 = vmatprep.subr.bf16.mxu0 0
        %3611 = vmatpush1.bf16.msra.mxu0 %v3153
        %3612 = vmatprep.subr.bf16.mxu0 0
        %3613 = vmatpush1.bf16.msra.mxu0 %v3154
        %3614 = vmatprep.subr.bf16.mxu0 0
        %3615 = vmatpush1.bf16.msra.mxu0 %v3155
        %3616 = vmatprep.subr.bf16.mxu0 0
        %3617 = vmatpush1.bf16.msra.mxu0 %v3156
        %3618 = vmatprep.subr.bf16.mxu0 0
        %3619 = vmatpush1.bf16.msra.mxu0 0
        %3620 = vmatprep.subr.bf16.mxu0 0
        %3621 = vmatpush1.bf16.msra.mxu0 0
        %3622 = vmatprep.subr.bf16.mxu0 0
        %3623 = vmatpush1.bf16.msra.mxu0 0
        %3624 = vmatprep.subr.bf16.mxu0 0
        %3625 = vmatpush1.bf16.msra.mxu0 0
        %3626 = vmatprep.subr.bf16.mxu0 0
        %3627 = vmatpush1.bf16.msra.mxu0 0
        %3628 = vmatprep.subr.bf16.mxu0 0
        %3629 = vmatpush1.bf16.msra.mxu0 0
        %3630 = vmatprep.subr.bf16.mxu0 0
        %3631 = vmatpush1.bf16.msra.mxu0 0
        %3632 = vmatprep.subr.bf16.mxu0 0
        %3633 = vmatpush1.bf16.msra.mxu0 0
        %3634 = vmatprep.subr.bf16.mxu0 0
        %3635 = vmatpush1.bf16.msra.mxu0 0
        %3636 = vmatprep.subr.bf16.mxu0 0
        %3637 = vmatpush1.bf16.msra.mxu0 0
        %3638 = vmatprep.subr.bf16.mxu0 0
        %3639 = vmatpush1.bf16.msra.mxu0 0
        %3640 = vmatprep.subr.bf16.mxu0 0
        %3641 = vmatpush1.bf16.msra.mxu0 0
        %3642 = vmatprep.mubr.bf16.mxu0 0
        %3643 = vmatmul.mubr.bf16.gmra.mrb[0].mxu0 %v3168
        %v3644 = vpop.f32.mrb[0].mxu0
        %v3645 = vpop.f32.mrb[0].mxu0
        %v3646 = vpop.f32.mrb[0].mxu0
        %v3647 = vpop.f32.mrb[0].mxu0
        %3648 = vmatprep.mubr.bf16.mxu0 0
        %3649 = vmatmul.mubr.bf16.gmra.mrb[0].mxu0 %v3171
        %v3650 = vpop.f32.mrb[0].mxu0
        %v3651 = vadd.f32 0.0, %v3650
        %v3652 = vpop.f32.mrb[0].mxu0
        %v3653 = vpop.f32.mrb[0].mxu0
        %v3654 = vadd.f32 0.0, %v3653
        %v3655 = vpop.f32.mrb[0].mxu0
        %3656 = vdwg.mxu0
        %v3665 = vrot.slane %v3208, 3
        %v3666 = vrot.slane %v3255, 3
        %v3667 = vrot.slane %v3303, 3
        %v3668 = vrot.slane %v3352, 3
        %v3669 = vrot.slane %v3401, 3
        %v3670 = vrot.slane %v3450, 3
        %v3671 = vrot.slane %v3499, 3
        %v3672 = vrot.slane %v3548, 3
        %3673 = vrot.lane.b32.xlu0 %v3665, 127
        %v3674 = vpop.permute.xlu0 %3673
        %3675 = vrot.lane.b32.xlu0 %v3666, 127
        %v3676 = vpop.permute.xlu0 %3675
        %3677 = vrot.lane.b32.xlu0 %v3667, 127
        %v3678 = vpop.permute.xlu0 %3677
        %3679 = vrot.lane.b32.xlu0 %v3668, 127
        %v3680 = vpop.permute.xlu0 %3679
        %3681 = vrot.lane.b32.xlu0 %v3669, 127
        %v3682 = vpop.permute.xlu0 %3681
        %3683 = vrot.lane.b32.xlu0 %v3670, 127
        %v3684 = vpop.permute.xlu0 %3683
        %3685 = vrot.lane.b32.xlu0 %v3671, 127
        %v3686 = vpop.permute.xlu0 %3685
        %3687 = vrot.lane.b32.xlu0 %v3672, 127
        %v3688 = vpop.permute.xlu0 %3687
        %v3697 = vadd.f32 %v3208, %v3674
        %v3698 = vadd.f32 %v3255, %v3676
        %v3699 = vadd.f32 %v3303, %v3678
        %v3700 = vadd.f32 %v3352, %v3680
        %v3701 = vadd.f32 %v3401, %v3682
        %v3702 = vadd.f32 %v3450, %v3684
        %v3703 = vadd.f32 %v3499, %v3686
        %v3704 = vadd.f32 %v3548, %v3688
        %vm3713 = vcmask 1041408
        %v3714 = vrot.slane %v3208, 6
        %v3715 = vrot.slane %v3211, 6
        %v3716 = vsel %vm3713, %v3714, %v3715
        %v3717 = vrot.slane %v3255, 6
        %v3718 = vrot.slane %v3258, 6
        %v3719 = vsel %vm3713, %v3717, %v3718
        %v3720 = vrot.slane %v3303, 6
        %v3721 = vrot.slane %v3306, 6
        %v3722 = vsel %vm3713, %v3720, %v3721
        %v3723 = vrot.slane %v3352, 6
        %v3724 = vrot.slane %v3355, 6
        %v3725 = vsel %vm3713, %v3723, %v3724
        %v3726 = vrot.slane %v3401, 6
        %v3727 = vrot.slane %v3404, 6
        %v3728 = vsel %vm3713, %v3726, %v3727
        %v3729 = vrot.slane %v3450, 6
        %v3730 = vrot.slane %v3453, 6
        %v3731 = vsel %vm3713, %v3729, %v3730
        %v3732 = vrot.slane %v3499, 6
        %v3733 = vrot.slane %v3502, 6
        %v3734 = vsel %vm3713, %v3732, %v3733
        %v3735 = vrot.slane %v3548, 6
        %v3736 = vrot.slane %v3551, 6
        %v3737 = vsel %vm3713, %v3735, %v3736
        %3738 = vrot.lane.b32.xlu0 %v3716, 126
        %v3739 = vpop.permute.xlu0 %3738
        %3740 = vrot.lane.b32.xlu0 %v3719, 126
        %v3741 = vpop.permute.xlu0 %3740
        %3742 = vrot.lane.b32.xlu0 %v3722, 126
        %v3743 = vpop.permute.xlu0 %3742
        %3744 = vrot.lane.b32.xlu0 %v3725, 126
        %v3745 = vpop.permute.xlu0 %3744
        %3746 = vrot.lane.b32.xlu0 %v3728, 126
        %v3747 = vpop.permute.xlu0 %3746
        %3748 = vrot.lane.b32.xlu0 %v3731, 126
        %v3749 = vpop.permute.xlu0 %3748
        %3750 = vrot.lane.b32.xlu0 %v3734, 126
        %v3751 = vpop.permute.xlu0 %3750
        %3752 = vrot.lane.b32.xlu0 %v3737, 126
        %v3753 = vpop.permute.xlu0 %3752
        %v3762 = vadd.f32 %v3697, %v3739
        %v3763 = vadd.f32 %v3698, %v3741
        %v3764 = vadd.f32 %v3699, %v3743
        %v3765 = vadd.f32 %v3700, %v3745
        %v3766 = vadd.f32 %v3701, %v3747
        %v3767 = vadd.f32 %v3702, %v3749
        %v3768 = vadd.f32 %v3703, %v3751
        %v3769 = vadd.f32 %v3704, %v3753
        %v3771 = vrot.slane %v3258, 1
        %v3772 = vrot.slane %v3306, 1
        %v3773 = vrot.slane %v3355, 1
        %v3774 = vrot.slane %v3404, 1
        %v3775 = vrot.slane %v3453, 1
        %v3776 = vrot.slane %v3502, 1
        %v3777 = vrot.slane %v3551, 1
        %v3778 = vrot.slane %v3599, 1
        %v3787 = vadd.f32 %v3762, %v3771
        %v3788 = vadd.f32 %v3763, %v3772
        %v3789 = vadd.f32 %v3764, %v3773
        %v3790 = vadd.f32 %v3765, %v3774
        %v3791 = vadd.f32 %v3766, %v3775
        %v3792 = vadd.f32 %v3767, %v3776
        %v3793 = vadd.f32 %v3768, %v3777
        %v3794 = vadd.f32 %v3769, %v3778
        %v3795 = vrot.slane %v3258, 4
        %v3796 = vrot.slane %v3306, 4
        %v3797 = vrot.slane %v3355, 4
        %v3798 = vrot.slane %v3404, 4
        %v3799 = vrot.slane %v3453, 4
        %v3800 = vrot.slane %v3502, 4
        %v3801 = vrot.slane %v3551, 4
        %v3802 = vrot.slane %v3599, 4
        %3803 = vrot.lane.b32.xlu0 %v3795, 127
        %v3804 = vpop.permute.xlu0 %3803
        %3805 = vrot.lane.b32.xlu0 %v3796, 127
        %v3806 = vpop.permute.xlu0 %3805
        %3807 = vrot.lane.b32.xlu0 %v3797, 127
        %v3808 = vpop.permute.xlu0 %3807
        %3809 = vrot.lane.b32.xlu0 %v3798, 127
        %v3810 = vpop.permute.xlu0 %3809
        %3811 = vrot.lane.b32.xlu0 %v3799, 127
        %v3812 = vpop.permute.xlu0 %3811
        %3813 = vrot.lane.b32.xlu0 %v3800, 127
        %v3814 = vpop.permute.xlu0 %3813
        %3815 = vrot.lane.b32.xlu0 %v3801, 127
        %v3816 = vpop.permute.xlu0 %3815
        %3817 = vrot.lane.b32.xlu0 %v3802, 127
        %v3818 = vpop.permute.xlu0 %3817
        %v3827 = vadd.f32 %v3787, %v3804
        %v3828 = vadd.f32 %v3788, %v3806
        %v3829 = vadd.f32 %v3789, %v3808
        %v3830 = vadd.f32 %v3790, %v3810
        %v3831 = vadd.f32 %v3791, %v3812
        %v3832 = vadd.f32 %v3792, %v3814
        %v3833 = vadd.f32 %v3793, %v3816
        %v3834 = vadd.f32 %v3794, %v3818
        %vm3843 = vcmask 1040384
        %v3844 = vrot.slane %v3258, 7
        %v3845 = vrot.slane %v3263, 7
        %v3846 = vsel %vm3843, %v3844, %v3845
        %v3847 = vrot.slane %v3306, 7
        %v3848 = vrot.slane %v3311, 7
        %v3849 = vsel %vm3843, %v3847, %v3848
        %v3850 = vrot.slane %v3355, 7
        %v3851 = vrot.slane %v3360, 7
        %v3852 = vsel %vm3843, %v3850, %v3851
        %v3853 = vrot.slane %v3404, 7
        %v3854 = vrot.slane %v3409, 7
        %v3855 = vsel %vm3843, %v3853, %v3854
        %v3856 = vrot.slane %v3453, 7
        %v3857 = vrot.slane %v3458, 7
        %v3858 = vsel %vm3843, %v3856, %v3857
        %v3859 = vrot.slane %v3502, 7
        %v3860 = vrot.slane %v3507, 7
        %v3861 = vsel %vm3843, %v3859, %v3860
        %v3862 = vrot.slane %v3551, 7
        %v3863 = vrot.slane %v3556, 7
        %v3864 = vsel %vm3843, %v3862, %v3863
        %v3865 = vrot.slane %v3599, 7
        %v3866 = vrot.slane %v3604, 7
        %v3867 = vsel %vm3843, %v3865, %v3866
        %3868 = vrot.lane.b32.xlu0 %v3846, 126
        %v3869 = vpop.permute.xlu0 %3868
        %3870 = vrot.lane.b32.xlu0 %v3849, 126
        %v3871 = vpop.permute.xlu0 %3870
        %3872 = vrot.lane.b32.xlu0 %v3852, 126
        %v3873 = vpop.permute.xlu0 %3872
        %3874 = vrot.lane.b32.xlu0 %v3855, 126
        %v3875 = vpop.permute.xlu0 %3874
        %3876 = vrot.lane.b32.xlu0 %v3858, 126
        %v3877 = vpop.permute.xlu0 %3876
        %3878 = vrot.lane.b32.xlu0 %v3861, 126
        %v3879 = vpop.permute.xlu0 %3878
        %3880 = vrot.lane.b32.xlu0 %v3864, 126
        %v3881 = vpop.permute.xlu0 %3880
        %3882 = vrot.lane.b32.xlu0 %v3867, 126
        %v3883 = vpop.permute.xlu0 %3882
        %v3892 = vadd.f32 %v3827, %v3869
        %v3893 = vadd.f32 %v3828, %v3871
        %v3894 = vadd.f32 %v3829, %v3873
        %v3895 = vadd.f32 %v3830, %v3875
        %v3896 = vadd.f32 %v3831, %v3877
        %v3897 = vadd.f32 %v3832, %v3879
        %v3898 = vadd.f32 %v3833, %v3881
        %v3899 = vadd.f32 %v3834, %v3883
        %v3901 = vrot.slane %v3311, 2
        %v3902 = vrot.slane %v3360, 2
        %v3903 = vrot.slane %v3409, 2
        %v3904 = vrot.slane %v3458, 2
        %v3905 = vrot.slane %v3507, 2
        %v3906 = vrot.slane %v3556, 2
        %v3907 = vrot.slane %v3604, 2
        %v3908 = vrot.slane %v3651, 2
        %v3917 = vadd.f32 %v3892, %v3901
        %v3918 = vadd.f32 %v3893, %v3902
        %v3919 = vadd.f32 %v3894, %v3903
        %v3920 = vadd.f32 %v3895, %v3904
        %v3921 = vadd.f32 %v3896, %v3905
        %v3922 = vadd.f32 %v3897, %v3906
        %v3923 = vadd.f32 %v3898, %v3907
        %v3924 = vadd.f32 %v3899, %v3908
        %v3925 = vrot.slane %v3311, 5
        %v3926 = vrot.slane %v3360, 5
        %v3927 = vrot.slane %v3409, 5
        %v3928 = vrot.slane %v3458, 5
        %v3929 = vrot.slane %v3507, 5
        %v3930 = vrot.slane %v3556, 5
        %v3931 = vrot.slane %v3604, 5
        %v3932 = vrot.slane %v3651, 5
        %3933 = vrot.lane.b32.xlu0 %v3925, 127
        %v3934 = vpop.permute.xlu0 %3933
        %3935 = vrot.lane.b32.xlu0 %v3926, 127
        %v3936 = vpop.permute.xlu0 %3935
        %3937 = vrot.lane.b32.xlu0 %v3927, 127
        %v3938 = vpop.permute.xlu0 %3937
        %3939 = vrot.lane.b32.xlu0 %v3928, 127
        %v3940 = vpop.permute.xlu0 %3939
        %3941 = vrot.lane.b32.xlu0 %v3929, 127
        %v3942 = vpop.permute.xlu0 %3941
        %3943 = vrot.lane.b32.xlu0 %v3930, 127
        %v3944 = vpop.permute.xlu0 %3943
        %3945 = vrot.lane.b32.xlu0 %v3931, 127
        %v3946 = vpop.permute.xlu0 %3945
        %3947 = vrot.lane.b32.xlu0 %v3932, 127
        %v3948 = vpop.permute.xlu0 %3947
        %v3957 = vadd.f32 %v3917, %v3934
        %v3958 = vadd.f32 %v3918, %v3936
        %v3959 = vadd.f32 %v3919, %v3938
        %v3960 = vadd.f32 %v3920, %v3940
        %v3961 = vadd.f32 %v3921, %v3942
        %v3962 = vadd.f32 %v3922, %v3944
        %v3963 = vadd.f32 %v3923, %v3946
        %v3964 = vadd.f32 %v3924, %v3948
        %3973 = vrot.lane.b32.xlu0 %v3314, 126
        %v3974 = vpop.permute.xlu0 %3973
        %3975 = vrot.lane.b32.xlu0 %v3363, 126
        %v3976 = vpop.permute.xlu0 %3975
        %3977 = vrot.lane.b32.xlu0 %v3412, 126
        %v3978 = vpop.permute.xlu0 %3977
        %3979 = vrot.lane.b32.xlu0 %v3461, 126
        %v3980 = vpop.permute.xlu0 %3979
        %3981 = vrot.lane.b32.xlu0 %v3510, 126
        %v3982 = vpop.permute.xlu0 %3981
        %3983 = vrot.lane.b32.xlu0 %v3559, 126
        %v3984 = vpop.permute.xlu0 %3983
        %3985 = vrot.lane.b32.xlu0 %v3607, 126
        %v3986 = vpop.permute.xlu0 %3985
        %3987 = vrot.lane.b32.xlu0 %v3654, 126
        %v3988 = vpop.permute.xlu0 %3987
        %v3997 = vadd.f32 %v3957, %v3974
        %v3998 = vadd.f32 %v3958, %v3976
        %v3999 = vadd.f32 %v3959, %v3978
        %v4000 = vadd.f32 %v3960, %v3980
        %v4001 = vadd.f32 %v3961, %v3982
        %v4002 = vadd.f32 %v3962, %v3984
        %v4003 = vadd.f32 %v3963, %v3986
        %v4004 = vadd.f32 %v3964, %v3988
        %v4005 = vld [vmem:[#allocation19] sm:$0x7]
        %4007 = vset.pattern.permute.xlu0 0
        %4008 = vperm.xlu0 %4007, %v4005
        %v4009 = vpop.permute.xlu0 %4008
        %v4011 = vadd.f32 %v3997, %v4009
        %v4012 = vadd.f32 %v3998, %v4009
        %v4013 = vadd.f32 %v3999, %v4009
        %v4014 = vadd.f32 %v4000, %v4009
        %v4015 = vadd.f32 %v4001, %v4009
        %v4016 = vadd.f32 %v4002, %v4009
        %v4017 = vadd.f32 %v4003, %v4009
        %v4018 = vadd.f32 %v4004, %v4009
        %v4019 = vmax.f32 %v4011, 0.0
        %v4020 = vmax.f32 %v4012, 0.0
        %v4021 = vmax.f32 %v4013, 0.0
        %v4022 = vmax.f32 %v4014, 0.0
        %v4023 = vmax.f32 %v4015, 0.0
        %v4024 = vmax.f32 %v4016, 0.0
        %v4025 = vmax.f32 %v4017, 0.0
        %v4026 = vmax.f32 %v4018, 0.0
        %v4027 = vld [vmem:[%s552] sm:$0x7]
        %v4028 = vld [vmem:[%s552 + $0x4] sm:$0x7]
        %v4029 = vld [vmem:[%s552 + $0x8] sm:$0x7]
        %v4030 = vld [vmem:[%s552 + $0xc] sm:$0x7]
        %v4031 = vld [vmem:[%s552 + $0x10] sm:$0x7]
        %v4032 = vld [vmem:[%s552 + $0x14] sm:$0x7]
        %v4033 = vld [vmem:[%s552 + $0x18] sm:$0x7]
        %v4034 = vld [vmem:[%s552 + $0x1c] sm:$0x7]
        %v4035 = vadd.f32 %v4019, %v4027
        %v4036 = vadd.f32 %v4020, %v4028
        %v4037 = vadd.f32 %v4021, %v4029
        %v4038 = vadd.f32 %v4022, %v4030
        %v4039 = vadd.f32 %v4023, %v4031
        %v4040 = vadd.f32 %v4024, %v4032
        %v4041 = vadd.f32 %v4025, %v4033
        %v4042 = vadd.f32 %v4026, %v4034
        %vm4043 = vcmask 124928
        %4044 = vst.msk [vmem:[%s627] sm:$0x7] %vm4043, %v4035
        %4045 = vst.msk [vmem:[%s627 + $0x4] sm:$0x7] %vm4043, %v4036
        %4046 = vst.msk [vmem:[%s627 + $0x8] sm:$0x7] %vm4043, %v4037
        %4047 = vst.msk [vmem:[%s627 + $0xc] sm:$0x7] %vm4043, %v4038
        %4048 = vst.msk [vmem:[%s627 + $0x10] sm:$0x7] %vm4043, %v4039
        %4049 = vst.msk [vmem:[%s627 + $0x14] sm:$0x7] %vm4043, %v4040
        %4050 = vst.msk [vmem:[%s627 + $0x18] sm:$0x7] %vm4043, %v4041
        %4051 = vst.msk [vmem:[%s627 + $0x1c] sm:$0x7] %vm4043, %v4042
        %s4052 = sand.u32 %s308, 1
        %s4053 = scalar_lea.sflag [#allocation6], %s4052
        %s4054 = sand.u32 %s308, 1
        %s4055 = smul.addr %s4054, 32
        %s4056 = scalar_lea.vmem [#allocation21], %s4055
        // Predicated region
        $region109: #{enhancement_net.3} parent=59 // pred_check
          %p4057 = pneg %p318
        $region110: #{enhancement_net.3} parent=59 // pred_check_branch
          %4059 = sbr.rel (%p4057) target = $region112
        $region111: #{enhancement_net.3} parent=59 // pred_region
          %s4060 = smul.u32 8, %s41
          %s4062 = ssub.s32 512, 512
          %4063 = vsyncadd %s4053, %s4062
          %s4064 = smul.addr %s40, 16
          %s4065 = sadd.s32 %s4060, %s4064
          %s4066 = smul.addr %s4065, 64
          %s4067 = scalar_lea.hbm %s10, %s4066
          %s4068 = sshll.u32 %s4056, 4
          %s4069 = int_to_ptr.vmem [resolvable:$true] %s4068
          %4074 = dma.vmem_to_hbm [thread:$0]  %s4069, 512, %s4067, %s4053, 64, 64, 4
        $region112: #{enhancement_net.3} parent=59 // pred_fallthru
          _
      $region60: #{enhancement_net.3} parent=5 // pred_fallthru
        _
      %p4075 = scmp.le.s32.totalorder 2, %s31
      // Predicated region
      $region113: #{enhancement_net.3} parent=5 // pred_check
        %p4076 = pneg %p4075
      $region114: #{enhancement_net.3} parent=5 // pred_check_branch
        %4078 = sbr.rel (%p4076) target = $region116
      $region115: #{enhancement_net.3} parent=5 // pred_region
        %s4079 = ssub.s32 %s31, 2
        // Predicated region
        $region117: #{enhancement_net.3} parent=115 // pred_check
          %p4080 = pneg %p324
        $region118: #{enhancement_net.3} parent=115 // pred_check_branch
          %4082 = sbr.rel (%p4080) target = $region120
        $region119: #{enhancement_net.3} parent=115 // pred_region
          %s4083 = sand.u32 %s309, 1
          %s4084 = scalar_lea.sflag [#allocation6], %s4083
          %s4085 = sand.u32 %s309, 1
          %s4086 = smul.addr %s4085, 32
          %s4087 = scalar_lea.vmem [#allocation21], %s4086
          %4088 = dma.done %s4084, 512
        $region120: #{enhancement_net.3} parent=115 // pred_fallthru
          _
      $region116: #{enhancement_net.3} parent=5 // pred_fallthru
        _
    $region6: #{enhancement_net.3} parent=1 // loop_footer
      %s35 = sadd.s32 1, %s31
    $region7: #{enhancement_net.3} parent=1 // loop_footer_branch
      %30 = sbr.rel target = $region3
    $region8: #{enhancement_net.3} parent=1 // loop_exit
      _
    %4089 = vsyncpa [#allocation5], 1
    %s4090 = scalar_lea.sflag [#allocation5], 1
    %4091 = vsyncpa %s4090, 1
    %4092 = vsyncpa [#allocation8], 1
    %s4093 = scalar_lea.sflag [#allocation8], 1
    %4094 = vsyncpa %s4093, 1
    %4095 = vsyncpa [#allocation11], 1
    %s4096 = scalar_lea.sflag [#allocation11], 1
    %4097 = vsyncpa %s4096, 1
    %4098 = vsyncpa [#allocation14], 1
    %4099 = vsyncpa [#allocation17], 1
    %4100 = vsyncpa [#allocation20], 1
    %4101 = vsyncpa [#allocation6], 1
    %s4102 = scalar_lea.sflag [#allocation6], 1
    %4103 = vsyncpa %s4102, 1

</llo_original>
